<compile_context>
chip_gen: v6e
topology: v6e:2x2x1
jax: 0.10.0
libtpu: 0.0.40
codegen_flags: <defaults>
</compile_context>

<pallas_src>
import jax
import jax.numpy as jnp
from jax import lax
from jax.experimental import pallas as pl
from jax.experimental.pallas import tpu as pltpu


# --------------------------------------------------------------------------
# Pallas kernel: one batch element per grid step.
# --------------------------------------------------------------------------
def _optimized_block_kernel(xs_ref, w1_ref, b1_ref, w2p_ref, wscq_ref, bsum_ref,
                            out_ref, hs_ref):
    Hp = int(xs_ref.shape[2]) - 1
    Wp = int(xs_ref.shape[3]) - 1
    Cin = int(xs_ref.shape[4])
    Cmid = int(hs_ref.shape[3])
    Cout = int(out_ref.shape[2])
    f32 = jnp.float32

    def xtap(u, v):
        # xpad[2a+u, 2b+v, :] over all output positions (a, b): a unit-stride
        # slice of the pool-split input (no strided gathers).
        return xs_ref[0, 2 * (u % 2) + (v % 2),
                      u // 2:u // 2 + Hp, v // 2:v // 2 + Wp, :].reshape(Hp * Wp, Cin)

    # ---- conv1: 3x3 / pad 1 + bias + ReLU, one output-parity piece at a time ----
    # h_pq[a,b] = h[2a+p, 2b+q]; each of the 9 taps is a bf16 tap-matmul (K = Cin)
    # accumulated in f32 (review: skip lane-axis im2col concat at small channels).
    for p in range(2):
        for q in range(2):
            acc1 = jnp.zeros((Hp * Wp, Cmid), f32)
            for dy in range(3):
                for dx in range(3):
                    acc1 += jnp.dot(xtap(p + dy, q + dx), w1_ref[3 * dy + dx],
                                    preferred_element_type=f32)
            hpq = jnp.maximum(acc1 + b1_ref[...], 0.0).astype(jnp.bfloat16)

            # Stash into the pool-split, zero-haloed bf16 scratch:
            #   hs[2s+t][r, c, :] = hpad[2r+s, 2c+t, :],  hpad = pad(h, 1).
            # Piece (p, q) lands at parity (1-p, 1-q), offset (p, q); the single
            # unwritten border row/col per piece is hpad's zero halo -> zero it
            # every step (scratch persists across grid iterations / cores).
            st = 2 * (1 - p) + (1 - q)
            r0 = (1 - p) * Hp
            c0 = (1 - q) * Wp
            hs_ref[st, r0:r0 + 1, :, :] = jnp.zeros((1, Wp + 1, Cmid), jnp.bfloat16)
            hs_ref[st, :, c0:c0 + 1, :] = jnp.zeros((Hp + 1, 1, Cmid), jnp.bfloat16)
            hs_ref[st, p:p + Hp, q:q + Wp, :] = hpq.reshape(Hp, Wp, Cmid)

    # ---- conv2 (3x3 / pad 1) with AvgPool2d(2) folded in -----------------------
    # pooled[a,b] = sum_{u,v<4} hpad[2a+u, 2b+v] @ w2p[u,v]; every tap is a
    # unit-stride slice of the split scratch, accumulated in f32 (K-chunked by tap).
    acc = jnp.zeros((Hp * Wp, Cout), f32)
    for u in range(4):
        for v in range(4):
            tap = hs_ref[2 * (u % 2) + (v % 2),
                         u // 2:u // 2 + Hp, v // 2:v // 2 + Wp, :].reshape(Hp * Wp, Cmid)
            acc += jnp.dot(tap, w2p_ref[4 * u + v], preferred_element_type=f32)

    # ---- skip branch: AvgPool2d(2)(conv1x1(x)) == 4 taps of x @ (0.25*wsc) ------
    # x[2a+s, 2b+t] = xpad[2a+1+s, 2b+1+t]  ->  xtap(1+s, 1+t).
    for s in range(2):
        for t in range(2):
            acc += jnp.dot(xtap(1 + s, 1 + t), wscq_ref[...],
                           preferred_element_type=f32)

    # bsum = b2 + bsc (pooling preserves constants, biases add after the pool).
    # TODO(synk): for Cout << 128, repack to a lane-dense output slab in-kernel.
    out_ref[0] = (acc + bsum_ref[...]).astype(out_ref.dtype)


# --------------------------------------------------------------------------
# Wrapper (NCHW in / NCHW out, PyTorch OIHW weights already spectrally normed)
# --------------------------------------------------------------------------
def optimized_block(x_nchw, w1_oihw, b1, w2_oihw, b2, wsc_oihw, bsc):
    N, Cin, H, W = x_nchw.shape
    Cmid = w1_oihw.shape[0]
    Cout = w2_oihw.shape[0]
    assert H % 2 == 0 and W % 2 == 0
    Hp, Wp = H // 2, W // 2

    # ---- weight preparation (pure JAX glue) ----------------------------------
    w1_hwio = jnp.transpose(w1_oihw, (2, 3, 1, 0)).astype(jnp.float32)   # (3,3,Cin,Cmid)
    w2_hwio = jnp.transpose(w2_oihw, (2, 3, 1, 0)).astype(jnp.float32)   # (3,3,Cmid,Cout)
    wsc_io = jnp.transpose(wsc_oihw, (2, 3, 1, 0))[0, 0].astype(jnp.float32)  # (Cin,Cout)

    # Fold AvgPool2d(2) into conv2: 4x4 "pooled" kernel for a stride-2 conv.
    # w2p[u, v] = 0.25 * sum_{a,b in {0,1}} w2[u - a, v - b]  (valid taps only)
    w2p = jnp.zeros((4, 4, Cmid, Cout), jnp.float32)
    for a in (0, 1):
        for b in (0, 1):
            w2p = w2p.at[a:a + 3, b:b + 3].add(0.25 * w2_hwio)

    w1k = w1_hwio.reshape(9, Cin, Cmid).astype(jnp.bfloat16)     # per-tap (Cin,Cmid)
    w2pk = w2p.reshape(16, Cmid, Cout).astype(jnp.bfloat16)      # per-tap (Cmid,Cout)
    wscq = (0.25 * wsc_io).astype(jnp.bfloat16)                  # pool mean folded in
    b1r = b1.reshape(1, Cmid).astype(jnp.float32)
    bsum = (b2 + bsc).reshape(1, Cout).astype(jnp.float32)

    # Input prep: NCHW -> NHWC, 1px zero halo, pool-split layout, bf16 DMA.
    #   xs[n, 2*s+t, r, c, :] = xpad[n, 2r+s, 2c+t, :]
    # so every 3x3-conv / 2x2-pool tap inside the kernel is a unit-stride slice.
    # TODO(synk): if the surrounding model runs NHWC, drop the NCHW<->NHWC transposes.
    x_nhwc = jnp.transpose(x_nchw, (0, 2, 3, 1))
    xpad = jnp.pad(x_nhwc, ((0, 0), (1, 1), (1, 1), (0, 0)))
    xs = xpad.reshape(N, Hp + 1, 2, Wp + 1, 2, Cin)
    xs = jnp.transpose(xs, (0, 2, 4, 1, 3, 5)).reshape(N, 4, Hp + 1, Wp + 1, Cin)
    xs = xs.astype(jnp.bfloat16)

    # Explicit VMEM budget (double-buffered blocks + scratch + headroom), clamped
    # to stay valid on v7x (64 MiB physical) while never shrinking the default.
    blk_bytes = (4 * (Hp + 1) * (Wp + 1) * Cin * 2
                 + (9 * Cin * Cmid + 16 * Cmid * Cout + Cin * Cout) * 2
                 + (Cmid + Cout) * 4 + Hp * Wp * Cout * 4)
    scr_bytes = 4 * (Hp + 1) * (Wp + 1) * Cmid * 2
    vmem_limit = int(min(64 << 20, max(32 << 20, 2 * blk_bytes + scr_bytes + (8 << 20))))

    out3 = pl.pallas_call(
        _optimized_block_kernel,
        out_shape=jax.ShapeDtypeStruct((N, Hp * Wp, Cout), x_nchw.dtype),
        grid_spec=pltpu.PrefetchScalarGridSpec(
            num_scalar_prefetch=0,
            grid=(N,),   # one image per step; >=2 steps can split across TCs
            in_specs=[
                pl.BlockSpec((1, 4, Hp + 1, Wp + 1, Cin), lambda n: (n, 0, 0, 0, 0)),
                pl.BlockSpec((9, Cin, Cmid), lambda n: (0, 0, 0)),
                pl.BlockSpec((1, Cmid), lambda n: (0, 0)),
                pl.BlockSpec((16, Cmid, Cout), lambda n: (0, 0, 0)),
                pl.BlockSpec((Cin, Cout), lambda n: (0, 0)),
                pl.BlockSpec((1, Cout), lambda n: (0, 0)),
            ],
            out_specs=pl.BlockSpec((1, Hp * Wp, Cout), lambda n: (n, 0, 0)),
            scratch_shapes=[pltpu.VMEM((4, Hp + 1, Wp + 1, Cmid), jnp.bfloat16)],
        ),
        compiler_params=pltpu.CompilerParams(
            dimension_semantics=("parallel",),
            vmem_limit_bytes=vmem_limit),
    )(xs, w1k, b1r, w2pk, wscq, bsum)

    out = out3.reshape(N, Hp, Wp, Cout)
    return jnp.transpose(out, (0, 3, 1, 2))   # back to NCHW


# --------------------------------------------------------------------------
# Parameter setup (deterministic) + spectral normalization (glue) + reference
# --------------------------------------------------------------------------
def spectral_normalize(w_oihw, n_iter=50):
    """Divide weight by its spectral norm (power iteration, deterministic start)."""
    cout = w_oihw.shape[0]
    mat = w_oihw.reshape(cout, -1).astype(jnp.float32)
    u = jnp.ones((cout,), jnp.float32)
    v = jnp.ones((mat.shape[1],), jnp.float32)
    for _ in range(n_iter):
        v = mat.T @ u
        v = v / (jnp.linalg.norm(v) + 1e-12)
        u = mat @ v
        u = u / (jnp.linalg.norm(u) + 1e-12)
    sigma = u @ (mat @ v)
    return w_oihw / sigma


def reference_forward(x_nchw, w1, b1, w2, b2, wsc, bsc):
    """Pure-JAX NCHW reference (lax.conv) for correctness checking."""
    def conv(x, w, b, pad):
        y = lax.conv_general_dilated(
            x, w, window_strides=(1, 1),
            padding=[(pad, pad), (pad, pad)],
            dimension_numbers=('NCHW', 'OIHW', 'NCHW'))
        return y + b.reshape(1, -1, 1, 1)

    def avgpool2(x):
        N, C, H, W = x.shape
        return x.reshape(N, C, H // 2, 2, W // 2, 2).mean(axis=(3, 5))

    h = jnp.maximum(conv(x_nchw, w1, b1, 1), 0.0)
    main = avgpool2(conv(h, w2, b2, 1))
    skip = avgpool2(conv(x_nchw, wsc, bsc, 0))
    return main + skip


if __name__ == "__main__":
    N, Cin, Cout, H, W = 2, 4, 8, 16, 16

    key = jax.random.PRNGKey(0)
    k_x, k_w1, k_b1, k_w2, k_b2, k_ws, k_bs = jax.random.split(key, 7)

    x = jax.random.normal(k_x, (N, Cin, H, W), jnp.float32)

    # PyTorch-layout (OIHW) raw weights, then spectral-normalize (SNConv2d).
    w1_raw = jax.random.normal(k_w1, (Cout, Cin, 3, 3), jnp.float32) * 0.2
    w2_raw = jax.random.normal(k_w2, (Cout, Cout, 3, 3), jnp.float32) * 0.2
    ws_raw = jax.random.normal(k_ws, (Cout, Cin, 1, 1), jnp.float32) * 0.2
    b1 = jax.random.normal(k_b1, (Cout,), jnp.float32) * 0.1
    b2 = jax.random.normal(k_b2, (Cout,), jnp.float32) * 0.1
    bs = jax.random.normal(k_bs, (Cout,), jnp.float32) * 0.1

    w1_sn = spectral_normalize(w1_raw)
    w2_sn = spectral_normalize(w2_raw)
    ws_sn = spectral_normalize(ws_raw)

    out = optimized_block(x, w1_sn, b1, w2_sn, b2, ws_sn, bs)
    out = jax.block_until_ready(out)

    ref = reference_forward(x, w1_sn, b1, w2_sn, b2, ws_sn, bs)
    ref = jax.block_until_ready(ref)

    assert out.shape == (N, Cout, H // 2, W // 2), out.shape
    # bf16 MXU operands (f32 accumulation) => looser tolerance than pure f32.
    if not jnp.allclose(out, ref, rtol=5e-2, atol=5e-2):
        raise AssertionError(f"mismatch: max abs err = {jnp.max(jnp.abs(out - ref))}")

    print("KERNEL_OK")
</pallas_src>

<mosaic_0001>
module attributes {stable_mosaic.version = 11 : i64} {
  func.func @_optimized_block_kernel(%arg0: i32, %arg1: memref<1x4x9x9x4xbf16, #tpu.memory_space<vmem>>, %arg2: memref<9x4x8xbf16, #tpu.memory_space<vmem>>, %arg3: memref<1x8xf32, #tpu.memory_space<vmem>>, %arg4: memref<16x8x8xbf16, #tpu.memory_space<vmem>>, %arg5: memref<4x8xbf16, #tpu.memory_space<vmem>>, %arg6: memref<1x8xf32, #tpu.memory_space<vmem>>, %arg7: memref<1x64x8xf32, #tpu.memory_space<vmem>>, %arg8: memref<4x9x9x8xbf16, #tpu.memory_space<vmem>>) attributes {dimension_semantics = [#tpu.dimension_semantics<parallel>], iteration_bounds = array<i64: 2>, scalar_prefetch = 0 : i64, scratch_operands = 1 : i64, tpu.core_type = #tpu.core_type<tc>, window_params = [{transform_indices = @transform_0, window_bounds = array<i64: 1, 4, 9, 9, 4>}, {pipeline_mode = #tpu.pipeline_mode<synchronous>, transform_indices = @transform_1, window_bounds = array<i64: 9, 4, 8>}, {pipeline_mode = #tpu.pipeline_mode<synchronous>, transform_indices = @transform_2, window_bounds = array<i64: 1, 8>}, {pipeline_mode = #tpu.pipeline_mode<synchronous>, transform_indices = @transform_3, window_bounds = array<i64: 16, 8, 8>}, {pipeline_mode = #tpu.pipeline_mode<synchronous>, transform_indices = @transform_4, window_bounds = array<i64: 4, 8>}, {pipeline_mode = #tpu.pipeline_mode<synchronous>, transform_indices = @transform_5, window_bounds = array<i64: 1, 8>}, {transform_indices = @transform_6, window_bounds = array<i64: 1, 64, 8>}]} {
    %cst = arith.constant 0.000000e+00 : f32
    %0 = vector.broadcast %cst : f32 to vector<64x8xf32>
    %c0 = arith.constant 0 : index
    %c0_0 = arith.constant 0 : index
    %c0_1 = arith.constant 0 : index
    %c0_2 = arith.constant 0 : index
    %c0_3 = arith.constant 0 : index
    %1 = vector.load %arg1[%c0, %c0_0, %c0_1, %c0_2, %c0_3] : memref<1x4x9x9x4xbf16, #tpu.memory_space<vmem>>, vector<1x1x8x8x4xbf16>
    %2 = vector.shape_cast %1 : vector<1x1x8x8x4xbf16> to vector<8x8x4xbf16>
    %3 = vector.shape_cast %2 : vector<8x8x4xbf16> to vector<64x4xbf16>
    %c0_4 = arith.constant 0 : index
    %c0_5 = arith.constant 0 : index
    %c0_6 = arith.constant 0 : index
    %4 = vector.load %arg2[%c0_4, %c0_5, %c0_6] : memref<9x4x8xbf16, #tpu.memory_space<vmem>>, vector<1x4x8xbf16>
    %5 = vector.shape_cast %4 : vector<1x4x8xbf16> to vector<4x8xbf16>
    %cst_7 = arith.constant dense<0.000000e+00> : vector<64x8xf32>
    %6 = tpu.matmul %3, %5, %cst_7 {dimension_numbers = #tpu.dot_dimension_numbers<[1], [0], [0], [1], [0, 0, 1, 1], [], []>} : vector<64x4xbf16>, vector<4x8xbf16>, vector<64x8xf32> -> vector<64x8xf32>
    %7 = arith.addf %0, %6 : vector<64x8xf32>
    %c0_8 = arith.constant 0 : index
    %c1 = arith.constant 1 : index
    %c0_9 = arith.constant 0 : index
    %c0_10 = arith.constant 0 : index
    %c0_11 = arith.constant 0 : index
    %8 = vector.load %arg1[%c0_8, %c1, %c0_9, %c0_10, %c0_11] : memref<1x4x9x9x4xbf16, #tpu.memory_space<vmem>>, vector<1x1x8x8x4xbf16>
    %9 = vector.shape_cast %8 : vector<1x1x8x8x4xbf16> to vector<8x8x4xbf16>
    %10 = vector.shape_cast %9 : vector<8x8x4xbf16> to vector<64x4xbf16>
    %c1_12 = arith.constant 1 : index
    %c0_13 = arith.constant 0 : index
    %c0_14 = arith.constant 0 : index
    %11 = vector.load %arg2[%c1_12, %c0_13, %c0_14] : memref<9x4x8xbf16, #tpu.memory_space<vmem>>, vector<1x4x8xbf16>
    %12 = vector.shape_cast %11 : vector<1x4x8xbf16> to vector<4x8xbf16>
    %cst_15 = arith.constant dense<0.000000e+00> : vector<64x8xf32>
    %13 = tpu.matmul %10, %12, %cst_15 {dimension_numbers = #tpu.dot_dimension_numbers<[1], [0], [0], [1], [0, 0, 1, 1], [], []>} : vector<64x4xbf16>, vector<4x8xbf16>, vector<64x8xf32> -> vector<64x8xf32>
    %14 = arith.addf %7, %13 : vector<64x8xf32>
    %c0_16 = arith.constant 0 : index
    %c0_17 = arith.constant 0 : index
    %c0_18 = arith.constant 0 : index
    %c1_19 = arith.constant 1 : index
    %c0_20 = arith.constant 0 : index
    %15 = vector.load %arg1[%c0_16, %c0_17, %c0_18, %c1_19, %c0_20] : memref<1x4x9x9x4xbf16, #tpu.memory_space<vmem>>, vector<1x1x8x8x4xbf16>
    %16 = vector.shape_cast %15 : vector<1x1x8x8x4xbf16> to vector<8x8x4xbf16>
    %17 = vector.shape_cast %16 : vector<8x8x4xbf16> to vector<64x4xbf16>
    %c2 = arith.constant 2 : index
    %c0_21 = arith.constant 0 : index
    %c0_22 = arith.constant 0 : index
    %18 = vector.load %arg2[%c2, %c0_21, %c0_22] : memref<9x4x8xbf16, #tpu.memory_space<vmem>>, vector<1x4x8xbf16>
    %19 = vector.shape_cast %18 : vector<1x4x8xbf16> to vector<4x8xbf16>
    %cst_23 = arith.constant dense<0.000000e+00> : vector<64x8xf32>
    %20 = tpu.matmul %17, %19, %cst_23 {dimension_numbers = #tpu.dot_dimension_numbers<[1], [0], [0], [1], [0, 0, 1, 1], [], []>} : vector<64x4xbf16>, vector<4x8xbf16>, vector<64x8xf32> -> vector<64x8xf32>
    %21 = arith.addf %14, %20 : vector<64x8xf32>
    %c0_24 = arith.constant 0 : index
    %c2_25 = arith.constant 2 : index
    %c0_26 = arith.constant 0 : index
    %c0_27 = arith.constant 0 : index
    %c0_28 = arith.constant 0 : index
    %22 = vector.load %arg1[%c0_24, %c2_25, %c0_26, %c0_27, %c0_28] : memref<1x4x9x9x4xbf16, #tpu.memory_space<vmem>>, vector<1x1x8x8x4xbf16>
    %23 = vector.shape_cast %22 : vector<1x1x8x8x4xbf16> to vector<8x8x4xbf16>
    %24 = vector.shape_cast %23 : vector<8x8x4xbf16> to vector<64x4xbf16>
    %c3 = arith.constant 3 : index
    %c0_29 = arith.constant 0 : index
    %c0_30 = arith.constant 0 : index
    %25 = vector.load %arg2[%c3, %c0_29, %c0_30] : memref<9x4x8xbf16, #tpu.memory_space<vmem>>, vector<1x4x8xbf16>
    %26 = vector.shape_cast %25 : vector<1x4x8xbf16> to vector<4x8xbf16>
    %cst_31 = arith.constant dense<0.000000e+00> : vector<64x8xf32>
    %27 = tpu.matmul %24, %26, %cst_31 {dimension_numbers = #tpu.dot_dimension_numbers<[1], [0], [0], [1], [0, 0, 1, 1], [], []>} : vector<64x4xbf16>, vector<4x8xbf16>, vector<64x8xf32> -> vector<64x8xf32>
    %28 = arith.addf %21, %27 : vector<64x8xf32>
    %c0_32 = arith.constant 0 : index
    %c3_33 = arith.constant 3 : index
    %c0_34 = arith.constant 0 : index
    %c0_35 = arith.constant 0 : index
    %c0_36 = arith.constant 0 : index
    %29 = vector.load %arg1[%c0_32, %c3_33, %c0_34, %c0_35, %c0_36] : memref<1x4x9x9x4xbf16, #tpu.memory_space<vmem>>, vector<1x1x8x8x4xbf16>
    %30 = vector.shape_cast %29 : vector<1x1x8x8x4xbf16> to vector<8x8x4xbf16>
    %31 = vector.shape_cast %30 : vector<8x8x4xbf16> to vector<64x4xbf16>
    %c4 = arith.constant 4 : index
    %c0_37 = arith.constant 0 : index
    %c0_38 = arith.constant 0 : index
    %32 = vector.load %arg2[%c4, %c0_37, %c0_38] : memref<9x4x8xbf16, #tpu.memory_space<vmem>>, vector<1x4x8xbf16>
    %33 = vector.shape_cast %32 : vector<1x4x8xbf16> to vector<4x8xbf16>
    %cst_39 = arith.constant dense<0.000000e+00> : vector<64x8xf32>
    %34 = tpu.matmul %31, %33, %cst_39 {dimension_numbers = #tpu.dot_dimension_numbers<[1], [0], [0], [1], [0, 0, 1, 1], [], []>} : vector<64x4xbf16>, vector<4x8xbf16>, vector<64x8xf32> -> vector<64x8xf32>
    %35 = arith.addf %28, %34 : vector<64x8xf32>
    %c0_40 = arith.constant 0 : index
    %c2_41 = arith.constant 2 : index
    %c0_42 = arith.constant 0 : index
    %c1_43 = arith.constant 1 : index
    %c0_44 = arith.constant 0 : index
    %36 = vector.load %arg1[%c0_40, %c2_41, %c0_42, %c1_43, %c0_44] : memref<1x4x9x9x4xbf16, #tpu.memory_space<vmem>>, vector<1x1x8x8x4xbf16>
    %37 = vector.shape_cast %36 : vector<1x1x8x8x4xbf16> to vector<8x8x4xbf16>
    %38 = vector.shape_cast %37 : vector<8x8x4xbf16> to vector<64x4xbf16>
    %c5 = arith.constant 5 : index
    %c0_45 = arith.constant 0 : index
    %c0_46 = arith.constant 0 : index
    %39 = vector.load %arg2[%c5, %c0_45, %c0_46] : memref<9x4x8xbf16, #tpu.memory_space<vmem>>, vector<1x4x8xbf16>
    %40 = vector.shape_cast %39 : vector<1x4x8xbf16> to vector<4x8xbf16>
    %cst_47 = arith.constant dense<0.000000e+00> : vector<64x8xf32>
    %41 = tpu.matmul %38, %40, %cst_47 {dimension_numbers = #tpu.dot_dimension_numbers<[1], [0], [0], [1], [0, 0, 1, 1], [], []>} : vector<64x4xbf16>, vector<4x8xbf16>, vector<64x8xf32> -> vector<64x8xf32>
    %42 = arith.addf %35, %41 : vector<64x8xf32>
    %c0_48 = arith.constant 0 : index
    %c0_49 = arith.constant 0 : index
    %c1_50 = arith.constant 1 : index
    %c0_51 = arith.constant 0 : index
    %c0_52 = arith.constant 0 : index
    %43 = vector.load %arg1[%c0_48, %c0_49, %c1_50, %c0_51, %c0_52] : memref<1x4x9x9x4xbf16, #tpu.memory_space<vmem>>, vector<1x1x8x8x4xbf16>
    %44 = vector.shape_cast %43 : vector<1x1x8x8x4xbf16> to vector<8x8x4xbf16>
    %45 = vector.shape_cast %44 : vector<8x8x4xbf16> to vector<64x4xbf16>
    %c6 = arith.constant 6 : index
    %c0_53 = arith.constant 0 : index
    %c0_54 = arith.constant 0 : index
    %46 = vector.load %arg2[%c6, %c0_53, %c0_54] : memref<9x4x8xbf16, #tpu.memory_space<vmem>>, vector<1x4x8xbf16>
    %47 = vector.shape_cast %46 : vector<1x4x8xbf16> to vector<4x8xbf16>
    %cst_55 = arith.constant dense<0.000000e+00> : vector<64x8xf32>
    %48 = tpu.matmul %45, %47, %cst_55 {dimension_numbers = #tpu.dot_dimension_numbers<[1], [0], [0], [1], [0, 0, 1, 1], [], []>} : vector<64x4xbf16>, vector<4x8xbf16>, vector<64x8xf32> -> vector<64x8xf32>
    %49 = arith.addf %42, %48 : vector<64x8xf32>
    %c0_56 = arith.constant 0 : index
    %c1_57 = arith.constant 1 : index
    %c1_58 = arith.constant 1 : index
    %c0_59 = arith.constant 0 : index
    %c0_60 = arith.constant 0 : index
    %50 = vector.load %arg1[%c0_56, %c1_57, %c1_58, %c0_59, %c0_60] : memref<1x4x9x9x4xbf16, #tpu.memory_space<vmem>>, vector<1x1x8x8x4xbf16>
    %51 = vector.shape_cast %50 : vector<1x1x8x8x4xbf16> to vector<8x8x4xbf16>
    %52 = vector.shape_cast %51 : vector<8x8x4xbf16> to vector<64x4xbf16>
    %c7 = arith.constant 7 : index
    %c0_61 = arith.constant 0 : index
    %c0_62 = arith.constant 0 : index
    %53 = vector.load %arg2[%c7, %c0_61, %c0_62] : memref<9x4x8xbf16, #tpu.memory_space<vmem>>, vector<1x4x8xbf16>
    %54 = vector.shape_cast %53 : vector<1x4x8xbf16> to vector<4x8xbf16>
    %cst_63 = arith.constant dense<0.000000e+00> : vector<64x8xf32>
    %55 = tpu.matmul %52, %54, %cst_63 {dimension_numbers = #tpu.dot_dimension_numbers<[1], [0], [0], [1], [0, 0, 1, 1], [], []>} : vector<64x4xbf16>, vector<4x8xbf16>, vector<64x8xf32> -> vector<64x8xf32>
    %56 = arith.addf %49, %55 : vector<64x8xf32>
    %c0_64 = arith.constant 0 : index
    %c0_65 = arith.constant 0 : index
    %c1_66 = arith.constant 1 : index
    %c1_67 = arith.constant 1 : index
    %c0_68 = arith.constant 0 : index
    %57 = vector.load %arg1[%c0_64, %c0_65, %c1_66, %c1_67, %c0_68] : memref<1x4x9x9x4xbf16, #tpu.memory_space<vmem>>, vector<1x1x8x8x4xbf16>
    %58 = vector.shape_cast %57 : vector<1x1x8x8x4xbf16> to vector<8x8x4xbf16>
    %59 = vector.shape_cast %58 : vector<8x8x4xbf16> to vector<64x4xbf16>
    %c8 = arith.constant 8 : index
    %c0_69 = arith.constant 0 : index
    %c0_70 = arith.constant 0 : index
    %60 = vector.load %arg2[%c8, %c0_69, %c0_70] : memref<9x4x8xbf16, #tpu.memory_space<vmem>>, vector<1x4x8xbf16>
    %61 = vector.shape_cast %60 : vector<1x4x8xbf16> to vector<4x8xbf16>
    %cst_71 = arith.constant dense<0.000000e+00> : vector<64x8xf32>
    %62 = tpu.matmul %59, %61, %cst_71 {dimension_numbers = #tpu.dot_dimension_numbers<[1], [0], [0], [1], [0, 0, 1, 1], [], []>} : vector<64x4xbf16>, vector<4x8xbf16>, vector<64x8xf32> -> vector<64x8xf32>
    %63 = arith.addf %56, %62 : vector<64x8xf32>
    %c0_72 = arith.constant 0 : index
    %c0_73 = arith.constant 0 : index
    %64 = vector.load %arg3[%c0_72, %c0_73] : memref<1x8xf32, #tpu.memory_space<vmem>>, vector<1x8xf32>
    %65 = vector.broadcast %64 : vector<1x8xf32> to vector<64x8xf32>
    %66 = arith.addf %63, %65 : vector<64x8xf32>
    %cst_74 = arith.constant 0.000000e+00 : f32
    %67 = vector.broadcast %cst_74 : f32 to vector<64x8xf32>
    %68 = arith.maximumf %66, %67 : vector<64x8xf32>
    %69 = arith.truncf %68 : vector<64x8xf32> to vector<64x8xbf16>
    %cst_75 = arith.constant 0.000000e+00 : bf16
    %70 = vector.broadcast %cst_75 : bf16 to vector<1x9x8xbf16>
    %c3_76 = arith.constant 3 : index
    %c8_77 = arith.constant 8 : index
    %c0_78 = arith.constant 0 : index
    %c0_79 = arith.constant 0 : index
    %71 = vector.load %arg8[%c3_76, %c8_77, %c0_78, %c0_79] : memref<4x9x9x8xbf16, #tpu.memory_space<vmem>>, vector<1x1x9x8xbf16>
    %72 = vector.shape_cast %71 : vector<1x1x9x8xbf16> to vector<1x9x8xbf16>
    %73 = vector.shape_cast %70 : vector<1x9x8xbf16> to vector<1x1x9x8xbf16>
    tpu.vector_store %arg8[%c3_76, %c8_77, %c0_78, %c0_79], %73 {strides = array<i32>} : memref<4x9x9x8xbf16, #tpu.memory_space<vmem>>, vector<1x1x9x8xbf16>,
    %cst_80 = arith.constant 0.000000e+00 : bf16
    %74 = vector.broadcast %cst_80 : bf16 to vector<9x1x8xbf16>
    %c3_81 = arith.constant 3 : index
    %c0_82 = arith.constant 0 : index
    %c8_83 = arith.constant 8 : index
    %c0_84 = arith.constant 0 : index
    %75 = vector.load %arg8[%c3_81, %c0_82, %c8_83, %c0_84] : memref<4x9x9x8xbf16, #tpu.memory_space<vmem>>, vector<1x9x1x8xbf16>
    %76 = vector.shape_cast %75 : vector<1x9x1x8xbf16> to vector<9x1x8xbf16>
    %77 = vector.shape_cast %74 : vector<9x1x8xbf16> to vector<1x9x1x8xbf16>
    tpu.vector_store %arg8[%c3_81, %c0_82, %c8_83, %c0_84], %77 {strides = array<i32>} : memref<4x9x9x8xbf16, #tpu.memory_space<vmem>>, vector<1x9x1x8xbf16>,
    %78 = vector.shape_cast %69 : vector<64x8xbf16> to vector<8x8x8xbf16>
    %c3_85 = arith.constant 3 : index
    %c0_86 = arith.constant 0 : index
    %c0_87 = arith.constant 0 : index
    %c0_88 = arith.constant 0 : index
    %79 = vector.load %arg8[%c3_85, %c0_86, %c0_87, %c0_88] : memref<4x9x9x8xbf16, #tpu.memory_space<vmem>>, vector<1x8x8x8xbf16>
    %80 = vector.shape_cast %79 : vector<1x8x8x8xbf16> to vector<8x8x8xbf16>
    %81 = vector.shape_cast %78 : vector<8x8x8xbf16> to vector<1x8x8x8xbf16>
    tpu.vector_store %arg8[%c3_85, %c0_86, %c0_87, %c0_88], %81 {strides = array<i32>} : memref<4x9x9x8xbf16, #tpu.memory_space<vmem>>, vector<1x8x8x8xbf16>,
    %cst_89 = arith.constant 0.000000e+00 : f32
    %82 = vector.broadcast %cst_89 : f32 to vector<64x8xf32>
    %c0_90 = arith.constant 0 : index
    %c1_91 = arith.constant 1 : index
    %c0_92 = arith.constant 0 : index
    %c0_93 = arith.constant 0 : index
    %c0_94 = arith.constant 0 : index
    %83 = vector.load %arg1[%c0_90, %c1_91, %c0_92, %c0_93, %c0_94] : memref<1x4x9x9x4xbf16, #tpu.memory_space<vmem>>, vector<1x1x8x8x4xbf16>
    %84 = vector.shape_cast %83 : vector<1x1x8x8x4xbf16> to vector<8x8x4xbf16>
    %85 = vector.shape_cast %84 : vector<8x8x4xbf16> to vector<64x4xbf16>
    %c0_95 = arith.constant 0 : index
    %c0_96 = arith.constant 0 : index
    %c0_97 = arith.constant 0 : index
    %86 = vector.load %arg2[%c0_95, %c0_96, %c0_97] : memref<9x4x8xbf16, #tpu.memory_space<vmem>>, vector<1x4x8xbf16>
    %87 = vector.shape_cast %86 : vector<1x4x8xbf16> to vector<4x8xbf16>
    %cst_98 = arith.constant dense<0.000000e+00> : vector<64x8xf32>
    %88 = tpu.matmul %85, %87, %cst_98 {dimension_numbers = #tpu.dot_dimension_numbers<[1], [0], [0], [1], [0, 0, 1, 1], [], []>} : vector<64x4xbf16>, vector<4x8xbf16>, vector<64x8xf32> -> vector<64x8xf32>
    %89 = arith.addf %82, %88 : vector<64x8xf32>
    %c0_99 = arith.constant 0 : index
    %c0_100 = arith.constant 0 : index
    %c0_101 = arith.constant 0 : index
    %c1_102 = arith.constant 1 : index
    %c0_103 = arith.constant 0 : index
    %90 = vector.load %arg1[%c0_99, %c0_100, %c0_101, %c1_102, %c0_103] : memref<1x4x9x9x4xbf16, #tpu.memory_space<vmem>>, vector<1x1x8x8x4xbf16>
    %91 = vector.shape_cast %90 : vector<1x1x8x8x4xbf16> to vector<8x8x4xbf16>
    %92 = vector.shape_cast %91 : vector<8x8x4xbf16> to vector<64x4xbf16>
    %c1_104 = arith.constant 1 : index
    %c0_105 = arith.constant 0 : index
    %c0_106 = arith.constant 0 : index
    %93 = vector.load %arg2[%c1_104, %c0_105, %c0_106] : memref<9x4x8xbf16, #tpu.memory_space<vmem>>, vector<1x4x8xbf16>
    %94 = vector.shape_cast %93 : vector<1x4x8xbf16> to vector<4x8xbf16>
    %cst_107 = arith.constant dense<0.000000e+00> : vector<64x8xf32>
    %95 = tpu.matmul %92, %94, %cst_107 {dimension_numbers = #tpu.dot_dimension_numbers<[1], [0], [0], [1], [0, 0, 1, 1], [], []>} : vector<64x4xbf16>, vector<4x8xbf16>, vector<64x8xf32> -> vector<64x8xf32>
    %96 = arith.addf %89, %95 : vector<64x8xf32>
    %c0_108 = arith.constant 0 : index
    %c1_109 = arith.constant 1 : index
    %c0_110 = arith.constant 0 : index
    %c1_111 = arith.constant 1 : index
    %c0_112 = arith.constant 0 : index
    %97 = vector.load %arg1[%c0_108, %c1_109, %c0_110, %c1_111, %c0_112] : memref<1x4x9x9x4xbf16, #tpu.memory_space<vmem>>, vector<1x1x8x8x4xbf16>
    %98 = vector.shape_cast %97 : vector<1x1x8x8x4xbf16> to vector<8x8x4xbf16>
    %99 = vector.shape_cast %98 : vector<8x8x4xbf16> to vector<64x4xbf16>
    %c2_113 = arith.constant 2 : index
    %c0_114 = arith.constant 0 : index
    %c0_115 = arith.constant 0 : index
    %100 = vector.load %arg2[%c2_113, %c0_114, %c0_115] : memref<9x4x8xbf16, #tpu.memory_space<vmem>>, vector<1x4x8xbf16>
    %101 = vector.shape_cast %100 : vector<1x4x8xbf16> to vector<4x8xbf16>
    %cst_116 = arith.constant dense<0.000000e+00> : vector<64x8xf32>
    %102 = tpu.matmul %99, %101, %cst_116 {dimension_numbers = #tpu.dot_dimension_numbers<[1], [0], [0], [1], [0, 0, 1, 1], [], []>} : vector<64x4xbf16>, vector<4x8xbf16>, vector<64x8xf32> -> vector<64x8xf32>
    %103 = arith.addf %96, %102 : vector<64x8xf32>
    %c0_117 = arith.constant 0 : index
    %c3_118 = arith.constant 3 : index
    %c0_119 = arith.constant 0 : index
    %c0_120 = arith.constant 0 : index
    %c0_121 = arith.constant 0 : index
    %104 = vector.load %arg1[%c0_117, %c3_118, %c0_119, %c0_120, %c0_121] : memref<1x4x9x9x4xbf16, #tpu.memory_space<vmem>>, vector<1x1x8x8x4xbf16>
    %105 = vector.shape_cast %104 : vector<1x1x8x8x4xbf16> to vector<8x8x4xbf16>
    %106 = vector.shape_cast %105 : vector<8x8x4xbf16> to vector<64x4xbf16>
    %c3_122 = arith.constant 3 : index
    %c0_123 = arith.constant 0 : index
    %c0_124 = arith.constant 0 : index
    %107 = vector.load %arg2[%c3_122, %c0_123, %c0_124] : memref<9x4x8xbf16, #tpu.memory_space<vmem>>, vector<1x4x8xbf16>
    %108 = vector.shape_cast %107 : vector<1x4x8xbf16> to vector<4x8xbf16>
    %cst_125 = arith.constant dense<0.000000e+00> : vector<64x8xf32>
    %109 = tpu.matmul %106, %108, %cst_125 {dimension_numbers = #tpu.dot_dimension_numbers<[1], [0], [0], [1], [0, 0, 1, 1], [], []>} : vector<64x4xbf16>, vector<4x8xbf16>, vector<64x8xf32> -> vector<64x8xf32>
    %110 = arith.addf %103, %109 : vector<64x8xf32>
    %c0_126 = arith.constant 0 : index
    %c2_127 = arith.constant 2 : index
    %c0_128 = arith.constant 0 : index
    %c1_129 = arith.constant 1 : index
    %c0_130 = arith.constant 0 : index
    %111 = vector.load %arg1[%c0_126, %c2_127, %c0_128, %c1_129, %c0_130] : memref<1x4x9x9x4xbf16, #tpu.memory_space<vmem>>, vector<1x1x8x8x4xbf16>
    %112 = vector.shape_cast %111 : vector<1x1x8x8x4xbf16> to vector<8x8x4xbf16>
    %113 = vector.shape_cast %112 : vector<8x8x4xbf16> to vector<64x4xbf16>
    %c4_131 = arith.constant 4 : index
    %c0_132 = arith.constant 0 : index
    %c0_133 = arith.constant 0 : index
    %114 = vector.load %arg2[%c4_131, %c0_132, %c0_133] : memref<9x4x8xbf16, #tpu.memory_space<vmem>>, vector<1x4x8xbf16>
    %115 = vector.shape_cast %114 : vector<1x4x8xbf16> to vector<4x8xbf16>
    %cst_134 = arith.constant dense<0.000000e+00> : vector<64x8xf32>
    %116 = tpu.matmul %113, %115, %cst_134 {dimension_numbers = #tpu.dot_dimension_numbers<[1], [0], [0], [1], [0, 0, 1, 1], [], []>} : vector<64x4xbf16>, vector<4x8xbf16>, vector<64x8xf32> -> vector<64x8xf32>
    %117 = arith.addf %110, %116 : vector<64x8xf32>
    %c0_135 = arith.constant 0 : index
    %c3_136 = arith.constant 3 : index
    %c0_137 = arith.constant 0 : index
    %c1_138 = arith.constant 1 : index
    %c0_139 = arith.constant 0 : index
    %118 = vector.load %arg1[%c0_135, %c3_136, %c0_137, %c1_138, %c0_139] : memref<1x4x9x9x4xbf16, #tpu.memory_space<vmem>>, vector<1x1x8x8x4xbf16>
    %119 = vector.shape_cast %118 : vector<1x1x8x8x4xbf16> to vector<8x8x4xbf16>
    %120 = vector.shape_cast %119 : vector<8x8x4xbf16> to vector<64x4xbf16>
    %c5_140 = arith.constant 5 : index
    %c0_141 = arith.constant 0 : index
    %c0_142 = arith.constant 0 : index
    %121 = vector.load %arg2[%c5_140, %c0_141, %c0_142] : memref<9x4x8xbf16, #tpu.memory_space<vmem>>, vector<1x4x8xbf16>
    %122 = vector.shape_cast %121 : vector<1x4x8xbf16> to vector<4x8xbf16>
    %cst_143 = arith.constant dense<0.000000e+00> : vector<64x8xf32>
    %123 = tpu.matmul %120, %122, %cst_143 {dimension_numbers = #tpu.dot_dimension_numbers<[1], [0], [0], [1], [0, 0, 1, 1], [], []>} : vector<64x4xbf16>, vector<4x8xbf16>, vector<64x8xf32> -> vector<64x8xf32>
    %124 = arith.addf %117, %123 : vector<64x8xf32>
    %c0_144 = arith.constant 0 : index
    %c1_145 = arith.constant 1 : index
    %c1_146 = arith.constant 1 : index
    %c0_147 = arith.constant 0 : index
    %c0_148 = arith.constant 0 : index
    %125 = vector.load %arg1[%c0_144, %c1_145, %c1_146, %c0_147, %c0_148] : memref<1x4x9x9x4xbf16, #tpu.memory_space<vmem>>, vector<1x1x8x8x4xbf16>
    %126 = vector.shape_cast %125 : vector<1x1x8x8x4xbf16> to vector<8x8x4xbf16>
    %127 = vector.shape_cast %126 : vector<8x8x4xbf16> to vector<64x4xbf16>
    %c6_149 = arith.constant 6 : index
    %c0_150 = arith.constant 0 : index
    %c0_151 = arith.constant 0 : index
    %128 = vector.load %arg2[%c6_149, %c0_150, %c0_151] : memref<9x4x8xbf16, #tpu.memory_space<vmem>>, vector<1x4x8xbf16>
    %129 = vector.shape_cast %128 : vector<1x4x8xbf16> to vector<4x8xbf16>
    %cst_152 = arith.constant dense<0.000000e+00> : vector<64x8xf32>
    %130 = tpu.matmul %127, %129, %cst_152 {dimension_numbers = #tpu.dot_dimension_numbers<[1], [0], [0], [1], [0, 0, 1, 1], [], []>} : vector<64x4xbf16>, vector<4x8xbf16>, vector<64x8xf32> -> vector<64x8xf32>
    %131 = arith.addf %124, %130 : vector<64x8xf32>
    %c0_153 = arith.constant 0 : index
    %c0_154 = arith.constant 0 : index
    %c1_155 = arith.constant 1 : index
    %c1_156 = arith.constant 1 : index
    %c0_157 = arith.constant 0 : index
    %132 = vector.load %arg1[%c0_153, %c0_154, %c1_155, %c1_156, %c0_157] : memref<1x4x9x9x4xbf16, #tpu.memory_space<vmem>>, vector<1x1x8x8x4xbf16>
    %133 = vector.shape_cast %132 : vector<1x1x8x8x4xbf16> to vector<8x8x4xbf16>
    %134 = vector.shape_cast %133 : vector<8x8x4xbf16> to vector<64x4xbf16>
    %c7_158 = arith.constant 7 : index
    %c0_159 = arith.constant 0 : index
    %c0_160 = arith.constant 0 : index
    %135 = vector.load %arg2[%c7_158, %c0_159, %c0_160] : memref<9x4x8xbf16, #tpu.memory_space<vmem>>, vector<1x4x8xbf16>
    %136 = vector.shape_cast %135 : vector<1x4x8xbf16> to vector<4x8xbf16>
    %cst_161 = arith.constant dense<0.000000e+00> : vector<64x8xf32>
    %137 = tpu.matmul %134, %136, %cst_161 {dimension_numbers = #tpu.dot_dimension_numbers<[1], [0], [0], [1], [0, 0, 1, 1], [], []>} : vector<64x4xbf16>, vector<4x8xbf16>, vector<64x8xf32> -> vector<64x8xf32>
    %138 = arith.addf %131, %137 : vector<64x8xf32>
    %c0_162 = arith.constant 0 : index
    %c1_163 = arith.constant 1 : index
    %c1_164 = arith.constant 1 : index
    %c1_165 = arith.constant 1 : index
    %c0_166 = arith.constant 0 : index
    %139 = vector.load %arg1[%c0_162, %c1_163, %c1_164, %c1_165, %c0_166] : memref<1x4x9x9x4xbf16, #tpu.memory_space<vmem>>, vector<1x1x8x8x4xbf16>
    %140 = vector.shape_cast %139 : vector<1x1x8x8x4xbf16> to vector<8x8x4xbf16>
    %141 = vector.shape_cast %140 : vector<8x8x4xbf16> to vector<64x4xbf16>
    %c8_167 = arith.constant 8 : index
    %c0_168 = arith.constant 0 : index
    %c0_169 = arith.constant 0 : index
    %142 = vector.load %arg2[%c8_167, %c0_168, %c0_169] : memref<9x4x8xbf16, #tpu.memory_space<vmem>>, vector<1x4x8xbf16>
    %143 = vector.shape_cast %142 : vector<1x4x8xbf16> to vector<4x8xbf16>
    %cst_170 = arith.constant dense<0.000000e+00> : vector<64x8xf32>
    %144 = tpu.matmul %141, %143, %cst_170 {dimension_numbers = #tpu.dot_dimension_numbers<[1], [0], [0], [1], [0, 0, 1, 1], [], []>} : vector<64x4xbf16>, vector<4x8xbf16>, vector<64x8xf32> -> vector<64x8xf32>
    %145 = arith.addf %138, %144 : vector<64x8xf32>
    %c0_171 = arith.constant 0 : index
    %c0_172 = arith.constant 0 : index
    %146 = vector.load %arg3[%c0_171, %c0_172] : memref<1x8xf32, #tpu.memory_space<vmem>>, vector<1x8xf32>
    %147 = vector.broadcast %146 : vector<1x8xf32> to vector<64x8xf32>
    %148 = arith.addf %145, %147 : vector<64x8xf32>
    %cst_173 = arith.constant 0.000000e+00 : f32
    %149 = vector.broadcast %cst_173 : f32 to vector<64x8xf32>
    %150 = arith.maximumf %148, %149 : vector<64x8xf32>
    %151 = arith.truncf %150 : vector<64x8xf32> to vector<64x8xbf16>
    %cst_174 = arith.constant 0.000000e+00 : bf16
    %152 = vector.broadcast %cst_174 : bf16 to vector<1x9x8xbf16>
    %c2_175 = arith.constant 2 : index
    %c8_176 = arith.constant 8 : index
    %c0_177 = arith.constant 0 : index
    %c0_178 = arith.constant 0 : index
    %153 = vector.load %arg8[%c2_175, %c8_176, %c0_177, %c0_178] : memref<4x9x9x8xbf16, #tpu.memory_space<vmem>>, vector<1x1x9x8xbf16>
    %154 = vector.shape_cast %153 : vector<1x1x9x8xbf16> to vector<1x9x8xbf16>
    %155 = vector.shape_cast %152 : vector<1x9x8xbf16> to vector<1x1x9x8xbf16>
    tpu.vector_store %arg8[%c2_175, %c8_176, %c0_177, %c0_178], %155 {strides = array<i32>} : memref<4x9x9x8xbf16, #tpu.memory_space<vmem>>, vector<1x1x9x8xbf16>,
    %cst_179 = arith.constant 0.000000e+00 : bf16
    %156 = vector.broadcast %cst_179 : bf16 to vector<9x1x8xbf16>
    %c2_180 = arith.constant 2 : index
    %c0_181 = arith.constant 0 : index
    %c0_182 = arith.constant 0 : index
    %c0_183 = arith.constant 0 : index
    %157 = vector.load %arg8[%c2_180, %c0_181, %c0_182, %c0_183] : memref<4x9x9x8xbf16, #tpu.memory_space<vmem>>, vector<1x9x1x8xbf16>
    %158 = vector.shape_cast %157 : vector<1x9x1x8xbf16> to vector<9x1x8xbf16>
    %159 = vector.shape_cast %156 : vector<9x1x8xbf16> to vector<1x9x1x8xbf16>
    tpu.vector_store %arg8[%c2_180, %c0_181, %c0_182, %c0_183], %159 {strides = array<i32>} : memref<4x9x9x8xbf16, #tpu.memory_space<vmem>>, vector<1x9x1x8xbf16>,
    %160 = vector.shape_cast %151 : vector<64x8xbf16> to vector<8x8x8xbf16>
    %c2_184 = arith.constant 2 : index
    %c0_185 = arith.constant 0 : index
    %c1_186 = arith.constant 1 : index
    %c0_187 = arith.constant 0 : index
    %161 = vector.load %arg8[%c2_184, %c0_185, %c1_186, %c0_187] : memref<4x9x9x8xbf16, #tpu.memory_space<vmem>>, vector<1x8x8x8xbf16>
    %162 = vector.shape_cast %161 : vector<1x8x8x8xbf16> to vector<8x8x8xbf16>
    %163 = vector.shape_cast %160 : vector<8x8x8xbf16> to vector<1x8x8x8xbf16>
    tpu.vector_store %arg8[%c2_184, %c0_185, %c1_186, %c0_187], %163 {strides = array<i32>} : memref<4x9x9x8xbf16, #tpu.memory_space<vmem>>, vector<1x8x8x8xbf16>,
    %cst_188 = arith.constant 0.000000e+00 : f32
    %164 = vector.broadcast %cst_188 : f32 to vector<64x8xf32>
    %c0_189 = arith.constant 0 : index
    %c2_190 = arith.constant 2 : index
    %c0_191 = arith.constant 0 : index
    %c0_192 = arith.constant 0 : index
    %c0_193 = arith.constant 0 : index
    %165 = vector.load %arg1[%c0_189, %c2_190, %c0_191, %c0_192, %c0_193] : memref<1x4x9x9x4xbf16, #tpu.memory_space<vmem>>, vector<1x1x8x8x4xbf16>
    %166 = vector.shape_cast %165 : vector<1x1x8x8x4xbf16> to vector<8x8x4xbf16>
    %167 = vector.shape_cast %166 : vector<8x8x4xbf16> to vector<64x4xbf16>
    %c0_194 = arith.constant 0 : index
    %c0_195 = arith.constant 0 : index
    %c0_196 = arith.constant 0 : index
    %168 = vector.load %arg2[%c0_194, %c0_195, %c0_196] : memref<9x4x8xbf16, #tpu.memory_space<vmem>>, vector<1x4x8xbf16>
    %169 = vector.shape_cast %168 : vector<1x4x8xbf16> to vector<4x8xbf16>
    %cst_197 = arith.constant dense<0.000000e+00> : vector<64x8xf32>
    %170 = tpu.matmul %167, %169, %cst_197 {dimension_numbers = #tpu.dot_dimension_numbers<[1], [0], [0], [1], [0, 0, 1, 1], [], []>} : vector<64x4xbf16>, vector<4x8xbf16>, vector<64x8xf32> -> vector<64x8xf32>
    %171 = arith.addf %164, %170 : vector<64x8xf32>
    %c0_198 = arith.constant 0 : index
    %c3_199 = arith.constant 3 : index
    %c0_200 = arith.constant 0 : index
    %c0_201 = arith.constant 0 : index
    %c0_202 = arith.constant 0 : index
    %172 = vector.load %arg1[%c0_198, %c3_199, %c0_200, %c0_201, %c0_202] : memref<1x4x9x9x4xbf16, #tpu.memory_space<vmem>>, vector<1x1x8x8x4xbf16>
    %173 = vector.shape_cast %172 : vector<1x1x8x8x4xbf16> to vector<8x8x4xbf16>
    %174 = vector.shape_cast %173 : vector<8x8x4xbf16> to vector<64x4xbf16>
    %c1_203 = arith.constant 1 : index
    %c0_204 = arith.constant 0 : index
    %c0_205 = arith.constant 0 : index
    %175 = vector.load %arg2[%c1_203, %c0_204, %c0_205] : memref<9x4x8xbf16, #tpu.memory_space<vmem>>, vector<1x4x8xbf16>
    %176 = vector.shape_cast %175 : vector<1x4x8xbf16> to vector<4x8xbf16>
    %cst_206 = arith.constant dense<0.000000e+00> : vector<64x8xf32>
    %177 = tpu.matmul %174, %176, %cst_206 {dimension_numbers = #tpu.dot_dimension_numbers<[1], [0], [0], [1], [0, 0, 1, 1], [], []>} : vector<64x4xbf16>, vector<4x8xbf16>, vector<64x8xf32> -> vector<64x8xf32>
    %178 = arith.addf %171, %177 : vector<64x8xf32>
    %c0_207 = arith.constant 0 : index
    %c2_208 = arith.constant 2 : index
    %c0_209 = arith.constant 0 : index
    %c1_210 = arith.constant 1 : index
    %c0_211 = arith.constant 0 : index
    %179 = vector.load %arg1[%c0_207, %c2_208, %c0_209, %c1_210, %c0_211] : memref<1x4x9x9x4xbf16, #tpu.memory_space<vmem>>, vector<1x1x8x8x4xbf16>
    %180 = vector.shape_cast %179 : vector<1x1x8x8x4xbf16> to vector<8x8x4xbf16>
    %181 = vector.shape_cast %180 : vector<8x8x4xbf16> to vector<64x4xbf16>
    %c2_212 = arith.constant 2 : index
    %c0_213 = arith.constant 0 : index
    %c0_214 = arith.constant 0 : index
    %182 = vector.load %arg2[%c2_212, %c0_213, %c0_214] : memref<9x4x8xbf16, #tpu.memory_space<vmem>>, vector<1x4x8xbf16>
    %183 = vector.shape_cast %182 : vector<1x4x8xbf16> to vector<4x8xbf16>
    %cst_215 = arith.constant dense<0.000000e+00> : vector<64x8xf32>
    %184 = tpu.matmul %181, %183, %cst_215 {dimension_numbers = #tpu.dot_dimension_numbers<[1], [0], [0], [1], [0, 0, 1, 1], [], []>} : vector<64x4xbf16>, vector<4x8xbf16>, vector<64x8xf32> -> vector<64x8xf32>
    %185 = arith.addf %178, %184 : vector<64x8xf32>
    %c0_216 = arith.constant 0 : index
    %c0_217 = arith.constant 0 : index
    %c1_218 = arith.constant 1 : index
    %c0_219 = arith.constant 0 : index
    %c0_220 = arith.constant 0 : index
    %186 = vector.load %arg1[%c0_216, %c0_217, %c1_218, %c0_219, %c0_220] : memref<1x4x9x9x4xbf16, #tpu.memory_space<vmem>>, vector<1x1x8x8x4xbf16>
    %187 = vector.shape_cast %186 : vector<1x1x8x8x4xbf16> to vector<8x8x4xbf16>
    %188 = vector.shape_cast %187 : vector<8x8x4xbf16> to vector<64x4xbf16>
    %c3_221 = arith.constant 3 : index
    %c0_222 = arith.constant 0 : index
    %c0_223 = arith.constant 0 : index
    %189 = vector.load %arg2[%c3_221, %c0_222, %c0_223] : memref<9x4x8xbf16, #tpu.memory_space<vmem>>, vector<1x4x8xbf16>
    %190 = vector.shape_cast %189 : vector<1x4x8xbf16> to vector<4x8xbf16>
    %cst_224 = arith.constant dense<0.000000e+00> : vector<64x8xf32>
    %191 = tpu.matmul %188, %190, %cst_224 {dimension_numbers = #tpu.dot_dimension_numbers<[1], [0], [0], [1], [0, 0, 1, 1], [], []>} : vector<64x4xbf16>, vector<4x8xbf16>, vector<64x8xf32> -> vector<64x8xf32>
    %192 = arith.addf %185, %191 : vector<64x8xf32>
    %c0_225 = arith.constant 0 : index
    %c1_226 = arith.constant 1 : index
    %c1_227 = arith.constant 1 : index
    %c0_228 = arith.constant 0 : index
    %c0_229 = arith.constant 0 : index
    %193 = vector.load %arg1[%c0_225, %c1_226, %c1_227, %c0_228, %c0_229] : memref<1x4x9x9x4xbf16, #tpu.memory_space<vmem>>, vector<1x1x8x8x4xbf16>
    %194 = vector.shape_cast %193 : vector<1x1x8x8x4xbf16> to vector<8x8x4xbf16>
    %195 = vector.shape_cast %194 : vector<8x8x4xbf16> to vector<64x4xbf16>
    %c4_230 = arith.constant 4 : index
    %c0_231 = arith.constant 0 : index
    %c0_232 = arith.constant 0 : index
    %196 = vector.load %arg2[%c4_230, %c0_231, %c0_232] : memref<9x4x8xbf16, #tpu.memory_space<vmem>>, vector<1x4x8xbf16>
    %197 = vector.shape_cast %196 : vector<1x4x8xbf16> to vector<4x8xbf16>
    %cst_233 = arith.constant dense<0.000000e+00> : vector<64x8xf32>
    %198 = tpu.matmul %195, %197, %cst_233 {dimension_numbers = #tpu.dot_dimension_numbers<[1], [0], [0], [1], [0, 0, 1, 1], [], []>} : vector<64x4xbf16>, vector<4x8xbf16>, vector<64x8xf32> -> vector<64x8xf32>
    %199 = arith.addf %192, %198 : vector<64x8xf32>
    %c0_234 = arith.constant 0 : index
    %c0_235 = arith.constant 0 : index
    %c1_236 = arith.constant 1 : index
    %c1_237 = arith.constant 1 : index
    %c0_238 = arith.constant 0 : index
    %200 = vector.load %arg1[%c0_234, %c0_235, %c1_236, %c1_237, %c0_238] : memref<1x4x9x9x4xbf16, #tpu.memory_space<vmem>>, vector<1x1x8x8x4xbf16>
    %201 = vector.shape_cast %200 : vector<1x1x8x8x4xbf16> to vector<8x8x4xbf16>
    %202 = vector.shape_cast %201 : vector<8x8x4xbf16> to vector<64x4xbf16>
    %c5_239 = arith.constant 5 : index
    %c0_240 = arith.constant 0 : index
    %c0_241 = arith.constant 0 : index
    %203 = vector.load %arg2[%c5_239, %c0_240, %c0_241] : memref<9x4x8xbf16, #tpu.memory_space<vmem>>, vector<1x4x8xbf16>
    %204 = vector.shape_cast %203 : vector<1x4x8xbf16> to vector<4x8xbf16>
    %cst_242 = arith.constant dense<0.000000e+00> : vector<64x8xf32>
    %205 = tpu.matmul %202, %204, %cst_242 {dimension_numbers = #tpu.dot_dimension_numbers<[1], [0], [0], [1], [0, 0, 1, 1], [], []>} : vector<64x4xbf16>, vector<4x8xbf16>, vector<64x8xf32> -> vector<64x8xf32>
    %206 = arith.addf %199, %205 : vector<64x8xf32>
    %c0_243 = arith.constant 0 : index
    %c2_244 = arith.constant 2 : index
    %c1_245 = arith.constant 1 : index
    %c0_246 = arith.constant 0 : index
    %c0_247 = arith.constant 0 : index
    %207 = vector.load %arg1[%c0_243, %c2_244, %c1_245, %c0_246, %c0_247] : memref<1x4x9x9x4xbf16, #tpu.memory_space<vmem>>, vector<1x1x8x8x4xbf16>
    %208 = vector.shape_cast %207 : vector<1x1x8x8x4xbf16> to vector<8x8x4xbf16>
    %209 = vector.shape_cast %208 : vector<8x8x4xbf16> to vector<64x4xbf16>
    %c6_248 = arith.constant 6 : index
    %c0_249 = arith.constant 0 : index
    %c0_250 = arith.constant 0 : index
    %210 = vector.load %arg2[%c6_248, %c0_249, %c0_250] : memref<9x4x8xbf16, #tpu.memory_space<vmem>>, vector<1x4x8xbf16>
    %211 = vector.shape_cast %210 : vector<1x4x8xbf16> to vector<4x8xbf16>
    %cst_251 = arith.constant dense<0.000000e+00> : vector<64x8xf32>
    %212 = tpu.matmul %209, %211, %cst_251 {dimension_numbers = #tpu.dot_dimension_numbers<[1], [0], [0], [1], [0, 0, 1, 1], [], []>} : vector<64x4xbf16>, vector<4x8xbf16>, vector<64x8xf32> -> vector<64x8xf32>
    %213 = arith.addf %206, %212 : vector<64x8xf32>
    %c0_252 = arith.constant 0 : index
    %c3_253 = arith.constant 3 : index
    %c1_254 = arith.constant 1 : index
    %c0_255 = arith.constant 0 : index
    %c0_256 = arith.constant 0 : index
    %214 = vector.load %arg1[%c0_252, %c3_253, %c1_254, %c0_255, %c0_256] : memref<1x4x9x9x4xbf16, #tpu.memory_space<vmem>>, vector<1x1x8x8x4xbf16>
    %215 = vector.shape_cast %214 : vector<1x1x8x8x4xbf16> to vector<8x8x4xbf16>
    %216 = vector.shape_cast %215 : vector<8x8x4xbf16> to vector<64x4xbf16>
    %c7_257 = arith.constant 7 : index
    %c0_258 = arith.constant 0 : index
    %c0_259 = arith.constant 0 : index
    %217 = vector.load %arg2[%c7_257, %c0_258, %c0_259] : memref<9x4x8xbf16, #tpu.memory_space<vmem>>, vector<1x4x8xbf16>
    %218 = vector.shape_cast %217 : vector<1x4x8xbf16> to vector<4x8xbf16>
    %cst_260 = arith.constant dense<0.000000e+00> : vector<64x8xf32>
    %219 = tpu.matmul %216, %218, %cst_260 {dimension_numbers = #tpu.dot_dimension_numbers<[1], [0], [0], [1], [0, 0, 1, 1], [], []>} : vector<64x4xbf16>, vector<4x8xbf16>, vector<64x8xf32> -> vector<64x8xf32>
    %220 = arith.addf %213, %219 : vector<64x8xf32>
    %c0_261 = arith.constant 0 : index
    %c2_262 = arith.constant 2 : index
    %c1_263 = arith.constant 1 : index
    %c1_264 = arith.constant 1 : index
    %c0_265 = arith.constant 0 : index
    %221 = vector.load %arg1[%c0_261, %c2_262, %c1_263, %c1_264, %c0_265] : memref<1x4x9x9x4xbf16, #tpu.memory_space<vmem>>, vector<1x1x8x8x4xbf16>
    %222 = vector.shape_cast %221 : vector<1x1x8x8x4xbf16> to vector<8x8x4xbf16>
    %223 = vector.shape_cast %222 : vector<8x8x4xbf16> to vector<64x4xbf16>
    %c8_266 = arith.constant 8 : index
    %c0_267 = arith.constant 0 : index
    %c0_268 = arith.constant 0 : index
    %224 = vector.load %arg2[%c8_266, %c0_267, %c0_268] : memref<9x4x8xbf16, #tpu.memory_space<vmem>>, vector<1x4x8xbf16>
    %225 = vector.shape_cast %224 : vector<1x4x8xbf16> to vector<4x8xbf16>
    %cst_269 = arith.constant dense<0.000000e+00> : vector<64x8xf32>
    %226 = tpu.matmul %223, %225, %cst_269 {dimension_numbers = #tpu.dot_dimension_numbers<[1], [0], [0], [1], [0, 0, 1, 1], [], []>} : vector<64x4xbf16>, vector<4x8xbf16>, vector<64x8xf32> -> vector<64x8xf32>
    %227 = arith.addf %220, %226 : vector<64x8xf32>
    %c0_270 = arith.constant 0 : index
    %c0_271 = arith.constant 0 : index
    %228 = vector.load %arg3[%c0_270, %c0_271] : memref<1x8xf32, #tpu.memory_space<vmem>>, vector<1x8xf32>
    %229 = vector.broadcast %228 : vector<1x8xf32> to vector<64x8xf32>
    %230 = arith.addf %227, %229 : vector<64x8xf32>
    %cst_272 = arith.constant 0.000000e+00 : f32
    %231 = vector.broadcast %cst_272 : f32 to vector<64x8xf32>
    %232 = arith.maximumf %230, %231 : vector<64x8xf32>
    %233 = arith.truncf %232 : vector<64x8xf32> to vector<64x8xbf16>
    %cst_273 = arith.constant 0.000000e+00 : bf16
    %234 = vector.broadcast %cst_273 : bf16 to vector<1x9x8xbf16>
    %c1_274 = arith.constant 1 : index
    %c0_275 = arith.constant 0 : index
    %c0_276 = arith.constant 0 : index
    %c0_277 = arith.constant 0 : index
    %235 = vector.load %arg8[%c1_274, %c0_275, %c0_276, %c0_277] : memref<4x9x9x8xbf16, #tpu.memory_space<vmem>>, vector<1x1x9x8xbf16>
    %236 = vector.shape_cast %235 : vector<1x1x9x8xbf16> to vector<1x9x8xbf16>
    %237 = vector.shape_cast %234 : vector<1x9x8xbf16> to vector<1x1x9x8xbf16>
    tpu.vector_store %arg8[%c1_274, %c0_275, %c0_276, %c0_277], %237 {strides = array<i32>} : memref<4x9x9x8xbf16, #tpu.memory_space<vmem>>, vector<1x1x9x8xbf16>,
    %cst_278 = arith.constant 0.000000e+00 : bf16
    %238 = vector.broadcast %cst_278 : bf16 to vector<9x1x8xbf16>
    %c1_279 = arith.constant 1 : index
    %c0_280 = arith.constant 0 : index
    %c8_281 = arith.constant 8 : index
    %c0_282 = arith.constant 0 : index
    %239 = vector.load %arg8[%c1_279, %c0_280, %c8_281, %c0_282] : memref<4x9x9x8xbf16, #tpu.memory_space<vmem>>, vector<1x9x1x8xbf16>
    %240 = vector.shape_cast %239 : vector<1x9x1x8xbf16> to vector<9x1x8xbf16>
    %241 = vector.shape_cast %238 : vector<9x1x8xbf16> to vector<1x9x1x8xbf16>
    tpu.vector_store %arg8[%c1_279, %c0_280, %c8_281, %c0_282], %241 {strides = array<i32>} : memref<4x9x9x8xbf16, #tpu.memory_space<vmem>>, vector<1x9x1x8xbf16>,
    %242 = vector.shape_cast %233 : vector<64x8xbf16> to vector<8x8x8xbf16>
    %c1_283 = arith.constant 1 : index
    %c1_284 = arith.constant 1 : index
    %c0_285 = arith.constant 0 : index
    %c0_286 = arith.constant 0 : index
    %243 = vector.load %arg8[%c1_283, %c1_284, %c0_285, %c0_286] : memref<4x9x9x8xbf16, #tpu.memory_space<vmem>>, vector<1x8x8x8xbf16>
    %244 = vector.shape_cast %243 : vector<1x8x8x8xbf16> to vector<8x8x8xbf16>
    %245 = vector.shape_cast %242 : vector<8x8x8xbf16> to vector<1x8x8x8xbf16>
    tpu.vector_store %arg8[%c1_283, %c1_284, %c0_285, %c0_286], %245 {strides = array<i32>} : memref<4x9x9x8xbf16, #tpu.memory_space<vmem>>, vector<1x8x8x8xbf16>,
    %cst_287 = arith.constant 0.000000e+00 : f32
    %246 = vector.broadcast %cst_287 : f32 to vector<64x8xf32>
    %c0_288 = arith.constant 0 : index
    %c3_289 = arith.constant 3 : index
    %c0_290 = arith.constant 0 : index
    %c0_291 = arith.constant 0 : index
    %c0_292 = arith.constant 0 : index
    %247 = vector.load %arg1[%c0_288, %c3_289, %c0_290, %c0_291, %c0_292] : memref<1x4x9x9x4xbf16, #tpu.memory_space<vmem>>, vector<1x1x8x8x4xbf16>
    %248 = vector.shape_cast %247 : vector<1x1x8x8x4xbf16> to vector<8x8x4xbf16>
    %249 = vector.shape_cast %248 : vector<8x8x4xbf16> to vector<64x4xbf16>
    %c0_293 = arith.constant 0 : index
    %c0_294 = arith.constant 0 : index
    %c0_295 = arith.constant 0 : index
    %250 = vector.load %arg2[%c0_293, %c0_294, %c0_295] : memref<9x4x8xbf16, #tpu.memory_space<vmem>>, vector<1x4x8xbf16>
    %251 = vector.shape_cast %250 : vector<1x4x8xbf16> to vector<4x8xbf16>
    %cst_296 = arith.constant dense<0.000000e+00> : vector<64x8xf32>
    %252 = tpu.matmul %249, %251, %cst_296 {dimension_numbers = #tpu.dot_dimension_numbers<[1], [0], [0], [1], [0, 0, 1, 1], [], []>} : vector<64x4xbf16>, vector<4x8xbf16>, vector<64x8xf32> -> vector<64x8xf32>
    %253 = arith.addf %246, %252 : vector<64x8xf32>
    %c0_297 = arith.constant 0 : index
    %c2_298 = arith.constant 2 : index
    %c0_299 = arith.constant 0 : index
    %c1_300 = arith.constant 1 : index
    %c0_301 = arith.constant 0 : index
    %254 = vector.load %arg1[%c0_297, %c2_298, %c0_299, %c1_300, %c0_301] : memref<1x4x9x9x4xbf16, #tpu.memory_space<vmem>>, vector<1x1x8x8x4xbf16>
    %255 = vector.shape_cast %254 : vector<1x1x8x8x4xbf16> to vector<8x8x4xbf16>
    %256 = vector.shape_cast %255 : vector<8x8x4xbf16> to vector<64x4xbf16>
    %c1_302 = arith.constant 1 : index
    %c0_303 = arith.constant 0 : index
    %c0_304 = arith.constant 0 : index
    %257 = vector.load %arg2[%c1_302, %c0_303, %c0_304] : memref<9x4x8xbf16, #tpu.memory_space<vmem>>, vector<1x4x8xbf16>
    %258 = vector.shape_cast %257 : vector<1x4x8xbf16> to vector<4x8xbf16>
    %cst_305 = arith.constant dense<0.000000e+00> : vector<64x8xf32>
    %259 = tpu.matmul %256, %258, %cst_305 {dimension_numbers = #tpu.dot_dimension_numbers<[1], [0], [0], [1], [0, 0, 1, 1], [], []>} : vector<64x4xbf16>, vector<4x8xbf16>, vector<64x8xf32> -> vector<64x8xf32>
    %260 = arith.addf %253, %259 : vector<64x8xf32>
    %c0_306 = arith.constant 0 : index
    %c3_307 = arith.constant 3 : index
    %c0_308 = arith.constant 0 : index
    %c1_309 = arith.constant 1 : index
    %c0_310 = arith.constant 0 : index
    %261 = vector.load %arg1[%c0_306, %c3_307, %c0_308, %c1_309, %c0_310] : memref<1x4x9x9x4xbf16, #tpu.memory_space<vmem>>, vector<1x1x8x8x4xbf16>
    %262 = vector.shape_cast %261 : vector<1x1x8x8x4xbf16> to vector<8x8x4xbf16>
    %263 = vector.shape_cast %262 : vector<8x8x4xbf16> to vector<64x4xbf16>
    %c2_311 = arith.constant 2 : index
    %c0_312 = arith.constant 0 : index
    %c0_313 = arith.constant 0 : index
    %264 = vector.load %arg2[%c2_311, %c0_312, %c0_313] : memref<9x4x8xbf16, #tpu.memory_space<vmem>>, vector<1x4x8xbf16>
    %265 = vector.shape_cast %264 : vector<1x4x8xbf16> to vector<4x8xbf16>
    %cst_314 = arith.constant dense<0.000000e+00> : vector<64x8xf32>
    %266 = tpu.matmul %263, %265, %cst_314 {dimension_numbers = #tpu.dot_dimension_numbers<[1], [0], [0], [1], [0, 0, 1, 1], [], []>} : vector<64x4xbf16>, vector<4x8xbf16>, vector<64x8xf32> -> vector<64x8xf32>
    %267 = arith.addf %260, %266 : vector<64x8xf32>
    %c0_315 = arith.constant 0 : index
    %c1_316 = arith.constant 1 : index
    %c1_317 = arith.constant 1 : index
    %c0_318 = arith.constant 0 : index
    %c0_319 = arith.constant 0 : index
    %268 = vector.load %arg1[%c0_315, %c1_316, %c1_317, %c0_318, %c0_319] : memref<1x4x9x9x4xbf16, #tpu.memory_space<vmem>>, vector<1x1x8x8x4xbf16>
    %269 = vector.shape_cast %268 : vector<1x1x8x8x4xbf16> to vector<8x8x4xbf16>
    %270 = vector.shape_cast %269 : vector<8x8x4xbf16> to vector<64x4xbf16>
    %c3_320 = arith.constant 3 : index
    %c0_321 = arith.constant 0 : index
    %c0_322 = arith.constant 0 : index
    %271 = vector.load %arg2[%c3_320, %c0_321, %c0_322] : memref<9x4x8xbf16, #tpu.memory_space<vmem>>, vector<1x4x8xbf16>
    %272 = vector.shape_cast %271 : vector<1x4x8xbf16> to vector<4x8xbf16>
    %cst_323 = arith.constant dense<0.000000e+00> : vector<64x8xf32>
    %273 = tpu.matmul %270, %272, %cst_323 {dimension_numbers = #tpu.dot_dimension_numbers<[1], [0], [0], [1], [0, 0, 1, 1], [], []>} : vector<64x4xbf16>, vector<4x8xbf16>, vector<64x8xf32> -> vector<64x8xf32>
    %274 = arith.addf %267, %273 : vector<64x8xf32>
    %c0_324 = arith.constant 0 : index
    %c0_325 = arith.constant 0 : index
    %c1_326 = arith.constant 1 : index
    %c1_327 = arith.constant 1 : index
    %c0_328 = arith.constant 0 : index
    %275 = vector.load %arg1[%c0_324, %c0_325, %c1_326, %c1_327, %c0_328] : memref<1x4x9x9x4xbf16, #tpu.memory_space<vmem>>, vector<1x1x8x8x4xbf16>
    %276 = vector.shape_cast %275 : vector<1x1x8x8x4xbf16> to vector<8x8x4xbf16>
    %277 = vector.shape_cast %276 : vector<8x8x4xbf16> to vector<64x4xbf16>
    %c4_329 = arith.constant 4 : index
    %c0_330 = arith.constant 0 : index
    %c0_331 = arith.constant 0 : index
    %278 = vector.load %arg2[%c4_329, %c0_330, %c0_331] : memref<9x4x8xbf16, #tpu.memory_space<vmem>>, vector<1x4x8xbf16>
    %279 = vector.shape_cast %278 : vector<1x4x8xbf16> to vector<4x8xbf16>
    %cst_332 = arith.constant dense<0.000000e+00> : vector<64x8xf32>
    %280 = tpu.matmul %277, %279, %cst_332 {dimension_numbers = #tpu.dot_dimension_numbers<[1], [0], [0], [1], [0, 0, 1, 1], [], []>} : vector<64x4xbf16>, vector<4x8xbf16>, vector<64x8xf32> -> vector<64x8xf32>
    %281 = arith.addf %274, %280 : vector<64x8xf32>
    %c0_333 = arith.constant 0 : index
    %c1_334 = arith.constant 1 : index
    %c1_335 = arith.constant 1 : index
    %c1_336 = arith.constant 1 : index
    %c0_337 = arith.constant 0 : index
    %282 = vector.load %arg1[%c0_333, %c1_334, %c1_335, %c1_336, %c0_337] : memref<1x4x9x9x4xbf16, #tpu.memory_space<vmem>>, vector<1x1x8x8x4xbf16>
    %283 = vector.shape_cast %282 : vector<1x1x8x8x4xbf16> to vector<8x8x4xbf16>
    %284 = vector.shape_cast %283 : vector<8x8x4xbf16> to vector<64x4xbf16>
    %c5_338 = arith.constant 5 : index
    %c0_339 = arith.constant 0 : index
    %c0_340 = arith.constant 0 : index
    %285 = vector.load %arg2[%c5_338, %c0_339, %c0_340] : memref<9x4x8xbf16, #tpu.memory_space<vmem>>, vector<1x4x8xbf16>
    %286 = vector.shape_cast %285 : vector<1x4x8xbf16> to vector<4x8xbf16>
    %cst_341 = arith.constant dense<0.000000e+00> : vector<64x8xf32>
    %287 = tpu.matmul %284, %286, %cst_341 {dimension_numbers = #tpu.dot_dimension_numbers<[1], [0], [0], [1], [0, 0, 1, 1], [], []>} : vector<64x4xbf16>, vector<4x8xbf16>, vector<64x8xf32> -> vector<64x8xf32>
    %288 = arith.addf %281, %287 : vector<64x8xf32>
    %c0_342 = arith.constant 0 : index
    %c3_343 = arith.constant 3 : index
    %c1_344 = arith.constant 1 : index
    %c0_345 = arith.constant 0 : index
    %c0_346 = arith.constant 0 : index
    %289 = vector.load %arg1[%c0_342, %c3_343, %c1_344, %c0_345, %c0_346] : memref<1x4x9x9x4xbf16, #tpu.memory_space<vmem>>, vector<1x1x8x8x4xbf16>
    %290 = vector.shape_cast %289 : vector<1x1x8x8x4xbf16> to vector<8x8x4xbf16>
    %291 = vector.shape_cast %290 : vector<8x8x4xbf16> to vector<64x4xbf16>
    %c6_347 = arith.constant 6 : index
    %c0_348 = arith.constant 0 : index
    %c0_349 = arith.constant 0 : index
    %292 = vector.load %arg2[%c6_347, %c0_348, %c0_349] : memref<9x4x8xbf16, #tpu.memory_space<vmem>>, vector<1x4x8xbf16>
    %293 = vector.shape_cast %292 : vector<1x4x8xbf16> to vector<4x8xbf16>
    %cst_350 = arith.constant dense<0.000000e+00> : vector<64x8xf32>
    %294 = tpu.matmul %291, %293, %cst_350 {dimension_numbers = #tpu.dot_dimension_numbers<[1], [0], [0], [1], [0, 0, 1, 1], [], []>} : vector<64x4xbf16>, vector<4x8xbf16>, vector<64x8xf32> -> vector<64x8xf32>
    %295 = arith.addf %288, %294 : vector<64x8xf32>
    %c0_351 = arith.constant 0 : index
    %c2_352 = arith.constant 2 : index
    %c1_353 = arith.constant 1 : index
    %c1_354 = arith.constant 1 : index
    %c0_355 = arith.constant 0 : index
    %296 = vector.load %arg1[%c0_351, %c2_352, %c1_353, %c1_354, %c0_355] : memref<1x4x9x9x4xbf16, #tpu.memory_space<vmem>>, vector<1x1x8x8x4xbf16>
    %297 = vector.shape_cast %296 : vector<1x1x8x8x4xbf16> to vector<8x8x4xbf16>
    %298 = vector.shape_cast %297 : vector<8x8x4xbf16> to vector<64x4xbf16>
    %c7_356 = arith.constant 7 : index
    %c0_357 = arith.constant 0 : index
    %c0_358 = arith.constant 0 : index
    %299 = vector.load %arg2[%c7_356, %c0_357, %c0_358] : memref<9x4x8xbf16, #tpu.memory_space<vmem>>, vector<1x4x8xbf16>
    %300 = vector.shape_cast %299 : vector<1x4x8xbf16> to vector<4x8xbf16>
    %cst_359 = arith.constant dense<0.000000e+00> : vector<64x8xf32>
    %301 = tpu.matmul %298, %300, %cst_359 {dimension_numbers = #tpu.dot_dimension_numbers<[1], [0], [0], [1], [0, 0, 1, 1], [], []>} : vector<64x4xbf16>, vector<4x8xbf16>, vector<64x8xf32> -> vector<64x8xf32>
    %302 = arith.addf %295, %301 : vector<64x8xf32>
    %c0_360 = arith.constant 0 : index
    %c3_361 = arith.constant 3 : index
    %c1_362 = arith.constant 1 : index
    %c1_363 = arith.constant 1 : index
    %c0_364 = arith.constant 0 : index
    %303 = vector.load %arg1[%c0_360, %c3_361, %c1_362, %c1_363, %c0_364] : memref<1x4x9x9x4xbf16, #tpu.memory_space<vmem>>, vector<1x1x8x8x4xbf16>
    %304 = vector.shape_cast %303 : vector<1x1x8x8x4xbf16> to vector<8x8x4xbf16>
    %305 = vector.shape_cast %304 : vector<8x8x4xbf16> to vector<64x4xbf16>
    %c8_365 = arith.constant 8 : index
    %c0_366 = arith.constant 0 : index
    %c0_367 = arith.constant 0 : index
    %306 = vector.load %arg2[%c8_365, %c0_366, %c0_367] : memref<9x4x8xbf16, #tpu.memory_space<vmem>>, vector<1x4x8xbf16>
    %307 = vector.shape_cast %306 : vector<1x4x8xbf16> to vector<4x8xbf16>
    %cst_368 = arith.constant dense<0.000000e+00> : vector<64x8xf32>
    %308 = tpu.matmul %305, %307, %cst_368 {dimension_numbers = #tpu.dot_dimension_numbers<[1], [0], [0], [1], [0, 0, 1, 1], [], []>} : vector<64x4xbf16>, vector<4x8xbf16>, vector<64x8xf32> -> vector<64x8xf32>
    %309 = arith.addf %302, %308 : vector<64x8xf32>
    %c0_369 = arith.constant 0 : index
    %c0_370 = arith.constant 0 : index
    %310 = vector.load %arg3[%c0_369, %c0_370] : memref<1x8xf32, #tpu.memory_space<vmem>>, vector<1x8xf32>
    %311 = vector.broadcast %310 : vector<1x8xf32> to vector<64x8xf32>
    %312 = arith.addf %309, %311 : vector<64x8xf32>
    %cst_371 = arith.constant 0.000000e+00 : f32
    %313 = vector.broadcast %cst_371 : f32 to vector<64x8xf32>
    %314 = arith.maximumf %312, %313 : vector<64x8xf32>
    %315 = arith.truncf %314 : vector<64x8xf32> to vector<64x8xbf16>
    %cst_372 = arith.constant 0.000000e+00 : bf16
    %316 = vector.broadcast %cst_372 : bf16 to vector<1x9x8xbf16>
    %c0_373 = arith.constant 0 : index
    %c0_374 = arith.constant 0 : index
    %c0_375 = arith.constant 0 : index
    %c0_376 = arith.constant 0 : index
    %317 = vector.load %arg8[%c0_373, %c0_374, %c0_375, %c0_376] : memref<4x9x9x8xbf16, #tpu.memory_space<vmem>>, vector<1x1x9x8xbf16>
    %318 = vector.shape_cast %317 : vector<1x1x9x8xbf16> to vector<1x9x8xbf16>
    %319 = vector.shape_cast %316 : vector<1x9x8xbf16> to vector<1x1x9x8xbf16>
    tpu.vector_store %arg8[%c0_373, %c0_374, %c0_375, %c0_376], %319 {strides = array<i32>} : memref<4x9x9x8xbf16, #tpu.memory_space<vmem>>, vector<1x1x9x8xbf16>,
    %cst_377 = arith.constant 0.000000e+00 : bf16
    %320 = vector.broadcast %cst_377 : bf16 to vector<9x1x8xbf16>
    %c0_378 = arith.constant 0 : index
    %c0_379 = arith.constant 0 : index
    %c0_380 = arith.constant 0 : index
    %c0_381 = arith.constant 0 : index
    %321 = vector.load %arg8[%c0_378, %c0_379, %c0_380, %c0_381] : memref<4x9x9x8xbf16, #tpu.memory_space<vmem>>, vector<1x9x1x8xbf16>
    %322 = vector.shape_cast %321 : vector<1x9x1x8xbf16> to vector<9x1x8xbf16>
    %323 = vector.shape_cast %320 : vector<9x1x8xbf16> to vector<1x9x1x8xbf16>
    tpu.vector_store %arg8[%c0_378, %c0_379, %c0_380, %c0_381], %323 {strides = array<i32>} : memref<4x9x9x8xbf16, #tpu.memory_space<vmem>>, vector<1x9x1x8xbf16>,
    %324 = vector.shape_cast %315 : vector<64x8xbf16> to vector<8x8x8xbf16>
    %c0_382 = arith.constant 0 : index
    %c1_383 = arith.constant 1 : index
    %c1_384 = arith.constant 1 : index
    %c0_385 = arith.constant 0 : index
    %325 = vector.load %arg8[%c0_382, %c1_383, %c1_384, %c0_385] : memref<4x9x9x8xbf16, #tpu.memory_space<vmem>>, vector<1x8x8x8xbf16>
    %326 = vector.shape_cast %325 : vector<1x8x8x8xbf16> to vector<8x8x8xbf16>
    %327 = vector.shape_cast %324 : vector<8x8x8xbf16> to vector<1x8x8x8xbf16>
    tpu.vector_store %arg8[%c0_382, %c1_383, %c1_384, %c0_385], %327 {strides = array<i32>} : memref<4x9x9x8xbf16, #tpu.memory_space<vmem>>, vector<1x8x8x8xbf16>,
    %cst_386 = arith.constant 0.000000e+00 : f32
    %328 = vector.broadcast %cst_386 : f32 to vector<64x8xf32>
    %c0_387 = arith.constant 0 : index
    %c0_388 = arith.constant 0 : index
    %c0_389 = arith.constant 0 : index
    %c0_390 = arith.constant 0 : index
    %329 = vector.load %arg8[%c0_387, %c0_388, %c0_389, %c0_390] : memref<4x9x9x8xbf16, #tpu.memory_space<vmem>>, vector<1x8x8x8xbf16>
    %330 = vector.shape_cast %329 : vector<1x8x8x8xbf16> to vector<8x8x8xbf16>
    %331 = vector.shape_cast %330 : vector<8x8x8xbf16> to vector<64x8xbf16>
    %c0_391 = arith.constant 0 : index
    %c0_392 = arith.constant 0 : index
    %c0_393 = arith.constant 0 : index
    %332 = vector.load %arg4[%c0_391, %c0_392, %c0_393] : memref<16x8x8xbf16, #tpu.memory_space<vmem>>, vector<1x8x8xbf16>
    %333 = vector.shape_cast %332 : vector<1x8x8xbf16> to vector<8x8xbf16>
    %cst_394 = arith.constant dense<0.000000e+00> : vector<64x8xf32>
    %334 = tpu.matmul %331, %333, %cst_394 {dimension_numbers = #tpu.dot_dimension_numbers<[1], [0], [0], [1], [0, 0, 1, 1], [], []>} : vector<64x8xbf16>, vector<8x8xbf16>, vector<64x8xf32> -> vector<64x8xf32>
    %335 = arith.addf %328, %334 : vector<64x8xf32>
    %c1_395 = arith.constant 1 : index
    %c0_396 = arith.constant 0 : index
    %c0_397 = arith.constant 0 : index
    %c0_398 = arith.constant 0 : index
    %336 = vector.load %arg8[%c1_395, %c0_396, %c0_397, %c0_398] : memref<4x9x9x8xbf16, #tpu.memory_space<vmem>>, vector<1x8x8x8xbf16>
    %337 = vector.shape_cast %336 : vector<1x8x8x8xbf16> to vector<8x8x8xbf16>
    %338 = vector.shape_cast %337 : vector<8x8x8xbf16> to vector<64x8xbf16>
    %c1_399 = arith.constant 1 : index
    %c0_400 = arith.constant 0 : index
    %c0_401 = arith.constant 0 : index
    %339 = vector.load %arg4[%c1_399, %c0_400, %c0_401] : memref<16x8x8xbf16, #tpu.memory_space<vmem>>, vector<1x8x8xbf16>
    %340 = vector.shape_cast %339 : vector<1x8x8xbf16> to vector<8x8xbf16>
    %cst_402 = arith.constant dense<0.000000e+00> : vector<64x8xf32>
    %341 = tpu.matmul %338, %340, %cst_402 {dimension_numbers = #tpu.dot_dimension_numbers<[1], [0], [0], [1], [0, 0, 1, 1], [], []>} : vector<64x8xbf16>, vector<8x8xbf16>, vector<64x8xf32> -> vector<64x8xf32>
    %342 = arith.addf %335, %341 : vector<64x8xf32>
    %c0_403 = arith.constant 0 : index
    %c0_404 = arith.constant 0 : index
    %c1_405 = arith.constant 1 : index
    %c0_406 = arith.constant 0 : index
    %343 = vector.load %arg8[%c0_403, %c0_404, %c1_405, %c0_406] : memref<4x9x9x8xbf16, #tpu.memory_space<vmem>>, vector<1x8x8x8xbf16>
    %344 = vector.shape_cast %343 : vector<1x8x8x8xbf16> to vector<8x8x8xbf16>
    %345 = vector.shape_cast %344 : vector<8x8x8xbf16> to vector<64x8xbf16>
    %c2_407 = arith.constant 2 : index
    %c0_408 = arith.constant 0 : index
    %c0_409 = arith.constant 0 : index
    %346 = vector.load %arg4[%c2_407, %c0_408, %c0_409] : memref<16x8x8xbf16, #tpu.memory_space<vmem>>, vector<1x8x8xbf16>
    %347 = vector.shape_cast %346 : vector<1x8x8xbf16> to vector<8x8xbf16>
    %cst_410 = arith.constant dense<0.000000e+00> : vector<64x8xf32>
    %348 = tpu.matmul %345, %347, %cst_410 {dimension_numbers = #tpu.dot_dimension_numbers<[1], [0], [0], [1], [0, 0, 1, 1], [], []>} : vector<64x8xbf16>, vector<8x8xbf16>, vector<64x8xf32> -> vector<64x8xf32>
    %349 = arith.addf %342, %348 : vector<64x8xf32>
    %c1_411 = arith.constant 1 : index
    %c0_412 = arith.constant 0 : index
    %c1_413 = arith.constant 1 : index
    %c0_414 = arith.constant 0 : index
    %350 = vector.load %arg8[%c1_411, %c0_412, %c1_413, %c0_414] : memref<4x9x9x8xbf16, #tpu.memory_space<vmem>>, vector<1x8x8x8xbf16>
    %351 = vector.shape_cast %350 : vector<1x8x8x8xbf16> to vector<8x8x8xbf16>
    %352 = vector.shape_cast %351 : vector<8x8x8xbf16> to vector<64x8xbf16>
    %c3_415 = arith.constant 3 : index
    %c0_416 = arith.constant 0 : index
    %c0_417 = arith.constant 0 : index
    %353 = vector.load %arg4[%c3_415, %c0_416, %c0_417] : memref<16x8x8xbf16, #tpu.memory_space<vmem>>, vector<1x8x8xbf16>
    %354 = vector.shape_cast %353 : vector<1x8x8xbf16> to vector<8x8xbf16>
    %cst_418 = arith.constant dense<0.000000e+00> : vector<64x8xf32>
    %355 = tpu.matmul %352, %354, %cst_418 {dimension_numbers = #tpu.dot_dimension_numbers<[1], [0], [0], [1], [0, 0, 1, 1], [], []>} : vector<64x8xbf16>, vector<8x8xbf16>, vector<64x8xf32> -> vector<64x8xf32>
    %356 = arith.addf %349, %355 : vector<64x8xf32>
    %c2_419 = arith.constant 2 : index
    %c0_420 = arith.constant 0 : index
    %c0_421 = arith.constant 0 : index
    %c0_422 = arith.constant 0 : index
    %357 = vector.load %arg8[%c2_419, %c0_420, %c0_421, %c0_422] : memref<4x9x9x8xbf16, #tpu.memory_space<vmem>>, vector<1x8x8x8xbf16>
    %358 = vector.shape_cast %357 : vector<1x8x8x8xbf16> to vector<8x8x8xbf16>
    %359 = vector.shape_cast %358 : vector<8x8x8xbf16> to vector<64x8xbf16>
    %c4_423 = arith.constant 4 : index
    %c0_424 = arith.constant 0 : index
    %c0_425 = arith.constant 0 : index
    %360 = vector.load %arg4[%c4_423, %c0_424, %c0_425] : memref<16x8x8xbf16, #tpu.memory_space<vmem>>, vector<1x8x8xbf16>
    %361 = vector.shape_cast %360 : vector<1x8x8xbf16> to vector<8x8xbf16>
    %cst_426 = arith.constant dense<0.000000e+00> : vector<64x8xf32>
    %362 = tpu.matmul %359, %361, %cst_426 {dimension_numbers = #tpu.dot_dimension_numbers<[1], [0], [0], [1], [0, 0, 1, 1], [], []>} : vector<64x8xbf16>, vector<8x8xbf16>, vector<64x8xf32> -> vector<64x8xf32>
    %363 = arith.addf %356, %362 : vector<64x8xf32>
    %c3_427 = arith.constant 3 : index
    %c0_428 = arith.constant 0 : index
    %c0_429 = arith.constant 0 : index
    %c0_430 = arith.constant 0 : index
    %364 = vector.load %arg8[%c3_427, %c0_428, %c0_429, %c0_430] : memref<4x9x9x8xbf16, #tpu.memory_space<vmem>>, vector<1x8x8x8xbf16>
    %365 = vector.shape_cast %364 : vector<1x8x8x8xbf16> to vector<8x8x8xbf16>
    %366 = vector.shape_cast %365 : vector<8x8x8xbf16> to vector<64x8xbf16>
    %c5_431 = arith.constant 5 : index
    %c0_432 = arith.constant 0 : index
    %c0_433 = arith.constant 0 : index
    %367 = vector.load %arg4[%c5_431, %c0_432, %c0_433] : memref<16x8x8xbf16, #tpu.memory_space<vmem>>, vector<1x8x8xbf16>
    %368 = vector.shape_cast %367 : vector<1x8x8xbf16> to vector<8x8xbf16>
    %cst_434 = arith.constant dense<0.000000e+00> : vector<64x8xf32>
    %369 = tpu.matmul %366, %368, %cst_434 {dimension_numbers = #tpu.dot_dimension_numbers<[1], [0], [0], [1], [0, 0, 1, 1], [], []>} : vector<64x8xbf16>, vector<8x8xbf16>, vector<64x8xf32> -> vector<64x8xf32>
    %370 = arith.addf %363, %369 : vector<64x8xf32>
    %c2_435 = arith.constant 2 : index
    %c0_436 = arith.constant 0 : index
    %c1_437 = arith.constant 1 : index
    %c0_438 = arith.constant 0 : index
    %371 = vector.load %arg8[%c2_435, %c0_436, %c1_437, %c0_438] : memref<4x9x9x8xbf16, #tpu.memory_space<vmem>>, vector<1x8x8x8xbf16>
    %372 = vector.shape_cast %371 : vector<1x8x8x8xbf16> to vector<8x8x8xbf16>
    %373 = vector.shape_cast %372 : vector<8x8x8xbf16> to vector<64x8xbf16>
    %c6_439 = arith.constant 6 : index
    %c0_440 = arith.constant 0 : index
    %c0_441 = arith.constant 0 : index
    %374 = vector.load %arg4[%c6_439, %c0_440, %c0_441] : memref<16x8x8xbf16, #tpu.memory_space<vmem>>, vector<1x8x8xbf16>
    %375 = vector.shape_cast %374 : vector<1x8x8xbf16> to vector<8x8xbf16>
    %cst_442 = arith.constant dense<0.000000e+00> : vector<64x8xf32>
    %376 = tpu.matmul %373, %375, %cst_442 {dimension_numbers = #tpu.dot_dimension_numbers<[1], [0], [0], [1], [0, 0, 1, 1], [], []>} : vector<64x8xbf16>, vector<8x8xbf16>, vector<64x8xf32> -> vector<64x8xf32>
    %377 = arith.addf %370, %376 : vector<64x8xf32>
    %c3_443 = arith.constant 3 : index
    %c0_444 = arith.constant 0 : index
    %c1_445 = arith.constant 1 : index
    %c0_446 = arith.constant 0 : index
    %378 = vector.load %arg8[%c3_443, %c0_444, %c1_445, %c0_446] : memref<4x9x9x8xbf16, #tpu.memory_space<vmem>>, vector<1x8x8x8xbf16>
    %379 = vector.shape_cast %378 : vector<1x8x8x8xbf16> to vector<8x8x8xbf16>
    %380 = vector.shape_cast %379 : vector<8x8x8xbf16> to vector<64x8xbf16>
    %c7_447 = arith.constant 7 : index
    %c0_448 = arith.constant 0 : index
    %c0_449 = arith.constant 0 : index
    %381 = vector.load %arg4[%c7_447, %c0_448, %c0_449] : memref<16x8x8xbf16, #tpu.memory_space<vmem>>, vector<1x8x8xbf16>
    %382 = vector.shape_cast %381 : vector<1x8x8xbf16> to vector<8x8xbf16>
    %cst_450 = arith.constant dense<0.000000e+00> : vector<64x8xf32>
    %383 = tpu.matmul %380, %382, %cst_450 {dimension_numbers = #tpu.dot_dimension_numbers<[1], [0], [0], [1], [0, 0, 1, 1], [], []>} : vector<64x8xbf16>, vector<8x8xbf16>, vector<64x8xf32> -> vector<64x8xf32>
    %384 = arith.addf %377, %383 : vector<64x8xf32>
    %c0_451 = arith.constant 0 : index
    %c1_452 = arith.constant 1 : index
    %c0_453 = arith.constant 0 : index
    %c0_454 = arith.constant 0 : index
    %385 = vector.load %arg8[%c0_451, %c1_452, %c0_453, %c0_454] : memref<4x9x9x8xbf16, #tpu.memory_space<vmem>>, vector<1x8x8x8xbf16>
    %386 = vector.shape_cast %385 : vector<1x8x8x8xbf16> to vector<8x8x8xbf16>
    %387 = vector.shape_cast %386 : vector<8x8x8xbf16> to vector<64x8xbf16>
    %c8_455 = arith.constant 8 : index
    %c0_456 = arith.constant 0 : index
    %c0_457 = arith.constant 0 : index
    %388 = vector.load %arg4[%c8_455, %c0_456, %c0_457] : memref<16x8x8xbf16, #tpu.memory_space<vmem>>, vector<1x8x8xbf16>
    %389 = vector.shape_cast %388 : vector<1x8x8xbf16> to vector<8x8xbf16>
    %cst_458 = arith.constant dense<0.000000e+00> : vector<64x8xf32>
    %390 = tpu.matmul %387, %389, %cst_458 {dimension_numbers = #tpu.dot_dimension_numbers<[1], [0], [0], [1], [0, 0, 1, 1], [], []>} : vector<64x8xbf16>, vector<8x8xbf16>, vector<64x8xf32> -> vector<64x8xf32>
    %391 = arith.addf %384, %390 : vector<64x8xf32>
    %c1_459 = arith.constant 1 : index
    %c1_460 = arith.constant 1 : index
    %c0_461 = arith.constant 0 : index
    %c0_462 = arith.constant 0 : index
    %392 = vector.load %arg8[%c1_459, %c1_460, %c0_461, %c0_462] : memref<4x9x9x8xbf16, #tpu.memory_space<vmem>>, vector<1x8x8x8xbf16>
    %393 = vector.shape_cast %392 : vector<1x8x8x8xbf16> to vector<8x8x8xbf16>
    %394 = vector.shape_cast %393 : vector<8x8x8xbf16> to vector<64x8xbf16>
    %c9 = arith.constant 9 : index
    %c0_463 = arith.constant 0 : index
    %c0_464 = arith.constant 0 : index
    %395 = vector.load %arg4[%c9, %c0_463, %c0_464] : memref<16x8x8xbf16, #tpu.memory_space<vmem>>, vector<1x8x8xbf16>
    %396 = vector.shape_cast %395 : vector<1x8x8xbf16> to vector<8x8xbf16>
    %cst_465 = arith.constant dense<0.000000e+00> : vector<64x8xf32>
    %397 = tpu.matmul %394, %396, %cst_465 {dimension_numbers = #tpu.dot_dimension_numbers<[1], [0], [0], [1], [0, 0, 1, 1], [], []>} : vector<64x8xbf16>, vector<8x8xbf16>, vector<64x8xf32> -> vector<64x8xf32>
    %398 = arith.addf %391, %397 : vector<64x8xf32>
    %c0_466 = arith.constant 0 : index
    %c1_467 = arith.constant 1 : index
    %c1_468 = arith.constant 1 : index
    %c0_469 = arith.constant 0 : index
    %399 = vector.load %arg8[%c0_466, %c1_467, %c1_468, %c0_469] : memref<4x9x9x8xbf16, #tpu.memory_space<vmem>>, vector<1x8x8x8xbf16>
    %400 = vector.shape_cast %399 : vector<1x8x8x8xbf16> to vector<8x8x8xbf16>
    %401 = vector.shape_cast %400 : vector<8x8x8xbf16> to vector<64x8xbf16>
    %c10 = arith.constant 10 : index
    %c0_470 = arith.constant 0 : index
    %c0_471 = arith.constant 0 : index
    %402 = vector.load %arg4[%c10, %c0_470, %c0_471] : memref<16x8x8xbf16, #tpu.memory_space<vmem>>, vector<1x8x8xbf16>
    %403 = vector.shape_cast %402 : vector<1x8x8xbf16> to vector<8x8xbf16>
    %cst_472 = arith.constant dense<0.000000e+00> : vector<64x8xf32>
    %404 = tpu.matmul %401, %403, %cst_472 {dimension_numbers = #tpu.dot_dimension_numbers<[1], [0], [0], [1], [0, 0, 1, 1], [], []>} : vector<64x8xbf16>, vector<8x8xbf16>, vector<64x8xf32> -> vector<64x8xf32>
    %405 = arith.addf %398, %404 : vector<64x8xf32>
    %c1_473 = arith.constant 1 : index
    %c1_474 = arith.constant 1 : index
    %c1_475 = arith.constant 1 : index
    %c0_476 = arith.constant 0 : index
    %406 = vector.load %arg8[%c1_473, %c1_474, %c1_475, %c0_476] : memref<4x9x9x8xbf16, #tpu.memory_space<vmem>>, vector<1x8x8x8xbf16>
    %407 = vector.shape_cast %406 : vector<1x8x8x8xbf16> to vector<8x8x8xbf16>
    %408 = vector.shape_cast %407 : vector<8x8x8xbf16> to vector<64x8xbf16>
    %c11 = arith.constant 11 : index
    %c0_477 = arith.constant 0 : index
    %c0_478 = arith.constant 0 : index
    %409 = vector.load %arg4[%c11, %c0_477, %c0_478] : memref<16x8x8xbf16, #tpu.memory_space<vmem>>, vector<1x8x8xbf16>
    %410 = vector.shape_cast %409 : vector<1x8x8xbf16> to vector<8x8xbf16>
    %cst_479 = arith.constant dense<0.000000e+00> : vector<64x8xf32>
    %411 = tpu.matmul %408, %410, %cst_479 {dimension_numbers = #tpu.dot_dimension_numbers<[1], [0], [0], [1], [0, 0, 1, 1], [], []>} : vector<64x8xbf16>, vector<8x8xbf16>, vector<64x8xf32> -> vector<64x8xf32>
    %412 = arith.addf %405, %411 : vector<64x8xf32>
    %c2_480 = arith.constant 2 : index
    %c1_481 = arith.constant 1 : index
    %c0_482 = arith.constant 0 : index
    %c0_483 = arith.constant 0 : index
    %413 = vector.load %arg8[%c2_480, %c1_481, %c0_482, %c0_483] : memref<4x9x9x8xbf16, #tpu.memory_space<vmem>>, vector<1x8x8x8xbf16>
    %414 = vector.shape_cast %413 : vector<1x8x8x8xbf16> to vector<8x8x8xbf16>
    %415 = vector.shape_cast %414 : vector<8x8x8xbf16> to vector<64x8xbf16>
    %c12 = arith.constant 12 : index
    %c0_484 = arith.constant 0 : index
    %c0_485 = arith.constant 0 : index
    %416 = vector.load %arg4[%c12, %c0_484, %c0_485] : memref<16x8x8xbf16, #tpu.memory_space<vmem>>, vector<1x8x8xbf16>
    %417 = vector.shape_cast %416 : vector<1x8x8xbf16> to vector<8x8xbf16>
    %cst_486 = arith.constant dense<0.000000e+00> : vector<64x8xf32>
    %418 = tpu.matmul %415, %417, %cst_486 {dimension_numbers = #tpu.dot_dimension_numbers<[1], [0], [0], [1], [0, 0, 1, 1], [], []>} : vector<64x8xbf16>, vector<8x8xbf16>, vector<64x8xf32> -> vector<64x8xf32>
    %419 = arith.addf %412, %418 : vector<64x8xf32>
    %c3_487 = arith.constant 3 : index
    %c1_488 = arith.constant 1 : index
    %c0_489 = arith.constant 0 : index
    %c0_490 = arith.constant 0 : index
    %420 = vector.load %arg8[%c3_487, %c1_488, %c0_489, %c0_490] : memref<4x9x9x8xbf16, #tpu.memory_space<vmem>>, vector<1x8x8x8xbf16>
    %421 = vector.shape_cast %420 : vector<1x8x8x8xbf16> to vector<8x8x8xbf16>
    %422 = vector.shape_cast %421 : vector<8x8x8xbf16> to vector<64x8xbf16>
    %c13 = arith.constant 13 : index
    %c0_491 = arith.constant 0 : index
    %c0_492 = arith.constant 0 : index
    %423 = vector.load %arg4[%c13, %c0_491, %c0_492] : memref<16x8x8xbf16, #tpu.memory_space<vmem>>, vector<1x8x8xbf16>
    %424 = vector.shape_cast %423 : vector<1x8x8xbf16> to vector<8x8xbf16>
    %cst_493 = arith.constant dense<0.000000e+00> : vector<64x8xf32>
    %425 = tpu.matmul %422, %424, %cst_493 {dimension_numbers = #tpu.dot_dimension_numbers<[1], [0], [0], [1], [0, 0, 1, 1], [], []>} : vector<64x8xbf16>, vector<8x8xbf16>, vector<64x8xf32> -> vector<64x8xf32>
    %426 = arith.addf %419, %425 : vector<64x8xf32>
    %c2_494 = arith.constant 2 : index
    %c1_495 = arith.constant 1 : index
    %c1_496 = arith.constant 1 : index
    %c0_497 = arith.constant 0 : index
    %427 = vector.load %arg8[%c2_494, %c1_495, %c1_496, %c0_497] : memref<4x9x9x8xbf16, #tpu.memory_space<vmem>>, vector<1x8x8x8xbf16>
    %428 = vector.shape_cast %427 : vector<1x8x8x8xbf16> to vector<8x8x8xbf16>
    %429 = vector.shape_cast %428 : vector<8x8x8xbf16> to vector<64x8xbf16>
    %c14 = arith.constant 14 : index
    %c0_498 = arith.constant 0 : index
    %c0_499 = arith.constant 0 : index
    %430 = vector.load %arg4[%c14, %c0_498, %c0_499] : memref<16x8x8xbf16, #tpu.memory_space<vmem>>, vector<1x8x8xbf16>
    %431 = vector.shape_cast %430 : vector<1x8x8xbf16> to vector<8x8xbf16>
    %cst_500 = arith.constant dense<0.000000e+00> : vector<64x8xf32>
    %432 = tpu.matmul %429, %431, %cst_500 {dimension_numbers = #tpu.dot_dimension_numbers<[1], [0], [0], [1], [0, 0, 1, 1], [], []>} : vector<64x8xbf16>, vector<8x8xbf16>, vector<64x8xf32> -> vector<64x8xf32>
    %433 = arith.addf %426, %432 : vector<64x8xf32>
    %c3_501 = arith.constant 3 : index
    %c1_502 = arith.constant 1 : index
    %c1_503 = arith.constant 1 : index
    %c0_504 = arith.constant 0 : index
    %434 = vector.load %arg8[%c3_501, %c1_502, %c1_503, %c0_504] : memref<4x9x9x8xbf16, #tpu.memory_space<vmem>>, vector<1x8x8x8xbf16>
    %435 = vector.shape_cast %434 : vector<1x8x8x8xbf16> to vector<8x8x8xbf16>
    %436 = vector.shape_cast %435 : vector<8x8x8xbf16> to vector<64x8xbf16>
    %c15 = arith.constant 15 : index
    %c0_505 = arith.constant 0 : index
    %c0_506 = arith.constant 0 : index
    %437 = vector.load %arg4[%c15, %c0_505, %c0_506] : memref<16x8x8xbf16, #tpu.memory_space<vmem>>, vector<1x8x8xbf16>
    %438 = vector.shape_cast %437 : vector<1x8x8xbf16> to vector<8x8xbf16>
    %cst_507 = arith.constant dense<0.000000e+00> : vector<64x8xf32>
    %439 = tpu.matmul %436, %438, %cst_507 {dimension_numbers = #tpu.dot_dimension_numbers<[1], [0], [0], [1], [0, 0, 1, 1], [], []>} : vector<64x8xbf16>, vector<8x8xbf16>, vector<64x8xf32> -> vector<64x8xf32>
    %440 = arith.addf %433, %439 : vector<64x8xf32>
    %c0_508 = arith.constant 0 : index
    %c3_509 = arith.constant 3 : index
    %c0_510 = arith.constant 0 : index
    %c0_511 = arith.constant 0 : index
    %c0_512 = arith.constant 0 : index
    %441 = vector.load %arg1[%c0_508, %c3_509, %c0_510, %c0_511, %c0_512] : memref<1x4x9x9x4xbf16, #tpu.memory_space<vmem>>, vector<1x1x8x8x4xbf16>
    %442 = vector.shape_cast %441 : vector<1x1x8x8x4xbf16> to vector<8x8x4xbf16>
    %443 = vector.shape_cast %442 : vector<8x8x4xbf16> to vector<64x4xbf16>
    %c0_513 = arith.constant 0 : index
    %c0_514 = arith.constant 0 : index
    %444 = vector.load %arg5[%c0_513, %c0_514] : memref<4x8xbf16, #tpu.memory_space<vmem>>, vector<4x8xbf16>
    %cst_515 = arith.constant dense<0.000000e+00> : vector<64x8xf32>
    %445 = tpu.matmul %443, %444, %cst_515 {dimension_numbers = #tpu.dot_dimension_numbers<[1], [0], [0], [1], [0, 0, 1, 1], [], []>} : vector<64x4xbf16>, vector<4x8xbf16>, vector<64x8xf32> -> vector<64x8xf32>
    %446 = arith.addf %440, %445 : vector<64x8xf32>
    %c0_516 = arith.constant 0 : index
    %c2_517 = arith.constant 2 : index
    %c0_518 = arith.constant 0 : index
    %c1_519 = arith.constant 1 : index
    %c0_520 = arith.constant 0 : index
    %447 = vector.load %arg1[%c0_516, %c2_517, %c0_518, %c1_519, %c0_520] : memref<1x4x9x9x4xbf16, #tpu.memory_space<vmem>>, vector<1x1x8x8x4xbf16>
    %448 = vector.shape_cast %447 : vector<1x1x8x8x4xbf16> to vector<8x8x4xbf16>
    %449 = vector.shape_cast %448 : vector<8x8x4xbf16> to vector<64x4xbf16>
    %c0_521 = arith.constant 0 : index
    %c0_522 = arith.constant 0 : index
    %450 = vector.load %arg5[%c0_521, %c0_522] : memref<4x8xbf16, #tpu.memory_space<vmem>>, vector<4x8xbf16>
    %cst_523 = arith.constant dense<0.000000e+00> : vector<64x8xf32>
    %451 = tpu.matmul %449, %450, %cst_523 {dimension_numbers = #tpu.dot_dimension_numbers<[1], [0], [0], [1], [0, 0, 1, 1], [], []>} : vector<64x4xbf16>, vector<4x8xbf16>, vector<64x8xf32> -> vector<64x8xf32>
    %452 = arith.addf %446, %451 : vector<64x8xf32>
    %c0_524 = arith.constant 0 : index
    %c1_525 = arith.constant 1 : index
    %c1_526 = arith.constant 1 : index
    %c0_527 = arith.constant 0 : index
    %c0_528 = arith.constant 0 : index
    %453 = vector.load %arg1[%c0_524, %c1_525, %c1_526, %c0_527, %c0_528] : memref<1x4x9x9x4xbf16, #tpu.memory_space<vmem>>, vector<1x1x8x8x4xbf16>
    %454 = vector.shape_cast %453 : vector<1x1x8x8x4xbf16> to vector<8x8x4xbf16>
    %455 = vector.shape_cast %454 : vector<8x8x4xbf16> to vector<64x4xbf16>
    %c0_529 = arith.constant 0 : index
    %c0_530 = arith.constant 0 : index
    %456 = vector.load %arg5[%c0_529, %c0_530] : memref<4x8xbf16, #tpu.memory_space<vmem>>, vector<4x8xbf16>
    %cst_531 = arith.constant dense<0.000000e+00> : vector<64x8xf32>
    %457 = tpu.matmul %455, %456, %cst_531 {dimension_numbers = #tpu.dot_dimension_numbers<[1], [0], [0], [1], [0, 0, 1, 1], [], []>} : vector<64x4xbf16>, vector<4x8xbf16>, vector<64x8xf32> -> vector<64x8xf32>
    %458 = arith.addf %452, %457 : vector<64x8xf32>
    %c0_532 = arith.constant 0 : index
    %c0_533 = arith.constant 0 : index
    %c1_534 = arith.constant 1 : index
    %c1_535 = arith.constant 1 : index
    %c0_536 = arith.constant 0 : index
    %459 = vector.load %arg1[%c0_532, %c0_533, %c1_534, %c1_535, %c0_536] : memref<1x4x9x9x4xbf16, #tpu.memory_space<vmem>>, vector<1x1x8x8x4xbf16>
    %460 = vector.shape_cast %459 : vector<1x1x8x8x4xbf16> to vector<8x8x4xbf16>
    %461 = vector.shape_cast %460 : vector<8x8x4xbf16> to vector<64x4xbf16>
    %c0_537 = arith.constant 0 : index
    %c0_538 = arith.constant 0 : index
    %462 = vector.load %arg5[%c0_537, %c0_538] : memref<4x8xbf16, #tpu.memory_space<vmem>>, vector<4x8xbf16>
    %cst_539 = arith.constant dense<0.000000e+00> : vector<64x8xf32>
    %463 = tpu.matmul %461, %462, %cst_539 {dimension_numbers = #tpu.dot_dimension_numbers<[1], [0], [0], [1], [0, 0, 1, 1], [], []>} : vector<64x4xbf16>, vector<4x8xbf16>, vector<64x8xf32> -> vector<64x8xf32>
    %464 = arith.addf %458, %463 : vector<64x8xf32>
    %c0_540 = arith.constant 0 : index
    %c0_541 = arith.constant 0 : index
    %465 = vector.load %arg6[%c0_540, %c0_541] : memref<1x8xf32, #tpu.memory_space<vmem>>, vector<1x8xf32>
    %466 = vector.broadcast %465 : vector<1x8xf32> to vector<64x8xf32>
    %467 = arith.addf %464, %466 : vector<64x8xf32>
    %c0_542 = arith.constant 0 : index
    %c0_543 = arith.constant 0 : index
    %c0_544 = arith.constant 0 : index
    %468 = vector.load %arg7[%c0_542, %c0_543, %c0_544] : memref<1x64x8xf32, #tpu.memory_space<vmem>>, vector<1x64x8xf32>
    %469 = vector.shape_cast %468 : vector<1x64x8xf32> to vector<64x8xf32>
    %470 = vector.shape_cast %467 : vector<64x8xf32> to vector<1x64x8xf32>
    tpu.vector_store %arg7[%c0_542, %c0_543, %c0_544], %470 {strides = array<i32>} : memref<1x64x8xf32, #tpu.memory_space<vmem>>, vector<1x64x8xf32>,
    return
  }
  func.func @transform_0(%arg0: i32) -> (i32, i32, i32, i32, i32) {
    %c0_i32 = arith.constant 0 : i32
    %c0_i32_0 = arith.constant 0 : i32
    %c0_i32_1 = arith.constant 0 : i32
    %c0_i32_2 = arith.constant 0 : i32
    %c0_i32_3 = arith.constant 0 : i32
    return %arg0, %c0_i32, %c0_i32_0, %c0_i32_1, %c0_i32_2 : i32, i32, i32, i32, i32
  }
  func.func @transform_1(%arg0: i32) -> (i32, i32, i32) {
    %c0_i32 = arith.constant 0 : i32
    %c0_i32_0 = arith.constant 0 : i32
    %c0_i32_1 = arith.constant 0 : i32
    %c0_i32_2 = arith.constant 0 : i32
    return %c0_i32, %c0_i32_0, %c0_i32_1 : i32, i32, i32
  }
  func.func @transform_2(%arg0: i32) -> (i32, i32) {
    %c0_i32 = arith.constant 0 : i32
    %c0_i32_0 = arith.constant 0 : i32
    %c0_i32_1 = arith.constant 0 : i32
    return %c0_i32, %c0_i32_0 : i32, i32
  }
  func.func @transform_3(%arg0: i32) -> (i32, i32, i32) {
    %c0_i32 = arith.constant 0 : i32
    %c0_i32_0 = arith.constant 0 : i32
    %c0_i32_1 = arith.constant 0 : i32
    %c0_i32_2 = arith.constant 0 : i32
    return %c0_i32, %c0_i32_0, %c0_i32_1 : i32, i32, i32
  }
  func.func @transform_4(%arg0: i32) -> (i32, i32) {
    %c0_i32 = arith.constant 0 : i32
    %c0_i32_0 = arith.constant 0 : i32
    %c0_i32_1 = arith.constant 0 : i32
    return %c0_i32, %c0_i32_0 : i32, i32
  }
  func.func @transform_5(%arg0: i32) -> (i32, i32) {
    %c0_i32 = arith.constant 0 : i32
    %c0_i32_0 = arith.constant 0 : i32
    %c0_i32_1 = arith.constant 0 : i32
    return %c0_i32, %c0_i32_0 : i32, i32
  }
  func.func @transform_6(%arg0: i32) -> (i32, i32, i32) {
    %c0_i32 = arith.constant 0 : i32
    %c0_i32_0 = arith.constant 0 : i32
    %c0_i32_1 = arith.constant 0 : i32
    return %arg0, %c0_i32, %c0_i32_0 : i32, i32, i32
  }
}

</mosaic_0001>

<llo_original>
// kernel: tpu_custom_call.1
$region0: #{tpu_custom_call.1}
  #allocation0 [shape = 'u32[]', space=smem, size = 0x4, offset = 0x4, fixed_abs, tag = 'smem constant byte address 0x4 - core index']
  #allocation1 [shape = 'u32[144,128]{1,0:T(1,128)}', space=vmem, size = 0x12000, scoped, tag = 'internal scratch']
  #allocation2 [shape = 'bf16[4,9,9,8]{3,2,1,0:T(8,128)(2,1)}', space=vmem, size = 0x24000, scoped, tag = 'scratch operand']
  %s0 = inlined_call_operand.vmem [shape: bf16[2,4,9,9,4], index: 0, kind: input, shape index: {}]
  %s1 = inlined_call_operand.vmem [shape: bf16[9,4,8], index: 1, kind: input, shape index: {}]
  %s2 = inlined_call_operand.vmem [shape: f32[1,8], index: 2, kind: input, shape index: {}]
  %s3 = inlined_call_operand.vmem [shape: bf16[16,8,8], index: 3, kind: input, shape index: {}]
  %s4 = inlined_call_operand.vmem [shape: bf16[4,8], index: 4, kind: input, shape index: {}]
  %s5 = inlined_call_operand.vmem [shape: f32[1,8], index: 5, kind: input, shape index: {}]
  %s6 = inlined_call_operand.vmem [shape: f32[2,64,8], index: 6, kind: output, shape index: {}]
  %s7 = sld [smem:[#allocation0]]
  $region57: #{tpu_custom_call.1} parent=0
    _
  %s9 = ssub.s32 1, %s7
  %s10 = scalar_select 0, %s9, %s7
  loop: start=0, step=1, limit=4
  $region2: #{tpu_custom_call.1} parent=0 // loop_pre_header
    _
  $region3: #{tpu_custom_call.1} parent=0 // loop_header
    %s12 = sphi 0, %s16
    %p13 = scmp.ge.s32.totalorder %s12, 4
    %s22 = sphi 0, %s24
    %s25 = sphi 0, %s22
    %s26 = sphi 0, %s25
    %s42 = sphi 0, %s26
    %s46 = sphi 0, %s46
    %s48 = sphi 0, %s46
    %s49 = sphi 0, %s48
    %s63 = sphi 0, %s49
    %s67 = sphi 0, %s67
    %s69 = sphi 0, %s67
    %s70 = sphi 0, %s69
    %s84 = sphi 0, %s70
    %s88 = sphi 0, %s88
    %s90 = sphi 0, %s88
    %s91 = sphi 0, %s90
    %s105 = sphi 0, %s91
    %s109 = sphi 0, %s109
    %s111 = sphi 0, %s109
    %s112 = sphi 0, %s111
    %s126 = sphi 0, %s112
    %s130 = sphi 0, %s130
    %s132 = sphi 0, %s130
    %s133 = sphi 0, %s132
    %s147 = sphi 0, %s133
    %s153 = sphi 0, %s155
    %s156 = sphi 0, %s153
    %s157 = sphi 0, %s156
    %s173 = sphi 0, %s157
  $region4: #{tpu_custom_call.1} parent=0 // loop_header_branch
    %15 = sbr.rel (%p13) target = $region8
  $region5: #{tpu_custom_call.1} parent=0 // loop_body
    %s17 = ssub.s32 %s12, 1
    %s18 = ssub.s32 %s12, 2
    %s19 = sadd.s32 %s12, 1
    %s20 = ssub.s32 %s12, %s19
    %p21 = scmp.eq.s32.totalorder %s20, 0
    %s23 = sadd.s32 %s22, 1
    %s24 = scalar_select %p21, %s22, %s23
    %p27 = pneg %p21
    %p28 = scmp.eq.s32.totalorder %s12, 1
    %p29 = por %p27, %p28
    %p30 = scmp.ne.s32.totalorder %s22, %s25
    %p31 = scmp.eq.s32.totalorder %s12, 0
    %p32 = por %p30, %p31
    %p33 = scmp.ne.s32.totalorder %s22, %s25
    %p34 = scmp.eq.s32.totalorder %s17, 1
    %p35 = por %p33, %p34
    %p36 = scmp.ne.s32.totalorder %s25, %s26
    %p37 = scmp.eq.s32.totalorder %s17, 0
    %p38 = por %p36, %p37
    %p39 = scmp.ne.s32.totalorder %s25, %s26
    %p40 = scmp.eq.s32.totalorder %s18, 1
    %p41 = por %p39, %p40
    %p43 = scmp.ne.s32.totalorder %s26, %s42
    %p44 = scmp.eq.s32.totalorder %s18, 0
    %p45 = por %p43, %p44
    %s47 = sadd.s32 %s46, 1
    %p50 = scmp.eq.s32.totalorder %s12, 1
    %p51 = scmp.ne.s32.totalorder %s46, %s48
    %p52 = scmp.eq.s32.totalorder %s12, 0
    %p53 = por %p51, %p52
    %p54 = scmp.ne.s32.totalorder %s46, %s48
    %p55 = scmp.eq.s32.totalorder %s17, 1
    %p56 = por %p54, %p55
    %p57 = scmp.ne.s32.totalorder %s48, %s49
    %p58 = scmp.eq.s32.totalorder %s17, 0
    %p59 = por %p57, %p58
    %p60 = scmp.ne.s32.totalorder %s48, %s49
    %p61 = scmp.eq.s32.totalorder %s18, 1
    %p62 = por %p60, %p61
    %p64 = scmp.ne.s32.totalorder %s49, %s63
    %p65 = scmp.eq.s32.totalorder %s18, 0
    %p66 = por %p64, %p65
    %s68 = sadd.s32 %s67, 1
    %p71 = scmp.eq.s32.totalorder %s12, 1
    %p72 = scmp.ne.s32.totalorder %s67, %s69
    %p73 = scmp.eq.s32.totalorder %s12, 0
    %p74 = por %p72, %p73
    %p75 = scmp.ne.s32.totalorder %s67, %s69
    %p76 = scmp.eq.s32.totalorder %s17, 1
    %p77 = por %p75, %p76
    %p78 = scmp.ne.s32.totalorder %s69, %s70
    %p79 = scmp.eq.s32.totalorder %s17, 0
    %p80 = por %p78, %p79
    %p81 = scmp.ne.s32.totalorder %s69, %s70
    %p82 = scmp.eq.s32.totalorder %s18, 1
    %p83 = por %p81, %p82
    %p85 = scmp.ne.s32.totalorder %s70, %s84
    %p86 = scmp.eq.s32.totalorder %s18, 0
    %p87 = por %p85, %p86
    %s89 = sadd.s32 %s88, 1
    %p92 = scmp.eq.s32.totalorder %s12, 1
    %p93 = scmp.ne.s32.totalorder %s88, %s90
    %p94 = scmp.eq.s32.totalorder %s12, 0
    %p95 = por %p93, %p94
    %p96 = scmp.ne.s32.totalorder %s88, %s90
    %p97 = scmp.eq.s32.totalorder %s17, 1
    %p98 = por %p96, %p97
    %p99 = scmp.ne.s32.totalorder %s90, %s91
    %p100 = scmp.eq.s32.totalorder %s17, 0
    %p101 = por %p99, %p100
    %p102 = scmp.ne.s32.totalorder %s90, %s91
    %p103 = scmp.eq.s32.totalorder %s18, 1
    %p104 = por %p102, %p103
    %p106 = scmp.ne.s32.totalorder %s91, %s105
    %p107 = scmp.eq.s32.totalorder %s18, 0
    %p108 = por %p106, %p107
    %s110 = sadd.s32 %s109, 1
    %p113 = scmp.eq.s32.totalorder %s12, 1
    %p114 = scmp.ne.s32.totalorder %s109, %s111
    %p115 = scmp.eq.s32.totalorder %s12, 0
    %p116 = por %p114, %p115
    %p117 = scmp.ne.s32.totalorder %s109, %s111
    %p118 = scmp.eq.s32.totalorder %s17, 1
    %p119 = por %p117, %p118
    %p120 = scmp.ne.s32.totalorder %s111, %s112
    %p121 = scmp.eq.s32.totalorder %s17, 0
    %p122 = por %p120, %p121
    %p123 = scmp.ne.s32.totalorder %s111, %s112
    %p124 = scmp.eq.s32.totalorder %s18, 1
    %p125 = por %p123, %p124
    %p127 = scmp.ne.s32.totalorder %s112, %s126
    %p128 = scmp.eq.s32.totalorder %s18, 0
    %p129 = por %p127, %p128
    %s131 = sadd.s32 %s130, 1
    %p134 = scmp.eq.s32.totalorder %s12, 1
    %p135 = scmp.ne.s32.totalorder %s130, %s132
    %p136 = scmp.eq.s32.totalorder %s12, 0
    %p137 = por %p135, %p136
    %p138 = scmp.ne.s32.totalorder %s130, %s132
    %p139 = scmp.eq.s32.totalorder %s17, 1
    %p140 = por %p138, %p139
    %p141 = scmp.ne.s32.totalorder %s132, %s133
    %p142 = scmp.eq.s32.totalorder %s17, 0
    %p143 = por %p141, %p142
    %p144 = scmp.ne.s32.totalorder %s132, %s133
    %p145 = scmp.eq.s32.totalorder %s18, 1
    %p146 = por %p144, %p145
    %p148 = scmp.ne.s32.totalorder %s133, %s147
    %p149 = scmp.eq.s32.totalorder %s18, 0
    %p150 = por %p148, %p149
    %s151 = ssub.s32 %s12, %s19
    %p152 = scmp.eq.s32.totalorder %s151, 0
    %s154 = sadd.s32 %s153, 1
    %s155 = scalar_select %p152, %s153, %s154
    %p158 = pneg %p152
    %p159 = scmp.eq.s32.totalorder %s12, 1
    %p160 = por %p158, %p159
    %p161 = scmp.ne.s32.totalorder %s153, %s156
    %p162 = scmp.eq.s32.totalorder %s12, 0
    %p163 = por %p161, %p162
    %p164 = scmp.ne.s32.totalorder %s153, %s156
    %p165 = scmp.eq.s32.totalorder %s17, 1
    %p166 = por %p164, %p165
    %p167 = scmp.ne.s32.totalorder %s156, %s157
    %p168 = scmp.eq.s32.totalorder %s17, 0
    %p169 = por %p167, %p168
    %p170 = scmp.ne.s32.totalorder %s156, %s157
    %p171 = scmp.eq.s32.totalorder %s18, 1
    %p172 = por %p170, %p171
    %p174 = scmp.ne.s32.totalorder %s157, %s173
    %p175 = scmp.eq.s32.totalorder %s18, 0
    %p176 = por %p174, %p175
    %p177 = scmp.le.s32.totalorder 1, %s12
    %p178 = scmp.lt.s32.totalorder %s12, 3
    %p179 = pnand %p177, %p178
    %p180 = pneg %p179
    // Predicated region
    $region9: #{tpu_custom_call.1} parent=5 // pred_check
      _
    $region10: #{tpu_custom_call.1} parent=5 // pred_check_branch
      %182 = sbr.rel (%p179) target = $region12
    $region11: #{tpu_custom_call.1} parent=5 // pred_region
      %s183 = ssub.s32 %s12, 1
      // Predicated region
      $region13: #{tpu_custom_call.1} parent=11 // pred_check
        %p184 = pneg %p59
      $region14: #{tpu_custom_call.1} parent=11 // pred_check_branch
        %186 = sbr.rel (%p184) target = $region16
      $region15: #{tpu_custom_call.1} parent=11 // pred_region
        _
      $region16: #{tpu_custom_call.1} parent=11 // pred_fallthru
        _
      // Predicated region
      $region17: #{tpu_custom_call.1} parent=11 // pred_check
        %p187 = pneg %p80
      $region18: #{tpu_custom_call.1} parent=11 // pred_check_branch
        %189 = sbr.rel (%p187) target = $region20
      $region19: #{tpu_custom_call.1} parent=11 // pred_region
        _
      $region20: #{tpu_custom_call.1} parent=11 // pred_fallthru
        _
      // Predicated region
      $region21: #{tpu_custom_call.1} parent=11 // pred_check
        %p190 = pneg %p101
      $region22: #{tpu_custom_call.1} parent=11 // pred_check_branch
        %192 = sbr.rel (%p190) target = $region24
      $region23: #{tpu_custom_call.1} parent=11 // pred_region
        _
      $region24: #{tpu_custom_call.1} parent=11 // pred_fallthru
        _
      // Predicated region
      $region25: #{tpu_custom_call.1} parent=11 // pred_check
        %p193 = pneg %p122
      $region26: #{tpu_custom_call.1} parent=11 // pred_check_branch
        %195 = sbr.rel (%p193) target = $region28
      $region27: #{tpu_custom_call.1} parent=11 // pred_region
        _
      $region28: #{tpu_custom_call.1} parent=11 // pred_fallthru
        _
      // Predicated region
      $region29: #{tpu_custom_call.1} parent=11 // pred_check
        %p196 = pneg %p143
      $region30: #{tpu_custom_call.1} parent=11 // pred_check_branch
        %198 = sbr.rel (%p196) target = $region32
      $region31: #{tpu_custom_call.1} parent=11 // pred_region
        _
      $region32: #{tpu_custom_call.1} parent=11 // pred_fallthru
        _
    $region12: #{tpu_custom_call.1} parent=5 // pred_fallthru
      _
    %p199 = scmp.lt.s32.totalorder %s12, 2
    // Predicated region
    $region33: #{tpu_custom_call.1} parent=5 // pred_check
      %p200 = pneg %p199
    $region34: #{tpu_custom_call.1} parent=5 // pred_check_branch
      %202 = sbr.rel (%p200) target = $region36
    $region35: #{tpu_custom_call.1} parent=5 // pred_region
      // Predicated region
      $region37: #{tpu_custom_call.1} parent=35 // pred_check
        %p203 = pneg %p32
      $region38: #{tpu_custom_call.1} parent=35 // pred_check_branch
        %205 = sbr.rel (%p203) target = $region40
      $region39: #{tpu_custom_call.1} parent=35 // pred_region
        %p206 = scmp.lt.s32.totalorder %s12, 1
        %s207 = scalar_select %p206, %s12, 1
        %s208 = smul.addr %s207, 72
        %s209 = smul.addr %s208, 4
        %s210 = scalar_lea.vmem %s0, %s209
      $region40: #{tpu_custom_call.1} parent=35 // pred_fallthru
        _
    $region36: #{tpu_custom_call.1} parent=5 // pred_fallthru
      _
    %p211 = scmp.le.s32.totalorder 1, %s12
    %p212 = scmp.lt.s32.totalorder %s12, 3
    %p213 = pnand %p211, %p212
    %p214 = pneg %p213
    // Predicated region
    $region41: #{tpu_custom_call.1} parent=5 // pred_check
      _
    $region42: #{tpu_custom_call.1} parent=5 // pred_check_branch
      %216 = sbr.rel (%p213) target = $region44
    $region43: #{tpu_custom_call.1} parent=5 // pred_region
      %s217 = ssub.s32 %s12, 1
      %p218 = scmp.lt.s32.totalorder %s17, 1
      %s219 = scalar_select %p218, %s17, 1
      %s220 = smul.addr %s219, 72
      %s221 = smul.addr %s220, 4
      %s222 = scalar_lea.vmem %s0, %s221
      %p223 = pneg %p38
      %p224 = pneg %p35
      %p225 = pneg %p59
      %p226 = pneg %p56
      %p227 = pneg %p80
      %p228 = pneg %p77
      %p229 = pneg %p101
      %p230 = pneg %p98
      %p231 = pneg %p122
      %p232 = pneg %p119
      %p233 = pneg %p143
      %p234 = pneg %p140
      %p235 = pneg %p169
      %p236 = pneg %p166
      %p237 = scmp.lt.s32.totalorder %s17, 1
      %s238 = scalar_select %p237, %s17, 1
      %s239 = smul.addr %s238, 8
      %s240 = smul.addr %s239, 8
      %s241 = scalar_lea.vmem %s6, %s240
      %p242 = scmp.lt.s32.totalorder %s17, 1
      %s243 = scalar_select %p242, %s17, 1
      %s244 = smul.addr %s243, 72
      %s245 = smul.addr %s244, 4
      %s246 = scalar_lea.vmem %s0, %s245
      %p247 = scmp.lt.s32.totalorder %s17, 1
      %s248 = scalar_select %p247, %s17, 1
      %s249 = smul.addr %s248, 8
      %s250 = smul.addr %s249, 8
      %s251 = scalar_lea.vmem %s6, %s250
      %v253 = vld [vmem:[%s246] sm:$0xf]
      %v254 = vld [vmem:[%s246 + $0x8] sm:$0xf]
      %v255 = vld [vmem:[%s246 + $0x10] sm:$0xf]
      %v256 = vld [vmem:[%s246 + $0x18] sm:$0xf]
      %v257 = vld [vmem:[%s246 + $0x20] sm:$0xf]
      %v258 = vld [vmem:[%s246 + $0x28] sm:$0xf]
      %v259 = vld [vmem:[%s246 + $0x30] sm:$0xf]
      %v260 = vld [vmem:[%s246 + $0x38] sm:$0xf]
      %v261 = vld [vmem:[%s1] sm:$0x3]
      %s262 = scalar_lea.vmem %s246, 72
      %v263 = vld [vmem:[%s262] sm:$0xf]
      %v264 = vld [vmem:[%s262 + $0x8] sm:$0xf]
      %v265 = vld [vmem:[%s262 + $0x10] sm:$0xf]
      %v266 = vld [vmem:[%s262 + $0x18] sm:$0xf]
      %v267 = vld [vmem:[%s262 + $0x20] sm:$0xf]
      %v268 = vld [vmem:[%s262 + $0x28] sm:$0xf]
      %v269 = vld [vmem:[%s262 + $0x30] sm:$0xf]
      %v270 = vld [vmem:[%s262 + $0x38] sm:$0xf]
      %s271 = scalar_lea.vmem %s1, 2
      %v272 = vld [vmem:[%s271] sm:$0x3]
      %v281 = vunpack.c.l.b16 %v263
      %v282 = vunpack.c.l.b16 %v264
      %v283 = vunpack.c.l.b16 %v265
      %v284 = vunpack.c.l.b16 %v266
      %v285 = vunpack.c.l.b16 %v267
      %v286 = vunpack.c.l.b16 %v268
      %v287 = vunpack.c.l.b16 %v269
      %v288 = vunpack.c.l.b16 %v270
      %v289 = vpack.c.b16 %v282, %v281
      %v290 = vpack.c.b16 %v284, %v283
      %v291 = vpack.c.b16 %v286, %v285
      %v292 = vpack.c.b16 %v288, %v287
      %vm293 = vcmask 31744
      %v295 = vsel %vm293, %v289, 0
      %v298 = vsel %vm293, %v290, 0
      %v301 = vsel %vm293, %v291, 0
      %v304 = vsel %vm293, %v292, 0
      %vm306 = vcmask 1041408
      %v308 = vsel %vm306, %v272, 0
      %310 = vmatprep.subr.bf16.mxu0 0
      %311 = vmatpush1.bf16.msra.mxu0 0
      %312 = vmatprep.subr.bf16.mxu0 0
      %313 = vmatpush1.bf16.msra.mxu0 0
      %314 = vmatprep.subr.bf16.mxu0 0
      %315 = vmatpush1.bf16.msra.mxu0 0
      %316 = vmatprep.subr.bf16.mxu0 0
      %317 = vmatpush1.bf16.msra.mxu0 0
      %318 = vmatprep.subr.bf16.mxu0 0
      %319 = vmatpush1.bf16.msra.mxu0 0
      %320 = vmatprep.subr.bf16.mxu0 0
      %321 = vmatpush1.bf16.msra.mxu0 0
      %322 = vmatprep.subr.bf16.mxu0 0
      %323 = vmatpush1.bf16.msra.mxu0 0
      %324 = vmatprep.subr.bf16.mxu0 0
      %325 = vmatpush1.bf16.msra.mxu0 %v308
      %326 = vmatprep.subr.bf16.mxu0 0
      %327 = vmatpush2.bf16.msra.mxu0 0
      %328 = vmatprep.subr.bf16.mxu0 0
      %329 = vmatpush2.bf16.msra.mxu0 0
      %330 = vmatprep.subr.bf16.mxu0 0
      %331 = vmatpush2.bf16.msra.mxu0 0
      %332 = vmatprep.subr.bf16.mxu0 0
      %333 = vmatpush2.bf16.msra.mxu0 0
      %334 = vmatprep.subr.bf16.mxu0 0
      %335 = vmatpush2.bf16.msra.mxu0 0
      %336 = vmatprep.subr.bf16.mxu0 0
      %337 = vmatpush2.bf16.msra.mxu0 0
      %338 = vmatprep.subr.bf16.mxu0 0
      %339 = vmatpush2.bf16.msra.mxu0 0
      %340 = vmatprep.subr.bf16.mxu0 0
      %341 = vmatpush2.bf16.msra.mxu0 0
      %342 = vmatprep.mubr.bf16.mxu0 0
      %343 = vmatmul.mubr.bf16.gmra.mxu0 %v295
      %v344 = vpop.f32.mrf.mxu0
      %v345 = vadd.f32 0.0, %v344
      %v346 = vpop.f32.mrf.mxu0
      %v347 = vpop.f32.mrf.mxu0
      %v348 = vadd.f32 0.0, %v347
      %v349 = vpop.f32.mrf.mxu0
      %350 = vmatprep.mubr.bf16.mxu0 0
      %351 = vmatmul.mubr.bf16.gmra.mxu0 %v298
      %v352 = vpop.f32.mrf.mxu0
      %v353 = vadd.f32 0.0, %v352
      %v354 = vpop.f32.mrf.mxu0
      %v355 = vpop.f32.mrf.mxu0
      %v356 = vadd.f32 0.0, %v355
      %v357 = vpop.f32.mrf.mxu0
      %358 = vmatprep.mubr.bf16.mxu0 0
      %359 = vmatmul.mubr.bf16.gmra.mxu0 %v301
      %v360 = vpop.f32.mrf.mxu0
      %v361 = vadd.f32 0.0, %v360
      %v362 = vpop.f32.mrf.mxu0
      %v363 = vpop.f32.mrf.mxu0
      %v364 = vadd.f32 0.0, %v363
      %v365 = vpop.f32.mrf.mxu0
      %366 = vmatprep.mubr.bf16.mxu0 0
      %367 = vmatmul.mubr.bf16.gmra.mxu0 %v304
      %v368 = vpop.f32.mrf.mxu0
      %v369 = vadd.f32 0.0, %v368
      %v370 = vpop.f32.mrf.mxu0
      %v371 = vpop.f32.mrf.mxu0
      %v372 = vadd.f32 0.0, %v371
      %v373 = vpop.f32.mrf.mxu0
      %374 = vdwg.mxu0
      %v383 = vunpack.c.l.b16 %v253
      %v384 = vunpack.c.l.b16 %v254
      %v385 = vunpack.c.l.b16 %v255
      %v386 = vunpack.c.l.b16 %v256
      %v387 = vunpack.c.l.b16 %v257
      %v388 = vunpack.c.l.b16 %v258
      %v389 = vunpack.c.l.b16 %v259
      %v390 = vunpack.c.l.b16 %v260
      %v391 = vpack.c.b16 %v384, %v383
      %v392 = vpack.c.b16 %v386, %v385
      %v393 = vpack.c.b16 %v388, %v387
      %v394 = vpack.c.b16 %v390, %v389
      %v396 = vsel %vm293, %v391, 0
      %v399 = vsel %vm293, %v392, 0
      %v402 = vsel %vm293, %v393, 0
      %v405 = vsel %vm293, %v394, 0
      %v408 = vsel %vm306, %v261, 0
      %410 = vmatprep.subr.bf16.mxu0 0
      %411 = vmatpush1.bf16.msra.mxu0 0
      %412 = vmatprep.subr.bf16.mxu0 0
      %413 = vmatpush1.bf16.msra.mxu0 0
      %414 = vmatprep.subr.bf16.mxu0 0
      %415 = vmatpush1.bf16.msra.mxu0 0
      %416 = vmatprep.subr.bf16.mxu0 0
      %417 = vmatpush1.bf16.msra.mxu0 0
      %418 = vmatprep.subr.bf16.mxu0 0
      %419 = vmatpush1.bf16.msra.mxu0 0
      %420 = vmatprep.subr.bf16.mxu0 0
      %421 = vmatpush1.bf16.msra.mxu0 0
      %422 = vmatprep.subr.bf16.mxu0 0
      %423 = vmatpush1.bf16.msra.mxu0 0
      %424 = vmatprep.subr.bf16.mxu0 0
      %425 = vmatpush1.bf16.msra.mxu0 %v408
      %426 = vmatprep.subr.bf16.mxu0 0
      %427 = vmatpush2.bf16.msra.mxu0 0
      %428 = vmatprep.subr.bf16.mxu0 0
      %429 = vmatpush2.bf16.msra.mxu0 0
      %430 = vmatprep.subr.bf16.mxu0 0
      %431 = vmatpush2.bf16.msra.mxu0 0
      %432 = vmatprep.subr.bf16.mxu0 0
      %433 = vmatpush2.bf16.msra.mxu0 0
      %434 = vmatprep.subr.bf16.mxu0 0
      %435 = vmatpush2.bf16.msra.mxu0 0
      %436 = vmatprep.subr.bf16.mxu0 0
      %437 = vmatpush2.bf16.msra.mxu0 0
      %438 = vmatprep.subr.bf16.mxu0 0
      %439 = vmatpush2.bf16.msra.mxu0 0
      %440 = vmatprep.subr.bf16.mxu0 0
      %441 = vmatpush2.bf16.msra.mxu0 0
      %442 = vmatprep.mubr.bf16.mxu0 0
      %443 = vmatmul.mubr.bf16.gmra.mxu0 %v396
      %v444 = vpop.f32.mrf.mxu0
      %v445 = vadd.f32 %v345, %v444
      %v446 = vpop.f32.mrf.mxu0
      %v447 = vpop.f32.mrf.mxu0
      %v448 = vadd.f32 %v348, %v447
      %v449 = vpop.f32.mrf.mxu0
      %450 = vmatprep.mubr.bf16.mxu0 0
      %451 = vmatmul.mubr.bf16.gmra.mxu0 %v399
      %v452 = vpop.f32.mrf.mxu0
      %v453 = vadd.f32 %v353, %v452
      %v454 = vpop.f32.mrf.mxu0
      %v455 = vpop.f32.mrf.mxu0
      %v456 = vadd.f32 %v356, %v455
      %v457 = vpop.f32.mrf.mxu0
      %458 = vmatprep.mubr.bf16.mxu0 0
      %459 = vmatmul.mubr.bf16.gmra.mxu0 %v402
      %v460 = vpop.f32.mrf.mxu0
      %v461 = vadd.f32 %v361, %v460
      %v462 = vpop.f32.mrf.mxu0
      %v463 = vpop.f32.mrf.mxu0
      %v464 = vadd.f32 %v364, %v463
      %v465 = vpop.f32.mrf.mxu0
      %466 = vmatprep.mubr.bf16.mxu0 0
      %467 = vmatmul.mubr.bf16.gmra.mxu0 %v405
      %v468 = vpop.f32.mrf.mxu0
      %v469 = vadd.f32 %v369, %v468
      %v470 = vpop.f32.mrf.mxu0
      %v471 = vpop.f32.mrf.mxu0
      %v472 = vadd.f32 %v372, %v471
      %v473 = vpop.f32.mrf.mxu0
      %474 = vdwg.mxu0
      %v475 = vld [vmem:[%s246] sm:$0xf]
      %v476 = vld [vmem:[%s246 + $0x4] sm:$0x1]
      %v477 = vld [vmem:[%s246 + $0x8] sm:$0xf]
      %v478 = vld [vmem:[%s246 + $0xc] sm:$0x1]
      %v479 = vld [vmem:[%s246 + $0x10] sm:$0xf]
      %v480 = vld [vmem:[%s246 + $0x14] sm:$0x1]
      %v481 = vld [vmem:[%s246 + $0x18] sm:$0xf]
      %v482 = vld [vmem:[%s246 + $0x1c] sm:$0x1]
      %v483 = vld [vmem:[%s246 + $0x20] sm:$0xf]
      %v484 = vld [vmem:[%s246 + $0x24] sm:$0x1]
      %v485 = vld [vmem:[%s246 + $0x28] sm:$0xf]
      %v486 = vld [vmem:[%s246 + $0x2c] sm:$0x1]
      %v487 = vld [vmem:[%s246 + $0x30] sm:$0xf]
      %v488 = vld [vmem:[%s246 + $0x34] sm:$0x1]
      %v489 = vld [vmem:[%s246 + $0x38] sm:$0xf]
      %v490 = vld [vmem:[%s246 + $0x3c] sm:$0x1]
      %vm491 = vsmask.f32 3328
      %vm492 = vsmask.f32 7440
      %vm493 = vmor %vm491, %vm492
      %v495 = vshrl.u32 %v475, 16
      %v497 = vrot.slane %v495, 4
      %v498 = vshll.u32 %v475, 16
      %v500 = vrot.slane %v498, 5
      %v501 = vor.u32 %v497, %v500
      %v502 = vrot.slane %v501, 4
      %v504 = vshll.u32 %v476, 16
      %v506 = vrot.slane %v504, 5
      %v507 = vsel %vm493, %v502, %v506
      %v509 = vshrl.u32 %v477, 16
      %v511 = vrot.slane %v509, 4
      %v512 = vshll.u32 %v477, 16
      %v514 = vrot.slane %v512, 5
      %v515 = vor.u32 %v511, %v514
      %v516 = vrot.slane %v515, 4
      %v518 = vshll.u32 %v478, 16
      %v520 = vrot.slane %v518, 5
      %v521 = vsel %vm493, %v516, %v520
      %v523 = vshrl.u32 %v479, 16
      %v525 = vrot.slane %v523, 4
      %v526 = vshll.u32 %v479, 16
      %v528 = vrot.slane %v526, 5
      %v529 = vor.u32 %v525, %v528
      %v530 = vrot.slane %v529, 4
      %v532 = vshll.u32 %v480, 16
      %v534 = vrot.slane %v532, 5
      %v535 = vsel %vm493, %v530, %v534
      %v537 = vshrl.u32 %v481, 16
      %v539 = vrot.slane %v537, 4
      %v540 = vshll.u32 %v481, 16
      %v542 = vrot.slane %v540, 5
      %v543 = vor.u32 %v539, %v542
      %v544 = vrot.slane %v543, 4
      %v546 = vshll.u32 %v482, 16
      %v548 = vrot.slane %v546, 5
      %v549 = vsel %vm493, %v544, %v548
      %v551 = vshrl.u32 %v483, 16
      %v553 = vrot.slane %v551, 4
      %v554 = vshll.u32 %v483, 16
      %v556 = vrot.slane %v554, 5
      %v557 = vor.u32 %v553, %v556
      %v558 = vrot.slane %v557, 4
      %v560 = vshll.u32 %v484, 16
      %v562 = vrot.slane %v560, 5
      %v563 = vsel %vm493, %v558, %v562
      %v565 = vshrl.u32 %v485, 16
      %v567 = vrot.slane %v565, 4
      %v568 = vshll.u32 %v485, 16
      %v570 = vrot.slane %v568, 5
      %v571 = vor.u32 %v567, %v570
      %v572 = vrot.slane %v571, 4
      %v574 = vshll.u32 %v486, 16
      %v576 = vrot.slane %v574, 5
      %v577 = vsel %vm493, %v572, %v576
      %v579 = vshrl.u32 %v487, 16
      %v581 = vrot.slane %v579, 4
      %v582 = vshll.u32 %v487, 16
      %v584 = vrot.slane %v582, 5
      %v585 = vor.u32 %v581, %v584
      %v586 = vrot.slane %v585, 4
      %v588 = vshll.u32 %v488, 16
      %v590 = vrot.slane %v588, 5
      %v591 = vsel %vm493, %v586, %v590
      %v593 = vshrl.u32 %v489, 16
      %v595 = vrot.slane %v593, 4
      %v596 = vshll.u32 %v489, 16
      %v598 = vrot.slane %v596, 5
      %v599 = vor.u32 %v595, %v598
      %v600 = vrot.slane %v599, 4
      %v602 = vshll.u32 %v490, 16
      %v604 = vrot.slane %v602, 5
      %v605 = vsel %vm493, %v600, %v604
      %s606 = scalar_lea.vmem %s1, 4
      %v607 = vld [vmem:[%s606] sm:$0x3]
      %v608 = vunpack.c.l.b16 %v507
      %v609 = vunpack.c.l.b16 %v521
      %v610 = vunpack.c.l.b16 %v535
      %v611 = vunpack.c.l.b16 %v549
      %v612 = vunpack.c.l.b16 %v563
      %v613 = vunpack.c.l.b16 %v577
      %v614 = vunpack.c.l.b16 %v591
      %v615 = vunpack.c.l.b16 %v605
      %v616 = vpack.c.b16 %v609, %v608
      %v617 = vpack.c.b16 %v611, %v610
      %v618 = vpack.c.b16 %v613, %v612
      %v619 = vpack.c.b16 %v615, %v614
      %v621 = vsel %vm293, %v616, 0
      %v624 = vsel %vm293, %v617, 0
      %v627 = vsel %vm293, %v618, 0
      %v630 = vsel %vm293, %v619, 0
      %v633 = vsel %vm306, %v607, 0
      %635 = vmatprep.subr.bf16.mxu0 0
      %636 = vmatpush1.bf16.msra.mxu0 0
      %637 = vmatprep.subr.bf16.mxu0 0
      %638 = vmatpush1.bf16.msra.mxu0 0
      %639 = vmatprep.subr.bf16.mxu0 0
      %640 = vmatpush1.bf16.msra.mxu0 0
      %641 = vmatprep.subr.bf16.mxu0 0
      %642 = vmatpush1.bf16.msra.mxu0 0
      %643 = vmatprep.subr.bf16.mxu0 0
      %644 = vmatpush1.bf16.msra.mxu0 0
      %645 = vmatprep.subr.bf16.mxu0 0
      %646 = vmatpush1.bf16.msra.mxu0 0
      %647 = vmatprep.subr.bf16.mxu0 0
      %648 = vmatpush1.bf16.msra.mxu0 0
      %649 = vmatprep.subr.bf16.mxu0 0
      %650 = vmatpush1.bf16.msra.mxu0 %v633
      %651 = vmatprep.subr.bf16.mxu0 0
      %652 = vmatpush2.bf16.msra.mxu0 0
      %653 = vmatprep.subr.bf16.mxu0 0
      %654 = vmatpush2.bf16.msra.mxu0 0
      %655 = vmatprep.subr.bf16.mxu0 0
      %656 = vmatpush2.bf16.msra.mxu0 0
      %657 = vmatprep.subr.bf16.mxu0 0
      %658 = vmatpush2.bf16.msra.mxu0 0
      %659 = vmatprep.subr.bf16.mxu0 0
      %660 = vmatpush2.bf16.msra.mxu0 0
      %661 = vmatprep.subr.bf16.mxu0 0
      %662 = vmatpush2.bf16.msra.mxu0 0
      %663 = vmatprep.subr.bf16.mxu0 0
      %664 = vmatpush2.bf16.msra.mxu0 0
      %665 = vmatprep.subr.bf16.mxu0 0
      %666 = vmatpush2.bf16.msra.mxu0 0
      %667 = vmatprep.mubr.bf16.mxu0 0
      %668 = vmatmul.mubr.bf16.gmra.mxu0 %v621
      %v669 = vpop.f32.mrf.mxu0
      %v670 = vadd.f32 0.0, %v669
      %v671 = vpop.f32.mrf.mxu0
      %v672 = vpop.f32.mrf.mxu0
      %v673 = vadd.f32 0.0, %v672
      %v674 = vpop.f32.mrf.mxu0
      %675 = vmatprep.mubr.bf16.mxu0 0
      %676 = vmatmul.mubr.bf16.gmra.mxu0 %v624
      %v677 = vpop.f32.mrf.mxu0
      %v678 = vadd.f32 0.0, %v677
      %v679 = vpop.f32.mrf.mxu0
      %v680 = vpop.f32.mrf.mxu0
      %v681 = vadd.f32 0.0, %v680
      %v682 = vpop.f32.mrf.mxu0
      %683 = vmatprep.mubr.bf16.mxu0 0
      %684 = vmatmul.mubr.bf16.gmra.mxu0 %v627
      %v685 = vpop.f32.mrf.mxu0
      %v686 = vadd.f32 0.0, %v685
      %v687 = vpop.f32.mrf.mxu0
      %v688 = vpop.f32.mrf.mxu0
      %v689 = vadd.f32 0.0, %v688
      %v690 = vpop.f32.mrf.mxu0
      %691 = vmatprep.mubr.bf16.mxu0 0
      %692 = vmatmul.mubr.bf16.gmra.mxu0 %v630
      %v693 = vpop.f32.mrf.mxu0
      %v694 = vadd.f32 0.0, %v693
      %v695 = vpop.f32.mrf.mxu0
      %v696 = vpop.f32.mrf.mxu0
      %v697 = vadd.f32 0.0, %v696
      %v698 = vpop.f32.mrf.mxu0
      %699 = vdwg.mxu0
      %v700 = vadd.f32 %v445, %v670
      %v701 = vadd.f32 %v448, %v673
      %v702 = vadd.f32 %v453, %v678
      %v703 = vadd.f32 %v456, %v681
      %v704 = vadd.f32 %v461, %v686
      %v705 = vadd.f32 %v464, %v689
      %v706 = vadd.f32 %v469, %v694
      %v707 = vadd.f32 %v472, %v697
      %s708 = scalar_lea.vmem %s246, 144
      %v709 = vld [vmem:[%s708] sm:$0xf]
      %v710 = vld [vmem:[%s708 + $0x8] sm:$0xf]
      %v711 = vld [vmem:[%s708 + $0x10] sm:$0xf]
      %v712 = vld [vmem:[%s708 + $0x18] sm:$0xf]
      %v713 = vld [vmem:[%s708 + $0x20] sm:$0xf]
      %v714 = vld [vmem:[%s708 + $0x28] sm:$0xf]
      %v715 = vld [vmem:[%s708 + $0x30] sm:$0xf]
      %v716 = vld [vmem:[%s708 + $0x38] sm:$0xf]
      %s717 = scalar_lea.vmem %s1, 6
      %v718 = vld [vmem:[%s717] sm:$0x3]
      %v727 = vunpack.c.l.b16 %v709
      %v728 = vunpack.c.l.b16 %v710
      %v729 = vunpack.c.l.b16 %v711
      %v730 = vunpack.c.l.b16 %v712
      %v731 = vunpack.c.l.b16 %v713
      %v732 = vunpack.c.l.b16 %v714
      %v733 = vunpack.c.l.b16 %v715
      %v734 = vunpack.c.l.b16 %v716
      %v735 = vpack.c.b16 %v728, %v727
      %v736 = vpack.c.b16 %v730, %v729
      %v737 = vpack.c.b16 %v732, %v731
      %v738 = vpack.c.b16 %v734, %v733
      %v740 = vsel %vm293, %v735, 0
      %v743 = vsel %vm293, %v736, 0
      %v746 = vsel %vm293, %v737, 0
      %v749 = vsel %vm293, %v738, 0
      %v752 = vsel %vm306, %v718, 0
      %754 = vmatprep.subr.bf16.mxu0 0
      %755 = vmatpush1.bf16.msra.mxu0 0
      %756 = vmatprep.subr.bf16.mxu0 0
      %757 = vmatpush1.bf16.msra.mxu0 0
      %758 = vmatprep.subr.bf16.mxu0 0
      %759 = vmatpush1.bf16.msra.mxu0 0
      %760 = vmatprep.subr.bf16.mxu0 0
      %761 = vmatpush1.bf16.msra.mxu0 0
      %762 = vmatprep.subr.bf16.mxu0 0
      %763 = vmatpush1.bf16.msra.mxu0 0
      %764 = vmatprep.subr.bf16.mxu0 0
      %765 = vmatpush1.bf16.msra.mxu0 0
      %766 = vmatprep.subr.bf16.mxu0 0
      %767 = vmatpush1.bf16.msra.mxu0 0
      %768 = vmatprep.subr.bf16.mxu0 0
      %769 = vmatpush1.bf16.msra.mxu0 %v752
      %770 = vmatprep.subr.bf16.mxu0 0
      %771 = vmatpush2.bf16.msra.mxu0 0
      %772 = vmatprep.subr.bf16.mxu0 0
      %773 = vmatpush2.bf16.msra.mxu0 0
      %774 = vmatprep.subr.bf16.mxu0 0
      %775 = vmatpush2.bf16.msra.mxu0 0
      %776 = vmatprep.subr.bf16.mxu0 0
      %777 = vmatpush2.bf16.msra.mxu0 0
      %778 = vmatprep.subr.bf16.mxu0 0
      %779 = vmatpush2.bf16.msra.mxu0 0
      %780 = vmatprep.subr.bf16.mxu0 0
      %781 = vmatpush2.bf16.msra.mxu0 0
      %782 = vmatprep.subr.bf16.mxu0 0
      %783 = vmatpush2.bf16.msra.mxu0 0
      %784 = vmatprep.subr.bf16.mxu0 0
      %785 = vmatpush2.bf16.msra.mxu0 0
      %786 = vmatprep.mubr.bf16.mxu0 0
      %787 = vmatmul.mubr.bf16.gmra.mxu0 %v740
      %v788 = vpop.f32.mrf.mxu0
      %v789 = vadd.f32 0.0, %v788
      %v790 = vpop.f32.mrf.mxu0
      %v791 = vpop.f32.mrf.mxu0
      %v792 = vadd.f32 0.0, %v791
      %v793 = vpop.f32.mrf.mxu0
      %794 = vmatprep.mubr.bf16.mxu0 0
      %795 = vmatmul.mubr.bf16.gmra.mxu0 %v743
      %v796 = vpop.f32.mrf.mxu0
      %v797 = vadd.f32 0.0, %v796
      %v798 = vpop.f32.mrf.mxu0
      %v799 = vpop.f32.mrf.mxu0
      %v800 = vadd.f32 0.0, %v799
      %v801 = vpop.f32.mrf.mxu0
      %802 = vmatprep.mubr.bf16.mxu0 0
      %803 = vmatmul.mubr.bf16.gmra.mxu0 %v746
      %v804 = vpop.f32.mrf.mxu0
      %v805 = vadd.f32 0.0, %v804
      %v806 = vpop.f32.mrf.mxu0
      %v807 = vpop.f32.mrf.mxu0
      %v808 = vadd.f32 0.0, %v807
      %v809 = vpop.f32.mrf.mxu0
      %810 = vmatprep.mubr.bf16.mxu0 0
      %811 = vmatmul.mubr.bf16.gmra.mxu0 %v749
      %v812 = vpop.f32.mrf.mxu0
      %v813 = vadd.f32 0.0, %v812
      %v814 = vpop.f32.mrf.mxu0
      %v815 = vpop.f32.mrf.mxu0
      %v816 = vadd.f32 0.0, %v815
      %v817 = vpop.f32.mrf.mxu0
      %818 = vdwg.mxu0
      %v819 = vadd.f32 %v700, %v789
      %v820 = vadd.f32 %v701, %v792
      %v821 = vadd.f32 %v702, %v797
      %v822 = vadd.f32 %v703, %v800
      %v823 = vadd.f32 %v704, %v805
      %v824 = vadd.f32 %v705, %v808
      %v825 = vadd.f32 %v706, %v813
      %v826 = vadd.f32 %v707, %v816
      %s827 = scalar_lea.vmem %s246, 216
      %v828 = vld [vmem:[%s827] sm:$0xf]
      %v829 = vld [vmem:[%s827 + $0x8] sm:$0xf]
      %v830 = vld [vmem:[%s827 + $0x10] sm:$0xf]
      %v831 = vld [vmem:[%s827 + $0x18] sm:$0xf]
      %v832 = vld [vmem:[%s827 + $0x20] sm:$0xf]
      %v833 = vld [vmem:[%s827 + $0x28] sm:$0xf]
      %v834 = vld [vmem:[%s827 + $0x30] sm:$0xf]
      %v835 = vld [vmem:[%s827 + $0x38] sm:$0xf]
      %s836 = scalar_lea.vmem %s1, 8
      %v837 = vld [vmem:[%s836] sm:$0x3]
      %v846 = vunpack.c.l.b16 %v828
      %v847 = vunpack.c.l.b16 %v829
      %v848 = vunpack.c.l.b16 %v830
      %v849 = vunpack.c.l.b16 %v831
      %v850 = vunpack.c.l.b16 %v832
      %v851 = vunpack.c.l.b16 %v833
      %v852 = vunpack.c.l.b16 %v834
      %v853 = vunpack.c.l.b16 %v835
      %v854 = vpack.c.b16 %v847, %v846
      %v855 = vpack.c.b16 %v849, %v848
      %v856 = vpack.c.b16 %v851, %v850
      %v857 = vpack.c.b16 %v853, %v852
      %v859 = vsel %vm293, %v854, 0
      %v862 = vsel %vm293, %v855, 0
      %v865 = vsel %vm293, %v856, 0
      %v868 = vsel %vm293, %v857, 0
      %v871 = vsel %vm306, %v837, 0
      %873 = vmatprep.subr.bf16.mxu0 0
      %874 = vmatpush1.bf16.msra.mxu0 0
      %875 = vmatprep.subr.bf16.mxu0 0
      %876 = vmatpush1.bf16.msra.mxu0 0
      %877 = vmatprep.subr.bf16.mxu0 0
      %878 = vmatpush1.bf16.msra.mxu0 0
      %879 = vmatprep.subr.bf16.mxu0 0
      %880 = vmatpush1.bf16.msra.mxu0 0
      %881 = vmatprep.subr.bf16.mxu0 0
      %882 = vmatpush1.bf16.msra.mxu0 0
      %883 = vmatprep.subr.bf16.mxu0 0
      %884 = vmatpush1.bf16.msra.mxu0 0
      %885 = vmatprep.subr.bf16.mxu0 0
      %886 = vmatpush1.bf16.msra.mxu0 0
      %887 = vmatprep.subr.bf16.mxu0 0
      %888 = vmatpush1.bf16.msra.mxu0 %v871
      %889 = vmatprep.subr.bf16.mxu0 0
      %890 = vmatpush2.bf16.msra.mxu0 0
      %891 = vmatprep.subr.bf16.mxu0 0
      %892 = vmatpush2.bf16.msra.mxu0 0
      %893 = vmatprep.subr.bf16.mxu0 0
      %894 = vmatpush2.bf16.msra.mxu0 0
      %895 = vmatprep.subr.bf16.mxu0 0
      %896 = vmatpush2.bf16.msra.mxu0 0
      %897 = vmatprep.subr.bf16.mxu0 0
      %898 = vmatpush2.bf16.msra.mxu0 0
      %899 = vmatprep.subr.bf16.mxu0 0
      %900 = vmatpush2.bf16.msra.mxu0 0
      %901 = vmatprep.subr.bf16.mxu0 0
      %902 = vmatpush2.bf16.msra.mxu0 0
      %903 = vmatprep.subr.bf16.mxu0 0
      %904 = vmatpush2.bf16.msra.mxu0 0
      %905 = vmatprep.mubr.bf16.mxu0 0
      %906 = vmatmul.mubr.bf16.gmra.mxu0 %v859
      %v907 = vpop.f32.mrf.mxu0
      %v908 = vadd.f32 0.0, %v907
      %v909 = vpop.f32.mrf.mxu0
      %v910 = vpop.f32.mrf.mxu0
      %v911 = vadd.f32 0.0, %v910
      %v912 = vpop.f32.mrf.mxu0
      %913 = vmatprep.mubr.bf16.mxu0 0
      %914 = vmatmul.mubr.bf16.gmra.mxu0 %v862
      %v915 = vpop.f32.mrf.mxu0
      %v916 = vadd.f32 0.0, %v915
      %v917 = vpop.f32.mrf.mxu0
      %v918 = vpop.f32.mrf.mxu0
      %v919 = vadd.f32 0.0, %v918
      %v920 = vpop.f32.mrf.mxu0
      %921 = vmatprep.mubr.bf16.mxu0 0
      %922 = vmatmul.mubr.bf16.gmra.mxu0 %v865
      %v923 = vpop.f32.mrf.mxu0
      %v924 = vadd.f32 0.0, %v923
      %v925 = vpop.f32.mrf.mxu0
      %v926 = vpop.f32.mrf.mxu0
      %v927 = vadd.f32 0.0, %v926
      %v928 = vpop.f32.mrf.mxu0
      %929 = vmatprep.mubr.bf16.mxu0 0
      %930 = vmatmul.mubr.bf16.gmra.mxu0 %v868
      %v931 = vpop.f32.mrf.mxu0
      %v932 = vadd.f32 0.0, %v931
      %v933 = vpop.f32.mrf.mxu0
      %v934 = vpop.f32.mrf.mxu0
      %v935 = vadd.f32 0.0, %v934
      %v936 = vpop.f32.mrf.mxu0
      %937 = vdwg.mxu0
      %v938 = vadd.f32 %v819, %v908
      %v939 = vadd.f32 %v820, %v911
      %v940 = vadd.f32 %v821, %v916
      %v941 = vadd.f32 %v822, %v919
      %v942 = vadd.f32 %v823, %v924
      %v943 = vadd.f32 %v824, %v927
      %v944 = vadd.f32 %v825, %v932
      %v945 = vadd.f32 %v826, %v935
      %v946 = vld [vmem:[%s708] sm:$0xf]
      %v947 = vld [vmem:[%s708 + $0x4] sm:$0x1]
      %v948 = vld [vmem:[%s708 + $0x8] sm:$0xf]
      %v949 = vld [vmem:[%s708 + $0xc] sm:$0x1]
      %v950 = vld [vmem:[%s708 + $0x10] sm:$0xf]
      %v951 = vld [vmem:[%s708 + $0x14] sm:$0x1]
      %v952 = vld [vmem:[%s708 + $0x18] sm:$0xf]
      %v953 = vld [vmem:[%s708 + $0x1c] sm:$0x1]
      %v954 = vld [vmem:[%s708 + $0x20] sm:$0xf]
      %v955 = vld [vmem:[%s708 + $0x24] sm:$0x1]
      %v956 = vld [vmem:[%s708 + $0x28] sm:$0xf]
      %v957 = vld [vmem:[%s708 + $0x2c] sm:$0x1]
      %v958 = vld [vmem:[%s708 + $0x30] sm:$0xf]
      %v959 = vld [vmem:[%s708 + $0x34] sm:$0x1]
      %v960 = vld [vmem:[%s708 + $0x38] sm:$0xf]
      %v961 = vld [vmem:[%s708 + $0x3c] sm:$0x1]
      %v963 = vshrl.u32 %v946, 16
      %v965 = vrot.slane %v963, 4
      %v966 = vshll.u32 %v946, 16
      %v968 = vrot.slane %v966, 5
      %v969 = vor.u32 %v965, %v968
      %v970 = vrot.slane %v969, 4
      %v972 = vshll.u32 %v947, 16
      %v974 = vrot.slane %v972, 5
      %v975 = vsel %vm493, %v970, %v974
      %v977 = vshrl.u32 %v948, 16
      %v979 = vrot.slane %v977, 4
      %v980 = vshll.u32 %v948, 16
      %v982 = vrot.slane %v980, 5
      %v983 = vor.u32 %v979, %v982
      %v984 = vrot.slane %v983, 4
      %v986 = vshll.u32 %v949, 16
      %v988 = vrot.slane %v986, 5
      %v989 = vsel %vm493, %v984, %v988
      %v991 = vshrl.u32 %v950, 16
      %v993 = vrot.slane %v991, 4
      %v994 = vshll.u32 %v950, 16
      %v996 = vrot.slane %v994, 5
      %v997 = vor.u32 %v993, %v996
      %v998 = vrot.slane %v997, 4
      %v1000 = vshll.u32 %v951, 16
      %v1002 = vrot.slane %v1000, 5
      %v1003 = vsel %vm493, %v998, %v1002
      %v1005 = vshrl.u32 %v952, 16
      %v1007 = vrot.slane %v1005, 4
      %v1008 = vshll.u32 %v952, 16
      %v1010 = vrot.slane %v1008, 5
      %v1011 = vor.u32 %v1007, %v1010
      %v1012 = vrot.slane %v1011, 4
      %v1014 = vshll.u32 %v953, 16
      %v1016 = vrot.slane %v1014, 5
      %v1017 = vsel %vm493, %v1012, %v1016
      %v1019 = vshrl.u32 %v954, 16
      %v1021 = vrot.slane %v1019, 4
      %v1022 = vshll.u32 %v954, 16
      %v1024 = vrot.slane %v1022, 5
      %v1025 = vor.u32 %v1021, %v1024
      %v1026 = vrot.slane %v1025, 4
      %v1028 = vshll.u32 %v955, 16
      %v1030 = vrot.slane %v1028, 5
      %v1031 = vsel %vm493, %v1026, %v1030
      %v1033 = vshrl.u32 %v956, 16
      %v1035 = vrot.slane %v1033, 4
      %v1036 = vshll.u32 %v956, 16
      %v1038 = vrot.slane %v1036, 5
      %v1039 = vor.u32 %v1035, %v1038
      %v1040 = vrot.slane %v1039, 4
      %v1042 = vshll.u32 %v957, 16
      %v1044 = vrot.slane %v1042, 5
      %v1045 = vsel %vm493, %v1040, %v1044
      %v1047 = vshrl.u32 %v958, 16
      %v1049 = vrot.slane %v1047, 4
      %v1050 = vshll.u32 %v958, 16
      %v1052 = vrot.slane %v1050, 5
      %v1053 = vor.u32 %v1049, %v1052
      %v1054 = vrot.slane %v1053, 4
      %v1056 = vshll.u32 %v959, 16
      %v1058 = vrot.slane %v1056, 5
      %v1059 = vsel %vm493, %v1054, %v1058
      %v1061 = vshrl.u32 %v960, 16
      %v1063 = vrot.slane %v1061, 4
      %v1064 = vshll.u32 %v960, 16
      %v1066 = vrot.slane %v1064, 5
      %v1067 = vor.u32 %v1063, %v1066
      %v1068 = vrot.slane %v1067, 4
      %v1070 = vshll.u32 %v961, 16
      %v1072 = vrot.slane %v1070, 5
      %v1073 = vsel %vm493, %v1068, %v1072
      %s1074 = scalar_lea.vmem %s1, 10
      %v1075 = vld [vmem:[%s1074] sm:$0x3]
      %v1076 = vunpack.c.l.b16 %v975
      %v1077 = vunpack.c.l.b16 %v989
      %v1078 = vunpack.c.l.b16 %v1003
      %v1079 = vunpack.c.l.b16 %v1017
      %v1080 = vunpack.c.l.b16 %v1031
      %v1081 = vunpack.c.l.b16 %v1045
      %v1082 = vunpack.c.l.b16 %v1059
      %v1083 = vunpack.c.l.b16 %v1073
      %v1084 = vpack.c.b16 %v1077, %v1076
      %v1085 = vpack.c.b16 %v1079, %v1078
      %v1086 = vpack.c.b16 %v1081, %v1080
      %v1087 = vpack.c.b16 %v1083, %v1082
      %v1089 = vsel %vm293, %v1084, 0
      %v1092 = vsel %vm293, %v1085, 0
      %v1095 = vsel %vm293, %v1086, 0
      %v1098 = vsel %vm293, %v1087, 0
      %v1101 = vsel %vm306, %v1075, 0
      %1103 = vmatprep.subr.bf16.mxu0 0
      %1104 = vmatpush1.bf16.msra.mxu0 0
      %1105 = vmatprep.subr.bf16.mxu0 0
      %1106 = vmatpush1.bf16.msra.mxu0 0
      %1107 = vmatprep.subr.bf16.mxu0 0
      %1108 = vmatpush1.bf16.msra.mxu0 0
      %1109 = vmatprep.subr.bf16.mxu0 0
      %1110 = vmatpush1.bf16.msra.mxu0 0
      %1111 = vmatprep.subr.bf16.mxu0 0
      %1112 = vmatpush1.bf16.msra.mxu0 0
      %1113 = vmatprep.subr.bf16.mxu0 0
      %1114 = vmatpush1.bf16.msra.mxu0 0
      %1115 = vmatprep.subr.bf16.mxu0 0
      %1116 = vmatpush1.bf16.msra.mxu0 0
      %1117 = vmatprep.subr.bf16.mxu0 0
      %1118 = vmatpush1.bf16.msra.mxu0 %v1101
      %1119 = vmatprep.subr.bf16.mxu0 0
      %1120 = vmatpush2.bf16.msra.mxu0 0
      %1121 = vmatprep.subr.bf16.mxu0 0
      %1122 = vmatpush2.bf16.msra.mxu0 0
      %1123 = vmatprep.subr.bf16.mxu0 0
      %1124 = vmatpush2.bf16.msra.mxu0 0
      %1125 = vmatprep.subr.bf16.mxu0 0
      %1126 = vmatpush2.bf16.msra.mxu0 0
      %1127 = vmatprep.subr.bf16.mxu0 0
      %1128 = vmatpush2.bf16.msra.mxu0 0
      %1129 = vmatprep.subr.bf16.mxu0 0
      %1130 = vmatpush2.bf16.msra.mxu0 0
      %1131 = vmatprep.subr.bf16.mxu0 0
      %1132 = vmatpush2.bf16.msra.mxu0 0
      %1133 = vmatprep.subr.bf16.mxu0 0
      %1134 = vmatpush2.bf16.msra.mxu0 0
      %1135 = vmatprep.mubr.bf16.mxu0 0
      %1136 = vmatmul.mubr.bf16.gmra.mxu0 %v1089
      %v1137 = vpop.f32.mrf.mxu0
      %v1138 = vadd.f32 0.0, %v1137
      %v1139 = vpop.f32.mrf.mxu0
      %v1140 = vpop.f32.mrf.mxu0
      %v1141 = vadd.f32 0.0, %v1140
      %v1142 = vpop.f32.mrf.mxu0
      %1143 = vmatprep.mubr.bf16.mxu0 0
      %1144 = vmatmul.mubr.bf16.gmra.mxu0 %v1092
      %v1145 = vpop.f32.mrf.mxu0
      %v1146 = vadd.f32 0.0, %v1145
      %v1147 = vpop.f32.mrf.mxu0
      %v1148 = vpop.f32.mrf.mxu0
      %v1149 = vadd.f32 0.0, %v1148
      %v1150 = vpop.f32.mrf.mxu0
      %1151 = vmatprep.mubr.bf16.mxu0 0
      %1152 = vmatmul.mubr.bf16.gmra.mxu0 %v1095
      %v1153 = vpop.f32.mrf.mxu0
      %v1154 = vadd.f32 0.0, %v1153
      %v1155 = vpop.f32.mrf.mxu0
      %v1156 = vpop.f32.mrf.mxu0
      %v1157 = vadd.f32 0.0, %v1156
      %v1158 = vpop.f32.mrf.mxu0
      %1159 = vmatprep.mubr.bf16.mxu0 0
      %1160 = vmatmul.mubr.bf16.gmra.mxu0 %v1098
      %v1161 = vpop.f32.mrf.mxu0
      %v1162 = vadd.f32 0.0, %v1161
      %v1163 = vpop.f32.mrf.mxu0
      %v1164 = vpop.f32.mrf.mxu0
      %v1165 = vadd.f32 0.0, %v1164
      %v1166 = vpop.f32.mrf.mxu0
      %1167 = vdwg.mxu0
      %v1168 = vadd.f32 %v938, %v1138
      %v1169 = vadd.f32 %v939, %v1141
      %v1170 = vadd.f32 %v940, %v1146
      %v1171 = vadd.f32 %v941, %v1149
      %v1172 = vadd.f32 %v942, %v1154
      %v1173 = vadd.f32 %v943, %v1157
      %v1174 = vadd.f32 %v944, %v1162
      %v1175 = vadd.f32 %v945, %v1165
      %s1176 = scalar_lea.vmem %s246, 8
      %v1177 = vld [vmem:[%s1176] sm:$0xf]
      %v1178 = vld [vmem:[%s1176 + $0x8] sm:$0xf]
      %v1179 = vld [vmem:[%s1176 + $0x10] sm:$0xf]
      %v1180 = vld [vmem:[%s1176 + $0x18] sm:$0xf]
      %v1181 = vld [vmem:[%s1176 + $0x20] sm:$0xf]
      %v1182 = vld [vmem:[%s1176 + $0x28] sm:$0xf]
      %v1183 = vld [vmem:[%s1176 + $0x30] sm:$0xf]
      %v1184 = vld [vmem:[%s1176 + $0x38] sm:$0xf]
      %s1185 = scalar_lea.vmem %s1, 12
      %v1186 = vld [vmem:[%s1185] sm:$0x3]
      %v1195 = vunpack.c.l.b16 %v1177
      %v1196 = vunpack.c.l.b16 %v1178
      %v1197 = vunpack.c.l.b16 %v1179
      %v1198 = vunpack.c.l.b16 %v1180
      %v1199 = vunpack.c.l.b16 %v1181
      %v1200 = vunpack.c.l.b16 %v1182
      %v1201 = vunpack.c.l.b16 %v1183
      %v1202 = vunpack.c.l.b16 %v1184
      %v1203 = vpack.c.b16 %v1196, %v1195
      %v1204 = vpack.c.b16 %v1198, %v1197
      %v1205 = vpack.c.b16 %v1200, %v1199
      %v1206 = vpack.c.b16 %v1202, %v1201
      %v1208 = vsel %vm293, %v1203, 0
      %v1211 = vsel %vm293, %v1204, 0
      %v1214 = vsel %vm293, %v1205, 0
      %v1217 = vsel %vm293, %v1206, 0
      %v1220 = vsel %vm306, %v1186, 0
      %1222 = vmatprep.subr.bf16.mxu0 0
      %1223 = vmatpush1.bf16.msra.mxu0 0
      %1224 = vmatprep.subr.bf16.mxu0 0
      %1225 = vmatpush1.bf16.msra.mxu0 0
      %1226 = vmatprep.subr.bf16.mxu0 0
      %1227 = vmatpush1.bf16.msra.mxu0 0
      %1228 = vmatprep.subr.bf16.mxu0 0
      %1229 = vmatpush1.bf16.msra.mxu0 0
      %1230 = vmatprep.subr.bf16.mxu0 0
      %1231 = vmatpush1.bf16.msra.mxu0 0
      %1232 = vmatprep.subr.bf16.mxu0 0
      %1233 = vmatpush1.bf16.msra.mxu0 0
      %1234 = vmatprep.subr.bf16.mxu0 0
      %1235 = vmatpush1.bf16.msra.mxu0 0
      %1236 = vmatprep.subr.bf16.mxu0 0
      %1237 = vmatpush1.bf16.msra.mxu0 %v1220
      %1238 = vmatprep.subr.bf16.mxu0 0
      %1239 = vmatpush2.bf16.msra.mxu0 0
      %1240 = vmatprep.subr.bf16.mxu0 0
      %1241 = vmatpush2.bf16.msra.mxu0 0
      %1242 = vmatprep.subr.bf16.mxu0 0
      %1243 = vmatpush2.bf16.msra.mxu0 0
      %1244 = vmatprep.subr.bf16.mxu0 0
      %1245 = vmatpush2.bf16.msra.mxu0 0
      %1246 = vmatprep.subr.bf16.mxu0 0
      %1247 = vmatpush2.bf16.msra.mxu0 0
      %1248 = vmatprep.subr.bf16.mxu0 0
      %1249 = vmatpush2.bf16.msra.mxu0 0
      %1250 = vmatprep.subr.bf16.mxu0 0
      %1251 = vmatpush2.bf16.msra.mxu0 0
      %1252 = vmatprep.subr.bf16.mxu0 0
      %1253 = vmatpush2.bf16.msra.mxu0 0
      %1254 = vmatprep.mubr.bf16.mxu0 0
      %1255 = vmatmul.mubr.bf16.gmra.mxu0 %v1208
      %v1256 = vpop.f32.mrf.mxu0
      %v1257 = vadd.f32 0.0, %v1256
      %v1258 = vpop.f32.mrf.mxu0
      %v1259 = vpop.f32.mrf.mxu0
      %v1260 = vadd.f32 0.0, %v1259
      %v1261 = vpop.f32.mrf.mxu0
      %1262 = vmatprep.mubr.bf16.mxu0 0
      %1263 = vmatmul.mubr.bf16.gmra.mxu0 %v1211
      %v1264 = vpop.f32.mrf.mxu0
      %v1265 = vadd.f32 0.0, %v1264
      %v1266 = vpop.f32.mrf.mxu0
      %v1267 = vpop.f32.mrf.mxu0
      %v1268 = vadd.f32 0.0, %v1267
      %v1269 = vpop.f32.mrf.mxu0
      %1270 = vmatprep.mubr.bf16.mxu0 0
      %1271 = vmatmul.mubr.bf16.gmra.mxu0 %v1214
      %v1272 = vpop.f32.mrf.mxu0
      %v1273 = vadd.f32 0.0, %v1272
      %v1274 = vpop.f32.mrf.mxu0
      %v1275 = vpop.f32.mrf.mxu0
      %v1276 = vadd.f32 0.0, %v1275
      %v1277 = vpop.f32.mrf.mxu0
      %1278 = vmatprep.mubr.bf16.mxu0 0
      %1279 = vmatmul.mubr.bf16.gmra.mxu0 %v1217
      %v1280 = vpop.f32.mrf.mxu0
      %v1281 = vadd.f32 0.0, %v1280
      %v1282 = vpop.f32.mrf.mxu0
      %v1283 = vpop.f32.mrf.mxu0
      %v1284 = vadd.f32 0.0, %v1283
      %v1285 = vpop.f32.mrf.mxu0
      %1286 = vdwg.mxu0
      %v1287 = vadd.f32 %v1168, %v1257
      %v1288 = vadd.f32 %v1169, %v1260
      %v1289 = vadd.f32 %v1170, %v1265
      %v1290 = vadd.f32 %v1171, %v1268
      %v1291 = vadd.f32 %v1172, %v1273
      %v1292 = vadd.f32 %v1173, %v1276
      %v1293 = vadd.f32 %v1174, %v1281
      %v1294 = vadd.f32 %v1175, %v1284
      %s1295 = scalar_lea.vmem %s246, 80
      %v1296 = vld [vmem:[%s1295] sm:$0xf]
      %v1297 = vld [vmem:[%s1295 + $0x8] sm:$0xf]
      %v1298 = vld [vmem:[%s1295 + $0x10] sm:$0xf]
      %v1299 = vld [vmem:[%s1295 + $0x18] sm:$0xf]
      %v1300 = vld [vmem:[%s1295 + $0x20] sm:$0xf]
      %v1301 = vld [vmem:[%s1295 + $0x28] sm:$0xf]
      %v1302 = vld [vmem:[%s1295 + $0x30] sm:$0xf]
      %v1303 = vld [vmem:[%s1295 + $0x38] sm:$0xf]
      %s1304 = scalar_lea.vmem %s1, 14
      %v1305 = vld [vmem:[%s1304] sm:$0x3]
      %v1314 = vunpack.c.l.b16 %v1296
      %v1315 = vunpack.c.l.b16 %v1297
      %v1316 = vunpack.c.l.b16 %v1298
      %v1317 = vunpack.c.l.b16 %v1299
      %v1318 = vunpack.c.l.b16 %v1300
      %v1319 = vunpack.c.l.b16 %v1301
      %v1320 = vunpack.c.l.b16 %v1302
      %v1321 = vunpack.c.l.b16 %v1303
      %v1322 = vpack.c.b16 %v1315, %v1314
      %v1323 = vpack.c.b16 %v1317, %v1316
      %v1324 = vpack.c.b16 %v1319, %v1318
      %v1325 = vpack.c.b16 %v1321, %v1320
      %v1327 = vsel %vm293, %v1322, 0
      %v1330 = vsel %vm293, %v1323, 0
      %v1333 = vsel %vm293, %v1324, 0
      %v1336 = vsel %vm293, %v1325, 0
      %v1339 = vsel %vm306, %v1305, 0
      %1341 = vmatprep.subr.bf16.mxu0 0
      %1342 = vmatpush1.bf16.msra.mxu0 0
      %1343 = vmatprep.subr.bf16.mxu0 0
      %1344 = vmatpush1.bf16.msra.mxu0 0
      %1345 = vmatprep.subr.bf16.mxu0 0
      %1346 = vmatpush1.bf16.msra.mxu0 0
      %1347 = vmatprep.subr.bf16.mxu0 0
      %1348 = vmatpush1.bf16.msra.mxu0 0
      %1349 = vmatprep.subr.bf16.mxu0 0
      %1350 = vmatpush1.bf16.msra.mxu0 0
      %1351 = vmatprep.subr.bf16.mxu0 0
      %1352 = vmatpush1.bf16.msra.mxu0 0
      %1353 = vmatprep.subr.bf16.mxu0 0
      %1354 = vmatpush1.bf16.msra.mxu0 0
      %1355 = vmatprep.subr.bf16.mxu0 0
      %1356 = vmatpush1.bf16.msra.mxu0 %v1339
      %1357 = vmatprep.subr.bf16.mxu0 0
      %1358 = vmatpush2.bf16.msra.mxu0 0
      %1359 = vmatprep.subr.bf16.mxu0 0
      %1360 = vmatpush2.bf16.msra.mxu0 0
      %1361 = vmatprep.subr.bf16.mxu0 0
      %1362 = vmatpush2.bf16.msra.mxu0 0
      %1363 = vmatprep.subr.bf16.mxu0 0
      %1364 = vmatpush2.bf16.msra.mxu0 0
      %1365 = vmatprep.subr.bf16.mxu0 0
      %1366 = vmatpush2.bf16.msra.mxu0 0
      %1367 = vmatprep.subr.bf16.mxu0 0
      %1368 = vmatpush2.bf16.msra.mxu0 0
      %1369 = vmatprep.subr.bf16.mxu0 0
      %1370 = vmatpush2.bf16.msra.mxu0 0
      %1371 = vmatprep.subr.bf16.mxu0 0
      %1372 = vmatpush2.bf16.msra.mxu0 0
      %1373 = vmatprep.mubr.bf16.mxu0 0
      %1374 = vmatmul.mubr.bf16.gmra.mxu0 %v1327
      %v1375 = vpop.f32.mrf.mxu0
      %v1376 = vadd.f32 0.0, %v1375
      %v1377 = vpop.f32.mrf.mxu0
      %v1378 = vpop.f32.mrf.mxu0
      %v1379 = vadd.f32 0.0, %v1378
      %v1380 = vpop.f32.mrf.mxu0
      %1381 = vmatprep.mubr.bf16.mxu0 0
      %1382 = vmatmul.mubr.bf16.gmra.mxu0 %v1330
      %v1383 = vpop.f32.mrf.mxu0
      %v1384 = vadd.f32 0.0, %v1383
      %v1385 = vpop.f32.mrf.mxu0
      %v1386 = vpop.f32.mrf.mxu0
      %v1387 = vadd.f32 0.0, %v1386
      %v1388 = vpop.f32.mrf.mxu0
      %1389 = vmatprep.mubr.bf16.mxu0 0
      %1390 = vmatmul.mubr.bf16.gmra.mxu0 %v1333
      %v1391 = vpop.f32.mrf.mxu0
      %v1392 = vadd.f32 0.0, %v1391
      %v1393 = vpop.f32.mrf.mxu0
      %v1394 = vpop.f32.mrf.mxu0
      %v1395 = vadd.f32 0.0, %v1394
      %v1396 = vpop.f32.mrf.mxu0
      %1397 = vmatprep.mubr.bf16.mxu0 0
      %1398 = vmatmul.mubr.bf16.gmra.mxu0 %v1336
      %v1399 = vpop.f32.mrf.mxu0
      %v1400 = vadd.f32 0.0, %v1399
      %v1401 = vpop.f32.mrf.mxu0
      %v1402 = vpop.f32.mrf.mxu0
      %v1403 = vadd.f32 0.0, %v1402
      %v1404 = vpop.f32.mrf.mxu0
      %1405 = vdwg.mxu0
      %v1406 = vadd.f32 %v1287, %v1376
      %v1407 = vadd.f32 %v1288, %v1379
      %v1408 = vadd.f32 %v1289, %v1384
      %v1409 = vadd.f32 %v1290, %v1387
      %v1410 = vadd.f32 %v1291, %v1392
      %v1411 = vadd.f32 %v1292, %v1395
      %v1412 = vadd.f32 %v1293, %v1400
      %v1413 = vadd.f32 %v1294, %v1403
      %v1414 = vld [vmem:[%s1176] sm:$0xf]
      %v1415 = vld [vmem:[%s1176 + $0x4] sm:$0x1]
      %v1416 = vld [vmem:[%s1176 + $0x8] sm:$0xf]
      %v1417 = vld [vmem:[%s1176 + $0xc] sm:$0x1]
      %v1418 = vld [vmem:[%s1176 + $0x10] sm:$0xf]
      %v1419 = vld [vmem:[%s1176 + $0x14] sm:$0x1]
      %v1420 = vld [vmem:[%s1176 + $0x18] sm:$0xf]
      %v1421 = vld [vmem:[%s1176 + $0x1c] sm:$0x1]
      %v1422 = vld [vmem:[%s1176 + $0x20] sm:$0xf]
      %v1423 = vld [vmem:[%s1176 + $0x24] sm:$0x1]
      %v1424 = vld [vmem:[%s1176 + $0x28] sm:$0xf]
      %v1425 = vld [vmem:[%s1176 + $0x2c] sm:$0x1]
      %v1426 = vld [vmem:[%s1176 + $0x30] sm:$0xf]
      %v1427 = vld [vmem:[%s1176 + $0x34] sm:$0x1]
      %v1428 = vld [vmem:[%s1176 + $0x38] sm:$0xf]
      %v1429 = vld [vmem:[%s1176 + $0x3c] sm:$0x1]
      %v1431 = vshrl.u32 %v1414, 16
      %v1433 = vrot.slane %v1431, 4
      %v1434 = vshll.u32 %v1414, 16
      %v1436 = vrot.slane %v1434, 5
      %v1437 = vor.u32 %v1433, %v1436
      %v1438 = vrot.slane %v1437, 4
      %v1440 = vshll.u32 %v1415, 16
      %v1442 = vrot.slane %v1440, 5
      %v1443 = vsel %vm493, %v1438, %v1442
      %v1445 = vshrl.u32 %v1416, 16
      %v1447 = vrot.slane %v1445, 4
      %v1448 = vshll.u32 %v1416, 16
      %v1450 = vrot.slane %v1448, 5
      %v1451 = vor.u32 %v1447, %v1450
      %v1452 = vrot.slane %v1451, 4
      %v1454 = vshll.u32 %v1417, 16
      %v1456 = vrot.slane %v1454, 5
      %v1457 = vsel %vm493, %v1452, %v1456
      %v1459 = vshrl.u32 %v1418, 16
      %v1461 = vrot.slane %v1459, 4
      %v1462 = vshll.u32 %v1418, 16
      %v1464 = vrot.slane %v1462, 5
      %v1465 = vor.u32 %v1461, %v1464
      %v1466 = vrot.slane %v1465, 4
      %v1468 = vshll.u32 %v1419, 16
      %v1470 = vrot.slane %v1468, 5
      %v1471 = vsel %vm493, %v1466, %v1470
      %v1473 = vshrl.u32 %v1420, 16
      %v1475 = vrot.slane %v1473, 4
      %v1476 = vshll.u32 %v1420, 16
      %v1478 = vrot.slane %v1476, 5
      %v1479 = vor.u32 %v1475, %v1478
      %v1480 = vrot.slane %v1479, 4
      %v1482 = vshll.u32 %v1421, 16
      %v1484 = vrot.slane %v1482, 5
      %v1485 = vsel %vm493, %v1480, %v1484
      %v1487 = vshrl.u32 %v1422, 16
      %v1489 = vrot.slane %v1487, 4
      %v1490 = vshll.u32 %v1422, 16
      %v1492 = vrot.slane %v1490, 5
      %v1493 = vor.u32 %v1489, %v1492
      %v1494 = vrot.slane %v1493, 4
      %v1496 = vshll.u32 %v1423, 16
      %v1498 = vrot.slane %v1496, 5
      %v1499 = vsel %vm493, %v1494, %v1498
      %v1501 = vshrl.u32 %v1424, 16
      %v1503 = vrot.slane %v1501, 4
      %v1504 = vshll.u32 %v1424, 16
      %v1506 = vrot.slane %v1504, 5
      %v1507 = vor.u32 %v1503, %v1506
      %v1508 = vrot.slane %v1507, 4
      %v1510 = vshll.u32 %v1425, 16
      %v1512 = vrot.slane %v1510, 5
      %v1513 = vsel %vm493, %v1508, %v1512
      %v1515 = vshrl.u32 %v1426, 16
      %v1517 = vrot.slane %v1515, 4
      %v1518 = vshll.u32 %v1426, 16
      %v1520 = vrot.slane %v1518, 5
      %v1521 = vor.u32 %v1517, %v1520
      %v1522 = vrot.slane %v1521, 4
      %v1524 = vshll.u32 %v1427, 16
      %v1526 = vrot.slane %v1524, 5
      %v1527 = vsel %vm493, %v1522, %v1526
      %v1529 = vshrl.u32 %v1428, 16
      %v1531 = vrot.slane %v1529, 4
      %v1532 = vshll.u32 %v1428, 16
      %v1534 = vrot.slane %v1532, 5
      %v1535 = vor.u32 %v1531, %v1534
      %v1536 = vrot.slane %v1535, 4
      %v1538 = vshll.u32 %v1429, 16
      %v1540 = vrot.slane %v1538, 5
      %v1541 = vsel %vm493, %v1536, %v1540
      %s1542 = scalar_lea.vmem %s1, 16
      %v1543 = vld [vmem:[%s1542] sm:$0x3]
      %v1544 = vunpack.c.l.b16 %v1443
      %v1545 = vunpack.c.l.b16 %v1457
      %v1546 = vunpack.c.l.b16 %v1471
      %v1547 = vunpack.c.l.b16 %v1485
      %v1548 = vunpack.c.l.b16 %v1499
      %v1549 = vunpack.c.l.b16 %v1513
      %v1550 = vunpack.c.l.b16 %v1527
      %v1551 = vunpack.c.l.b16 %v1541
      %v1552 = vpack.c.b16 %v1545, %v1544
      %v1553 = vpack.c.b16 %v1547, %v1546
      %v1554 = vpack.c.b16 %v1549, %v1548
      %v1555 = vpack.c.b16 %v1551, %v1550
      %v1557 = vsel %vm293, %v1552, 0
      %v1560 = vsel %vm293, %v1553, 0
      %v1563 = vsel %vm293, %v1554, 0
      %v1566 = vsel %vm293, %v1555, 0
      %v1569 = vsel %vm306, %v1543, 0
      %1571 = vmatprep.subr.bf16.mxu0 0
      %1572 = vmatpush1.bf16.msra.mxu0 0
      %1573 = vmatprep.subr.bf16.mxu0 0
      %1574 = vmatpush1.bf16.msra.mxu0 0
      %1575 = vmatprep.subr.bf16.mxu0 0
      %1576 = vmatpush1.bf16.msra.mxu0 0
      %1577 = vmatprep.subr.bf16.mxu0 0
      %1578 = vmatpush1.bf16.msra.mxu0 0
      %1579 = vmatprep.subr.bf16.mxu0 0
      %1580 = vmatpush1.bf16.msra.mxu0 0
      %1581 = vmatprep.subr.bf16.mxu0 0
      %1582 = vmatpush1.bf16.msra.mxu0 0
      %1583 = vmatprep.subr.bf16.mxu0 0
      %1584 = vmatpush1.bf16.msra.mxu0 0
      %1585 = vmatprep.subr.bf16.mxu0 0
      %1586 = vmatpush1.bf16.msra.mxu0 %v1569
      %1587 = vmatprep.subr.bf16.mxu0 0
      %1588 = vmatpush2.bf16.msra.mxu0 0
      %1589 = vmatprep.subr.bf16.mxu0 0
      %1590 = vmatpush2.bf16.msra.mxu0 0
      %1591 = vmatprep.subr.bf16.mxu0 0
      %1592 = vmatpush2.bf16.msra.mxu0 0
      %1593 = vmatprep.subr.bf16.mxu0 0
      %1594 = vmatpush2.bf16.msra.mxu0 0
      %1595 = vmatprep.subr.bf16.mxu0 0
      %1596 = vmatpush2.bf16.msra.mxu0 0
      %1597 = vmatprep.subr.bf16.mxu0 0
      %1598 = vmatpush2.bf16.msra.mxu0 0
      %1599 = vmatprep.subr.bf16.mxu0 0
      %1600 = vmatpush2.bf16.msra.mxu0 0
      %1601 = vmatprep.subr.bf16.mxu0 0
      %1602 = vmatpush2.bf16.msra.mxu0 0
      %1603 = vmatprep.mubr.bf16.mxu0 0
      %1604 = vmatmul.mubr.bf16.gmra.mxu0 %v1557
      %v1605 = vpop.f32.mrf.mxu0
      %v1606 = vadd.f32 0.0, %v1605
      %v1607 = vpop.f32.mrf.mxu0
      %v1608 = vpop.f32.mrf.mxu0
      %v1609 = vadd.f32 0.0, %v1608
      %v1610 = vpop.f32.mrf.mxu0
      %1611 = vmatprep.mubr.bf16.mxu0 0
      %1612 = vmatmul.mubr.bf16.gmra.mxu0 %v1560
      %v1613 = vpop.f32.mrf.mxu0
      %v1614 = vadd.f32 0.0, %v1613
      %v1615 = vpop.f32.mrf.mxu0
      %v1616 = vpop.f32.mrf.mxu0
      %v1617 = vadd.f32 0.0, %v1616
      %v1618 = vpop.f32.mrf.mxu0
      %1619 = vmatprep.mubr.bf16.mxu0 0
      %1620 = vmatmul.mubr.bf16.gmra.mxu0 %v1563
      %v1621 = vpop.f32.mrf.mxu0
      %v1622 = vadd.f32 0.0, %v1621
      %v1623 = vpop.f32.mrf.mxu0
      %v1624 = vpop.f32.mrf.mxu0
      %v1625 = vadd.f32 0.0, %v1624
      %v1626 = vpop.f32.mrf.mxu0
      %1627 = vmatprep.mubr.bf16.mxu0 0
      %1628 = vmatmul.mubr.bf16.gmra.mxu0 %v1566
      %v1629 = vpop.f32.mrf.mxu0
      %v1630 = vadd.f32 0.0, %v1629
      %v1631 = vpop.f32.mrf.mxu0
      %v1632 = vpop.f32.mrf.mxu0
      %v1633 = vadd.f32 0.0, %v1632
      %v1634 = vpop.f32.mrf.mxu0
      %1635 = vdwg.mxu0
      %v1636 = vadd.f32 %v1406, %v1606
      %v1637 = vadd.f32 %v1407, %v1609
      %v1638 = vadd.f32 %v1408, %v1614
      %v1639 = vadd.f32 %v1409, %v1617
      %v1640 = vadd.f32 %v1410, %v1622
      %v1641 = vadd.f32 %v1411, %v1625
      %v1642 = vadd.f32 %v1412, %v1630
      %v1643 = vadd.f32 %v1413, %v1633
      %v1644 = vld [vmem:[%s2] sm:$0x1]
      %v1646 = vlaneseq
      %v1647 = vshrl.u32 %v1646, 7
      %v1648 = vsub.s32 0, %v1647
      %v1649 = vrot.slane %v1644, %v1648
      %v1651 = vadd.f32 %v1636, %v1649
      %v1652 = vadd.f32 %v1637, %v1649
      %v1653 = vadd.f32 %v1638, %v1649
      %v1654 = vadd.f32 %v1639, %v1649
      %v1655 = vadd.f32 %v1640, %v1649
      %v1656 = vadd.f32 %v1641, %v1649
      %v1657 = vadd.f32 %v1642, %v1649
      %v1658 = vadd.f32 %v1643, %v1649
      %v1659 = vmax.f32 %v1651, 0.0
      %v1660 = vmax.f32 %v1652, 0.0
      %v1661 = vmax.f32 %v1653, 0.0
      %v1662 = vmax.f32 %v1654, 0.0
      %v1663 = vmax.f32 %v1655, 0.0
      %v1664 = vmax.f32 %v1656, 0.0
      %v1665 = vmax.f32 %v1657, 0.0
      %v1666 = vmax.f32 %v1658, 0.0
      %v1667 = vpack.c.bf16 %v1660, %v1659
      %v1668 = vpack.c.bf16 %v1662, %v1661
      %v1669 = vpack.c.bf16 %v1664, %v1663
      %v1670 = vpack.c.bf16 %v1666, %v1665
      %s1671 = scalar_lea.vmem [#allocation2], 280
      %vm1672 = vcmask 60416
      %1673 = vst.msk [vmem:[%s1671] sm:$0xf] %vm1672, 0
      %vm1674 = vcmask 57344
      %vm1675 = vsmask.f32 256
      %vm1676 = vmand %vm1674, %vm1675
      %v1677 = vld [vmem:[%s1671 + $0x4] sm:$0x1]
      %v1678 = vsel %vm1676, 0, %v1677
      %1679 = vst [vmem:[%s1671 + $0x4] sm:$0x1] %v1678
      %s1680 = scalar_lea.vmem [#allocation2], 216
      %v1681 = vld [vmem:[%s1680 + $0x4] sm:$0x1]
      %v1682 = vsel %vm1676, 0, %v1681
      %1683 = vst [vmem:[%s1680 + $0x4] sm:$0x1] %v1682
      %v1684 = vld [vmem:[%s1680 + $0xc] sm:$0x1]
      %v1685 = vsel %vm1676, 0, %v1684
      %1686 = vst [vmem:[%s1680 + $0xc] sm:$0x1] %v1685
      %v1687 = vld [vmem:[%s1680 + $0x14] sm:$0x1]
      %v1688 = vsel %vm1676, 0, %v1687
      %1689 = vst [vmem:[%s1680 + $0x14] sm:$0x1] %v1688
      %v1690 = vld [vmem:[%s1680 + $0x1c] sm:$0x1]
      %v1691 = vsel %vm1676, 0, %v1690
      %1692 = vst [vmem:[%s1680 + $0x1c] sm:$0x1] %v1691
      %v1693 = vld [vmem:[%s1680 + $0x24] sm:$0x1]
      %v1694 = vsel %vm1676, 0, %v1693
      %1695 = vst [vmem:[%s1680 + $0x24] sm:$0x1] %v1694
      %v1696 = vld [vmem:[%s1680 + $0x2c] sm:$0x1]
      %v1697 = vsel %vm1676, 0, %v1696
      %1698 = vst [vmem:[%s1680 + $0x2c] sm:$0x1] %v1697
      %v1699 = vld [vmem:[%s1680 + $0x34] sm:$0x1]
      %v1700 = vsel %vm1676, 0, %v1699
      %1701 = vst [vmem:[%s1680 + $0x34] sm:$0x1] %v1700
      %v1702 = vld [vmem:[%s1680 + $0x3c] sm:$0x1]
      %v1703 = vsel %vm1676, 0, %v1702
      %1704 = vst [vmem:[%s1680 + $0x3c] sm:$0x1] %v1703
      %v1705 = vld [vmem:[%s1680 + $0x44] sm:$0x1]
      %v1706 = vsel %vm1676, 0, %v1705
      %1707 = vst [vmem:[%s1680 + $0x44] sm:$0x1] %v1706
      %v1712 = vunpack.c.l.b16 %v1667
      %v1713 = vunpack.c.h.b16 %v1667
      %v1714 = vunpack.c.l.b16 %v1668
      %v1715 = vunpack.c.h.b16 %v1668
      %v1716 = vunpack.c.l.b16 %v1669
      %v1717 = vunpack.c.h.b16 %v1669
      %v1718 = vunpack.c.l.b16 %v1670
      %v1719 = vunpack.c.h.b16 %v1670
      %v1720 = vpack.c.b16 %v1712, %v1712
      %v1721 = vpack.c.b16 %v1713, %v1713
      %v1722 = vpack.c.b16 %v1714, %v1714
      %v1723 = vpack.c.b16 %v1715, %v1715
      %v1724 = vpack.c.b16 %v1716, %v1716
      %v1725 = vpack.c.b16 %v1717, %v1717
      %v1726 = vpack.c.b16 %v1718, %v1718
      %v1727 = vpack.c.b16 %v1719, %v1719
      %1736 = vst.msk [vmem:[%s1680] sm:$0xf] %vm1672, %v1720
      %1737 = vst.msk [vmem:[%s1680 + $0x8] sm:$0xf] %vm1672, %v1721
      %1738 = vst.msk [vmem:[%s1680 + $0x10] sm:$0xf] %vm1672, %v1722
      %1739 = vst.msk [vmem:[%s1680 + $0x18] sm:$0xf] %vm1672, %v1723
      %1740 = vst.msk [vmem:[%s1680 + $0x20] sm:$0xf] %vm1672, %v1724
      %1741 = vst.msk [vmem:[%s1680 + $0x28] sm:$0xf] %vm1672, %v1725
      %1742 = vst.msk [vmem:[%s1680 + $0x30] sm:$0xf] %vm1672, %v1726
      %1743 = vst.msk [vmem:[%s1680 + $0x38] sm:$0xf] %vm1672, %v1727
      %v1744 = vld [vmem:[%s262] sm:$0xf]
      %v1745 = vld [vmem:[%s262 + $0x8] sm:$0xf]
      %v1746 = vld [vmem:[%s262 + $0x10] sm:$0xf]
      %v1747 = vld [vmem:[%s262 + $0x18] sm:$0xf]
      %v1748 = vld [vmem:[%s262 + $0x20] sm:$0xf]
      %v1749 = vld [vmem:[%s262 + $0x28] sm:$0xf]
      %v1750 = vld [vmem:[%s262 + $0x30] sm:$0xf]
      %v1751 = vld [vmem:[%s262 + $0x38] sm:$0xf]
      %v1752 = vld [vmem:[%s1] sm:$0x3]
      %v1753 = vld [vmem:[%s246] sm:$0xf]
      %v1754 = vld [vmem:[%s246 + $0x4] sm:$0x1]
      %v1755 = vld [vmem:[%s246 + $0x8] sm:$0xf]
      %v1756 = vld [vmem:[%s246 + $0xc] sm:$0x1]
      %v1757 = vld [vmem:[%s246 + $0x10] sm:$0xf]
      %v1758 = vld [vmem:[%s246 + $0x14] sm:$0x1]
      %v1759 = vld [vmem:[%s246 + $0x18] sm:$0xf]
      %v1760 = vld [vmem:[%s246 + $0x1c] sm:$0x1]
      %v1761 = vld [vmem:[%s246 + $0x20] sm:$0xf]
      %v1762 = vld [vmem:[%s246 + $0x24] sm:$0x1]
      %v1763 = vld [vmem:[%s246 + $0x28] sm:$0xf]
      %v1764 = vld [vmem:[%s246 + $0x2c] sm:$0x1]
      %v1765 = vld [vmem:[%s246 + $0x30] sm:$0xf]
      %v1766 = vld [vmem:[%s246 + $0x34] sm:$0x1]
      %v1767 = vld [vmem:[%s246 + $0x38] sm:$0xf]
      %v1768 = vld [vmem:[%s246 + $0x3c] sm:$0x1]
      %v1770 = vshrl.u32 %v1753, 16
      %v1772 = vrot.slane %v1770, 4
      %v1773 = vshll.u32 %v1753, 16
      %v1775 = vrot.slane %v1773, 5
      %v1776 = vor.u32 %v1772, %v1775
      %v1777 = vrot.slane %v1776, 4
      %v1779 = vshll.u32 %v1754, 16
      %v1781 = vrot.slane %v1779, 5
      %v1782 = vsel %vm493, %v1777, %v1781
      %v1784 = vshrl.u32 %v1755, 16
      %v1786 = vrot.slane %v1784, 4
      %v1787 = vshll.u32 %v1755, 16
      %v1789 = vrot.slane %v1787, 5
      %v1790 = vor.u32 %v1786, %v1789
      %v1791 = vrot.slane %v1790, 4
      %v1793 = vshll.u32 %v1756, 16
      %v1795 = vrot.slane %v1793, 5
      %v1796 = vsel %vm493, %v1791, %v1795
      %v1798 = vshrl.u32 %v1757, 16
      %v1800 = vrot.slane %v1798, 4
      %v1801 = vshll.u32 %v1757, 16
      %v1803 = vrot.slane %v1801, 5
      %v1804 = vor.u32 %v1800, %v1803
      %v1805 = vrot.slane %v1804, 4
      %v1807 = vshll.u32 %v1758, 16
      %v1809 = vrot.slane %v1807, 5
      %v1810 = vsel %vm493, %v1805, %v1809
      %v1812 = vshrl.u32 %v1759, 16
      %v1814 = vrot.slane %v1812, 4
      %v1815 = vshll.u32 %v1759, 16
      %v1817 = vrot.slane %v1815, 5
      %v1818 = vor.u32 %v1814, %v1817
      %v1819 = vrot.slane %v1818, 4
      %v1821 = vshll.u32 %v1760, 16
      %v1823 = vrot.slane %v1821, 5
      %v1824 = vsel %vm493, %v1819, %v1823
      %v1826 = vshrl.u32 %v1761, 16
      %v1828 = vrot.slane %v1826, 4
      %v1829 = vshll.u32 %v1761, 16
      %v1831 = vrot.slane %v1829, 5
      %v1832 = vor.u32 %v1828, %v1831
      %v1833 = vrot.slane %v1832, 4
      %v1835 = vshll.u32 %v1762, 16
      %v1837 = vrot.slane %v1835, 5
      %v1838 = vsel %vm493, %v1833, %v1837
      %v1840 = vshrl.u32 %v1763, 16
      %v1842 = vrot.slane %v1840, 4
      %v1843 = vshll.u32 %v1763, 16
      %v1845 = vrot.slane %v1843, 5
      %v1846 = vor.u32 %v1842, %v1845
      %v1847 = vrot.slane %v1846, 4
      %v1849 = vshll.u32 %v1764, 16
      %v1851 = vrot.slane %v1849, 5
      %v1852 = vsel %vm493, %v1847, %v1851
      %v1854 = vshrl.u32 %v1765, 16
      %v1856 = vrot.slane %v1854, 4
      %v1857 = vshll.u32 %v1765, 16
      %v1859 = vrot.slane %v1857, 5
      %v1860 = vor.u32 %v1856, %v1859
      %v1861 = vrot.slane %v1860, 4
      %v1863 = vshll.u32 %v1766, 16
      %v1865 = vrot.slane %v1863, 5
      %v1866 = vsel %vm493, %v1861, %v1865
      %v1868 = vshrl.u32 %v1767, 16
      %v1870 = vrot.slane %v1868, 4
      %v1871 = vshll.u32 %v1767, 16
      %v1873 = vrot.slane %v1871, 5
      %v1874 = vor.u32 %v1870, %v1873
      %v1875 = vrot.slane %v1874, 4
      %v1877 = vshll.u32 %v1768, 16
      %v1879 = vrot.slane %v1877, 5
      %v1880 = vsel %vm493, %v1875, %v1879
      %v1881 = vld [vmem:[%s271] sm:$0x3]
      %v1882 = vunpack.c.l.b16 %v1782
      %v1883 = vunpack.c.l.b16 %v1796
      %v1884 = vunpack.c.l.b16 %v1810
      %v1885 = vunpack.c.l.b16 %v1824
      %v1886 = vunpack.c.l.b16 %v1838
      %v1887 = vunpack.c.l.b16 %v1852
      %v1888 = vunpack.c.l.b16 %v1866
      %v1889 = vunpack.c.l.b16 %v1880
      %v1890 = vpack.c.b16 %v1883, %v1882
      %v1891 = vpack.c.b16 %v1885, %v1884
      %v1892 = vpack.c.b16 %v1887, %v1886
      %v1893 = vpack.c.b16 %v1889, %v1888
      %v1895 = vsel %vm293, %v1890, 0
      %v1898 = vsel %vm293, %v1891, 0
      %v1901 = vsel %vm293, %v1892, 0
      %v1904 = vsel %vm293, %v1893, 0
      %v1907 = vsel %vm306, %v1881, 0
      %1909 = vmatprep.subr.bf16.mxu0 0
      %1910 = vmatpush1.bf16.msra.mxu0 0
      %1911 = vmatprep.subr.bf16.mxu0 0
      %1912 = vmatpush1.bf16.msra.mxu0 0
      %1913 = vmatprep.subr.bf16.mxu0 0
      %1914 = vmatpush1.bf16.msra.mxu0 0
      %1915 = vmatprep.subr.bf16.mxu0 0
      %1916 = vmatpush1.bf16.msra.mxu0 0
      %1917 = vmatprep.subr.bf16.mxu0 0
      %1918 = vmatpush1.bf16.msra.mxu0 0
      %1919 = vmatprep.subr.bf16.mxu0 0
      %1920 = vmatpush1.bf16.msra.mxu0 0
      %1921 = vmatprep.subr.bf16.mxu0 0
      %1922 = vmatpush1.bf16.msra.mxu0 0
      %1923 = vmatprep.subr.bf16.mxu0 0
      %1924 = vmatpush1.bf16.msra.mxu0 %v1907
      %1925 = vmatprep.subr.bf16.mxu0 0
      %1926 = vmatpush2.bf16.msra.mxu0 0
      %1927 = vmatprep.subr.bf16.mxu0 0
      %1928 = vmatpush2.bf16.msra.mxu0 0
      %1929 = vmatprep.subr.bf16.mxu0 0
      %1930 = vmatpush2.bf16.msra.mxu0 0
      %1931 = vmatprep.subr.bf16.mxu0 0
      %1932 = vmatpush2.bf16.msra.mxu0 0
      %1933 = vmatprep.subr.bf16.mxu0 0
      %1934 = vmatpush2.bf16.msra.mxu0 0
      %1935 = vmatprep.subr.bf16.mxu0 0
      %1936 = vmatpush2.bf16.msra.mxu0 0
      %1937 = vmatprep.subr.bf16.mxu0 0
      %1938 = vmatpush2.bf16.msra.mxu0 0
      %1939 = vmatprep.subr.bf16.mxu0 0
      %1940 = vmatpush2.bf16.msra.mxu0 0
      %1941 = vmatprep.mubr.bf16.mxu0 0
      %1942 = vmatmul.mubr.bf16.gmra.mxu0 %v1895
      %v1943 = vpop.f32.mrf.mxu0
      %v1944 = vadd.f32 0.0, %v1943
      %v1945 = vpop.f32.mrf.mxu0
      %v1946 = vpop.f32.mrf.mxu0
      %v1947 = vadd.f32 0.0, %v1946
      %v1948 = vpop.f32.mrf.mxu0
      %1949 = vmatprep.mubr.bf16.mxu0 0
      %1950 = vmatmul.mubr.bf16.gmra.mxu0 %v1898
      %v1951 = vpop.f32.mrf.mxu0
      %v1952 = vadd.f32 0.0, %v1951
      %v1953 = vpop.f32.mrf.mxu0
      %v1954 = vpop.f32.mrf.mxu0
      %v1955 = vadd.f32 0.0, %v1954
      %v1956 = vpop.f32.mrf.mxu0
      %1957 = vmatprep.mubr.bf16.mxu0 0
      %1958 = vmatmul.mubr.bf16.gmra.mxu0 %v1901
      %v1959 = vpop.f32.mrf.mxu0
      %v1960 = vadd.f32 0.0, %v1959
      %v1961 = vpop.f32.mrf.mxu0
      %v1962 = vpop.f32.mrf.mxu0
      %v1963 = vadd.f32 0.0, %v1962
      %v1964 = vpop.f32.mrf.mxu0
      %1965 = vmatprep.mubr.bf16.mxu0 0
      %1966 = vmatmul.mubr.bf16.gmra.mxu0 %v1904
      %v1967 = vpop.f32.mrf.mxu0
      %v1968 = vadd.f32 0.0, %v1967
      %v1969 = vpop.f32.mrf.mxu0
      %v1970 = vpop.f32.mrf.mxu0
      %v1971 = vadd.f32 0.0, %v1970
      %v1972 = vpop.f32.mrf.mxu0
      %1973 = vdwg.mxu0
      %v1982 = vunpack.c.l.b16 %v1744
      %v1983 = vunpack.c.l.b16 %v1745
      %v1984 = vunpack.c.l.b16 %v1746
      %v1985 = vunpack.c.l.b16 %v1747
      %v1986 = vunpack.c.l.b16 %v1748
      %v1987 = vunpack.c.l.b16 %v1749
      %v1988 = vunpack.c.l.b16 %v1750
      %v1989 = vunpack.c.l.b16 %v1751
      %v1990 = vpack.c.b16 %v1983, %v1982
      %v1991 = vpack.c.b16 %v1985, %v1984
      %v1992 = vpack.c.b16 %v1987, %v1986
      %v1993 = vpack.c.b16 %v1989, %v1988
      %v1995 = vsel %vm293, %v1990, 0
      %v1998 = vsel %vm293, %v1991, 0
      %v2001 = vsel %vm293, %v1992, 0
      %v2004 = vsel %vm293, %v1993, 0
      %v2007 = vsel %vm306, %v1752, 0
      %2009 = vmatprep.subr.bf16.mxu0 0
      %2010 = vmatpush1.bf16.msra.mxu0 0
      %2011 = vmatprep.subr.bf16.mxu0 0
      %2012 = vmatpush1.bf16.msra.mxu0 0
      %2013 = vmatprep.subr.bf16.mxu0 0
      %2014 = vmatpush1.bf16.msra.mxu0 0
      %2015 = vmatprep.subr.bf16.mxu0 0
      %2016 = vmatpush1.bf16.msra.mxu0 0
      %2017 = vmatprep.subr.bf16.mxu0 0
      %2018 = vmatpush1.bf16.msra.mxu0 0
      %2019 = vmatprep.subr.bf16.mxu0 0
      %2020 = vmatpush1.bf16.msra.mxu0 0
      %2021 = vmatprep.subr.bf16.mxu0 0
      %2022 = vmatpush1.bf16.msra.mxu0 0
      %2023 = vmatprep.subr.bf16.mxu0 0
      %2024 = vmatpush1.bf16.msra.mxu0 %v2007
      %2025 = vmatprep.subr.bf16.mxu0 0
      %2026 = vmatpush2.bf16.msra.mxu0 0
      %2027 = vmatprep.subr.bf16.mxu0 0
      %2028 = vmatpush2.bf16.msra.mxu0 0
      %2029 = vmatprep.subr.bf16.mxu0 0
      %2030 = vmatpush2.bf16.msra.mxu0 0
      %2031 = vmatprep.subr.bf16.mxu0 0
      %2032 = vmatpush2.bf16.msra.mxu0 0
      %2033 = vmatprep.subr.bf16.mxu0 0
      %2034 = vmatpush2.bf16.msra.mxu0 0
      %2035 = vmatprep.subr.bf16.mxu0 0
      %2036 = vmatpush2.bf16.msra.mxu0 0
      %2037 = vmatprep.subr.bf16.mxu0 0
      %2038 = vmatpush2.bf16.msra.mxu0 0
      %2039 = vmatprep.subr.bf16.mxu0 0
      %2040 = vmatpush2.bf16.msra.mxu0 0
      %2041 = vmatprep.mubr.bf16.mxu0 0
      %2042 = vmatmul.mubr.bf16.gmra.mxu0 %v1995
      %v2043 = vpop.f32.mrf.mxu0
      %v2044 = vadd.f32 %v1944, %v2043
      %v2045 = vpop.f32.mrf.mxu0
      %v2046 = vpop.f32.mrf.mxu0
      %v2047 = vadd.f32 %v1947, %v2046
      %v2048 = vpop.f32.mrf.mxu0
      %2049 = vmatprep.mubr.bf16.mxu0 0
      %2050 = vmatmul.mubr.bf16.gmra.mxu0 %v1998
      %v2051 = vpop.f32.mrf.mxu0
      %v2052 = vadd.f32 %v1952, %v2051
      %v2053 = vpop.f32.mrf.mxu0
      %v2054 = vpop.f32.mrf.mxu0
      %v2055 = vadd.f32 %v1955, %v2054
      %v2056 = vpop.f32.mrf.mxu0
      %2057 = vmatprep.mubr.bf16.mxu0 0
      %2058 = vmatmul.mubr.bf16.gmra.mxu0 %v2001
      %v2059 = vpop.f32.mrf.mxu0
      %v2060 = vadd.f32 %v1960, %v2059
      %v2061 = vpop.f32.mrf.mxu0
      %v2062 = vpop.f32.mrf.mxu0
      %v2063 = vadd.f32 %v1963, %v2062
      %v2064 = vpop.f32.mrf.mxu0
      %2065 = vmatprep.mubr.bf16.mxu0 0
      %2066 = vmatmul.mubr.bf16.gmra.mxu0 %v2004
      %v2067 = vpop.f32.mrf.mxu0
      %v2068 = vadd.f32 %v1968, %v2067
      %v2069 = vpop.f32.mrf.mxu0
      %v2070 = vpop.f32.mrf.mxu0
      %v2071 = vadd.f32 %v1971, %v2070
      %v2072 = vpop.f32.mrf.mxu0
      %2073 = vdwg.mxu0
      %v2074 = vld [vmem:[%s262] sm:$0xf]
      %v2075 = vld [vmem:[%s262 + $0x4] sm:$0x1]
      %v2076 = vld [vmem:[%s262 + $0x8] sm:$0xf]
      %v2077 = vld [vmem:[%s262 + $0xc] sm:$0x1]
      %v2078 = vld [vmem:[%s262 + $0x10] sm:$0xf]
      %v2079 = vld [vmem:[%s262 + $0x14] sm:$0x1]
      %v2080 = vld [vmem:[%s262 + $0x18] sm:$0xf]
      %v2081 = vld [vmem:[%s262 + $0x1c] sm:$0x1]
      %v2082 = vld [vmem:[%s262 + $0x20] sm:$0xf]
      %v2083 = vld [vmem:[%s262 + $0x24] sm:$0x1]
      %v2084 = vld [vmem:[%s262 + $0x28] sm:$0xf]
      %v2085 = vld [vmem:[%s262 + $0x2c] sm:$0x1]
      %v2086 = vld [vmem:[%s262 + $0x30] sm:$0xf]
      %v2087 = vld [vmem:[%s262 + $0x34] sm:$0x1]
      %v2088 = vld [vmem:[%s262 + $0x38] sm:$0xf]
      %v2089 = vld [vmem:[%s262 + $0x3c] sm:$0x1]
      %v2091 = vshrl.u32 %v2074, 16
      %v2093 = vrot.slane %v2091, 4
      %v2094 = vshll.u32 %v2074, 16
      %v2096 = vrot.slane %v2094, 5
      %v2097 = vor.u32 %v2093, %v2096
      %v2098 = vrot.slane %v2097, 4
      %v2100 = vshll.u32 %v2075, 16
      %v2102 = vrot.slane %v2100, 5
      %v2103 = vsel %vm493, %v2098, %v2102
      %v2105 = vshrl.u32 %v2076, 16
      %v2107 = vrot.slane %v2105, 4
      %v2108 = vshll.u32 %v2076, 16
      %v2110 = vrot.slane %v2108, 5
      %v2111 = vor.u32 %v2107, %v2110
      %v2112 = vrot.slane %v2111, 4
      %v2114 = vshll.u32 %v2077, 16
      %v2116 = vrot.slane %v2114, 5
      %v2117 = vsel %vm493, %v2112, %v2116
      %v2119 = vshrl.u32 %v2078, 16
      %v2121 = vrot.slane %v2119, 4
      %v2122 = vshll.u32 %v2078, 16
      %v2124 = vrot.slane %v2122, 5
      %v2125 = vor.u32 %v2121, %v2124
      %v2126 = vrot.slane %v2125, 4
      %v2128 = vshll.u32 %v2079, 16
      %v2130 = vrot.slane %v2128, 5
      %v2131 = vsel %vm493, %v2126, %v2130
      %v2133 = vshrl.u32 %v2080, 16
      %v2135 = vrot.slane %v2133, 4
      %v2136 = vshll.u32 %v2080, 16
      %v2138 = vrot.slane %v2136, 5
      %v2139 = vor.u32 %v2135, %v2138
      %v2140 = vrot.slane %v2139, 4
      %v2142 = vshll.u32 %v2081, 16
      %v2144 = vrot.slane %v2142, 5
      %v2145 = vsel %vm493, %v2140, %v2144
      %v2147 = vshrl.u32 %v2082, 16
      %v2149 = vrot.slane %v2147, 4
      %v2150 = vshll.u32 %v2082, 16
      %v2152 = vrot.slane %v2150, 5
      %v2153 = vor.u32 %v2149, %v2152
      %v2154 = vrot.slane %v2153, 4
      %v2156 = vshll.u32 %v2083, 16
      %v2158 = vrot.slane %v2156, 5
      %v2159 = vsel %vm493, %v2154, %v2158
      %v2161 = vshrl.u32 %v2084, 16
      %v2163 = vrot.slane %v2161, 4
      %v2164 = vshll.u32 %v2084, 16
      %v2166 = vrot.slane %v2164, 5
      %v2167 = vor.u32 %v2163, %v2166
      %v2168 = vrot.slane %v2167, 4
      %v2170 = vshll.u32 %v2085, 16
      %v2172 = vrot.slane %v2170, 5
      %v2173 = vsel %vm493, %v2168, %v2172
      %v2175 = vshrl.u32 %v2086, 16
      %v2177 = vrot.slane %v2175, 4
      %v2178 = vshll.u32 %v2086, 16
      %v2180 = vrot.slane %v2178, 5
      %v2181 = vor.u32 %v2177, %v2180
      %v2182 = vrot.slane %v2181, 4
      %v2184 = vshll.u32 %v2087, 16
      %v2186 = vrot.slane %v2184, 5
      %v2187 = vsel %vm493, %v2182, %v2186
      %v2189 = vshrl.u32 %v2088, 16
      %v2191 = vrot.slane %v2189, 4
      %v2192 = vshll.u32 %v2088, 16
      %v2194 = vrot.slane %v2192, 5
      %v2195 = vor.u32 %v2191, %v2194
      %v2196 = vrot.slane %v2195, 4
      %v2198 = vshll.u32 %v2089, 16
      %v2200 = vrot.slane %v2198, 5
      %v2201 = vsel %vm493, %v2196, %v2200
      %v2202 = vld [vmem:[%s606] sm:$0x3]
      %v2203 = vunpack.c.l.b16 %v2103
      %v2204 = vunpack.c.l.b16 %v2117
      %v2205 = vunpack.c.l.b16 %v2131
      %v2206 = vunpack.c.l.b16 %v2145
      %v2207 = vunpack.c.l.b16 %v2159
      %v2208 = vunpack.c.l.b16 %v2173
      %v2209 = vunpack.c.l.b16 %v2187
      %v2210 = vunpack.c.l.b16 %v2201
      %v2211 = vpack.c.b16 %v2204, %v2203
      %v2212 = vpack.c.b16 %v2206, %v2205
      %v2213 = vpack.c.b16 %v2208, %v2207
      %v2214 = vpack.c.b16 %v2210, %v2209
      %v2216 = vsel %vm293, %v2211, 0
      %v2219 = vsel %vm293, %v2212, 0
      %v2222 = vsel %vm293, %v2213, 0
      %v2225 = vsel %vm293, %v2214, 0
      %v2228 = vsel %vm306, %v2202, 0
      %2230 = vmatprep.subr.bf16.mxu0 0
      %2231 = vmatpush1.bf16.msra.mxu0 0
      %2232 = vmatprep.subr.bf16.mxu0 0
      %2233 = vmatpush1.bf16.msra.mxu0 0
      %2234 = vmatprep.subr.bf16.mxu0 0
      %2235 = vmatpush1.bf16.msra.mxu0 0
      %2236 = vmatprep.subr.bf16.mxu0 0
      %2237 = vmatpush1.bf16.msra.mxu0 0
      %2238 = vmatprep.subr.bf16.mxu0 0
      %2239 = vmatpush1.bf16.msra.mxu0 0
      %2240 = vmatprep.subr.bf16.mxu0 0
      %2241 = vmatpush1.bf16.msra.mxu0 0
      %2242 = vmatprep.subr.bf16.mxu0 0
      %2243 = vmatpush1.bf16.msra.mxu0 0
      %2244 = vmatprep.subr.bf16.mxu0 0
      %2245 = vmatpush1.bf16.msra.mxu0 %v2228
      %2246 = vmatprep.subr.bf16.mxu0 0
      %2247 = vmatpush2.bf16.msra.mxu0 0
      %2248 = vmatprep.subr.bf16.mxu0 0
      %2249 = vmatpush2.bf16.msra.mxu0 0
      %2250 = vmatprep.subr.bf16.mxu0 0
      %2251 = vmatpush2.bf16.msra.mxu0 0
      %2252 = vmatprep.subr.bf16.mxu0 0
      %2253 = vmatpush2.bf16.msra.mxu0 0
      %2254 = vmatprep.subr.bf16.mxu0 0
      %2255 = vmatpush2.bf16.msra.mxu0 0
      %2256 = vmatprep.subr.bf16.mxu0 0
      %2257 = vmatpush2.bf16.msra.mxu0 0
      %2258 = vmatprep.subr.bf16.mxu0 0
      %2259 = vmatpush2.bf16.msra.mxu0 0
      %2260 = vmatprep.subr.bf16.mxu0 0
      %2261 = vmatpush2.bf16.msra.mxu0 0
      %2262 = vmatprep.mubr.bf16.mxu0 0
      %2263 = vmatmul.mubr.bf16.gmra.mxu0 %v2216
      %v2264 = vpop.f32.mrf.mxu0
      %v2265 = vadd.f32 0.0, %v2264
      %v2266 = vpop.f32.mrf.mxu0
      %v2267 = vpop.f32.mrf.mxu0
      %v2268 = vadd.f32 0.0, %v2267
      %v2269 = vpop.f32.mrf.mxu0
      %2270 = vmatprep.mubr.bf16.mxu0 0
      %2271 = vmatmul.mubr.bf16.gmra.mxu0 %v2219
      %v2272 = vpop.f32.mrf.mxu0
      %v2273 = vadd.f32 0.0, %v2272
      %v2274 = vpop.f32.mrf.mxu0
      %v2275 = vpop.f32.mrf.mxu0
      %v2276 = vadd.f32 0.0, %v2275
      %v2277 = vpop.f32.mrf.mxu0
      %2278 = vmatprep.mubr.bf16.mxu0 0
      %2279 = vmatmul.mubr.bf16.gmra.mxu0 %v2222
      %v2280 = vpop.f32.mrf.mxu0
      %v2281 = vadd.f32 0.0, %v2280
      %v2282 = vpop.f32.mrf.mxu0
      %v2283 = vpop.f32.mrf.mxu0
      %v2284 = vadd.f32 0.0, %v2283
      %v2285 = vpop.f32.mrf.mxu0
      %2286 = vmatprep.mubr.bf16.mxu0 0
      %2287 = vmatmul.mubr.bf16.gmra.mxu0 %v2225
      %v2288 = vpop.f32.mrf.mxu0
      %v2289 = vadd.f32 0.0, %v2288
      %v2290 = vpop.f32.mrf.mxu0
      %v2291 = vpop.f32.mrf.mxu0
      %v2292 = vadd.f32 0.0, %v2291
      %v2293 = vpop.f32.mrf.mxu0
      %2294 = vdwg.mxu0
      %v2295 = vadd.f32 %v2044, %v2265
      %v2296 = vadd.f32 %v2047, %v2268
      %v2297 = vadd.f32 %v2052, %v2273
      %v2298 = vadd.f32 %v2055, %v2276
      %v2299 = vadd.f32 %v2060, %v2281
      %v2300 = vadd.f32 %v2063, %v2284
      %v2301 = vadd.f32 %v2068, %v2289
      %v2302 = vadd.f32 %v2071, %v2292
      %v2303 = vld [vmem:[%s827] sm:$0xf]
      %v2304 = vld [vmem:[%s827 + $0x8] sm:$0xf]
      %v2305 = vld [vmem:[%s827 + $0x10] sm:$0xf]
      %v2306 = vld [vmem:[%s827 + $0x18] sm:$0xf]
      %v2307 = vld [vmem:[%s827 + $0x20] sm:$0xf]
      %v2308 = vld [vmem:[%s827 + $0x28] sm:$0xf]
      %v2309 = vld [vmem:[%s827 + $0x30] sm:$0xf]
      %v2310 = vld [vmem:[%s827 + $0x38] sm:$0xf]
      %v2311 = vld [vmem:[%s717] sm:$0x3]
      %v2320 = vunpack.c.l.b16 %v2303
      %v2321 = vunpack.c.l.b16 %v2304
      %v2322 = vunpack.c.l.b16 %v2305
      %v2323 = vunpack.c.l.b16 %v2306
      %v2324 = vunpack.c.l.b16 %v2307
      %v2325 = vunpack.c.l.b16 %v2308
      %v2326 = vunpack.c.l.b16 %v2309
      %v2327 = vunpack.c.l.b16 %v2310
      %v2328 = vpack.c.b16 %v2321, %v2320
      %v2329 = vpack.c.b16 %v2323, %v2322
      %v2330 = vpack.c.b16 %v2325, %v2324
      %v2331 = vpack.c.b16 %v2327, %v2326
      %v2333 = vsel %vm293, %v2328, 0
      %v2336 = vsel %vm293, %v2329, 0
      %v2339 = vsel %vm293, %v2330, 0
      %v2342 = vsel %vm293, %v2331, 0
      %v2345 = vsel %vm306, %v2311, 0
      %2347 = vmatprep.subr.bf16.mxu0 0
      %2348 = vmatpush1.bf16.msra.mxu0 0
      %2349 = vmatprep.subr.bf16.mxu0 0
      %2350 = vmatpush1.bf16.msra.mxu0 0
      %2351 = vmatprep.subr.bf16.mxu0 0
      %2352 = vmatpush1.bf16.msra.mxu0 0
      %2353 = vmatprep.subr.bf16.mxu0 0
      %2354 = vmatpush1.bf16.msra.mxu0 0
      %2355 = vmatprep.subr.bf16.mxu0 0
      %2356 = vmatpush1.bf16.msra.mxu0 0
      %2357 = vmatprep.subr.bf16.mxu0 0
      %2358 = vmatpush1.bf16.msra.mxu0 0
      %2359 = vmatprep.subr.bf16.mxu0 0
      %2360 = vmatpush1.bf16.msra.mxu0 0
      %2361 = vmatprep.subr.bf16.mxu0 0
      %2362 = vmatpush1.bf16.msra.mxu0 %v2345
      %2363 = vmatprep.subr.bf16.mxu0 0
      %2364 = vmatpush2.bf16.msra.mxu0 0
      %2365 = vmatprep.subr.bf16.mxu0 0
      %2366 = vmatpush2.bf16.msra.mxu0 0
      %2367 = vmatprep.subr.bf16.mxu0 0
      %2368 = vmatpush2.bf16.msra.mxu0 0
      %2369 = vmatprep.subr.bf16.mxu0 0
      %2370 = vmatpush2.bf16.msra.mxu0 0
      %2371 = vmatprep.subr.bf16.mxu0 0
      %2372 = vmatpush2.bf16.msra.mxu0 0
      %2373 = vmatprep.subr.bf16.mxu0 0
      %2374 = vmatpush2.bf16.msra.mxu0 0
      %2375 = vmatprep.subr.bf16.mxu0 0
      %2376 = vmatpush2.bf16.msra.mxu0 0
      %2377 = vmatprep.subr.bf16.mxu0 0
      %2378 = vmatpush2.bf16.msra.mxu0 0
      %2379 = vmatprep.mubr.bf16.mxu0 0
      %2380 = vmatmul.mubr.bf16.gmra.mxu0 %v2333
      %v2381 = vpop.f32.mrf.mxu0
      %v2382 = vadd.f32 0.0, %v2381
      %v2383 = vpop.f32.mrf.mxu0
      %v2384 = vpop.f32.mrf.mxu0
      %v2385 = vadd.f32 0.0, %v2384
      %v2386 = vpop.f32.mrf.mxu0
      %2387 = vmatprep.mubr.bf16.mxu0 0
      %2388 = vmatmul.mubr.bf16.gmra.mxu0 %v2336
      %v2389 = vpop.f32.mrf.mxu0
      %v2390 = vadd.f32 0.0, %v2389
      %v2391 = vpop.f32.mrf.mxu0
      %v2392 = vpop.f32.mrf.mxu0
      %v2393 = vadd.f32 0.0, %v2392
      %v2394 = vpop.f32.mrf.mxu0
      %2395 = vmatprep.mubr.bf16.mxu0 0
      %2396 = vmatmul.mubr.bf16.gmra.mxu0 %v2339
      %v2397 = vpop.f32.mrf.mxu0
      %v2398 = vadd.f32 0.0, %v2397
      %v2399 = vpop.f32.mrf.mxu0
      %v2400 = vpop.f32.mrf.mxu0
      %v2401 = vadd.f32 0.0, %v2400
      %v2402 = vpop.f32.mrf.mxu0
      %2403 = vmatprep.mubr.bf16.mxu0 0
      %2404 = vmatmul.mubr.bf16.gmra.mxu0 %v2342
      %v2405 = vpop.f32.mrf.mxu0
      %v2406 = vadd.f32 0.0, %v2405
      %v2407 = vpop.f32.mrf.mxu0
      %v2408 = vpop.f32.mrf.mxu0
      %v2409 = vadd.f32 0.0, %v2408
      %v2410 = vpop.f32.mrf.mxu0
      %2411 = vdwg.mxu0
      %v2412 = vadd.f32 %v2295, %v2382
      %v2413 = vadd.f32 %v2296, %v2385
      %v2414 = vadd.f32 %v2297, %v2390
      %v2415 = vadd.f32 %v2298, %v2393
      %v2416 = vadd.f32 %v2299, %v2398
      %v2417 = vadd.f32 %v2300, %v2401
      %v2418 = vadd.f32 %v2301, %v2406
      %v2419 = vadd.f32 %v2302, %v2409
      %v2420 = vld [vmem:[%s708] sm:$0xf]
      %v2421 = vld [vmem:[%s708 + $0x4] sm:$0x1]
      %v2422 = vld [vmem:[%s708 + $0x8] sm:$0xf]
      %v2423 = vld [vmem:[%s708 + $0xc] sm:$0x1]
      %v2424 = vld [vmem:[%s708 + $0x10] sm:$0xf]
      %v2425 = vld [vmem:[%s708 + $0x14] sm:$0x1]
      %v2426 = vld [vmem:[%s708 + $0x18] sm:$0xf]
      %v2427 = vld [vmem:[%s708 + $0x1c] sm:$0x1]
      %v2428 = vld [vmem:[%s708 + $0x20] sm:$0xf]
      %v2429 = vld [vmem:[%s708 + $0x24] sm:$0x1]
      %v2430 = vld [vmem:[%s708 + $0x28] sm:$0xf]
      %v2431 = vld [vmem:[%s708 + $0x2c] sm:$0x1]
      %v2432 = vld [vmem:[%s708 + $0x30] sm:$0xf]
      %v2433 = vld [vmem:[%s708 + $0x34] sm:$0x1]
      %v2434 = vld [vmem:[%s708 + $0x38] sm:$0xf]
      %v2435 = vld [vmem:[%s708 + $0x3c] sm:$0x1]
      %v2437 = vshrl.u32 %v2420, 16
      %v2439 = vrot.slane %v2437, 4
      %v2440 = vshll.u32 %v2420, 16
      %v2442 = vrot.slane %v2440, 5
      %v2443 = vor.u32 %v2439, %v2442
      %v2444 = vrot.slane %v2443, 4
      %v2446 = vshll.u32 %v2421, 16
      %v2448 = vrot.slane %v2446, 5
      %v2449 = vsel %vm493, %v2444, %v2448
      %v2451 = vshrl.u32 %v2422, 16
      %v2453 = vrot.slane %v2451, 4
      %v2454 = vshll.u32 %v2422, 16
      %v2456 = vrot.slane %v2454, 5
      %v2457 = vor.u32 %v2453, %v2456
      %v2458 = vrot.slane %v2457, 4
      %v2460 = vshll.u32 %v2423, 16
      %v2462 = vrot.slane %v2460, 5
      %v2463 = vsel %vm493, %v2458, %v2462
      %v2465 = vshrl.u32 %v2424, 16
      %v2467 = vrot.slane %v2465, 4
      %v2468 = vshll.u32 %v2424, 16
      %v2470 = vrot.slane %v2468, 5
      %v2471 = vor.u32 %v2467, %v2470
      %v2472 = vrot.slane %v2471, 4
      %v2474 = vshll.u32 %v2425, 16
      %v2476 = vrot.slane %v2474, 5
      %v2477 = vsel %vm493, %v2472, %v2476
      %v2479 = vshrl.u32 %v2426, 16
      %v2481 = vrot.slane %v2479, 4
      %v2482 = vshll.u32 %v2426, 16
      %v2484 = vrot.slane %v2482, 5
      %v2485 = vor.u32 %v2481, %v2484
      %v2486 = vrot.slane %v2485, 4
      %v2488 = vshll.u32 %v2427, 16
      %v2490 = vrot.slane %v2488, 5
      %v2491 = vsel %vm493, %v2486, %v2490
      %v2493 = vshrl.u32 %v2428, 16
      %v2495 = vrot.slane %v2493, 4
      %v2496 = vshll.u32 %v2428, 16
      %v2498 = vrot.slane %v2496, 5
      %v2499 = vor.u32 %v2495, %v2498
      %v2500 = vrot.slane %v2499, 4
      %v2502 = vshll.u32 %v2429, 16
      %v2504 = vrot.slane %v2502, 5
      %v2505 = vsel %vm493, %v2500, %v2504
      %v2507 = vshrl.u32 %v2430, 16
      %v2509 = vrot.slane %v2507, 4
      %v2510 = vshll.u32 %v2430, 16
      %v2512 = vrot.slane %v2510, 5
      %v2513 = vor.u32 %v2509, %v2512
      %v2514 = vrot.slane %v2513, 4
      %v2516 = vshll.u32 %v2431, 16
      %v2518 = vrot.slane %v2516, 5
      %v2519 = vsel %vm493, %v2514, %v2518
      %v2521 = vshrl.u32 %v2432, 16
      %v2523 = vrot.slane %v2521, 4
      %v2524 = vshll.u32 %v2432, 16
      %v2526 = vrot.slane %v2524, 5
      %v2527 = vor.u32 %v2523, %v2526
      %v2528 = vrot.slane %v2527, 4
      %v2530 = vshll.u32 %v2433, 16
      %v2532 = vrot.slane %v2530, 5
      %v2533 = vsel %vm493, %v2528, %v2532
      %v2535 = vshrl.u32 %v2434, 16
      %v2537 = vrot.slane %v2535, 4
      %v2538 = vshll.u32 %v2434, 16
      %v2540 = vrot.slane %v2538, 5
      %v2541 = vor.u32 %v2537, %v2540
      %v2542 = vrot.slane %v2541, 4
      %v2544 = vshll.u32 %v2435, 16
      %v2546 = vrot.slane %v2544, 5
      %v2547 = vsel %vm493, %v2542, %v2546
      %v2548 = vld [vmem:[%s836] sm:$0x3]
      %v2549 = vunpack.c.l.b16 %v2449
      %v2550 = vunpack.c.l.b16 %v2463
      %v2551 = vunpack.c.l.b16 %v2477
      %v2552 = vunpack.c.l.b16 %v2491
      %v2553 = vunpack.c.l.b16 %v2505
      %v2554 = vunpack.c.l.b16 %v2519
      %v2555 = vunpack.c.l.b16 %v2533
      %v2556 = vunpack.c.l.b16 %v2547
      %v2557 = vpack.c.b16 %v2550, %v2549
      %v2558 = vpack.c.b16 %v2552, %v2551
      %v2559 = vpack.c.b16 %v2554, %v2553
      %v2560 = vpack.c.b16 %v2556, %v2555
      %v2562 = vsel %vm293, %v2557, 0
      %v2565 = vsel %vm293, %v2558, 0
      %v2568 = vsel %vm293, %v2559, 0
      %v2571 = vsel %vm293, %v2560, 0
      %v2574 = vsel %vm306, %v2548, 0
      %2576 = vmatprep.subr.bf16.mxu0 0
      %2577 = vmatpush1.bf16.msra.mxu0 0
      %2578 = vmatprep.subr.bf16.mxu0 0
      %2579 = vmatpush1.bf16.msra.mxu0 0
      %2580 = vmatprep.subr.bf16.mxu0 0
      %2581 = vmatpush1.bf16.msra.mxu0 0
      %2582 = vmatprep.subr.bf16.mxu0 0
      %2583 = vmatpush1.bf16.msra.mxu0 0
      %2584 = vmatprep.subr.bf16.mxu0 0
      %2585 = vmatpush1.bf16.msra.mxu0 0
      %2586 = vmatprep.subr.bf16.mxu0 0
      %2587 = vmatpush1.bf16.msra.mxu0 0
      %2588 = vmatprep.subr.bf16.mxu0 0
      %2589 = vmatpush1.bf16.msra.mxu0 0
      %2590 = vmatprep.subr.bf16.mxu0 0
      %2591 = vmatpush1.bf16.msra.mxu0 %v2574
      %2592 = vmatprep.subr.bf16.mxu0 0
      %2593 = vmatpush2.bf16.msra.mxu0 0
      %2594 = vmatprep.subr.bf16.mxu0 0
      %2595 = vmatpush2.bf16.msra.mxu0 0
      %2596 = vmatprep.subr.bf16.mxu0 0
      %2597 = vmatpush2.bf16.msra.mxu0 0
      %2598 = vmatprep.subr.bf16.mxu0 0
      %2599 = vmatpush2.bf16.msra.mxu0 0
      %2600 = vmatprep.subr.bf16.mxu0 0
      %2601 = vmatpush2.bf16.msra.mxu0 0
      %2602 = vmatprep.subr.bf16.mxu0 0
      %2603 = vmatpush2.bf16.msra.mxu0 0
      %2604 = vmatprep.subr.bf16.mxu0 0
      %2605 = vmatpush2.bf16.msra.mxu0 0
      %2606 = vmatprep.subr.bf16.mxu0 0
      %2607 = vmatpush2.bf16.msra.mxu0 0
      %2608 = vmatprep.mubr.bf16.mxu0 0
      %2609 = vmatmul.mubr.bf16.gmra.mxu0 %v2562
      %v2610 = vpop.f32.mrf.mxu0
      %v2611 = vadd.f32 0.0, %v2610
      %v2612 = vpop.f32.mrf.mxu0
      %v2613 = vpop.f32.mrf.mxu0
      %v2614 = vadd.f32 0.0, %v2613
      %v2615 = vpop.f32.mrf.mxu0
      %2616 = vmatprep.mubr.bf16.mxu0 0
      %2617 = vmatmul.mubr.bf16.gmra.mxu0 %v2565
      %v2618 = vpop.f32.mrf.mxu0
      %v2619 = vadd.f32 0.0, %v2618
      %v2620 = vpop.f32.mrf.mxu0
      %v2621 = vpop.f32.mrf.mxu0
      %v2622 = vadd.f32 0.0, %v2621
      %v2623 = vpop.f32.mrf.mxu0
      %2624 = vmatprep.mubr.bf16.mxu0 0
      %2625 = vmatmul.mubr.bf16.gmra.mxu0 %v2568
      %v2626 = vpop.f32.mrf.mxu0
      %v2627 = vadd.f32 0.0, %v2626
      %v2628 = vpop.f32.mrf.mxu0
      %v2629 = vpop.f32.mrf.mxu0
      %v2630 = vadd.f32 0.0, %v2629
      %v2631 = vpop.f32.mrf.mxu0
      %2632 = vmatprep.mubr.bf16.mxu0 0
      %2633 = vmatmul.mubr.bf16.gmra.mxu0 %v2571
      %v2634 = vpop.f32.mrf.mxu0
      %v2635 = vadd.f32 0.0, %v2634
      %v2636 = vpop.f32.mrf.mxu0
      %v2637 = vpop.f32.mrf.mxu0
      %v2638 = vadd.f32 0.0, %v2637
      %v2639 = vpop.f32.mrf.mxu0
      %2640 = vdwg.mxu0
      %v2641 = vadd.f32 %v2412, %v2611
      %v2642 = vadd.f32 %v2413, %v2614
      %v2643 = vadd.f32 %v2414, %v2619
      %v2644 = vadd.f32 %v2415, %v2622
      %v2645 = vadd.f32 %v2416, %v2627
      %v2646 = vadd.f32 %v2417, %v2630
      %v2647 = vadd.f32 %v2418, %v2635
      %v2648 = vadd.f32 %v2419, %v2638
      %v2649 = vld [vmem:[%s827] sm:$0xf]
      %v2650 = vld [vmem:[%s827 + $0x4] sm:$0x1]
      %v2651 = vld [vmem:[%s827 + $0x8] sm:$0xf]
      %v2652 = vld [vmem:[%s827 + $0xc] sm:$0x1]
      %v2653 = vld [vmem:[%s827 + $0x10] sm:$0xf]
      %v2654 = vld [vmem:[%s827 + $0x14] sm:$0x1]
      %v2655 = vld [vmem:[%s827 + $0x18] sm:$0xf]
      %v2656 = vld [vmem:[%s827 + $0x1c] sm:$0x1]
      %v2657 = vld [vmem:[%s827 + $0x20] sm:$0xf]
      %v2658 = vld [vmem:[%s827 + $0x24] sm:$0x1]
      %v2659 = vld [vmem:[%s827 + $0x28] sm:$0xf]
      %v2660 = vld [vmem:[%s827 + $0x2c] sm:$0x1]
      %v2661 = vld [vmem:[%s827 + $0x30] sm:$0xf]
      %v2662 = vld [vmem:[%s827 + $0x34] sm:$0x1]
      %v2663 = vld [vmem:[%s827 + $0x38] sm:$0xf]
      %v2664 = vld [vmem:[%s827 + $0x3c] sm:$0x1]
      %v2666 = vshrl.u32 %v2649, 16
      %v2668 = vrot.slane %v2666, 4
      %v2669 = vshll.u32 %v2649, 16
      %v2671 = vrot.slane %v2669, 5
      %v2672 = vor.u32 %v2668, %v2671
      %v2673 = vrot.slane %v2672, 4
      %v2675 = vshll.u32 %v2650, 16
      %v2677 = vrot.slane %v2675, 5
      %v2678 = vsel %vm493, %v2673, %v2677
      %v2680 = vshrl.u32 %v2651, 16
      %v2682 = vrot.slane %v2680, 4
      %v2683 = vshll.u32 %v2651, 16
      %v2685 = vrot.slane %v2683, 5
      %v2686 = vor.u32 %v2682, %v2685
      %v2687 = vrot.slane %v2686, 4
      %v2689 = vshll.u32 %v2652, 16
      %v2691 = vrot.slane %v2689, 5
      %v2692 = vsel %vm493, %v2687, %v2691
      %v2694 = vshrl.u32 %v2653, 16
      %v2696 = vrot.slane %v2694, 4
      %v2697 = vshll.u32 %v2653, 16
      %v2699 = vrot.slane %v2697, 5
      %v2700 = vor.u32 %v2696, %v2699
      %v2701 = vrot.slane %v2700, 4
      %v2703 = vshll.u32 %v2654, 16
      %v2705 = vrot.slane %v2703, 5
      %v2706 = vsel %vm493, %v2701, %v2705
      %v2708 = vshrl.u32 %v2655, 16
      %v2710 = vrot.slane %v2708, 4
      %v2711 = vshll.u32 %v2655, 16
      %v2713 = vrot.slane %v2711, 5
      %v2714 = vor.u32 %v2710, %v2713
      %v2715 = vrot.slane %v2714, 4
      %v2717 = vshll.u32 %v2656, 16
      %v2719 = vrot.slane %v2717, 5
      %v2720 = vsel %vm493, %v2715, %v2719
      %v2722 = vshrl.u32 %v2657, 16
      %v2724 = vrot.slane %v2722, 4
      %v2725 = vshll.u32 %v2657, 16
      %v2727 = vrot.slane %v2725, 5
      %v2728 = vor.u32 %v2724, %v2727
      %v2729 = vrot.slane %v2728, 4
      %v2731 = vshll.u32 %v2658, 16
      %v2733 = vrot.slane %v2731, 5
      %v2734 = vsel %vm493, %v2729, %v2733
      %v2736 = vshrl.u32 %v2659, 16
      %v2738 = vrot.slane %v2736, 4
      %v2739 = vshll.u32 %v2659, 16
      %v2741 = vrot.slane %v2739, 5
      %v2742 = vor.u32 %v2738, %v2741
      %v2743 = vrot.slane %v2742, 4
      %v2745 = vshll.u32 %v2660, 16
      %v2747 = vrot.slane %v2745, 5
      %v2748 = vsel %vm493, %v2743, %v2747
      %v2750 = vshrl.u32 %v2661, 16
      %v2752 = vrot.slane %v2750, 4
      %v2753 = vshll.u32 %v2661, 16
      %v2755 = vrot.slane %v2753, 5
      %v2756 = vor.u32 %v2752, %v2755
      %v2757 = vrot.slane %v2756, 4
      %v2759 = vshll.u32 %v2662, 16
      %v2761 = vrot.slane %v2759, 5
      %v2762 = vsel %vm493, %v2757, %v2761
      %v2764 = vshrl.u32 %v2663, 16
      %v2766 = vrot.slane %v2764, 4
      %v2767 = vshll.u32 %v2663, 16
      %v2769 = vrot.slane %v2767, 5
      %v2770 = vor.u32 %v2766, %v2769
      %v2771 = vrot.slane %v2770, 4
      %v2773 = vshll.u32 %v2664, 16
      %v2775 = vrot.slane %v2773, 5
      %v2776 = vsel %vm493, %v2771, %v2775
      %v2777 = vld [vmem:[%s1074] sm:$0x3]
      %v2778 = vunpack.c.l.b16 %v2678
      %v2779 = vunpack.c.l.b16 %v2692
      %v2780 = vunpack.c.l.b16 %v2706
      %v2781 = vunpack.c.l.b16 %v2720
      %v2782 = vunpack.c.l.b16 %v2734
      %v2783 = vunpack.c.l.b16 %v2748
      %v2784 = vunpack.c.l.b16 %v2762
      %v2785 = vunpack.c.l.b16 %v2776
      %v2786 = vpack.c.b16 %v2779, %v2778
      %v2787 = vpack.c.b16 %v2781, %v2780
      %v2788 = vpack.c.b16 %v2783, %v2782
      %v2789 = vpack.c.b16 %v2785, %v2784
      %v2791 = vsel %vm293, %v2786, 0
      %v2794 = vsel %vm293, %v2787, 0
      %v2797 = vsel %vm293, %v2788, 0
      %v2800 = vsel %vm293, %v2789, 0
      %v2803 = vsel %vm306, %v2777, 0
      %2805 = vmatprep.subr.bf16.mxu0 0
      %2806 = vmatpush1.bf16.msra.mxu0 0
      %2807 = vmatprep.subr.bf16.mxu0 0
      %2808 = vmatpush1.bf16.msra.mxu0 0
      %2809 = vmatprep.subr.bf16.mxu0 0
      %2810 = vmatpush1.bf16.msra.mxu0 0
      %2811 = vmatprep.subr.bf16.mxu0 0
      %2812 = vmatpush1.bf16.msra.mxu0 0
      %2813 = vmatprep.subr.bf16.mxu0 0
      %2814 = vmatpush1.bf16.msra.mxu0 0
      %2815 = vmatprep.subr.bf16.mxu0 0
      %2816 = vmatpush1.bf16.msra.mxu0 0
      %2817 = vmatprep.subr.bf16.mxu0 0
      %2818 = vmatpush1.bf16.msra.mxu0 0
      %2819 = vmatprep.subr.bf16.mxu0 0
      %2820 = vmatpush1.bf16.msra.mxu0 %v2803
      %2821 = vmatprep.subr.bf16.mxu0 0
      %2822 = vmatpush2.bf16.msra.mxu0 0
      %2823 = vmatprep.subr.bf16.mxu0 0
      %2824 = vmatpush2.bf16.msra.mxu0 0
      %2825 = vmatprep.subr.bf16.mxu0 0
      %2826 = vmatpush2.bf16.msra.mxu0 0
      %2827 = vmatprep.subr.bf16.mxu0 0
      %2828 = vmatpush2.bf16.msra.mxu0 0
      %2829 = vmatprep.subr.bf16.mxu0 0
      %2830 = vmatpush2.bf16.msra.mxu0 0
      %2831 = vmatprep.subr.bf16.mxu0 0
      %2832 = vmatpush2.bf16.msra.mxu0 0
      %2833 = vmatprep.subr.bf16.mxu0 0
      %2834 = vmatpush2.bf16.msra.mxu0 0
      %2835 = vmatprep.subr.bf16.mxu0 0
      %2836 = vmatpush2.bf16.msra.mxu0 0
      %2837 = vmatprep.mubr.bf16.mxu0 0
      %2838 = vmatmul.mubr.bf16.gmra.mxu0 %v2791
      %v2839 = vpop.f32.mrf.mxu0
      %v2840 = vadd.f32 0.0, %v2839
      %v2841 = vpop.f32.mrf.mxu0
      %v2842 = vpop.f32.mrf.mxu0
      %v2843 = vadd.f32 0.0, %v2842
      %v2844 = vpop.f32.mrf.mxu0
      %2845 = vmatprep.mubr.bf16.mxu0 0
      %2846 = vmatmul.mubr.bf16.gmra.mxu0 %v2794
      %v2847 = vpop.f32.mrf.mxu0
      %v2848 = vadd.f32 0.0, %v2847
      %v2849 = vpop.f32.mrf.mxu0
      %v2850 = vpop.f32.mrf.mxu0
      %v2851 = vadd.f32 0.0, %v2850
      %v2852 = vpop.f32.mrf.mxu0
      %2853 = vmatprep.mubr.bf16.mxu0 0
      %2854 = vmatmul.mubr.bf16.gmra.mxu0 %v2797
      %v2855 = vpop.f32.mrf.mxu0
      %v2856 = vadd.f32 0.0, %v2855
      %v2857 = vpop.f32.mrf.mxu0
      %v2858 = vpop.f32.mrf.mxu0
      %v2859 = vadd.f32 0.0, %v2858
      %v2860 = vpop.f32.mrf.mxu0
      %2861 = vmatprep.mubr.bf16.mxu0 0
      %2862 = vmatmul.mubr.bf16.gmra.mxu0 %v2800
      %v2863 = vpop.f32.mrf.mxu0
      %v2864 = vadd.f32 0.0, %v2863
      %v2865 = vpop.f32.mrf.mxu0
      %v2866 = vpop.f32.mrf.mxu0
      %v2867 = vadd.f32 0.0, %v2866
      %v2868 = vpop.f32.mrf.mxu0
      %2869 = vdwg.mxu0
      %v2870 = vadd.f32 %v2641, %v2840
      %v2871 = vadd.f32 %v2642, %v2843
      %v2872 = vadd.f32 %v2643, %v2848
      %v2873 = vadd.f32 %v2644, %v2851
      %v2874 = vadd.f32 %v2645, %v2856
      %v2875 = vadd.f32 %v2646, %v2859
      %v2876 = vadd.f32 %v2647, %v2864
      %v2877 = vadd.f32 %v2648, %v2867
      %v2878 = vld [vmem:[%s1295] sm:$0xf]
      %v2879 = vld [vmem:[%s1295 + $0x8] sm:$0xf]
      %v2880 = vld [vmem:[%s1295 + $0x10] sm:$0xf]
      %v2881 = vld [vmem:[%s1295 + $0x18] sm:$0xf]
      %v2882 = vld [vmem:[%s1295 + $0x20] sm:$0xf]
      %v2883 = vld [vmem:[%s1295 + $0x28] sm:$0xf]
      %v2884 = vld [vmem:[%s1295 + $0x30] sm:$0xf]
      %v2885 = vld [vmem:[%s1295 + $0x38] sm:$0xf]
      %v2886 = vld [vmem:[%s1185] sm:$0x3]
      %v2895 = vunpack.c.l.b16 %v2878
      %v2896 = vunpack.c.l.b16 %v2879
      %v2897 = vunpack.c.l.b16 %v2880
      %v2898 = vunpack.c.l.b16 %v2881
      %v2899 = vunpack.c.l.b16 %v2882
      %v2900 = vunpack.c.l.b16 %v2883
      %v2901 = vunpack.c.l.b16 %v2884
      %v2902 = vunpack.c.l.b16 %v2885
      %v2903 = vpack.c.b16 %v2896, %v2895
      %v2904 = vpack.c.b16 %v2898, %v2897
      %v2905 = vpack.c.b16 %v2900, %v2899
      %v2906 = vpack.c.b16 %v2902, %v2901
      %v2908 = vsel %vm293, %v2903, 0
      %v2911 = vsel %vm293, %v2904, 0
      %v2914 = vsel %vm293, %v2905, 0
      %v2917 = vsel %vm293, %v2906, 0
      %v2920 = vsel %vm306, %v2886, 0
      %2922 = vmatprep.subr.bf16.mxu0 0
      %2923 = vmatpush1.bf16.msra.mxu0 0
      %2924 = vmatprep.subr.bf16.mxu0 0
      %2925 = vmatpush1.bf16.msra.mxu0 0
      %2926 = vmatprep.subr.bf16.mxu0 0
      %2927 = vmatpush1.bf16.msra.mxu0 0
      %2928 = vmatprep.subr.bf16.mxu0 0
      %2929 = vmatpush1.bf16.msra.mxu0 0
      %2930 = vmatprep.subr.bf16.mxu0 0
      %2931 = vmatpush1.bf16.msra.mxu0 0
      %2932 = vmatprep.subr.bf16.mxu0 0
      %2933 = vmatpush1.bf16.msra.mxu0 0
      %2934 = vmatprep.subr.bf16.mxu0 0
      %2935 = vmatpush1.bf16.msra.mxu0 0
      %2936 = vmatprep.subr.bf16.mxu0 0
      %2937 = vmatpush1.bf16.msra.mxu0 %v2920
      %2938 = vmatprep.subr.bf16.mxu0 0
      %2939 = vmatpush2.bf16.msra.mxu0 0
      %2940 = vmatprep.subr.bf16.mxu0 0
      %2941 = vmatpush2.bf16.msra.mxu0 0
      %2942 = vmatprep.subr.bf16.mxu0 0
      %2943 = vmatpush2.bf16.msra.mxu0 0
      %2944 = vmatprep.subr.bf16.mxu0 0
      %2945 = vmatpush2.bf16.msra.mxu0 0
      %2946 = vmatprep.subr.bf16.mxu0 0
      %2947 = vmatpush2.bf16.msra.mxu0 0
      %2948 = vmatprep.subr.bf16.mxu0 0
      %2949 = vmatpush2.bf16.msra.mxu0 0
      %2950 = vmatprep.subr.bf16.mxu0 0
      %2951 = vmatpush2.bf16.msra.mxu0 0
      %2952 = vmatprep.subr.bf16.mxu0 0
      %2953 = vmatpush2.bf16.msra.mxu0 0
      %2954 = vmatprep.mubr.bf16.mxu0 0
      %2955 = vmatmul.mubr.bf16.gmra.mxu0 %v2908
      %v2956 = vpop.f32.mrf.mxu0
      %v2957 = vadd.f32 0.0, %v2956
      %v2958 = vpop.f32.mrf.mxu0
      %v2959 = vpop.f32.mrf.mxu0
      %v2960 = vadd.f32 0.0, %v2959
      %v2961 = vpop.f32.mrf.mxu0
      %2962 = vmatprep.mubr.bf16.mxu0 0
      %2963 = vmatmul.mubr.bf16.gmra.mxu0 %v2911
      %v2964 = vpop.f32.mrf.mxu0
      %v2965 = vadd.f32 0.0, %v2964
      %v2966 = vpop.f32.mrf.mxu0
      %v2967 = vpop.f32.mrf.mxu0
      %v2968 = vadd.f32 0.0, %v2967
      %v2969 = vpop.f32.mrf.mxu0
      %2970 = vmatprep.mubr.bf16.mxu0 0
      %2971 = vmatmul.mubr.bf16.gmra.mxu0 %v2914
      %v2972 = vpop.f32.mrf.mxu0
      %v2973 = vadd.f32 0.0, %v2972
      %v2974 = vpop.f32.mrf.mxu0
      %v2975 = vpop.f32.mrf.mxu0
      %v2976 = vadd.f32 0.0, %v2975
      %v2977 = vpop.f32.mrf.mxu0
      %2978 = vmatprep.mubr.bf16.mxu0 0
      %2979 = vmatmul.mubr.bf16.gmra.mxu0 %v2917
      %v2980 = vpop.f32.mrf.mxu0
      %v2981 = vadd.f32 0.0, %v2980
      %v2982 = vpop.f32.mrf.mxu0
      %v2983 = vpop.f32.mrf.mxu0
      %v2984 = vadd.f32 0.0, %v2983
      %v2985 = vpop.f32.mrf.mxu0
      %2986 = vdwg.mxu0
      %v2987 = vadd.f32 %v2870, %v2957
      %v2988 = vadd.f32 %v2871, %v2960
      %v2989 = vadd.f32 %v2872, %v2965
      %v2990 = vadd.f32 %v2873, %v2968
      %v2991 = vadd.f32 %v2874, %v2973
      %v2992 = vadd.f32 %v2875, %v2976
      %v2993 = vadd.f32 %v2876, %v2981
      %v2994 = vadd.f32 %v2877, %v2984
      %v2995 = vld [vmem:[%s1176] sm:$0xf]
      %v2996 = vld [vmem:[%s1176 + $0x4] sm:$0x1]
      %v2997 = vld [vmem:[%s1176 + $0x8] sm:$0xf]
      %v2998 = vld [vmem:[%s1176 + $0xc] sm:$0x1]
      %v2999 = vld [vmem:[%s1176 + $0x10] sm:$0xf]
      %v3000 = vld [vmem:[%s1176 + $0x14] sm:$0x1]
      %v3001 = vld [vmem:[%s1176 + $0x18] sm:$0xf]
      %v3002 = vld [vmem:[%s1176 + $0x1c] sm:$0x1]
      %v3003 = vld [vmem:[%s1176 + $0x20] sm:$0xf]
      %v3004 = vld [vmem:[%s1176 + $0x24] sm:$0x1]
      %v3005 = vld [vmem:[%s1176 + $0x28] sm:$0xf]
      %v3006 = vld [vmem:[%s1176 + $0x2c] sm:$0x1]
      %v3007 = vld [vmem:[%s1176 + $0x30] sm:$0xf]
      %v3008 = vld [vmem:[%s1176 + $0x34] sm:$0x1]
      %v3009 = vld [vmem:[%s1176 + $0x38] sm:$0xf]
      %v3010 = vld [vmem:[%s1176 + $0x3c] sm:$0x1]
      %v3012 = vshrl.u32 %v2995, 16
      %v3014 = vrot.slane %v3012, 4
      %v3015 = vshll.u32 %v2995, 16
      %v3017 = vrot.slane %v3015, 5
      %v3018 = vor.u32 %v3014, %v3017
      %v3019 = vrot.slane %v3018, 4
      %v3021 = vshll.u32 %v2996, 16
      %v3023 = vrot.slane %v3021, 5
      %v3024 = vsel %vm493, %v3019, %v3023
      %v3026 = vshrl.u32 %v2997, 16
      %v3028 = vrot.slane %v3026, 4
      %v3029 = vshll.u32 %v2997, 16
      %v3031 = vrot.slane %v3029, 5
      %v3032 = vor.u32 %v3028, %v3031
      %v3033 = vrot.slane %v3032, 4
      %v3035 = vshll.u32 %v2998, 16
      %v3037 = vrot.slane %v3035, 5
      %v3038 = vsel %vm493, %v3033, %v3037
      %v3040 = vshrl.u32 %v2999, 16
      %v3042 = vrot.slane %v3040, 4
      %v3043 = vshll.u32 %v2999, 16
      %v3045 = vrot.slane %v3043, 5
      %v3046 = vor.u32 %v3042, %v3045
      %v3047 = vrot.slane %v3046, 4
      %v3049 = vshll.u32 %v3000, 16
      %v3051 = vrot.slane %v3049, 5
      %v3052 = vsel %vm493, %v3047, %v3051
      %v3054 = vshrl.u32 %v3001, 16
      %v3056 = vrot.slane %v3054, 4
      %v3057 = vshll.u32 %v3001, 16
      %v3059 = vrot.slane %v3057, 5
      %v3060 = vor.u32 %v3056, %v3059
      %v3061 = vrot.slane %v3060, 4
      %v3063 = vshll.u32 %v3002, 16
      %v3065 = vrot.slane %v3063, 5
      %v3066 = vsel %vm493, %v3061, %v3065
      %v3068 = vshrl.u32 %v3003, 16
      %v3070 = vrot.slane %v3068, 4
      %v3071 = vshll.u32 %v3003, 16
      %v3073 = vrot.slane %v3071, 5
      %v3074 = vor.u32 %v3070, %v3073
      %v3075 = vrot.slane %v3074, 4
      %v3077 = vshll.u32 %v3004, 16
      %v3079 = vrot.slane %v3077, 5
      %v3080 = vsel %vm493, %v3075, %v3079
      %v3082 = vshrl.u32 %v3005, 16
      %v3084 = vrot.slane %v3082, 4
      %v3085 = vshll.u32 %v3005, 16
      %v3087 = vrot.slane %v3085, 5
      %v3088 = vor.u32 %v3084, %v3087
      %v3089 = vrot.slane %v3088, 4
      %v3091 = vshll.u32 %v3006, 16
      %v3093 = vrot.slane %v3091, 5
      %v3094 = vsel %vm493, %v3089, %v3093
      %v3096 = vshrl.u32 %v3007, 16
      %v3098 = vrot.slane %v3096, 4
      %v3099 = vshll.u32 %v3007, 16
      %v3101 = vrot.slane %v3099, 5
      %v3102 = vor.u32 %v3098, %v3101
      %v3103 = vrot.slane %v3102, 4
      %v3105 = vshll.u32 %v3008, 16
      %v3107 = vrot.slane %v3105, 5
      %v3108 = vsel %vm493, %v3103, %v3107
      %v3110 = vshrl.u32 %v3009, 16
      %v3112 = vrot.slane %v3110, 4
      %v3113 = vshll.u32 %v3009, 16
      %v3115 = vrot.slane %v3113, 5
      %v3116 = vor.u32 %v3112, %v3115
      %v3117 = vrot.slane %v3116, 4
      %v3119 = vshll.u32 %v3010, 16
      %v3121 = vrot.slane %v3119, 5
      %v3122 = vsel %vm493, %v3117, %v3121
      %v3123 = vld [vmem:[%s1304] sm:$0x3]
      %v3124 = vunpack.c.l.b16 %v3024
      %v3125 = vunpack.c.l.b16 %v3038
      %v3126 = vunpack.c.l.b16 %v3052
      %v3127 = vunpack.c.l.b16 %v3066
      %v3128 = vunpack.c.l.b16 %v3080
      %v3129 = vunpack.c.l.b16 %v3094
      %v3130 = vunpack.c.l.b16 %v3108
      %v3131 = vunpack.c.l.b16 %v3122
      %v3132 = vpack.c.b16 %v3125, %v3124
      %v3133 = vpack.c.b16 %v3127, %v3126
      %v3134 = vpack.c.b16 %v3129, %v3128
      %v3135 = vpack.c.b16 %v3131, %v3130
      %v3137 = vsel %vm293, %v3132, 0
      %v3140 = vsel %vm293, %v3133, 0
      %v3143 = vsel %vm293, %v3134, 0
      %v3146 = vsel %vm293, %v3135, 0
      %v3149 = vsel %vm306, %v3123, 0
      %3151 = vmatprep.subr.bf16.mxu0 0
      %3152 = vmatpush1.bf16.msra.mxu0 0
      %3153 = vmatprep.subr.bf16.mxu0 0
      %3154 = vmatpush1.bf16.msra.mxu0 0
      %3155 = vmatprep.subr.bf16.mxu0 0
      %3156 = vmatpush1.bf16.msra.mxu0 0
      %3157 = vmatprep.subr.bf16.mxu0 0
      %3158 = vmatpush1.bf16.msra.mxu0 0
      %3159 = vmatprep.subr.bf16.mxu0 0
      %3160 = vmatpush1.bf16.msra.mxu0 0
      %3161 = vmatprep.subr.bf16.mxu0 0
      %3162 = vmatpush1.bf16.msra.mxu0 0
      %3163 = vmatprep.subr.bf16.mxu0 0
      %3164 = vmatpush1.bf16.msra.mxu0 0
      %3165 = vmatprep.subr.bf16.mxu0 0
      %3166 = vmatpush1.bf16.msra.mxu0 %v3149
      %3167 = vmatprep.subr.bf16.mxu0 0
      %3168 = vmatpush2.bf16.msra.mxu0 0
      %3169 = vmatprep.subr.bf16.mxu0 0
      %3170 = vmatpush2.bf16.msra.mxu0 0
      %3171 = vmatprep.subr.bf16.mxu0 0
      %3172 = vmatpush2.bf16.msra.mxu0 0
      %3173 = vmatprep.subr.bf16.mxu0 0
      %3174 = vmatpush2.bf16.msra.mxu0 0
      %3175 = vmatprep.subr.bf16.mxu0 0
      %3176 = vmatpush2.bf16.msra.mxu0 0
      %3177 = vmatprep.subr.bf16.mxu0 0
      %3178 = vmatpush2.bf16.msra.mxu0 0
      %3179 = vmatprep.subr.bf16.mxu0 0
      %3180 = vmatpush2.bf16.msra.mxu0 0
      %3181 = vmatprep.subr.bf16.mxu0 0
      %3182 = vmatpush2.bf16.msra.mxu0 0
      %3183 = vmatprep.mubr.bf16.mxu0 0
      %3184 = vmatmul.mubr.bf16.gmra.mxu0 %v3137
      %v3185 = vpop.f32.mrf.mxu0
      %v3186 = vadd.f32 0.0, %v3185
      %v3187 = vpop.f32.mrf.mxu0
      %v3188 = vpop.f32.mrf.mxu0
      %v3189 = vadd.f32 0.0, %v3188
      %v3190 = vpop.f32.mrf.mxu0
      %3191 = vmatprep.mubr.bf16.mxu0 0
      %3192 = vmatmul.mubr.bf16.gmra.mxu0 %v3140
      %v3193 = vpop.f32.mrf.mxu0
      %v3194 = vadd.f32 0.0, %v3193
      %v3195 = vpop.f32.mrf.mxu0
      %v3196 = vpop.f32.mrf.mxu0
      %v3197 = vadd.f32 0.0, %v3196
      %v3198 = vpop.f32.mrf.mxu0
      %3199 = vmatprep.mubr.bf16.mxu0 0
      %3200 = vmatmul.mubr.bf16.gmra.mxu0 %v3143
      %v3201 = vpop.f32.mrf.mxu0
      %v3202 = vadd.f32 0.0, %v3201
      %v3203 = vpop.f32.mrf.mxu0
      %v3204 = vpop.f32.mrf.mxu0
      %v3205 = vadd.f32 0.0, %v3204
      %v3206 = vpop.f32.mrf.mxu0
      %3207 = vmatprep.mubr.bf16.mxu0 0
      %3208 = vmatmul.mubr.bf16.gmra.mxu0 %v3146
      %v3209 = vpop.f32.mrf.mxu0
      %v3210 = vadd.f32 0.0, %v3209
      %v3211 = vpop.f32.mrf.mxu0
      %v3212 = vpop.f32.mrf.mxu0
      %v3213 = vadd.f32 0.0, %v3212
      %v3214 = vpop.f32.mrf.mxu0
      %3215 = vdwg.mxu0
      %v3216 = vadd.f32 %v2987, %v3186
      %v3217 = vadd.f32 %v2988, %v3189
      %v3218 = vadd.f32 %v2989, %v3194
      %v3219 = vadd.f32 %v2990, %v3197
      %v3220 = vadd.f32 %v2991, %v3202
      %v3221 = vadd.f32 %v2992, %v3205
      %v3222 = vadd.f32 %v2993, %v3210
      %v3223 = vadd.f32 %v2994, %v3213
      %v3224 = vld [vmem:[%s1295] sm:$0xf]
      %v3225 = vld [vmem:[%s1295 + $0x4] sm:$0x1]
      %v3226 = vld [vmem:[%s1295 + $0x8] sm:$0xf]
      %v3227 = vld [vmem:[%s1295 + $0xc] sm:$0x1]
      %v3228 = vld [vmem:[%s1295 + $0x10] sm:$0xf]
      %v3229 = vld [vmem:[%s1295 + $0x14] sm:$0x1]
      %v3230 = vld [vmem:[%s1295 + $0x18] sm:$0xf]
      %v3231 = vld [vmem:[%s1295 + $0x1c] sm:$0x1]
      %v3232 = vld [vmem:[%s1295 + $0x20] sm:$0xf]
      %v3233 = vld [vmem:[%s1295 + $0x24] sm:$0x1]
      %v3234 = vld [vmem:[%s1295 + $0x28] sm:$0xf]
      %v3235 = vld [vmem:[%s1295 + $0x2c] sm:$0x1]
      %v3236 = vld [vmem:[%s1295 + $0x30] sm:$0xf]
      %v3237 = vld [vmem:[%s1295 + $0x34] sm:$0x1]
      %v3238 = vld [vmem:[%s1295 + $0x38] sm:$0xf]
      %v3239 = vld [vmem:[%s1295 + $0x3c] sm:$0x1]
      %v3241 = vshrl.u32 %v3224, 16
      %v3243 = vrot.slane %v3241, 4
      %v3244 = vshll.u32 %v3224, 16
      %v3246 = vrot.slane %v3244, 5
      %v3247 = vor.u32 %v3243, %v3246
      %v3248 = vrot.slane %v3247, 4
      %v3250 = vshll.u32 %v3225, 16
      %v3252 = vrot.slane %v3250, 5
      %v3253 = vsel %vm493, %v3248, %v3252
      %v3255 = vshrl.u32 %v3226, 16
      %v3257 = vrot.slane %v3255, 4
      %v3258 = vshll.u32 %v3226, 16
      %v3260 = vrot.slane %v3258, 5
      %v3261 = vor.u32 %v3257, %v3260
      %v3262 = vrot.slane %v3261, 4
      %v3264 = vshll.u32 %v3227, 16
      %v3266 = vrot.slane %v3264, 5
      %v3267 = vsel %vm493, %v3262, %v3266
      %v3269 = vshrl.u32 %v3228, 16
      %v3271 = vrot.slane %v3269, 4
      %v3272 = vshll.u32 %v3228, 16
      %v3274 = vrot.slane %v3272, 5
      %v3275 = vor.u32 %v3271, %v3274
      %v3276 = vrot.slane %v3275, 4
      %v3278 = vshll.u32 %v3229, 16
      %v3280 = vrot.slane %v3278, 5
      %v3281 = vsel %vm493, %v3276, %v3280
      %v3283 = vshrl.u32 %v3230, 16
      %v3285 = vrot.slane %v3283, 4
      %v3286 = vshll.u32 %v3230, 16
      %v3288 = vrot.slane %v3286, 5
      %v3289 = vor.u32 %v3285, %v3288
      %v3290 = vrot.slane %v3289, 4
      %v3292 = vshll.u32 %v3231, 16
      %v3294 = vrot.slane %v3292, 5
      %v3295 = vsel %vm493, %v3290, %v3294
      %v3297 = vshrl.u32 %v3232, 16
      %v3299 = vrot.slane %v3297, 4
      %v3300 = vshll.u32 %v3232, 16
      %v3302 = vrot.slane %v3300, 5
      %v3303 = vor.u32 %v3299, %v3302
      %v3304 = vrot.slane %v3303, 4
      %v3306 = vshll.u32 %v3233, 16
      %v3308 = vrot.slane %v3306, 5
      %v3309 = vsel %vm493, %v3304, %v3308
      %v3311 = vshrl.u32 %v3234, 16
      %v3313 = vrot.slane %v3311, 4
      %v3314 = vshll.u32 %v3234, 16
      %v3316 = vrot.slane %v3314, 5
      %v3317 = vor.u32 %v3313, %v3316
      %v3318 = vrot.slane %v3317, 4
      %v3320 = vshll.u32 %v3235, 16
      %v3322 = vrot.slane %v3320, 5
      %v3323 = vsel %vm493, %v3318, %v3322
      %v3325 = vshrl.u32 %v3236, 16
      %v3327 = vrot.slane %v3325, 4
      %v3328 = vshll.u32 %v3236, 16
      %v3330 = vrot.slane %v3328, 5
      %v3331 = vor.u32 %v3327, %v3330
      %v3332 = vrot.slane %v3331, 4
      %v3334 = vshll.u32 %v3237, 16
      %v3336 = vrot.slane %v3334, 5
      %v3337 = vsel %vm493, %v3332, %v3336
      %v3339 = vshrl.u32 %v3238, 16
      %v3341 = vrot.slane %v3339, 4
      %v3342 = vshll.u32 %v3238, 16
      %v3344 = vrot.slane %v3342, 5
      %v3345 = vor.u32 %v3341, %v3344
      %v3346 = vrot.slane %v3345, 4
      %v3348 = vshll.u32 %v3239, 16
      %v3350 = vrot.slane %v3348, 5
      %v3351 = vsel %vm493, %v3346, %v3350
      %v3352 = vld [vmem:[%s1542] sm:$0x3]
      %v3353 = vunpack.c.l.b16 %v3253
      %v3354 = vunpack.c.l.b16 %v3267
      %v3355 = vunpack.c.l.b16 %v3281
      %v3356 = vunpack.c.l.b16 %v3295
      %v3357 = vunpack.c.l.b16 %v3309
      %v3358 = vunpack.c.l.b16 %v3323
      %v3359 = vunpack.c.l.b16 %v3337
      %v3360 = vunpack.c.l.b16 %v3351
      %v3361 = vpack.c.b16 %v3354, %v3353
      %v3362 = vpack.c.b16 %v3356, %v3355
      %v3363 = vpack.c.b16 %v3358, %v3357
      %v3364 = vpack.c.b16 %v3360, %v3359
      %v3366 = vsel %vm293, %v3361, 0
      %v3369 = vsel %vm293, %v3362, 0
      %v3372 = vsel %vm293, %v3363, 0
      %v3375 = vsel %vm293, %v3364, 0
      %v3378 = vsel %vm306, %v3352, 0
      %3380 = vmatprep.subr.bf16.mxu0 0
      %3381 = vmatpush1.bf16.msra.mxu0 0
      %3382 = vmatprep.subr.bf16.mxu0 0
      %3383 = vmatpush1.bf16.msra.mxu0 0
      %3384 = vmatprep.subr.bf16.mxu0 0
      %3385 = vmatpush1.bf16.msra.mxu0 0
      %3386 = vmatprep.subr.bf16.mxu0 0
      %3387 = vmatpush1.bf16.msra.mxu0 0
      %3388 = vmatprep.subr.bf16.mxu0 0
      %3389 = vmatpush1.bf16.msra.mxu0 0
      %3390 = vmatprep.subr.bf16.mxu0 0
      %3391 = vmatpush1.bf16.msra.mxu0 0
      %3392 = vmatprep.subr.bf16.mxu0 0
      %3393 = vmatpush1.bf16.msra.mxu0 0
      %3394 = vmatprep.subr.bf16.mxu0 0
      %3395 = vmatpush1.bf16.msra.mxu0 %v3378
      %3396 = vmatprep.subr.bf16.mxu0 0
      %3397 = vmatpush2.bf16.msra.mxu0 0
      %3398 = vmatprep.subr.bf16.mxu0 0
      %3399 = vmatpush2.bf16.msra.mxu0 0
      %3400 = vmatprep.subr.bf16.mxu0 0
      %3401 = vmatpush2.bf16.msra.mxu0 0
      %3402 = vmatprep.subr.bf16.mxu0 0
      %3403 = vmatpush2.bf16.msra.mxu0 0
      %3404 = vmatprep.subr.bf16.mxu0 0
      %3405 = vmatpush2.bf16.msra.mxu0 0
      %3406 = vmatprep.subr.bf16.mxu0 0
      %3407 = vmatpush2.bf16.msra.mxu0 0
      %3408 = vmatprep.subr.bf16.mxu0 0
      %3409 = vmatpush2.bf16.msra.mxu0 0
      %3410 = vmatprep.subr.bf16.mxu0 0
      %3411 = vmatpush2.bf16.msra.mxu0 0
      %3412 = vmatprep.mubr.bf16.mxu0 0
      %3413 = vmatmul.mubr.bf16.gmra.mxu0 %v3366
      %v3414 = vpop.f32.mrf.mxu0
      %v3415 = vadd.f32 0.0, %v3414
      %v3416 = vpop.f32.mrf.mxu0
      %v3417 = vpop.f32.mrf.mxu0
      %v3418 = vadd.f32 0.0, %v3417
      %v3419 = vpop.f32.mrf.mxu0
      %3420 = vmatprep.mubr.bf16.mxu0 0
      %3421 = vmatmul.mubr.bf16.gmra.mxu0 %v3369
      %v3422 = vpop.f32.mrf.mxu0
      %v3423 = vadd.f32 0.0, %v3422
      %v3424 = vpop.f32.mrf.mxu0
      %v3425 = vpop.f32.mrf.mxu0
      %v3426 = vadd.f32 0.0, %v3425
      %v3427 = vpop.f32.mrf.mxu0
      %3428 = vmatprep.mubr.bf16.mxu0 0
      %3429 = vmatmul.mubr.bf16.gmra.mxu0 %v3372
      %v3430 = vpop.f32.mrf.mxu0
      %v3431 = vadd.f32 0.0, %v3430
      %v3432 = vpop.f32.mrf.mxu0
      %v3433 = vpop.f32.mrf.mxu0
      %v3434 = vadd.f32 0.0, %v3433
      %v3435 = vpop.f32.mrf.mxu0
      %3436 = vmatprep.mubr.bf16.mxu0 0
      %3437 = vmatmul.mubr.bf16.gmra.mxu0 %v3375
      %v3438 = vpop.f32.mrf.mxu0
      %v3439 = vadd.f32 0.0, %v3438
      %v3440 = vpop.f32.mrf.mxu0
      %v3441 = vpop.f32.mrf.mxu0
      %v3442 = vadd.f32 0.0, %v3441
      %v3443 = vpop.f32.mrf.mxu0
      %3444 = vdwg.mxu0
      %v3445 = vadd.f32 %v3216, %v3415
      %v3446 = vadd.f32 %v3217, %v3418
      %v3447 = vadd.f32 %v3218, %v3423
      %v3448 = vadd.f32 %v3219, %v3426
      %v3449 = vadd.f32 %v3220, %v3431
      %v3450 = vadd.f32 %v3221, %v3434
      %v3451 = vadd.f32 %v3222, %v3439
      %v3452 = vadd.f32 %v3223, %v3442
      %v3453 = vld [vmem:[%s2] sm:$0x1]
      %v3455 = vlaneseq
      %v3456 = vshrl.u32 %v3455, 7
      %v3457 = vsub.s32 0, %v3456
      %v3458 = vrot.slane %v3453, %v3457
      %v3460 = vadd.f32 %v3445, %v3458
      %v3461 = vadd.f32 %v3446, %v3458
      %v3462 = vadd.f32 %v3447, %v3458
      %v3463 = vadd.f32 %v3448, %v3458
      %v3464 = vadd.f32 %v3449, %v3458
      %v3465 = vadd.f32 %v3450, %v3458
      %v3466 = vadd.f32 %v3451, %v3458
      %v3467 = vadd.f32 %v3452, %v3458
      %v3468 = vmax.f32 %v3460, 0.0
      %v3469 = vmax.f32 %v3461, 0.0
      %v3470 = vmax.f32 %v3462, 0.0
      %v3471 = vmax.f32 %v3463, 0.0
      %v3472 = vmax.f32 %v3464, 0.0
      %v3473 = vmax.f32 %v3465, 0.0
      %v3474 = vmax.f32 %v3466, 0.0
      %v3475 = vmax.f32 %v3467, 0.0
      %v3476 = vpack.c.bf16 %v3469, %v3468
      %v3477 = vpack.c.bf16 %v3471, %v3470
      %v3478 = vpack.c.bf16 %v3473, %v3472
      %v3479 = vpack.c.bf16 %v3475, %v3474
      %s3480 = scalar_lea.vmem [#allocation2], 208
      %3481 = vst.msk [vmem:[%s3480] sm:$0xf] %vm1672, 0
      %v3482 = vld [vmem:[%s3480 + $0x4] sm:$0x1]
      %v3483 = vsel %vm1676, 0, %v3482
      %3484 = vst [vmem:[%s3480 + $0x4] sm:$0x1] %v3483
      %s3485 = scalar_lea.vmem [#allocation2], 144
      %v3486 = vld [vmem:[%s3485] sm:$0x1]
      %v3487 = vsel %vm1676, 0, %v3486
      %3488 = vst [vmem:[%s3485] sm:$0x1] %v3487
      %v3489 = vld [vmem:[%s3485 + $0x8] sm:$0x1]
      %v3490 = vsel %vm1676, 0, %v3489
      %3491 = vst [vmem:[%s3485 + $0x8] sm:$0x1] %v3490
      %v3492 = vld [vmem:[%s3485 + $0x10] sm:$0x1]
      %v3493 = vsel %vm1676, 0, %v3492
      %3494 = vst [vmem:[%s3485 + $0x10] sm:$0x1] %v3493
      %v3495 = vld [vmem:[%s3485 + $0x18] sm:$0x1]
      %v3496 = vsel %vm1676, 0, %v3495
      %3497 = vst [vmem:[%s3485 + $0x18] sm:$0x1] %v3496
      %v3498 = vld [vmem:[%s3485 + $0x20] sm:$0x1]
      %v3499 = vsel %vm1676, 0, %v3498
      %3500 = vst [vmem:[%s3485 + $0x20] sm:$0x1] %v3499
      %v3501 = vld [vmem:[%s3485 + $0x28] sm:$0x1]
      %v3502 = vsel %vm1676, 0, %v3501
      %3503 = vst [vmem:[%s3485 + $0x28] sm:$0x1] %v3502
      %v3504 = vld [vmem:[%s3485 + $0x30] sm:$0x1]
      %v3505 = vsel %vm1676, 0, %v3504
      %3506 = vst [vmem:[%s3485 + $0x30] sm:$0x1] %v3505
      %v3507 = vld [vmem:[%s3485 + $0x38] sm:$0x1]
      %v3508 = vsel %vm1676, 0, %v3507
      %3509 = vst [vmem:[%s3485 + $0x38] sm:$0x1] %v3508
      %v3510 = vld [vmem:[%s3485 + $0x40] sm:$0x1]
      %v3511 = vsel %vm1676, 0, %v3510
      %3512 = vst [vmem:[%s3485 + $0x40] sm:$0x1] %v3511
      %v3517 = vunpack.c.l.b16 %v3476
      %v3518 = vunpack.c.h.b16 %v3476
      %v3519 = vunpack.c.l.b16 %v3477
      %v3520 = vunpack.c.h.b16 %v3477
      %v3521 = vunpack.c.l.b16 %v3478
      %v3522 = vunpack.c.h.b16 %v3478
      %v3523 = vunpack.c.l.b16 %v3479
      %v3524 = vunpack.c.h.b16 %v3479
      %v3525 = vpack.c.b16 %v3517, %v3517
      %v3526 = vpack.c.b16 %v3518, %v3518
      %v3527 = vpack.c.b16 %v3519, %v3519
      %v3528 = vpack.c.b16 %v3520, %v3520
      %v3529 = vpack.c.b16 %v3521, %v3521
      %v3530 = vpack.c.b16 %v3522, %v3522
      %v3531 = vpack.c.b16 %v3523, %v3523
      %v3532 = vpack.c.b16 %v3524, %v3524
      %v3534 = vshrl.u32 %v3525, 16
      %v3536 = vrot.slane %v3534, 7
      %v3537 = vshll.u32 %v3525, 16
      %v3539 = vor.u32 %v3536, %v3537
      %v3540 = vrot.slane %v3536, 4
      %v3542 = vshrl.u32 %v3526, 16
      %v3544 = vrot.slane %v3542, 7
      %v3545 = vshll.u32 %v3526, 16
      %v3547 = vor.u32 %v3544, %v3545
      %v3548 = vrot.slane %v3544, 4
      %v3550 = vshrl.u32 %v3527, 16
      %v3552 = vrot.slane %v3550, 7
      %v3553 = vshll.u32 %v3527, 16
      %v3555 = vor.u32 %v3552, %v3553
      %v3556 = vrot.slane %v3552, 4
      %v3558 = vshrl.u32 %v3528, 16
      %v3560 = vrot.slane %v3558, 7
      %v3561 = vshll.u32 %v3528, 16
      %v3563 = vor.u32 %v3560, %v3561
      %v3564 = vrot.slane %v3560, 4
      %v3566 = vshrl.u32 %v3529, 16
      %v3568 = vrot.slane %v3566, 7
      %v3569 = vshll.u32 %v3529, 16
      %v3571 = vor.u32 %v3568, %v3569
      %v3572 = vrot.slane %v3568, 4
      %v3574 = vshrl.u32 %v3530, 16
      %v3576 = vrot.slane %v3574, 7
      %v3577 = vshll.u32 %v3530, 16
      %v3579 = vor.u32 %v3576, %v3577
      %v3580 = vrot.slane %v3576, 4
      %v3582 = vshrl.u32 %v3531, 16
      %v3584 = vrot.slane %v3582, 7
      %v3585 = vshll.u32 %v3531, 16
      %v3587 = vor.u32 %v3584, %v3585
      %v3588 = vrot.slane %v3584, 4
      %v3590 = vshrl.u32 %v3532, 16
      %v3592 = vrot.slane %v3590, 7
      %v3593 = vshll.u32 %v3532, 16
      %v3595 = vor.u32 %v3592, %v3593
      %v3596 = vrot.slane %v3592, 4
      %vm3613 = vcmask 60416
      %vm3614 = vsmask.f32 7938
      %vm3615 = vmand %vm3613, %vm3614
      %v3616 = vld [vmem:[%s3485] sm:$0xf]
      %v3617 = vsel %vm3615, %v3539, %v3616
      %3618 = vst [vmem:[%s3485] sm:$0xf] %v3617
      %v3619 = vld [vmem:[%s3485 + $0x4] sm:$0x1]
      %v3620 = vsel %vm1676, %v3540, %v3619
      %3621 = vst [vmem:[%s3485 + $0x4] sm:$0x1] %v3620
      %v3622 = vld [vmem:[%s3485 + $0x8] sm:$0xf]
      %v3623 = vsel %vm3615, %v3547, %v3622
      %3624 = vst [vmem:[%s3485 + $0x8] sm:$0xf] %v3623
      %v3625 = vld [vmem:[%s3485 + $0xc] sm:$0x1]
      %v3626 = vsel %vm1676, %v3548, %v3625
      %3627 = vst [vmem:[%s3485 + $0xc] sm:$0x1] %v3626
      %v3628 = vld [vmem:[%s3485 + $0x10] sm:$0xf]
      %v3629 = vsel %vm3615, %v3555, %v3628
      %3630 = vst [vmem:[%s3485 + $0x10] sm:$0xf] %v3629
      %v3631 = vld [vmem:[%s3485 + $0x14] sm:$0x1]
      %v3632 = vsel %vm1676, %v3556, %v3631
      %3633 = vst [vmem:[%s3485 + $0x14] sm:$0x1] %v3632
      %v3634 = vld [vmem:[%s3485 + $0x18] sm:$0xf]
      %v3635 = vsel %vm3615, %v3563, %v3634
      %3636 = vst [vmem:[%s3485 + $0x18] sm:$0xf] %v3635
      %v3637 = vld [vmem:[%s3485 + $0x1c] sm:$0x1]
      %v3638 = vsel %vm1676, %v3564, %v3637
      %3639 = vst [vmem:[%s3485 + $0x1c] sm:$0x1] %v3638
      %v3640 = vld [vmem:[%s3485 + $0x20] sm:$0xf]
      %v3641 = vsel %vm3615, %v3571, %v3640
      %3642 = vst [vmem:[%s3485 + $0x20] sm:$0xf] %v3641
      %v3643 = vld [vmem:[%s3485 + $0x24] sm:$0x1]
      %v3644 = vsel %vm1676, %v3572, %v3643
      %3645 = vst [vmem:[%s3485 + $0x24] sm:$0x1] %v3644
      %v3646 = vld [vmem:[%s3485 + $0x28] sm:$0xf]
      %v3647 = vsel %vm3615, %v3579, %v3646
      %3648 = vst [vmem:[%s3485 + $0x28] sm:$0xf] %v3647
      %v3649 = vld [vmem:[%s3485 + $0x2c] sm:$0x1]
      %v3650 = vsel %vm1676, %v3580, %v3649
      %3651 = vst [vmem:[%s3485 + $0x2c] sm:$0x1] %v3650
      %v3652 = vld [vmem:[%s3485 + $0x30] sm:$0xf]
      %v3653 = vsel %vm3615, %v3587, %v3652
      %3654 = vst [vmem:[%s3485 + $0x30] sm:$0xf] %v3653
      %v3655 = vld [vmem:[%s3485 + $0x34] sm:$0x1]
      %v3656 = vsel %vm1676, %v3588, %v3655
      %3657 = vst [vmem:[%s3485 + $0x34] sm:$0x1] %v3656
      %v3658 = vld [vmem:[%s3485 + $0x38] sm:$0xf]
      %v3659 = vsel %vm3615, %v3595, %v3658
      %3660 = vst [vmem:[%s3485 + $0x38] sm:$0xf] %v3659
      %v3661 = vld [vmem:[%s3485 + $0x3c] sm:$0x1]
      %v3662 = vsel %vm1676, %v3596, %v3661
      %3663 = vst [vmem:[%s3485 + $0x3c] sm:$0x1] %v3662
      %v3664 = vld [vmem:[%s708] sm:$0xf]
      %v3665 = vld [vmem:[%s708 + $0x8] sm:$0xf]
      %v3666 = vld [vmem:[%s708 + $0x10] sm:$0xf]
      %v3667 = vld [vmem:[%s708 + $0x18] sm:$0xf]
      %v3668 = vld [vmem:[%s708 + $0x20] sm:$0xf]
      %v3669 = vld [vmem:[%s708 + $0x28] sm:$0xf]
      %v3670 = vld [vmem:[%s708 + $0x30] sm:$0xf]
      %v3671 = vld [vmem:[%s708 + $0x38] sm:$0xf]
      %v3672 = vld [vmem:[%s1] sm:$0x3]
      %v3673 = vld [vmem:[%s827] sm:$0xf]
      %v3674 = vld [vmem:[%s827 + $0x8] sm:$0xf]
      %v3675 = vld [vmem:[%s827 + $0x10] sm:$0xf]
      %v3676 = vld [vmem:[%s827 + $0x18] sm:$0xf]
      %v3677 = vld [vmem:[%s827 + $0x20] sm:$0xf]
      %v3678 = vld [vmem:[%s827 + $0x28] sm:$0xf]
      %v3679 = vld [vmem:[%s827 + $0x30] sm:$0xf]
      %v3680 = vld [vmem:[%s827 + $0x38] sm:$0xf]
      %v3681 = vld [vmem:[%s271] sm:$0x3]
      %v3690 = vunpack.c.l.b16 %v3673
      %v3691 = vunpack.c.l.b16 %v3674
      %v3692 = vunpack.c.l.b16 %v3675
      %v3693 = vunpack.c.l.b16 %v3676
      %v3694 = vunpack.c.l.b16 %v3677
      %v3695 = vunpack.c.l.b16 %v3678
      %v3696 = vunpack.c.l.b16 %v3679
      %v3697 = vunpack.c.l.b16 %v3680
      %v3698 = vpack.c.b16 %v3691, %v3690
      %v3699 = vpack.c.b16 %v3693, %v3692
      %v3700 = vpack.c.b16 %v3695, %v3694
      %v3701 = vpack.c.b16 %v3697, %v3696
      %v3703 = vsel %vm293, %v3698, 0
      %v3706 = vsel %vm293, %v3699, 0
      %v3709 = vsel %vm293, %v3700, 0
      %v3712 = vsel %vm293, %v3701, 0
      %v3715 = vsel %vm306, %v3681, 0
      %3717 = vmatprep.subr.bf16.mxu0 0
      %3718 = vmatpush1.bf16.msra.mxu0 0
      %3719 = vmatprep.subr.bf16.mxu0 0
      %3720 = vmatpush1.bf16.msra.mxu0 0
      %3721 = vmatprep.subr.bf16.mxu0 0
      %3722 = vmatpush1.bf16.msra.mxu0 0
      %3723 = vmatprep.subr.bf16.mxu0 0
      %3724 = vmatpush1.bf16.msra.mxu0 0
      %3725 = vmatprep.subr.bf16.mxu0 0
      %3726 = vmatpush1.bf16.msra.mxu0 0
      %3727 = vmatprep.subr.bf16.mxu0 0
      %3728 = vmatpush1.bf16.msra.mxu0 0
      %3729 = vmatprep.subr.bf16.mxu0 0
      %3730 = vmatpush1.bf16.msra.mxu0 0
      %3731 = vmatprep.subr.bf16.mxu0 0
      %3732 = vmatpush1.bf16.msra.mxu0 %v3715
      %3733 = vmatprep.subr.bf16.mxu0 0
      %3734 = vmatpush2.bf16.msra.mxu0 0
      %3735 = vmatprep.subr.bf16.mxu0 0
      %3736 = vmatpush2.bf16.msra.mxu0 0
      %3737 = vmatprep.subr.bf16.mxu0 0
      %3738 = vmatpush2.bf16.msra.mxu0 0
      %3739 = vmatprep.subr.bf16.mxu0 0
      %3740 = vmatpush2.bf16.msra.mxu0 0
      %3741 = vmatprep.subr.bf16.mxu0 0
      %3742 = vmatpush2.bf16.msra.mxu0 0
      %3743 = vmatprep.subr.bf16.mxu0 0
      %3744 = vmatpush2.bf16.msra.mxu0 0
      %3745 = vmatprep.subr.bf16.mxu0 0
      %3746 = vmatpush2.bf16.msra.mxu0 0
      %3747 = vmatprep.subr.bf16.mxu0 0
      %3748 = vmatpush2.bf16.msra.mxu0 0
      %3749 = vmatprep.mubr.bf16.mxu0 0
      %3750 = vmatmul.mubr.bf16.gmra.mxu0 %v3703
      %v3751 = vpop.f32.mrf.mxu0
      %v3752 = vadd.f32 0.0, %v3751
      %v3753 = vpop.f32.mrf.mxu0
      %v3754 = vpop.f32.mrf.mxu0
      %v3755 = vadd.f32 0.0, %v3754
      %v3756 = vpop.f32.mrf.mxu0
      %3757 = vmatprep.mubr.bf16.mxu0 0
      %3758 = vmatmul.mubr.bf16.gmra.mxu0 %v3706
      %v3759 = vpop.f32.mrf.mxu0
      %v3760 = vadd.f32 0.0, %v3759
      %v3761 = vpop.f32.mrf.mxu0
      %v3762 = vpop.f32.mrf.mxu0
      %v3763 = vadd.f32 0.0, %v3762
      %v3764 = vpop.f32.mrf.mxu0
      %3765 = vmatprep.mubr.bf16.mxu0 0
      %3766 = vmatmul.mubr.bf16.gmra.mxu0 %v3709
      %v3767 = vpop.f32.mrf.mxu0
      %v3768 = vadd.f32 0.0, %v3767
      %v3769 = vpop.f32.mrf.mxu0
      %v3770 = vpop.f32.mrf.mxu0
      %v3771 = vadd.f32 0.0, %v3770
      %v3772 = vpop.f32.mrf.mxu0
      %3773 = vmatprep.mubr.bf16.mxu0 0
      %3774 = vmatmul.mubr.bf16.gmra.mxu0 %v3712
      %v3775 = vpop.f32.mrf.mxu0
      %v3776 = vadd.f32 0.0, %v3775
      %v3777 = vpop.f32.mrf.mxu0
      %v3778 = vpop.f32.mrf.mxu0
      %v3779 = vadd.f32 0.0, %v3778
      %v3780 = vpop.f32.mrf.mxu0
      %3781 = vdwg.mxu0
      %v3790 = vunpack.c.l.b16 %v3664
      %v3791 = vunpack.c.l.b16 %v3665
      %v3792 = vunpack.c.l.b16 %v3666
      %v3793 = vunpack.c.l.b16 %v3667
      %v3794 = vunpack.c.l.b16 %v3668
      %v3795 = vunpack.c.l.b16 %v3669
      %v3796 = vunpack.c.l.b16 %v3670
      %v3797 = vunpack.c.l.b16 %v3671
      %v3798 = vpack.c.b16 %v3791, %v3790
      %v3799 = vpack.c.b16 %v3793, %v3792
      %v3800 = vpack.c.b16 %v3795, %v3794
      %v3801 = vpack.c.b16 %v3797, %v3796
      %v3803 = vsel %vm293, %v3798, 0
      %v3806 = vsel %vm293, %v3799, 0
      %v3809 = vsel %vm293, %v3800, 0
      %v3812 = vsel %vm293, %v3801, 0
      %v3815 = vsel %vm306, %v3672, 0
      %3817 = vmatprep.subr.bf16.mxu0 0
      %3818 = vmatpush1.bf16.msra.mxu0 0
      %3819 = vmatprep.subr.bf16.mxu0 0
      %3820 = vmatpush1.bf16.msra.mxu0 0
      %3821 = vmatprep.subr.bf16.mxu0 0
      %3822 = vmatpush1.bf16.msra.mxu0 0
      %3823 = vmatprep.subr.bf16.mxu0 0
      %3824 = vmatpush1.bf16.msra.mxu0 0
      %3825 = vmatprep.subr.bf16.mxu0 0
      %3826 = vmatpush1.bf16.msra.mxu0 0
      %3827 = vmatprep.subr.bf16.mxu0 0
      %3828 = vmatpush1.bf16.msra.mxu0 0
      %3829 = vmatprep.subr.bf16.mxu0 0
      %3830 = vmatpush1.bf16.msra.mxu0 0
      %3831 = vmatprep.subr.bf16.mxu0 0
      %3832 = vmatpush1.bf16.msra.mxu0 %v3815
      %3833 = vmatprep.subr.bf16.mxu0 0
      %3834 = vmatpush2.bf16.msra.mxu0 0
      %3835 = vmatprep.subr.bf16.mxu0 0
      %3836 = vmatpush2.bf16.msra.mxu0 0
      %3837 = vmatprep.subr.bf16.mxu0 0
      %3838 = vmatpush2.bf16.msra.mxu0 0
      %3839 = vmatprep.subr.bf16.mxu0 0
      %3840 = vmatpush2.bf16.msra.mxu0 0
      %3841 = vmatprep.subr.bf16.mxu0 0
      %3842 = vmatpush2.bf16.msra.mxu0 0
      %3843 = vmatprep.subr.bf16.mxu0 0
      %3844 = vmatpush2.bf16.msra.mxu0 0
      %3845 = vmatprep.subr.bf16.mxu0 0
      %3846 = vmatpush2.bf16.msra.mxu0 0
      %3847 = vmatprep.subr.bf16.mxu0 0
      %3848 = vmatpush2.bf16.msra.mxu0 0
      %3849 = vmatprep.mubr.bf16.mxu0 0
      %3850 = vmatmul.mubr.bf16.gmra.mxu0 %v3803
      %v3851 = vpop.f32.mrf.mxu0
      %v3852 = vadd.f32 %v3752, %v3851
      %v3853 = vpop.f32.mrf.mxu0
      %v3854 = vpop.f32.mrf.mxu0
      %v3855 = vadd.f32 %v3755, %v3854
      %v3856 = vpop.f32.mrf.mxu0
      %3857 = vmatprep.mubr.bf16.mxu0 0
      %3858 = vmatmul.mubr.bf16.gmra.mxu0 %v3806
      %v3859 = vpop.f32.mrf.mxu0
      %v3860 = vadd.f32 %v3760, %v3859
      %v3861 = vpop.f32.mrf.mxu0
      %v3862 = vpop.f32.mrf.mxu0
      %v3863 = vadd.f32 %v3763, %v3862
      %v3864 = vpop.f32.mrf.mxu0
      %3865 = vmatprep.mubr.bf16.mxu0 0
      %3866 = vmatmul.mubr.bf16.gmra.mxu0 %v3809
      %v3867 = vpop.f32.mrf.mxu0
      %v3868 = vadd.f32 %v3768, %v3867
      %v3869 = vpop.f32.mrf.mxu0
      %v3870 = vpop.f32.mrf.mxu0
      %v3871 = vadd.f32 %v3771, %v3870
      %v3872 = vpop.f32.mrf.mxu0
      %3873 = vmatprep.mubr.bf16.mxu0 0
      %3874 = vmatmul.mubr.bf16.gmra.mxu0 %v3812
      %v3875 = vpop.f32.mrf.mxu0
      %v3876 = vadd.f32 %v3776, %v3875
      %v3877 = vpop.f32.mrf.mxu0
      %v3878 = vpop.f32.mrf.mxu0
      %v3879 = vadd.f32 %v3779, %v3878
      %v3880 = vpop.f32.mrf.mxu0
      %3881 = vdwg.mxu0
      %v3882 = vld [vmem:[%s708] sm:$0xf]
      %v3883 = vld [vmem:[%s708 + $0x4] sm:$0x1]
      %v3884 = vld [vmem:[%s708 + $0x8] sm:$0xf]
      %v3885 = vld [vmem:[%s708 + $0xc] sm:$0x1]
      %v3886 = vld [vmem:[%s708 + $0x10] sm:$0xf]
      %v3887 = vld [vmem:[%s708 + $0x14] sm:$0x1]
      %v3888 = vld [vmem:[%s708 + $0x18] sm:$0xf]
      %v3889 = vld [vmem:[%s708 + $0x1c] sm:$0x1]
      %v3890 = vld [vmem:[%s708 + $0x20] sm:$0xf]
      %v3891 = vld [vmem:[%s708 + $0x24] sm:$0x1]
      %v3892 = vld [vmem:[%s708 + $0x28] sm:$0xf]
      %v3893 = vld [vmem:[%s708 + $0x2c] sm:$0x1]
      %v3894 = vld [vmem:[%s708 + $0x30] sm:$0xf]
      %v3895 = vld [vmem:[%s708 + $0x34] sm:$0x1]
      %v3896 = vld [vmem:[%s708 + $0x38] sm:$0xf]
      %v3897 = vld [vmem:[%s708 + $0x3c] sm:$0x1]
      %v3899 = vshrl.u32 %v3882, 16
      %v3901 = vrot.slane %v3899, 4
      %v3902 = vshll.u32 %v3882, 16
      %v3904 = vrot.slane %v3902, 5
      %v3905 = vor.u32 %v3901, %v3904
      %v3906 = vrot.slane %v3905, 4
      %v3908 = vshll.u32 %v3883, 16
      %v3910 = vrot.slane %v3908, 5
      %v3911 = vsel %vm493, %v3906, %v3910
      %v3913 = vshrl.u32 %v3884, 16
      %v3915 = vrot.slane %v3913, 4
      %v3916 = vshll.u32 %v3884, 16
      %v3918 = vrot.slane %v3916, 5
      %v3919 = vor.u32 %v3915, %v3918
      %v3920 = vrot.slane %v3919, 4
      %v3922 = vshll.u32 %v3885, 16
      %v3924 = vrot.slane %v3922, 5
      %v3925 = vsel %vm493, %v3920, %v3924
      %v3927 = vshrl.u32 %v3886, 16
      %v3929 = vrot.slane %v3927, 4
      %v3930 = vshll.u32 %v3886, 16
      %v3932 = vrot.slane %v3930, 5
      %v3933 = vor.u32 %v3929, %v3932
      %v3934 = vrot.slane %v3933, 4
      %v3936 = vshll.u32 %v3887, 16
      %v3938 = vrot.slane %v3936, 5
      %v3939 = vsel %vm493, %v3934, %v3938
      %v3941 = vshrl.u32 %v3888, 16
      %v3943 = vrot.slane %v3941, 4
      %v3944 = vshll.u32 %v3888, 16
      %v3946 = vrot.slane %v3944, 5
      %v3947 = vor.u32 %v3943, %v3946
      %v3948 = vrot.slane %v3947, 4
      %v3950 = vshll.u32 %v3889, 16
      %v3952 = vrot.slane %v3950, 5
      %v3953 = vsel %vm493, %v3948, %v3952
      %v3955 = vshrl.u32 %v3890, 16
      %v3957 = vrot.slane %v3955, 4
      %v3958 = vshll.u32 %v3890, 16
      %v3960 = vrot.slane %v3958, 5
      %v3961 = vor.u32 %v3957, %v3960
      %v3962 = vrot.slane %v3961, 4
      %v3964 = vshll.u32 %v3891, 16
      %v3966 = vrot.slane %v3964, 5
      %v3967 = vsel %vm493, %v3962, %v3966
      %v3969 = vshrl.u32 %v3892, 16
      %v3971 = vrot.slane %v3969, 4
      %v3972 = vshll.u32 %v3892, 16
      %v3974 = vrot.slane %v3972, 5
      %v3975 = vor.u32 %v3971, %v3974
      %v3976 = vrot.slane %v3975, 4
      %v3978 = vshll.u32 %v3893, 16
      %v3980 = vrot.slane %v3978, 5
      %v3981 = vsel %vm493, %v3976, %v3980
      %v3983 = vshrl.u32 %v3894, 16
      %v3985 = vrot.slane %v3983, 4
      %v3986 = vshll.u32 %v3894, 16
      %v3988 = vrot.slane %v3986, 5
      %v3989 = vor.u32 %v3985, %v3988
      %v3990 = vrot.slane %v3989, 4
      %v3992 = vshll.u32 %v3895, 16
      %v3994 = vrot.slane %v3992, 5
      %v3995 = vsel %vm493, %v3990, %v3994
      %v3997 = vshrl.u32 %v3896, 16
      %v3999 = vrot.slane %v3997, 4
      %v4000 = vshll.u32 %v3896, 16
      %v4002 = vrot.slane %v4000, 5
      %v4003 = vor.u32 %v3999, %v4002
      %v4004 = vrot.slane %v4003, 4
      %v4006 = vshll.u32 %v3897, 16
      %v4008 = vrot.slane %v4006, 5
      %v4009 = vsel %vm493, %v4004, %v4008
      %v4010 = vld [vmem:[%s606] sm:$0x3]
      %v4011 = vunpack.c.l.b16 %v3911
      %v4012 = vunpack.c.l.b16 %v3925
      %v4013 = vunpack.c.l.b16 %v3939
      %v4014 = vunpack.c.l.b16 %v3953
      %v4015 = vunpack.c.l.b16 %v3967
      %v4016 = vunpack.c.l.b16 %v3981
      %v4017 = vunpack.c.l.b16 %v3995
      %v4018 = vunpack.c.l.b16 %v4009
      %v4019 = vpack.c.b16 %v4012, %v4011
      %v4020 = vpack.c.b16 %v4014, %v4013
      %v4021 = vpack.c.b16 %v4016, %v4015
      %v4022 = vpack.c.b16 %v4018, %v4017
      %v4024 = vsel %vm293, %v4019, 0
      %v4027 = vsel %vm293, %v4020, 0
      %v4030 = vsel %vm293, %v4021, 0
      %v4033 = vsel %vm293, %v4022, 0
      %v4036 = vsel %vm306, %v4010, 0
      %4038 = vmatprep.subr.bf16.mxu0 0
      %4039 = vmatpush1.bf16.msra.mxu0 0
      %4040 = vmatprep.subr.bf16.mxu0 0
      %4041 = vmatpush1.bf16.msra.mxu0 0
      %4042 = vmatprep.subr.bf16.mxu0 0
      %4043 = vmatpush1.bf16.msra.mxu0 0
      %4044 = vmatprep.subr.bf16.mxu0 0
      %4045 = vmatpush1.bf16.msra.mxu0 0
      %4046 = vmatprep.subr.bf16.mxu0 0
      %4047 = vmatpush1.bf16.msra.mxu0 0
      %4048 = vmatprep.subr.bf16.mxu0 0
      %4049 = vmatpush1.bf16.msra.mxu0 0
      %4050 = vmatprep.subr.bf16.mxu0 0
      %4051 = vmatpush1.bf16.msra.mxu0 0
      %4052 = vmatprep.subr.bf16.mxu0 0
      %4053 = vmatpush1.bf16.msra.mxu0 %v4036
      %4054 = vmatprep.subr.bf16.mxu0 0
      %4055 = vmatpush2.bf16.msra.mxu0 0
      %4056 = vmatprep.subr.bf16.mxu0 0
      %4057 = vmatpush2.bf16.msra.mxu0 0
      %4058 = vmatprep.subr.bf16.mxu0 0
      %4059 = vmatpush2.bf16.msra.mxu0 0
      %4060 = vmatprep.subr.bf16.mxu0 0
      %4061 = vmatpush2.bf16.msra.mxu0 0
      %4062 = vmatprep.subr.bf16.mxu0 0
      %4063 = vmatpush2.bf16.msra.mxu0 0
      %4064 = vmatprep.subr.bf16.mxu0 0
      %4065 = vmatpush2.bf16.msra.mxu0 0
      %4066 = vmatprep.subr.bf16.mxu0 0
      %4067 = vmatpush2.bf16.msra.mxu0 0
      %4068 = vmatprep.subr.bf16.mxu0 0
      %4069 = vmatpush2.bf16.msra.mxu0 0
      %4070 = vmatprep.mubr.bf16.mxu0 0
      %4071 = vmatmul.mubr.bf16.gmra.mxu0 %v4024
      %v4072 = vpop.f32.mrf.mxu0
      %v4073 = vadd.f32 0.0, %v4072
      %v4074 = vpop.f32.mrf.mxu0
      %v4075 = vpop.f32.mrf.mxu0
      %v4076 = vadd.f32 0.0, %v4075
      %v4077 = vpop.f32.mrf.mxu0
      %4078 = vmatprep.mubr.bf16.mxu0 0
      %4079 = vmatmul.mubr.bf16.gmra.mxu0 %v4027
      %v4080 = vpop.f32.mrf.mxu0
      %v4081 = vadd.f32 0.0, %v4080
      %v4082 = vpop.f32.mrf.mxu0
      %v4083 = vpop.f32.mrf.mxu0
      %v4084 = vadd.f32 0.0, %v4083
      %v4085 = vpop.f32.mrf.mxu0
      %4086 = vmatprep.mubr.bf16.mxu0 0
      %4087 = vmatmul.mubr.bf16.gmra.mxu0 %v4030
      %v4088 = vpop.f32.mrf.mxu0
      %v4089 = vadd.f32 0.0, %v4088
      %v4090 = vpop.f32.mrf.mxu0
      %v4091 = vpop.f32.mrf.mxu0
      %v4092 = vadd.f32 0.0, %v4091
      %v4093 = vpop.f32.mrf.mxu0
      %4094 = vmatprep.mubr.bf16.mxu0 0
      %4095 = vmatmul.mubr.bf16.gmra.mxu0 %v4033
      %v4096 = vpop.f32.mrf.mxu0
      %v4097 = vadd.f32 0.0, %v4096
      %v4098 = vpop.f32.mrf.mxu0
      %v4099 = vpop.f32.mrf.mxu0
      %v4100 = vadd.f32 0.0, %v4099
      %v4101 = vpop.f32.mrf.mxu0
      %4102 = vdwg.mxu0
      %v4103 = vadd.f32 %v3852, %v4073
      %v4104 = vadd.f32 %v3855, %v4076
      %v4105 = vadd.f32 %v3860, %v4081
      %v4106 = vadd.f32 %v3863, %v4084
      %v4107 = vadd.f32 %v3868, %v4089
      %v4108 = vadd.f32 %v3871, %v4092
      %v4109 = vadd.f32 %v3876, %v4097
      %v4110 = vadd.f32 %v3879, %v4100
      %v4111 = vld [vmem:[%s1176] sm:$0xf]
      %v4112 = vld [vmem:[%s1176 + $0x8] sm:$0xf]
      %v4113 = vld [vmem:[%s1176 + $0x10] sm:$0xf]
      %v4114 = vld [vmem:[%s1176 + $0x18] sm:$0xf]
      %v4115 = vld [vmem:[%s1176 + $0x20] sm:$0xf]
      %v4116 = vld [vmem:[%s1176 + $0x28] sm:$0xf]
      %v4117 = vld [vmem:[%s1176 + $0x30] sm:$0xf]
      %v4118 = vld [vmem:[%s1176 + $0x38] sm:$0xf]
      %v4119 = vld [vmem:[%s717] sm:$0x3]
      %v4128 = vunpack.c.l.b16 %v4111
      %v4129 = vunpack.c.l.b16 %v4112
      %v4130 = vunpack.c.l.b16 %v4113
      %v4131 = vunpack.c.l.b16 %v4114
      %v4132 = vunpack.c.l.b16 %v4115
      %v4133 = vunpack.c.l.b16 %v4116
      %v4134 = vunpack.c.l.b16 %v4117
      %v4135 = vunpack.c.l.b16 %v4118
      %v4136 = vpack.c.b16 %v4129, %v4128
      %v4137 = vpack.c.b16 %v4131, %v4130
      %v4138 = vpack.c.b16 %v4133, %v4132
      %v4139 = vpack.c.b16 %v4135, %v4134
      %v4141 = vsel %vm293, %v4136, 0
      %v4144 = vsel %vm293, %v4137, 0
      %v4147 = vsel %vm293, %v4138, 0
      %v4150 = vsel %vm293, %v4139, 0
      %v4153 = vsel %vm306, %v4119, 0
      %4155 = vmatprep.subr.bf16.mxu0 0
      %4156 = vmatpush1.bf16.msra.mxu0 0
      %4157 = vmatprep.subr.bf16.mxu0 0
      %4158 = vmatpush1.bf16.msra.mxu0 0
      %4159 = vmatprep.subr.bf16.mxu0 0
      %4160 = vmatpush1.bf16.msra.mxu0 0
      %4161 = vmatprep.subr.bf16.mxu0 0
      %4162 = vmatpush1.bf16.msra.mxu0 0
      %4163 = vmatprep.subr.bf16.mxu0 0
      %4164 = vmatpush1.bf16.msra.mxu0 0
      %4165 = vmatprep.subr.bf16.mxu0 0
      %4166 = vmatpush1.bf16.msra.mxu0 0
      %4167 = vmatprep.subr.bf16.mxu0 0
      %4168 = vmatpush1.bf16.msra.mxu0 0
      %4169 = vmatprep.subr.bf16.mxu0 0
      %4170 = vmatpush1.bf16.msra.mxu0 %v4153
      %4171 = vmatprep.subr.bf16.mxu0 0
      %4172 = vmatpush2.bf16.msra.mxu0 0
      %4173 = vmatprep.subr.bf16.mxu0 0
      %4174 = vmatpush2.bf16.msra.mxu0 0
      %4175 = vmatprep.subr.bf16.mxu0 0
      %4176 = vmatpush2.bf16.msra.mxu0 0
      %4177 = vmatprep.subr.bf16.mxu0 0
      %4178 = vmatpush2.bf16.msra.mxu0 0
      %4179 = vmatprep.subr.bf16.mxu0 0
      %4180 = vmatpush2.bf16.msra.mxu0 0
      %4181 = vmatprep.subr.bf16.mxu0 0
      %4182 = vmatpush2.bf16.msra.mxu0 0
      %4183 = vmatprep.subr.bf16.mxu0 0
      %4184 = vmatpush2.bf16.msra.mxu0 0
      %4185 = vmatprep.subr.bf16.mxu0 0
      %4186 = vmatpush2.bf16.msra.mxu0 0
      %4187 = vmatprep.mubr.bf16.mxu0 0
      %4188 = vmatmul.mubr.bf16.gmra.mxu0 %v4141
      %v4189 = vpop.f32.mrf.mxu0
      %v4190 = vadd.f32 0.0, %v4189
      %v4191 = vpop.f32.mrf.mxu0
      %v4192 = vpop.f32.mrf.mxu0
      %v4193 = vadd.f32 0.0, %v4192
      %v4194 = vpop.f32.mrf.mxu0
      %4195 = vmatprep.mubr.bf16.mxu0 0
      %4196 = vmatmul.mubr.bf16.gmra.mxu0 %v4144
      %v4197 = vpop.f32.mrf.mxu0
      %v4198 = vadd.f32 0.0, %v4197
      %v4199 = vpop.f32.mrf.mxu0
      %v4200 = vpop.f32.mrf.mxu0
      %v4201 = vadd.f32 0.0, %v4200
      %v4202 = vpop.f32.mrf.mxu0
      %4203 = vmatprep.mubr.bf16.mxu0 0
      %4204 = vmatmul.mubr.bf16.gmra.mxu0 %v4147
      %v4205 = vpop.f32.mrf.mxu0
      %v4206 = vadd.f32 0.0, %v4205
      %v4207 = vpop.f32.mrf.mxu0
      %v4208 = vpop.f32.mrf.mxu0
      %v4209 = vadd.f32 0.0, %v4208
      %v4210 = vpop.f32.mrf.mxu0
      %4211 = vmatprep.mubr.bf16.mxu0 0
      %4212 = vmatmul.mubr.bf16.gmra.mxu0 %v4150
      %v4213 = vpop.f32.mrf.mxu0
      %v4214 = vadd.f32 0.0, %v4213
      %v4215 = vpop.f32.mrf.mxu0
      %v4216 = vpop.f32.mrf.mxu0
      %v4217 = vadd.f32 0.0, %v4216
      %v4218 = vpop.f32.mrf.mxu0
      %4219 = vdwg.mxu0
      %v4220 = vadd.f32 %v4103, %v4190
      %v4221 = vadd.f32 %v4104, %v4193
      %v4222 = vadd.f32 %v4105, %v4198
      %v4223 = vadd.f32 %v4106, %v4201
      %v4224 = vadd.f32 %v4107, %v4206
      %v4225 = vadd.f32 %v4108, %v4209
      %v4226 = vadd.f32 %v4109, %v4214
      %v4227 = vadd.f32 %v4110, %v4217
      %v4228 = vld [vmem:[%s1295] sm:$0xf]
      %v4229 = vld [vmem:[%s1295 + $0x8] sm:$0xf]
      %v4230 = vld [vmem:[%s1295 + $0x10] sm:$0xf]
      %v4231 = vld [vmem:[%s1295 + $0x18] sm:$0xf]
      %v4232 = vld [vmem:[%s1295 + $0x20] sm:$0xf]
      %v4233 = vld [vmem:[%s1295 + $0x28] sm:$0xf]
      %v4234 = vld [vmem:[%s1295 + $0x30] sm:$0xf]
      %v4235 = vld [vmem:[%s1295 + $0x38] sm:$0xf]
      %v4236 = vld [vmem:[%s836] sm:$0x3]
      %v4245 = vunpack.c.l.b16 %v4228
      %v4246 = vunpack.c.l.b16 %v4229
      %v4247 = vunpack.c.l.b16 %v4230
      %v4248 = vunpack.c.l.b16 %v4231
      %v4249 = vunpack.c.l.b16 %v4232
      %v4250 = vunpack.c.l.b16 %v4233
      %v4251 = vunpack.c.l.b16 %v4234
      %v4252 = vunpack.c.l.b16 %v4235
      %v4253 = vpack.c.b16 %v4246, %v4245
      %v4254 = vpack.c.b16 %v4248, %v4247
      %v4255 = vpack.c.b16 %v4250, %v4249
      %v4256 = vpack.c.b16 %v4252, %v4251
      %v4258 = vsel %vm293, %v4253, 0
      %v4261 = vsel %vm293, %v4254, 0
      %v4264 = vsel %vm293, %v4255, 0
      %v4267 = vsel %vm293, %v4256, 0
      %v4270 = vsel %vm306, %v4236, 0
      %4272 = vmatprep.subr.bf16.mxu0 0
      %4273 = vmatpush1.bf16.msra.mxu0 0
      %4274 = vmatprep.subr.bf16.mxu0 0
      %4275 = vmatpush1.bf16.msra.mxu0 0
      %4276 = vmatprep.subr.bf16.mxu0 0
      %4277 = vmatpush1.bf16.msra.mxu0 0
      %4278 = vmatprep.subr.bf16.mxu0 0
      %4279 = vmatpush1.bf16.msra.mxu0 0
      %4280 = vmatprep.subr.bf16.mxu0 0
      %4281 = vmatpush1.bf16.msra.mxu0 0
      %4282 = vmatprep.subr.bf16.mxu0 0
      %4283 = vmatpush1.bf16.msra.mxu0 0
      %4284 = vmatprep.subr.bf16.mxu0 0
      %4285 = vmatpush1.bf16.msra.mxu0 0
      %4286 = vmatprep.subr.bf16.mxu0 0
      %4287 = vmatpush1.bf16.msra.mxu0 %v4270
      %4288 = vmatprep.subr.bf16.mxu0 0
      %4289 = vmatpush2.bf16.msra.mxu0 0
      %4290 = vmatprep.subr.bf16.mxu0 0
      %4291 = vmatpush2.bf16.msra.mxu0 0
      %4292 = vmatprep.subr.bf16.mxu0 0
      %4293 = vmatpush2.bf16.msra.mxu0 0
      %4294 = vmatprep.subr.bf16.mxu0 0
      %4295 = vmatpush2.bf16.msra.mxu0 0
      %4296 = vmatprep.subr.bf16.mxu0 0
      %4297 = vmatpush2.bf16.msra.mxu0 0
      %4298 = vmatprep.subr.bf16.mxu0 0
      %4299 = vmatpush2.bf16.msra.mxu0 0
      %4300 = vmatprep.subr.bf16.mxu0 0
      %4301 = vmatpush2.bf16.msra.mxu0 0
      %4302 = vmatprep.subr.bf16.mxu0 0
      %4303 = vmatpush2.bf16.msra.mxu0 0
      %4304 = vmatprep.mubr.bf16.mxu0 0
      %4305 = vmatmul.mubr.bf16.gmra.mxu0 %v4258
      %v4306 = vpop.f32.mrf.mxu0
      %v4307 = vadd.f32 0.0, %v4306
      %v4308 = vpop.f32.mrf.mxu0
      %v4309 = vpop.f32.mrf.mxu0
      %v4310 = vadd.f32 0.0, %v4309
      %v4311 = vpop.f32.mrf.mxu0
      %4312 = vmatprep.mubr.bf16.mxu0 0
      %4313 = vmatmul.mubr.bf16.gmra.mxu0 %v4261
      %v4314 = vpop.f32.mrf.mxu0
      %v4315 = vadd.f32 0.0, %v4314
      %v4316 = vpop.f32.mrf.mxu0
      %v4317 = vpop.f32.mrf.mxu0
      %v4318 = vadd.f32 0.0, %v4317
      %v4319 = vpop.f32.mrf.mxu0
      %4320 = vmatprep.mubr.bf16.mxu0 0
      %4321 = vmatmul.mubr.bf16.gmra.mxu0 %v4264
      %v4322 = vpop.f32.mrf.mxu0
      %v4323 = vadd.f32 0.0, %v4322
      %v4324 = vpop.f32.mrf.mxu0
      %v4325 = vpop.f32.mrf.mxu0
      %v4326 = vadd.f32 0.0, %v4325
      %v4327 = vpop.f32.mrf.mxu0
      %4328 = vmatprep.mubr.bf16.mxu0 0
      %4329 = vmatmul.mubr.bf16.gmra.mxu0 %v4267
      %v4330 = vpop.f32.mrf.mxu0
      %v4331 = vadd.f32 0.0, %v4330
      %v4332 = vpop.f32.mrf.mxu0
      %v4333 = vpop.f32.mrf.mxu0
      %v4334 = vadd.f32 0.0, %v4333
      %v4335 = vpop.f32.mrf.mxu0
      %4336 = vdwg.mxu0
      %v4337 = vadd.f32 %v4220, %v4307
      %v4338 = vadd.f32 %v4221, %v4310
      %v4339 = vadd.f32 %v4222, %v4315
      %v4340 = vadd.f32 %v4223, %v4318
      %v4341 = vadd.f32 %v4224, %v4323
      %v4342 = vadd.f32 %v4225, %v4326
      %v4343 = vadd.f32 %v4226, %v4331
      %v4344 = vadd.f32 %v4227, %v4334
      %v4345 = vld [vmem:[%s1176] sm:$0xf]
      %v4346 = vld [vmem:[%s1176 + $0x4] sm:$0x1]
      %v4347 = vld [vmem:[%s1176 + $0x8] sm:$0xf]
      %v4348 = vld [vmem:[%s1176 + $0xc] sm:$0x1]
      %v4349 = vld [vmem:[%s1176 + $0x10] sm:$0xf]
      %v4350 = vld [vmem:[%s1176 + $0x14] sm:$0x1]
      %v4351 = vld [vmem:[%s1176 + $0x18] sm:$0xf]
      %v4352 = vld [vmem:[%s1176 + $0x1c] sm:$0x1]
      %v4353 = vld [vmem:[%s1176 + $0x20] sm:$0xf]
      %v4354 = vld [vmem:[%s1176 + $0x24] sm:$0x1]
      %v4355 = vld [vmem:[%s1176 + $0x28] sm:$0xf]
      %v4356 = vld [vmem:[%s1176 + $0x2c] sm:$0x1]
      %v4357 = vld [vmem:[%s1176 + $0x30] sm:$0xf]
      %v4358 = vld [vmem:[%s1176 + $0x34] sm:$0x1]
      %v4359 = vld [vmem:[%s1176 + $0x38] sm:$0xf]
      %v4360 = vld [vmem:[%s1176 + $0x3c] sm:$0x1]
      %v4362 = vshrl.u32 %v4345, 16
      %v4364 = vrot.slane %v4362, 4
      %v4365 = vshll.u32 %v4345, 16
      %v4367 = vrot.slane %v4365, 5
      %v4368 = vor.u32 %v4364, %v4367
      %v4369 = vrot.slane %v4368, 4
      %v4371 = vshll.u32 %v4346, 16
      %v4373 = vrot.slane %v4371, 5
      %v4374 = vsel %vm493, %v4369, %v4373
      %v4376 = vshrl.u32 %v4347, 16
      %v4378 = vrot.slane %v4376, 4
      %v4379 = vshll.u32 %v4347, 16
      %v4381 = vrot.slane %v4379, 5
      %v4382 = vor.u32 %v4378, %v4381
      %v4383 = vrot.slane %v4382, 4
      %v4385 = vshll.u32 %v4348, 16
      %v4387 = vrot.slane %v4385, 5
      %v4388 = vsel %vm493, %v4383, %v4387
      %v4390 = vshrl.u32 %v4349, 16
      %v4392 = vrot.slane %v4390, 4
      %v4393 = vshll.u32 %v4349, 16
      %v4395 = vrot.slane %v4393, 5
      %v4396 = vor.u32 %v4392, %v4395
      %v4397 = vrot.slane %v4396, 4
      %v4399 = vshll.u32 %v4350, 16
      %v4401 = vrot.slane %v4399, 5
      %v4402 = vsel %vm493, %v4397, %v4401
      %v4404 = vshrl.u32 %v4351, 16
      %v4406 = vrot.slane %v4404, 4
      %v4407 = vshll.u32 %v4351, 16
      %v4409 = vrot.slane %v4407, 5
      %v4410 = vor.u32 %v4406, %v4409
      %v4411 = vrot.slane %v4410, 4
      %v4413 = vshll.u32 %v4352, 16
      %v4415 = vrot.slane %v4413, 5
      %v4416 = vsel %vm493, %v4411, %v4415
      %v4418 = vshrl.u32 %v4353, 16
      %v4420 = vrot.slane %v4418, 4
      %v4421 = vshll.u32 %v4353, 16
      %v4423 = vrot.slane %v4421, 5
      %v4424 = vor.u32 %v4420, %v4423
      %v4425 = vrot.slane %v4424, 4
      %v4427 = vshll.u32 %v4354, 16
      %v4429 = vrot.slane %v4427, 5
      %v4430 = vsel %vm493, %v4425, %v4429
      %v4432 = vshrl.u32 %v4355, 16
      %v4434 = vrot.slane %v4432, 4
      %v4435 = vshll.u32 %v4355, 16
      %v4437 = vrot.slane %v4435, 5
      %v4438 = vor.u32 %v4434, %v4437
      %v4439 = vrot.slane %v4438, 4
      %v4441 = vshll.u32 %v4356, 16
      %v4443 = vrot.slane %v4441, 5
      %v4444 = vsel %vm493, %v4439, %v4443
      %v4446 = vshrl.u32 %v4357, 16
      %v4448 = vrot.slane %v4446, 4
      %v4449 = vshll.u32 %v4357, 16
      %v4451 = vrot.slane %v4449, 5
      %v4452 = vor.u32 %v4448, %v4451
      %v4453 = vrot.slane %v4452, 4
      %v4455 = vshll.u32 %v4358, 16
      %v4457 = vrot.slane %v4455, 5
      %v4458 = vsel %vm493, %v4453, %v4457
      %v4460 = vshrl.u32 %v4359, 16
      %v4462 = vrot.slane %v4460, 4
      %v4463 = vshll.u32 %v4359, 16
      %v4465 = vrot.slane %v4463, 5
      %v4466 = vor.u32 %v4462, %v4465
      %v4467 = vrot.slane %v4466, 4
      %v4469 = vshll.u32 %v4360, 16
      %v4471 = vrot.slane %v4469, 5
      %v4472 = vsel %vm493, %v4467, %v4471
      %v4473 = vld [vmem:[%s1074] sm:$0x3]
      %v4474 = vunpack.c.l.b16 %v4374
      %v4475 = vunpack.c.l.b16 %v4388
      %v4476 = vunpack.c.l.b16 %v4402
      %v4477 = vunpack.c.l.b16 %v4416
      %v4478 = vunpack.c.l.b16 %v4430
      %v4479 = vunpack.c.l.b16 %v4444
      %v4480 = vunpack.c.l.b16 %v4458
      %v4481 = vunpack.c.l.b16 %v4472
      %v4482 = vpack.c.b16 %v4475, %v4474
      %v4483 = vpack.c.b16 %v4477, %v4476
      %v4484 = vpack.c.b16 %v4479, %v4478
      %v4485 = vpack.c.b16 %v4481, %v4480
      %v4487 = vsel %vm293, %v4482, 0
      %v4490 = vsel %vm293, %v4483, 0
      %v4493 = vsel %vm293, %v4484, 0
      %v4496 = vsel %vm293, %v4485, 0
      %v4499 = vsel %vm306, %v4473, 0
      %4501 = vmatprep.subr.bf16.mxu0 0
      %4502 = vmatpush1.bf16.msra.mxu0 0
      %4503 = vmatprep.subr.bf16.mxu0 0
      %4504 = vmatpush1.bf16.msra.mxu0 0
      %4505 = vmatprep.subr.bf16.mxu0 0
      %4506 = vmatpush1.bf16.msra.mxu0 0
      %4507 = vmatprep.subr.bf16.mxu0 0
      %4508 = vmatpush1.bf16.msra.mxu0 0
      %4509 = vmatprep.subr.bf16.mxu0 0
      %4510 = vmatpush1.bf16.msra.mxu0 0
      %4511 = vmatprep.subr.bf16.mxu0 0
      %4512 = vmatpush1.bf16.msra.mxu0 0
      %4513 = vmatprep.subr.bf16.mxu0 0
      %4514 = vmatpush1.bf16.msra.mxu0 0
      %4515 = vmatprep.subr.bf16.mxu0 0
      %4516 = vmatpush1.bf16.msra.mxu0 %v4499
      %4517 = vmatprep.subr.bf16.mxu0 0
      %4518 = vmatpush2.bf16.msra.mxu0 0
      %4519 = vmatprep.subr.bf16.mxu0 0
      %4520 = vmatpush2.bf16.msra.mxu0 0
      %4521 = vmatprep.subr.bf16.mxu0 0
      %4522 = vmatpush2.bf16.msra.mxu0 0
      %4523 = vmatprep.subr.bf16.mxu0 0
      %4524 = vmatpush2.bf16.msra.mxu0 0
      %4525 = vmatprep.subr.bf16.mxu0 0
      %4526 = vmatpush2.bf16.msra.mxu0 0
      %4527 = vmatprep.subr.bf16.mxu0 0
      %4528 = vmatpush2.bf16.msra.mxu0 0
      %4529 = vmatprep.subr.bf16.mxu0 0
      %4530 = vmatpush2.bf16.msra.mxu0 0
      %4531 = vmatprep.subr.bf16.mxu0 0
      %4532 = vmatpush2.bf16.msra.mxu0 0
      %4533 = vmatprep.mubr.bf16.mxu0 0
      %4534 = vmatmul.mubr.bf16.gmra.mxu0 %v4487
      %v4535 = vpop.f32.mrf.mxu0
      %v4536 = vadd.f32 0.0, %v4535
      %v4537 = vpop.f32.mrf.mxu0
      %v4538 = vpop.f32.mrf.mxu0
      %v4539 = vadd.f32 0.0, %v4538
      %v4540 = vpop.f32.mrf.mxu0
      %4541 = vmatprep.mubr.bf16.mxu0 0
      %4542 = vmatmul.mubr.bf16.gmra.mxu0 %v4490
      %v4543 = vpop.f32.mrf.mxu0
      %v4544 = vadd.f32 0.0, %v4543
      %v4545 = vpop.f32.mrf.mxu0
      %v4546 = vpop.f32.mrf.mxu0
      %v4547 = vadd.f32 0.0, %v4546
      %v4548 = vpop.f32.mrf.mxu0
      %4549 = vmatprep.mubr.bf16.mxu0 0
      %4550 = vmatmul.mubr.bf16.gmra.mxu0 %v4493
      %v4551 = vpop.f32.mrf.mxu0
      %v4552 = vadd.f32 0.0, %v4551
      %v4553 = vpop.f32.mrf.mxu0
      %v4554 = vpop.f32.mrf.mxu0
      %v4555 = vadd.f32 0.0, %v4554
      %v4556 = vpop.f32.mrf.mxu0
      %4557 = vmatprep.mubr.bf16.mxu0 0
      %4558 = vmatmul.mubr.bf16.gmra.mxu0 %v4496
      %v4559 = vpop.f32.mrf.mxu0
      %v4560 = vadd.f32 0.0, %v4559
      %v4561 = vpop.f32.mrf.mxu0
      %v4562 = vpop.f32.mrf.mxu0
      %v4563 = vadd.f32 0.0, %v4562
      %v4564 = vpop.f32.mrf.mxu0
      %4565 = vdwg.mxu0
      %v4566 = vadd.f32 %v4337, %v4536
      %v4567 = vadd.f32 %v4338, %v4539
      %v4568 = vadd.f32 %v4339, %v4544
      %v4569 = vadd.f32 %v4340, %v4547
      %v4570 = vadd.f32 %v4341, %v4552
      %v4571 = vadd.f32 %v4342, %v4555
      %v4572 = vadd.f32 %v4343, %v4560
      %v4573 = vadd.f32 %v4344, %v4563
      %s4574 = scalar_lea.vmem %s246, 152
      %v4575 = vld [vmem:[%s4574] sm:$0xf]
      %v4576 = vld [vmem:[%s4574 + $0x8] sm:$0xf]
      %v4577 = vld [vmem:[%s4574 + $0x10] sm:$0xf]
      %v4578 = vld [vmem:[%s4574 + $0x18] sm:$0xf]
      %v4579 = vld [vmem:[%s4574 + $0x20] sm:$0xf]
      %v4580 = vld [vmem:[%s4574 + $0x28] sm:$0xf]
      %v4581 = vld [vmem:[%s4574 + $0x30] sm:$0xf]
      %v4582 = vld [vmem:[%s4574 + $0x38] sm:$0xf]
      %v4583 = vld [vmem:[%s1185] sm:$0x3]
      %v4592 = vunpack.c.l.b16 %v4575
      %v4593 = vunpack.c.l.b16 %v4576
      %v4594 = vunpack.c.l.b16 %v4577
      %v4595 = vunpack.c.l.b16 %v4578
      %v4596 = vunpack.c.l.b16 %v4579
      %v4597 = vunpack.c.l.b16 %v4580
      %v4598 = vunpack.c.l.b16 %v4581
      %v4599 = vunpack.c.l.b16 %v4582
      %v4600 = vpack.c.b16 %v4593, %v4592
      %v4601 = vpack.c.b16 %v4595, %v4594
      %v4602 = vpack.c.b16 %v4597, %v4596
      %v4603 = vpack.c.b16 %v4599, %v4598
      %v4605 = vsel %vm293, %v4600, 0
      %v4608 = vsel %vm293, %v4601, 0
      %v4611 = vsel %vm293, %v4602, 0
      %v4614 = vsel %vm293, %v4603, 0
      %v4617 = vsel %vm306, %v4583, 0
      %4619 = vmatprep.subr.bf16.mxu0 0
      %4620 = vmatpush1.bf16.msra.mxu0 0
      %4621 = vmatprep.subr.bf16.mxu0 0
      %4622 = vmatpush1.bf16.msra.mxu0 0
      %4623 = vmatprep.subr.bf16.mxu0 0
      %4624 = vmatpush1.bf16.msra.mxu0 0
      %4625 = vmatprep.subr.bf16.mxu0 0
      %4626 = vmatpush1.bf16.msra.mxu0 0
      %4627 = vmatprep.subr.bf16.mxu0 0
      %4628 = vmatpush1.bf16.msra.mxu0 0
      %4629 = vmatprep.subr.bf16.mxu0 0
      %4630 = vmatpush1.bf16.msra.mxu0 0
      %4631 = vmatprep.subr.bf16.mxu0 0
      %4632 = vmatpush1.bf16.msra.mxu0 0
      %4633 = vmatprep.subr.bf16.mxu0 0
      %4634 = vmatpush1.bf16.msra.mxu0 %v4617
      %4635 = vmatprep.subr.bf16.mxu0 0
      %4636 = vmatpush2.bf16.msra.mxu0 0
      %4637 = vmatprep.subr.bf16.mxu0 0
      %4638 = vmatpush2.bf16.msra.mxu0 0
      %4639 = vmatprep.subr.bf16.mxu0 0
      %4640 = vmatpush2.bf16.msra.mxu0 0
      %4641 = vmatprep.subr.bf16.mxu0 0
      %4642 = vmatpush2.bf16.msra.mxu0 0
      %4643 = vmatprep.subr.bf16.mxu0 0
      %4644 = vmatpush2.bf16.msra.mxu0 0
      %4645 = vmatprep.subr.bf16.mxu0 0
      %4646 = vmatpush2.bf16.msra.mxu0 0
      %4647 = vmatprep.subr.bf16.mxu0 0
      %4648 = vmatpush2.bf16.msra.mxu0 0
      %4649 = vmatprep.subr.bf16.mxu0 0
      %4650 = vmatpush2.bf16.msra.mxu0 0
      %4651 = vmatprep.mubr.bf16.mxu0 0
      %4652 = vmatmul.mubr.bf16.gmra.mxu0 %v4605
      %v4653 = vpop.f32.mrf.mxu0
      %v4654 = vadd.f32 0.0, %v4653
      %v4655 = vpop.f32.mrf.mxu0
      %v4656 = vpop.f32.mrf.mxu0
      %v4657 = vadd.f32 0.0, %v4656
      %v4658 = vpop.f32.mrf.mxu0
      %4659 = vmatprep.mubr.bf16.mxu0 0
      %4660 = vmatmul.mubr.bf16.gmra.mxu0 %v4608
      %v4661 = vpop.f32.mrf.mxu0
      %v4662 = vadd.f32 0.0, %v4661
      %v4663 = vpop.f32.mrf.mxu0
      %v4664 = vpop.f32.mrf.mxu0
      %v4665 = vadd.f32 0.0, %v4664
      %v4666 = vpop.f32.mrf.mxu0
      %4667 = vmatprep.mubr.bf16.mxu0 0
      %4668 = vmatmul.mubr.bf16.gmra.mxu0 %v4611
      %v4669 = vpop.f32.mrf.mxu0
      %v4670 = vadd.f32 0.0, %v4669
      %v4671 = vpop.f32.mrf.mxu0
      %v4672 = vpop.f32.mrf.mxu0
      %v4673 = vadd.f32 0.0, %v4672
      %v4674 = vpop.f32.mrf.mxu0
      %4675 = vmatprep.mubr.bf16.mxu0 0
      %4676 = vmatmul.mubr.bf16.gmra.mxu0 %v4614
      %v4677 = vpop.f32.mrf.mxu0
      %v4678 = vadd.f32 0.0, %v4677
      %v4679 = vpop.f32.mrf.mxu0
      %v4680 = vpop.f32.mrf.mxu0
      %v4681 = vadd.f32 0.0, %v4680
      %v4682 = vpop.f32.mrf.mxu0
      %4683 = vdwg.mxu0
      %v4684 = vadd.f32 %v4566, %v4654
      %v4685 = vadd.f32 %v4567, %v4657
      %v4686 = vadd.f32 %v4568, %v4662
      %v4687 = vadd.f32 %v4569, %v4665
      %v4688 = vadd.f32 %v4570, %v4670
      %v4689 = vadd.f32 %v4571, %v4673
      %v4690 = vadd.f32 %v4572, %v4678
      %v4691 = vadd.f32 %v4573, %v4681
      %s4692 = scalar_lea.vmem %s246, 224
      %v4693 = vld [vmem:[%s4692] sm:$0xf]
      %v4694 = vld [vmem:[%s4692 + $0x8] sm:$0xf]
      %v4695 = vld [vmem:[%s4692 + $0x10] sm:$0xf]
      %v4696 = vld [vmem:[%s4692 + $0x18] sm:$0xf]
      %v4697 = vld [vmem:[%s4692 + $0x20] sm:$0xf]
      %v4698 = vld [vmem:[%s4692 + $0x28] sm:$0xf]
      %v4699 = vld [vmem:[%s4692 + $0x30] sm:$0xf]
      %v4700 = vld [vmem:[%s4692 + $0x38] sm:$0xf]
      %v4701 = vld [vmem:[%s1304] sm:$0x3]
      %v4710 = vunpack.c.l.b16 %v4693
      %v4711 = vunpack.c.l.b16 %v4694
      %v4712 = vunpack.c.l.b16 %v4695
      %v4713 = vunpack.c.l.b16 %v4696
      %v4714 = vunpack.c.l.b16 %v4697
      %v4715 = vunpack.c.l.b16 %v4698
      %v4716 = vunpack.c.l.b16 %v4699
      %v4717 = vunpack.c.l.b16 %v4700
      %v4718 = vpack.c.b16 %v4711, %v4710
      %v4719 = vpack.c.b16 %v4713, %v4712
      %v4720 = vpack.c.b16 %v4715, %v4714
      %v4721 = vpack.c.b16 %v4717, %v4716
      %v4723 = vsel %vm293, %v4718, 0
      %v4726 = vsel %vm293, %v4719, 0
      %v4729 = vsel %vm293, %v4720, 0
      %v4732 = vsel %vm293, %v4721, 0
      %v4735 = vsel %vm306, %v4701, 0
      %4737 = vmatprep.subr.bf16.mxu0 0
      %4738 = vmatpush1.bf16.msra.mxu0 0
      %4739 = vmatprep.subr.bf16.mxu0 0
      %4740 = vmatpush1.bf16.msra.mxu0 0
      %4741 = vmatprep.subr.bf16.mxu0 0
      %4742 = vmatpush1.bf16.msra.mxu0 0
      %4743 = vmatprep.subr.bf16.mxu0 0
      %4744 = vmatpush1.bf16.msra.mxu0 0
      %4745 = vmatprep.subr.bf16.mxu0 0
      %4746 = vmatpush1.bf16.msra.mxu0 0
      %4747 = vmatprep.subr.bf16.mxu0 0
      %4748 = vmatpush1.bf16.msra.mxu0 0
      %4749 = vmatprep.subr.bf16.mxu0 0
      %4750 = vmatpush1.bf16.msra.mxu0 0
      %4751 = vmatprep.subr.bf16.mxu0 0
      %4752 = vmatpush1.bf16.msra.mxu0 %v4735
      %4753 = vmatprep.subr.bf16.mxu0 0
      %4754 = vmatpush2.bf16.msra.mxu0 0
      %4755 = vmatprep.subr.bf16.mxu0 0
      %4756 = vmatpush2.bf16.msra.mxu0 0
      %4757 = vmatprep.subr.bf16.mxu0 0
      %4758 = vmatpush2.bf16.msra.mxu0 0
      %4759 = vmatprep.subr.bf16.mxu0 0
      %4760 = vmatpush2.bf16.msra.mxu0 0
      %4761 = vmatprep.subr.bf16.mxu0 0
      %4762 = vmatpush2.bf16.msra.mxu0 0
      %4763 = vmatprep.subr.bf16.mxu0 0
      %4764 = vmatpush2.bf16.msra.mxu0 0
      %4765 = vmatprep.subr.bf16.mxu0 0
      %4766 = vmatpush2.bf16.msra.mxu0 0
      %4767 = vmatprep.subr.bf16.mxu0 0
      %4768 = vmatpush2.bf16.msra.mxu0 0
      %4769 = vmatprep.mubr.bf16.mxu0 0
      %4770 = vmatmul.mubr.bf16.gmra.mxu0 %v4723
      %v4771 = vpop.f32.mrf.mxu0
      %v4772 = vadd.f32 0.0, %v4771
      %v4773 = vpop.f32.mrf.mxu0
      %v4774 = vpop.f32.mrf.mxu0
      %v4775 = vadd.f32 0.0, %v4774
      %v4776 = vpop.f32.mrf.mxu0
      %4777 = vmatprep.mubr.bf16.mxu0 0
      %4778 = vmatmul.mubr.bf16.gmra.mxu0 %v4726
      %v4779 = vpop.f32.mrf.mxu0
      %v4780 = vadd.f32 0.0, %v4779
      %v4781 = vpop.f32.mrf.mxu0
      %v4782 = vpop.f32.mrf.mxu0
      %v4783 = vadd.f32 0.0, %v4782
      %v4784 = vpop.f32.mrf.mxu0
      %4785 = vmatprep.mubr.bf16.mxu0 0
      %4786 = vmatmul.mubr.bf16.gmra.mxu0 %v4729
      %v4787 = vpop.f32.mrf.mxu0
      %v4788 = vadd.f32 0.0, %v4787
      %v4789 = vpop.f32.mrf.mxu0
      %v4790 = vpop.f32.mrf.mxu0
      %v4791 = vadd.f32 0.0, %v4790
      %v4792 = vpop.f32.mrf.mxu0
      %4793 = vmatprep.mubr.bf16.mxu0 0
      %4794 = vmatmul.mubr.bf16.gmra.mxu0 %v4732
      %v4795 = vpop.f32.mrf.mxu0
      %v4796 = vadd.f32 0.0, %v4795
      %v4797 = vpop.f32.mrf.mxu0
      %v4798 = vpop.f32.mrf.mxu0
      %v4799 = vadd.f32 0.0, %v4798
      %v4800 = vpop.f32.mrf.mxu0
      %4801 = vdwg.mxu0
      %v4802 = vadd.f32 %v4684, %v4772
      %v4803 = vadd.f32 %v4685, %v4775
      %v4804 = vadd.f32 %v4686, %v4780
      %v4805 = vadd.f32 %v4687, %v4783
      %v4806 = vadd.f32 %v4688, %v4788
      %v4807 = vadd.f32 %v4689, %v4791
      %v4808 = vadd.f32 %v4690, %v4796
      %v4809 = vadd.f32 %v4691, %v4799
      %v4810 = vld [vmem:[%s4574] sm:$0xf]
      %v4811 = vld [vmem:[%s4574 + $0x4] sm:$0x1]
      %v4812 = vld [vmem:[%s4574 + $0x8] sm:$0xf]
      %v4813 = vld [vmem:[%s4574 + $0xc] sm:$0x1]
      %v4814 = vld [vmem:[%s4574 + $0x10] sm:$0xf]
      %v4815 = vld [vmem:[%s4574 + $0x14] sm:$0x1]
      %v4816 = vld [vmem:[%s4574 + $0x18] sm:$0xf]
      %v4817 = vld [vmem:[%s4574 + $0x1c] sm:$0x1]
      %v4818 = vld [vmem:[%s4574 + $0x20] sm:$0xf]
      %v4819 = vld [vmem:[%s4574 + $0x24] sm:$0x1]
      %v4820 = vld [vmem:[%s4574 + $0x28] sm:$0xf]
      %v4821 = vld [vmem:[%s4574 + $0x2c] sm:$0x1]
      %v4822 = vld [vmem:[%s4574 + $0x30] sm:$0xf]
      %v4823 = vld [vmem:[%s4574 + $0x34] sm:$0x1]
      %v4824 = vld [vmem:[%s4574 + $0x38] sm:$0xf]
      %v4825 = vld [vmem:[%s4574 + $0x3c] sm:$0x1]
      %v4827 = vshrl.u32 %v4810, 16
      %v4829 = vrot.slane %v4827, 4
      %v4830 = vshll.u32 %v4810, 16
      %v4832 = vrot.slane %v4830, 5
      %v4833 = vor.u32 %v4829, %v4832
      %v4834 = vrot.slane %v4833, 4
      %v4836 = vshll.u32 %v4811, 16
      %v4838 = vrot.slane %v4836, 5
      %v4839 = vsel %vm493, %v4834, %v4838
      %v4841 = vshrl.u32 %v4812, 16
      %v4843 = vrot.slane %v4841, 4
      %v4844 = vshll.u32 %v4812, 16
      %v4846 = vrot.slane %v4844, 5
      %v4847 = vor.u32 %v4843, %v4846
      %v4848 = vrot.slane %v4847, 4
      %v4850 = vshll.u32 %v4813, 16
      %v4852 = vrot.slane %v4850, 5
      %v4853 = vsel %vm493, %v4848, %v4852
      %v4855 = vshrl.u32 %v4814, 16
      %v4857 = vrot.slane %v4855, 4
      %v4858 = vshll.u32 %v4814, 16
      %v4860 = vrot.slane %v4858, 5
      %v4861 = vor.u32 %v4857, %v4860
      %v4862 = vrot.slane %v4861, 4
      %v4864 = vshll.u32 %v4815, 16
      %v4866 = vrot.slane %v4864, 5
      %v4867 = vsel %vm493, %v4862, %v4866
      %v4869 = vshrl.u32 %v4816, 16
      %v4871 = vrot.slane %v4869, 4
      %v4872 = vshll.u32 %v4816, 16
      %v4874 = vrot.slane %v4872, 5
      %v4875 = vor.u32 %v4871, %v4874
      %v4876 = vrot.slane %v4875, 4
      %v4878 = vshll.u32 %v4817, 16
      %v4880 = vrot.slane %v4878, 5
      %v4881 = vsel %vm493, %v4876, %v4880
      %v4883 = vshrl.u32 %v4818, 16
      %v4885 = vrot.slane %v4883, 4
      %v4886 = vshll.u32 %v4818, 16
      %v4888 = vrot.slane %v4886, 5
      %v4889 = vor.u32 %v4885, %v4888
      %v4890 = vrot.slane %v4889, 4
      %v4892 = vshll.u32 %v4819, 16
      %v4894 = vrot.slane %v4892, 5
      %v4895 = vsel %vm493, %v4890, %v4894
      %v4897 = vshrl.u32 %v4820, 16
      %v4899 = vrot.slane %v4897, 4
      %v4900 = vshll.u32 %v4820, 16
      %v4902 = vrot.slane %v4900, 5
      %v4903 = vor.u32 %v4899, %v4902
      %v4904 = vrot.slane %v4903, 4
      %v4906 = vshll.u32 %v4821, 16
      %v4908 = vrot.slane %v4906, 5
      %v4909 = vsel %vm493, %v4904, %v4908
      %v4911 = vshrl.u32 %v4822, 16
      %v4913 = vrot.slane %v4911, 4
      %v4914 = vshll.u32 %v4822, 16
      %v4916 = vrot.slane %v4914, 5
      %v4917 = vor.u32 %v4913, %v4916
      %v4918 = vrot.slane %v4917, 4
      %v4920 = vshll.u32 %v4823, 16
      %v4922 = vrot.slane %v4920, 5
      %v4923 = vsel %vm493, %v4918, %v4922
      %v4925 = vshrl.u32 %v4824, 16
      %v4927 = vrot.slane %v4925, 4
      %v4928 = vshll.u32 %v4824, 16
      %v4930 = vrot.slane %v4928, 5
      %v4931 = vor.u32 %v4927, %v4930
      %v4932 = vrot.slane %v4931, 4
      %v4934 = vshll.u32 %v4825, 16
      %v4936 = vrot.slane %v4934, 5
      %v4937 = vsel %vm493, %v4932, %v4936
      %v4938 = vld [vmem:[%s1542] sm:$0x3]
      %v4939 = vunpack.c.l.b16 %v4839
      %v4940 = vunpack.c.l.b16 %v4853
      %v4941 = vunpack.c.l.b16 %v4867
      %v4942 = vunpack.c.l.b16 %v4881
      %v4943 = vunpack.c.l.b16 %v4895
      %v4944 = vunpack.c.l.b16 %v4909
      %v4945 = vunpack.c.l.b16 %v4923
      %v4946 = vunpack.c.l.b16 %v4937
      %v4947 = vpack.c.b16 %v4940, %v4939
      %v4948 = vpack.c.b16 %v4942, %v4941
      %v4949 = vpack.c.b16 %v4944, %v4943
      %v4950 = vpack.c.b16 %v4946, %v4945
      %v4952 = vsel %vm293, %v4947, 0
      %v4955 = vsel %vm293, %v4948, 0
      %v4958 = vsel %vm293, %v4949, 0
      %v4961 = vsel %vm293, %v4950, 0
      %v4964 = vsel %vm306, %v4938, 0
      %4966 = vmatprep.subr.bf16.mxu0 0
      %4967 = vmatpush1.bf16.msra.mxu0 0
      %4968 = vmatprep.subr.bf16.mxu0 0
      %4969 = vmatpush1.bf16.msra.mxu0 0
      %4970 = vmatprep.subr.bf16.mxu0 0
      %4971 = vmatpush1.bf16.msra.mxu0 0
      %4972 = vmatprep.subr.bf16.mxu0 0
      %4973 = vmatpush1.bf16.msra.mxu0 0
      %4974 = vmatprep.subr.bf16.mxu0 0
      %4975 = vmatpush1.bf16.msra.mxu0 0
      %4976 = vmatprep.subr.bf16.mxu0 0
      %4977 = vmatpush1.bf16.msra.mxu0 0
      %4978 = vmatprep.subr.bf16.mxu0 0
      %4979 = vmatpush1.bf16.msra.mxu0 0
      %4980 = vmatprep.subr.bf16.mxu0 0
      %4981 = vmatpush1.bf16.msra.mxu0 %v4964
      %4982 = vmatprep.subr.bf16.mxu0 0
      %4983 = vmatpush2.bf16.msra.mxu0 0
      %4984 = vmatprep.subr.bf16.mxu0 0
      %4985 = vmatpush2.bf16.msra.mxu0 0
      %4986 = vmatprep.subr.bf16.mxu0 0
      %4987 = vmatpush2.bf16.msra.mxu0 0
      %4988 = vmatprep.subr.bf16.mxu0 0
      %4989 = vmatpush2.bf16.msra.mxu0 0
      %4990 = vmatprep.subr.bf16.mxu0 0
      %4991 = vmatpush2.bf16.msra.mxu0 0
      %4992 = vmatprep.subr.bf16.mxu0 0
      %4993 = vmatpush2.bf16.msra.mxu0 0
      %4994 = vmatprep.subr.bf16.mxu0 0
      %4995 = vmatpush2.bf16.msra.mxu0 0
      %4996 = vmatprep.subr.bf16.mxu0 0
      %4997 = vmatpush2.bf16.msra.mxu0 0
      %4998 = vmatprep.mubr.bf16.mxu0 0
      %4999 = vmatmul.mubr.bf16.gmra.mxu0 %v4952
      %v5000 = vpop.f32.mrf.mxu0
      %v5001 = vadd.f32 0.0, %v5000
      %v5002 = vpop.f32.mrf.mxu0
      %v5003 = vpop.f32.mrf.mxu0
      %v5004 = vadd.f32 0.0, %v5003
      %v5005 = vpop.f32.mrf.mxu0
      %5006 = vmatprep.mubr.bf16.mxu0 0
      %5007 = vmatmul.mubr.bf16.gmra.mxu0 %v4955
      %v5008 = vpop.f32.mrf.mxu0
      %v5009 = vadd.f32 0.0, %v5008
      %v5010 = vpop.f32.mrf.mxu0
      %v5011 = vpop.f32.mrf.mxu0
      %v5012 = vadd.f32 0.0, %v5011
      %v5013 = vpop.f32.mrf.mxu0
      %5014 = vmatprep.mubr.bf16.mxu0 0
      %5015 = vmatmul.mubr.bf16.gmra.mxu0 %v4958
      %v5016 = vpop.f32.mrf.mxu0
      %v5017 = vadd.f32 0.0, %v5016
      %v5018 = vpop.f32.mrf.mxu0
      %v5019 = vpop.f32.mrf.mxu0
      %v5020 = vadd.f32 0.0, %v5019
      %v5021 = vpop.f32.mrf.mxu0
      %5022 = vmatprep.mubr.bf16.mxu0 0
      %5023 = vmatmul.mubr.bf16.gmra.mxu0 %v4961
      %v5024 = vpop.f32.mrf.mxu0
      %v5025 = vadd.f32 0.0, %v5024
      %v5026 = vpop.f32.mrf.mxu0
      %v5027 = vpop.f32.mrf.mxu0
      %v5028 = vadd.f32 0.0, %v5027
      %v5029 = vpop.f32.mrf.mxu0
      %5030 = vdwg.mxu0
      %v5031 = vadd.f32 %v4802, %v5001
      %v5032 = vadd.f32 %v4803, %v5004
      %v5033 = vadd.f32 %v4804, %v5009
      %v5034 = vadd.f32 %v4805, %v5012
      %v5035 = vadd.f32 %v4806, %v5017
      %v5036 = vadd.f32 %v4807, %v5020
      %v5037 = vadd.f32 %v4808, %v5025
      %v5038 = vadd.f32 %v4809, %v5028
      %v5039 = vld [vmem:[%s2] sm:$0x1]
      %v5041 = vlaneseq
      %v5042 = vshrl.u32 %v5041, 7
      %v5043 = vsub.s32 0, %v5042
      %v5044 = vrot.slane %v5039, %v5043
      %v5046 = vadd.f32 %v5031, %v5044
      %v5047 = vadd.f32 %v5032, %v5044
      %v5048 = vadd.f32 %v5033, %v5044
      %v5049 = vadd.f32 %v5034, %v5044
      %v5050 = vadd.f32 %v5035, %v5044
      %v5051 = vadd.f32 %v5036, %v5044
      %v5052 = vadd.f32 %v5037, %v5044
      %v5053 = vadd.f32 %v5038, %v5044
      %v5054 = vmax.f32 %v5046, 0.0
      %v5055 = vmax.f32 %v5047, 0.0
      %v5056 = vmax.f32 %v5048, 0.0
      %v5057 = vmax.f32 %v5049, 0.0
      %v5058 = vmax.f32 %v5050, 0.0
      %v5059 = vmax.f32 %v5051, 0.0
      %v5060 = vmax.f32 %v5052, 0.0
      %v5061 = vmax.f32 %v5053, 0.0
      %v5062 = vpack.c.bf16 %v5055, %v5054
      %v5063 = vpack.c.bf16 %v5057, %v5056
      %v5064 = vpack.c.bf16 %v5059, %v5058
      %v5065 = vpack.c.bf16 %v5061, %v5060
      %s5066 = scalar_lea.vmem [#allocation2], 72
      %5067 = vst.msk [vmem:[%s5066] sm:$0xf] %vm1672, 0
      %v5068 = vld [vmem:[%s5066 + $0x4] sm:$0x1]
      %v5069 = vsel %vm1676, 0, %v5068
      %5070 = vst [vmem:[%s5066 + $0x4] sm:$0x1] %v5069
      %v5071 = vld [vmem:[%s5066 + $0x4] sm:$0x1]
      %v5072 = vsel %vm1676, 0, %v5071
      %5073 = vst [vmem:[%s5066 + $0x4] sm:$0x1] %v5072
      %v5074 = vld [vmem:[%s5066 + $0xc] sm:$0x1]
      %v5075 = vsel %vm1676, 0, %v5074
      %5076 = vst [vmem:[%s5066 + $0xc] sm:$0x1] %v5075
      %v5077 = vld [vmem:[%s5066 + $0x14] sm:$0x1]
      %v5078 = vsel %vm1676, 0, %v5077
      %5079 = vst [vmem:[%s5066 + $0x14] sm:$0x1] %v5078
      %v5080 = vld [vmem:[%s5066 + $0x1c] sm:$0x1]
      %v5081 = vsel %vm1676, 0, %v5080
      %5082 = vst [vmem:[%s5066 + $0x1c] sm:$0x1] %v5081
      %v5083 = vld [vmem:[%s5066 + $0x24] sm:$0x1]
      %v5084 = vsel %vm1676, 0, %v5083
      %5085 = vst [vmem:[%s5066 + $0x24] sm:$0x1] %v5084
      %v5086 = vld [vmem:[%s5066 + $0x2c] sm:$0x1]
      %v5087 = vsel %vm1676, 0, %v5086
      %5088 = vst [vmem:[%s5066 + $0x2c] sm:$0x1] %v5087
      %v5089 = vld [vmem:[%s5066 + $0x34] sm:$0x1]
      %v5090 = vsel %vm1676, 0, %v5089
      %5091 = vst [vmem:[%s5066 + $0x34] sm:$0x1] %v5090
      %v5092 = vld [vmem:[%s5066 + $0x3c] sm:$0x1]
      %v5093 = vsel %vm1676, 0, %v5092
      %5094 = vst [vmem:[%s5066 + $0x3c] sm:$0x1] %v5093
      %v5095 = vld [vmem:[%s5066 + $0x44] sm:$0x1]
      %v5096 = vsel %vm1676, 0, %v5095
      %5097 = vst [vmem:[%s5066 + $0x44] sm:$0x1] %v5096
      %v5102 = vunpack.c.l.b16 %v5062
      %v5103 = vunpack.c.h.b16 %v5062
      %v5104 = vunpack.c.l.b16 %v5063
      %v5105 = vunpack.c.h.b16 %v5063
      %v5106 = vunpack.c.l.b16 %v5064
      %v5107 = vunpack.c.h.b16 %v5064
      %v5108 = vunpack.c.l.b16 %v5065
      %v5109 = vunpack.c.h.b16 %v5065
      %v5110 = vpack.c.b16 %v5102, %v5102
      %v5111 = vpack.c.b16 %v5103, %v5103
      %v5112 = vpack.c.b16 %v5104, %v5104
      %v5113 = vpack.c.b16 %v5105, %v5105
      %v5114 = vpack.c.b16 %v5106, %v5106
      %v5115 = vpack.c.b16 %v5107, %v5107
      %v5116 = vpack.c.b16 %v5108, %v5108
      %v5117 = vpack.c.b16 %v5109, %v5109
      %s5126 = scalar_lea.vmem [#allocation2], 80
      %5127 = vst.msk [vmem:[%s5126] sm:$0xf] %vm1672, %v5110
      %5128 = vst.msk [vmem:[%s5126 + $0x8] sm:$0xf] %vm1672, %v5111
      %5129 = vst.msk [vmem:[%s5126 + $0x10] sm:$0xf] %vm1672, %v5112
      %5130 = vst.msk [vmem:[%s5126 + $0x18] sm:$0xf] %vm1672, %v5113
      %5131 = vst.msk [vmem:[%s5126 + $0x20] sm:$0xf] %vm1672, %v5114
      %5132 = vst.msk [vmem:[%s5126 + $0x28] sm:$0xf] %vm1672, %v5115
      %5133 = vst.msk [vmem:[%s5126 + $0x30] sm:$0xf] %vm1672, %v5116
      %5134 = vst.msk [vmem:[%s5126 + $0x38] sm:$0xf] %vm1672, %v5117
      %v5135 = vld [vmem:[%s827] sm:$0xf]
      %v5136 = vld [vmem:[%s827 + $0x8] sm:$0xf]
      %v5137 = vld [vmem:[%s827 + $0x10] sm:$0xf]
      %v5138 = vld [vmem:[%s827 + $0x18] sm:$0xf]
      %v5139 = vld [vmem:[%s827 + $0x20] sm:$0xf]
      %v5140 = vld [vmem:[%s827 + $0x28] sm:$0xf]
      %v5141 = vld [vmem:[%s827 + $0x30] sm:$0xf]
      %v5142 = vld [vmem:[%s827 + $0x38] sm:$0xf]
      %v5143 = vld [vmem:[%s1] sm:$0x3]
      %v5144 = vld [vmem:[%s708] sm:$0xf]
      %v5145 = vld [vmem:[%s708 + $0x4] sm:$0x1]
      %v5146 = vld [vmem:[%s708 + $0x8] sm:$0xf]
      %v5147 = vld [vmem:[%s708 + $0xc] sm:$0x1]
      %v5148 = vld [vmem:[%s708 + $0x10] sm:$0xf]
      %v5149 = vld [vmem:[%s708 + $0x14] sm:$0x1]
      %v5150 = vld [vmem:[%s708 + $0x18] sm:$0xf]
      %v5151 = vld [vmem:[%s708 + $0x1c] sm:$0x1]
      %v5152 = vld [vmem:[%s708 + $0x20] sm:$0xf]
      %v5153 = vld [vmem:[%s708 + $0x24] sm:$0x1]
      %v5154 = vld [vmem:[%s708 + $0x28] sm:$0xf]
      %v5155 = vld [vmem:[%s708 + $0x2c] sm:$0x1]
      %v5156 = vld [vmem:[%s708 + $0x30] sm:$0xf]
      %v5157 = vld [vmem:[%s708 + $0x34] sm:$0x1]
      %v5158 = vld [vmem:[%s708 + $0x38] sm:$0xf]
      %v5159 = vld [vmem:[%s708 + $0x3c] sm:$0x1]
      %v5161 = vshrl.u32 %v5144, 16
      %v5163 = vrot.slane %v5161, 4
      %v5164 = vshll.u32 %v5144, 16
      %v5166 = vrot.slane %v5164, 5
      %v5167 = vor.u32 %v5163, %v5166
      %v5168 = vrot.slane %v5167, 4
      %v5170 = vshll.u32 %v5145, 16
      %v5172 = vrot.slane %v5170, 5
      %v5173 = vsel %vm493, %v5168, %v5172
      %v5175 = vshrl.u32 %v5146, 16
      %v5177 = vrot.slane %v5175, 4
      %v5178 = vshll.u32 %v5146, 16
      %v5180 = vrot.slane %v5178, 5
      %v5181 = vor.u32 %v5177, %v5180
      %v5182 = vrot.slane %v5181, 4
      %v5184 = vshll.u32 %v5147, 16
      %v5186 = vrot.slane %v5184, 5
      %v5187 = vsel %vm493, %v5182, %v5186
      %v5189 = vshrl.u32 %v5148, 16
      %v5191 = vrot.slane %v5189, 4
      %v5192 = vshll.u32 %v5148, 16
      %v5194 = vrot.slane %v5192, 5
      %v5195 = vor.u32 %v5191, %v5194
      %v5196 = vrot.slane %v5195, 4
      %v5198 = vshll.u32 %v5149, 16
      %v5200 = vrot.slane %v5198, 5
      %v5201 = vsel %vm493, %v5196, %v5200
      %v5203 = vshrl.u32 %v5150, 16
      %v5205 = vrot.slane %v5203, 4
      %v5206 = vshll.u32 %v5150, 16
      %v5208 = vrot.slane %v5206, 5
      %v5209 = vor.u32 %v5205, %v5208
      %v5210 = vrot.slane %v5209, 4
      %v5212 = vshll.u32 %v5151, 16
      %v5214 = vrot.slane %v5212, 5
      %v5215 = vsel %vm493, %v5210, %v5214
      %v5217 = vshrl.u32 %v5152, 16
      %v5219 = vrot.slane %v5217, 4
      %v5220 = vshll.u32 %v5152, 16
      %v5222 = vrot.slane %v5220, 5
      %v5223 = vor.u32 %v5219, %v5222
      %v5224 = vrot.slane %v5223, 4
      %v5226 = vshll.u32 %v5153, 16
      %v5228 = vrot.slane %v5226, 5
      %v5229 = vsel %vm493, %v5224, %v5228
      %v5231 = vshrl.u32 %v5154, 16
      %v5233 = vrot.slane %v5231, 4
      %v5234 = vshll.u32 %v5154, 16
      %v5236 = vrot.slane %v5234, 5
      %v5237 = vor.u32 %v5233, %v5236
      %v5238 = vrot.slane %v5237, 4
      %v5240 = vshll.u32 %v5155, 16
      %v5242 = vrot.slane %v5240, 5
      %v5243 = vsel %vm493, %v5238, %v5242
      %v5245 = vshrl.u32 %v5156, 16
      %v5247 = vrot.slane %v5245, 4
      %v5248 = vshll.u32 %v5156, 16
      %v5250 = vrot.slane %v5248, 5
      %v5251 = vor.u32 %v5247, %v5250
      %v5252 = vrot.slane %v5251, 4
      %v5254 = vshll.u32 %v5157, 16
      %v5256 = vrot.slane %v5254, 5
      %v5257 = vsel %vm493, %v5252, %v5256
      %v5259 = vshrl.u32 %v5158, 16
      %v5261 = vrot.slane %v5259, 4
      %v5262 = vshll.u32 %v5158, 16
      %v5264 = vrot.slane %v5262, 5
      %v5265 = vor.u32 %v5261, %v5264
      %v5266 = vrot.slane %v5265, 4
      %v5268 = vshll.u32 %v5159, 16
      %v5270 = vrot.slane %v5268, 5
      %v5271 = vsel %vm493, %v5266, %v5270
      %v5272 = vld [vmem:[%s271] sm:$0x3]
      %v5273 = vunpack.c.l.b16 %v5173
      %v5274 = vunpack.c.l.b16 %v5187
      %v5275 = vunpack.c.l.b16 %v5201
      %v5276 = vunpack.c.l.b16 %v5215
      %v5277 = vunpack.c.l.b16 %v5229
      %v5278 = vunpack.c.l.b16 %v5243
      %v5279 = vunpack.c.l.b16 %v5257
      %v5280 = vunpack.c.l.b16 %v5271
      %v5281 = vpack.c.b16 %v5274, %v5273
      %v5282 = vpack.c.b16 %v5276, %v5275
      %v5283 = vpack.c.b16 %v5278, %v5277
      %v5284 = vpack.c.b16 %v5280, %v5279
      %v5286 = vsel %vm293, %v5281, 0
      %v5289 = vsel %vm293, %v5282, 0
      %v5292 = vsel %vm293, %v5283, 0
      %v5295 = vsel %vm293, %v5284, 0
      %v5298 = vsel %vm306, %v5272, 0
      %5300 = vmatprep.subr.bf16.mxu0 0
      %5301 = vmatpush1.bf16.msra.mxu0 0
      %5302 = vmatprep.subr.bf16.mxu0 0
      %5303 = vmatpush1.bf16.msra.mxu0 0
      %5304 = vmatprep.subr.bf16.mxu0 0
      %5305 = vmatpush1.bf16.msra.mxu0 0
      %5306 = vmatprep.subr.bf16.mxu0 0
      %5307 = vmatpush1.bf16.msra.mxu0 0
      %5308 = vmatprep.subr.bf16.mxu0 0
      %5309 = vmatpush1.bf16.msra.mxu0 0
      %5310 = vmatprep.subr.bf16.mxu0 0
      %5311 = vmatpush1.bf16.msra.mxu0 0
      %5312 = vmatprep.subr.bf16.mxu0 0
      %5313 = vmatpush1.bf16.msra.mxu0 0
      %5314 = vmatprep.subr.bf16.mxu0 0
      %5315 = vmatpush1.bf16.msra.mxu0 %v5298
      %5316 = vmatprep.subr.bf16.mxu0 0
      %5317 = vmatpush2.bf16.msra.mxu0 0
      %5318 = vmatprep.subr.bf16.mxu0 0
      %5319 = vmatpush2.bf16.msra.mxu0 0
      %5320 = vmatprep.subr.bf16.mxu0 0
      %5321 = vmatpush2.bf16.msra.mxu0 0
      %5322 = vmatprep.subr.bf16.mxu0 0
      %5323 = vmatpush2.bf16.msra.mxu0 0
      %5324 = vmatprep.subr.bf16.mxu0 0
      %5325 = vmatpush2.bf16.msra.mxu0 0
      %5326 = vmatprep.subr.bf16.mxu0 0
      %5327 = vmatpush2.bf16.msra.mxu0 0
      %5328 = vmatprep.subr.bf16.mxu0 0
      %5329 = vmatpush2.bf16.msra.mxu0 0
      %5330 = vmatprep.subr.bf16.mxu0 0
      %5331 = vmatpush2.bf16.msra.mxu0 0
      %5332 = vmatprep.mubr.bf16.mxu0 0
      %5333 = vmatmul.mubr.bf16.gmra.mxu0 %v5286
      %v5334 = vpop.f32.mrf.mxu0
      %v5335 = vadd.f32 0.0, %v5334
      %v5336 = vpop.f32.mrf.mxu0
      %v5337 = vpop.f32.mrf.mxu0
      %v5338 = vadd.f32 0.0, %v5337
      %v5339 = vpop.f32.mrf.mxu0
      %5340 = vmatprep.mubr.bf16.mxu0 0
      %5341 = vmatmul.mubr.bf16.gmra.mxu0 %v5289
      %v5342 = vpop.f32.mrf.mxu0
      %v5343 = vadd.f32 0.0, %v5342
      %v5344 = vpop.f32.mrf.mxu0
      %v5345 = vpop.f32.mrf.mxu0
      %v5346 = vadd.f32 0.0, %v5345
      %v5347 = vpop.f32.mrf.mxu0
      %5348 = vmatprep.mubr.bf16.mxu0 0
      %5349 = vmatmul.mubr.bf16.gmra.mxu0 %v5292
      %v5350 = vpop.f32.mrf.mxu0
      %v5351 = vadd.f32 0.0, %v5350
      %v5352 = vpop.f32.mrf.mxu0
      %v5353 = vpop.f32.mrf.mxu0
      %v5354 = vadd.f32 0.0, %v5353
      %v5355 = vpop.f32.mrf.mxu0
      %5356 = vmatprep.mubr.bf16.mxu0 0
      %5357 = vmatmul.mubr.bf16.gmra.mxu0 %v5295
      %v5358 = vpop.f32.mrf.mxu0
      %v5359 = vadd.f32 0.0, %v5358
      %v5360 = vpop.f32.mrf.mxu0
      %v5361 = vpop.f32.mrf.mxu0
      %v5362 = vadd.f32 0.0, %v5361
      %v5363 = vpop.f32.mrf.mxu0
      %5364 = vdwg.mxu0
      %v5373 = vunpack.c.l.b16 %v5135
      %v5374 = vunpack.c.l.b16 %v5136
      %v5375 = vunpack.c.l.b16 %v5137
      %v5376 = vunpack.c.l.b16 %v5138
      %v5377 = vunpack.c.l.b16 %v5139
      %v5378 = vunpack.c.l.b16 %v5140
      %v5379 = vunpack.c.l.b16 %v5141
      %v5380 = vunpack.c.l.b16 %v5142
      %v5381 = vpack.c.b16 %v5374, %v5373
      %v5382 = vpack.c.b16 %v5376, %v5375
      %v5383 = vpack.c.b16 %v5378, %v5377
      %v5384 = vpack.c.b16 %v5380, %v5379
      %v5386 = vsel %vm293, %v5381, 0
      %v5389 = vsel %vm293, %v5382, 0
      %v5392 = vsel %vm293, %v5383, 0
      %v5395 = vsel %vm293, %v5384, 0
      %v5398 = vsel %vm306, %v5143, 0
      %5400 = vmatprep.subr.bf16.mxu0 0
      %5401 = vmatpush1.bf16.msra.mxu0 0
      %5402 = vmatprep.subr.bf16.mxu0 0
      %5403 = vmatpush1.bf16.msra.mxu0 0
      %5404 = vmatprep.subr.bf16.mxu0 0
      %5405 = vmatpush1.bf16.msra.mxu0 0
      %5406 = vmatprep.subr.bf16.mxu0 0
      %5407 = vmatpush1.bf16.msra.mxu0 0
      %5408 = vmatprep.subr.bf16.mxu0 0
      %5409 = vmatpush1.bf16.msra.mxu0 0
      %5410 = vmatprep.subr.bf16.mxu0 0
      %5411 = vmatpush1.bf16.msra.mxu0 0
      %5412 = vmatprep.subr.bf16.mxu0 0
      %5413 = vmatpush1.bf16.msra.mxu0 0
      %5414 = vmatprep.subr.bf16.mxu0 0
      %5415 = vmatpush1.bf16.msra.mxu0 %v5398
      %5416 = vmatprep.subr.bf16.mxu0 0
      %5417 = vmatpush2.bf16.msra.mxu0 0
      %5418 = vmatprep.subr.bf16.mxu0 0
      %5419 = vmatpush2.bf16.msra.mxu0 0
      %5420 = vmatprep.subr.bf16.mxu0 0
      %5421 = vmatpush2.bf16.msra.mxu0 0
      %5422 = vmatprep.subr.bf16.mxu0 0
      %5423 = vmatpush2.bf16.msra.mxu0 0
      %5424 = vmatprep.subr.bf16.mxu0 0
      %5425 = vmatpush2.bf16.msra.mxu0 0
      %5426 = vmatprep.subr.bf16.mxu0 0
      %5427 = vmatpush2.bf16.msra.mxu0 0
      %5428 = vmatprep.subr.bf16.mxu0 0
      %5429 = vmatpush2.bf16.msra.mxu0 0
      %5430 = vmatprep.subr.bf16.mxu0 0
      %5431 = vmatpush2.bf16.msra.mxu0 0
      %5432 = vmatprep.mubr.bf16.mxu0 0
      %5433 = vmatmul.mubr.bf16.gmra.mxu0 %v5386
      %v5434 = vpop.f32.mrf.mxu0
      %v5435 = vadd.f32 %v5335, %v5434
      %v5436 = vpop.f32.mrf.mxu0
      %v5437 = vpop.f32.mrf.mxu0
      %v5438 = vadd.f32 %v5338, %v5437
      %v5439 = vpop.f32.mrf.mxu0
      %5440 = vmatprep.mubr.bf16.mxu0 0
      %5441 = vmatmul.mubr.bf16.gmra.mxu0 %v5389
      %v5442 = vpop.f32.mrf.mxu0
      %v5443 = vadd.f32 %v5343, %v5442
      %v5444 = vpop.f32.mrf.mxu0
      %v5445 = vpop.f32.mrf.mxu0
      %v5446 = vadd.f32 %v5346, %v5445
      %v5447 = vpop.f32.mrf.mxu0
      %5448 = vmatprep.mubr.bf16.mxu0 0
      %5449 = vmatmul.mubr.bf16.gmra.mxu0 %v5392
      %v5450 = vpop.f32.mrf.mxu0
      %v5451 = vadd.f32 %v5351, %v5450
      %v5452 = vpop.f32.mrf.mxu0
      %v5453 = vpop.f32.mrf.mxu0
      %v5454 = vadd.f32 %v5354, %v5453
      %v5455 = vpop.f32.mrf.mxu0
      %5456 = vmatprep.mubr.bf16.mxu0 0
      %5457 = vmatmul.mubr.bf16.gmra.mxu0 %v5395
      %v5458 = vpop.f32.mrf.mxu0
      %v5459 = vadd.f32 %v5359, %v5458
      %v5460 = vpop.f32.mrf.mxu0
      %v5461 = vpop.f32.mrf.mxu0
      %v5462 = vadd.f32 %v5362, %v5461
      %v5463 = vpop.f32.mrf.mxu0
      %5464 = vdwg.mxu0
      %v5465 = vld [vmem:[%s827] sm:$0xf]
      %v5466 = vld [vmem:[%s827 + $0x4] sm:$0x1]
      %v5467 = vld [vmem:[%s827 + $0x8] sm:$0xf]
      %v5468 = vld [vmem:[%s827 + $0xc] sm:$0x1]
      %v5469 = vld [vmem:[%s827 + $0x10] sm:$0xf]
      %v5470 = vld [vmem:[%s827 + $0x14] sm:$0x1]
      %v5471 = vld [vmem:[%s827 + $0x18] sm:$0xf]
      %v5472 = vld [vmem:[%s827 + $0x1c] sm:$0x1]
      %v5473 = vld [vmem:[%s827 + $0x20] sm:$0xf]
      %v5474 = vld [vmem:[%s827 + $0x24] sm:$0x1]
      %v5475 = vld [vmem:[%s827 + $0x28] sm:$0xf]
      %v5476 = vld [vmem:[%s827 + $0x2c] sm:$0x1]
      %v5477 = vld [vmem:[%s827 + $0x30] sm:$0xf]
      %v5478 = vld [vmem:[%s827 + $0x34] sm:$0x1]
      %v5479 = vld [vmem:[%s827 + $0x38] sm:$0xf]
      %v5480 = vld [vmem:[%s827 + $0x3c] sm:$0x1]
      %v5482 = vshrl.u32 %v5465, 16
      %v5484 = vrot.slane %v5482, 4
      %v5485 = vshll.u32 %v5465, 16
      %v5487 = vrot.slane %v5485, 5
      %v5488 = vor.u32 %v5484, %v5487
      %v5489 = vrot.slane %v5488, 4
      %v5491 = vshll.u32 %v5466, 16
      %v5493 = vrot.slane %v5491, 5
      %v5494 = vsel %vm493, %v5489, %v5493
      %v5496 = vshrl.u32 %v5467, 16
      %v5498 = vrot.slane %v5496, 4
      %v5499 = vshll.u32 %v5467, 16
      %v5501 = vrot.slane %v5499, 5
      %v5502 = vor.u32 %v5498, %v5501
      %v5503 = vrot.slane %v5502, 4
      %v5505 = vshll.u32 %v5468, 16
      %v5507 = vrot.slane %v5505, 5
      %v5508 = vsel %vm493, %v5503, %v5507
      %v5510 = vshrl.u32 %v5469, 16
      %v5512 = vrot.slane %v5510, 4
      %v5513 = vshll.u32 %v5469, 16
      %v5515 = vrot.slane %v5513, 5
      %v5516 = vor.u32 %v5512, %v5515
      %v5517 = vrot.slane %v5516, 4
      %v5519 = vshll.u32 %v5470, 16
      %v5521 = vrot.slane %v5519, 5
      %v5522 = vsel %vm493, %v5517, %v5521
      %v5524 = vshrl.u32 %v5471, 16
      %v5526 = vrot.slane %v5524, 4
      %v5527 = vshll.u32 %v5471, 16
      %v5529 = vrot.slane %v5527, 5
      %v5530 = vor.u32 %v5526, %v5529
      %v5531 = vrot.slane %v5530, 4
      %v5533 = vshll.u32 %v5472, 16
      %v5535 = vrot.slane %v5533, 5
      %v5536 = vsel %vm493, %v5531, %v5535
      %v5538 = vshrl.u32 %v5473, 16
      %v5540 = vrot.slane %v5538, 4
      %v5541 = vshll.u32 %v5473, 16
      %v5543 = vrot.slane %v5541, 5
      %v5544 = vor.u32 %v5540, %v5543
      %v5545 = vrot.slane %v5544, 4
      %v5547 = vshll.u32 %v5474, 16
      %v5549 = vrot.slane %v5547, 5
      %v5550 = vsel %vm493, %v5545, %v5549
      %v5552 = vshrl.u32 %v5475, 16
      %v5554 = vrot.slane %v5552, 4
      %v5555 = vshll.u32 %v5475, 16
      %v5557 = vrot.slane %v5555, 5
      %v5558 = vor.u32 %v5554, %v5557
      %v5559 = vrot.slane %v5558, 4
      %v5561 = vshll.u32 %v5476, 16
      %v5563 = vrot.slane %v5561, 5
      %v5564 = vsel %vm493, %v5559, %v5563
      %v5566 = vshrl.u32 %v5477, 16
      %v5568 = vrot.slane %v5566, 4
      %v5569 = vshll.u32 %v5477, 16
      %v5571 = vrot.slane %v5569, 5
      %v5572 = vor.u32 %v5568, %v5571
      %v5573 = vrot.slane %v5572, 4
      %v5575 = vshll.u32 %v5478, 16
      %v5577 = vrot.slane %v5575, 5
      %v5578 = vsel %vm493, %v5573, %v5577
      %v5580 = vshrl.u32 %v5479, 16
      %v5582 = vrot.slane %v5580, 4
      %v5583 = vshll.u32 %v5479, 16
      %v5585 = vrot.slane %v5583, 5
      %v5586 = vor.u32 %v5582, %v5585
      %v5587 = vrot.slane %v5586, 4
      %v5589 = vshll.u32 %v5480, 16
      %v5591 = vrot.slane %v5589, 5
      %v5592 = vsel %vm493, %v5587, %v5591
      %v5593 = vld [vmem:[%s606] sm:$0x3]
      %v5594 = vunpack.c.l.b16 %v5494
      %v5595 = vunpack.c.l.b16 %v5508
      %v5596 = vunpack.c.l.b16 %v5522
      %v5597 = vunpack.c.l.b16 %v5536
      %v5598 = vunpack.c.l.b16 %v5550
      %v5599 = vunpack.c.l.b16 %v5564
      %v5600 = vunpack.c.l.b16 %v5578
      %v5601 = vunpack.c.l.b16 %v5592
      %v5602 = vpack.c.b16 %v5595, %v5594
      %v5603 = vpack.c.b16 %v5597, %v5596
      %v5604 = vpack.c.b16 %v5599, %v5598
      %v5605 = vpack.c.b16 %v5601, %v5600
      %v5607 = vsel %vm293, %v5602, 0
      %v5610 = vsel %vm293, %v5603, 0
      %v5613 = vsel %vm293, %v5604, 0
      %v5616 = vsel %vm293, %v5605, 0
      %v5619 = vsel %vm306, %v5593, 0
      %5621 = vmatprep.subr.bf16.mxu0 0
      %5622 = vmatpush1.bf16.msra.mxu0 0
      %5623 = vmatprep.subr.bf16.mxu0 0
      %5624 = vmatpush1.bf16.msra.mxu0 0
      %5625 = vmatprep.subr.bf16.mxu0 0
      %5626 = vmatpush1.bf16.msra.mxu0 0
      %5627 = vmatprep.subr.bf16.mxu0 0
      %5628 = vmatpush1.bf16.msra.mxu0 0
      %5629 = vmatprep.subr.bf16.mxu0 0
      %5630 = vmatpush1.bf16.msra.mxu0 0
      %5631 = vmatprep.subr.bf16.mxu0 0
      %5632 = vmatpush1.bf16.msra.mxu0 0
      %5633 = vmatprep.subr.bf16.mxu0 0
      %5634 = vmatpush1.bf16.msra.mxu0 0
      %5635 = vmatprep.subr.bf16.mxu0 0
      %5636 = vmatpush1.bf16.msra.mxu0 %v5619
      %5637 = vmatprep.subr.bf16.mxu0 0
      %5638 = vmatpush2.bf16.msra.mxu0 0
      %5639 = vmatprep.subr.bf16.mxu0 0
      %5640 = vmatpush2.bf16.msra.mxu0 0
      %5641 = vmatprep.subr.bf16.mxu0 0
      %5642 = vmatpush2.bf16.msra.mxu0 0
      %5643 = vmatprep.subr.bf16.mxu0 0
      %5644 = vmatpush2.bf16.msra.mxu0 0
      %5645 = vmatprep.subr.bf16.mxu0 0
      %5646 = vmatpush2.bf16.msra.mxu0 0
      %5647 = vmatprep.subr.bf16.mxu0 0
      %5648 = vmatpush2.bf16.msra.mxu0 0
      %5649 = vmatprep.subr.bf16.mxu0 0
      %5650 = vmatpush2.bf16.msra.mxu0 0
      %5651 = vmatprep.subr.bf16.mxu0 0
      %5652 = vmatpush2.bf16.msra.mxu0 0
      %5653 = vmatprep.mubr.bf16.mxu0 0
      %5654 = vmatmul.mubr.bf16.gmra.mxu0 %v5607
      %v5655 = vpop.f32.mrf.mxu0
      %v5656 = vadd.f32 0.0, %v5655
      %v5657 = vpop.f32.mrf.mxu0
      %v5658 = vpop.f32.mrf.mxu0
      %v5659 = vadd.f32 0.0, %v5658
      %v5660 = vpop.f32.mrf.mxu0
      %5661 = vmatprep.mubr.bf16.mxu0 0
      %5662 = vmatmul.mubr.bf16.gmra.mxu0 %v5610
      %v5663 = vpop.f32.mrf.mxu0
      %v5664 = vadd.f32 0.0, %v5663
      %v5665 = vpop.f32.mrf.mxu0
      %v5666 = vpop.f32.mrf.mxu0
      %v5667 = vadd.f32 0.0, %v5666
      %v5668 = vpop.f32.mrf.mxu0
      %5669 = vmatprep.mubr.bf16.mxu0 0
      %5670 = vmatmul.mubr.bf16.gmra.mxu0 %v5613
      %v5671 = vpop.f32.mrf.mxu0
      %v5672 = vadd.f32 0.0, %v5671
      %v5673 = vpop.f32.mrf.mxu0
      %v5674 = vpop.f32.mrf.mxu0
      %v5675 = vadd.f32 0.0, %v5674
      %v5676 = vpop.f32.mrf.mxu0
      %5677 = vmatprep.mubr.bf16.mxu0 0
      %5678 = vmatmul.mubr.bf16.gmra.mxu0 %v5616
      %v5679 = vpop.f32.mrf.mxu0
      %v5680 = vadd.f32 0.0, %v5679
      %v5681 = vpop.f32.mrf.mxu0
      %v5682 = vpop.f32.mrf.mxu0
      %v5683 = vadd.f32 0.0, %v5682
      %v5684 = vpop.f32.mrf.mxu0
      %5685 = vdwg.mxu0
      %v5686 = vadd.f32 %v5435, %v5656
      %v5687 = vadd.f32 %v5438, %v5659
      %v5688 = vadd.f32 %v5443, %v5664
      %v5689 = vadd.f32 %v5446, %v5667
      %v5690 = vadd.f32 %v5451, %v5672
      %v5691 = vadd.f32 %v5454, %v5675
      %v5692 = vadd.f32 %v5459, %v5680
      %v5693 = vadd.f32 %v5462, %v5683
      %v5694 = vld [vmem:[%s1295] sm:$0xf]
      %v5695 = vld [vmem:[%s1295 + $0x8] sm:$0xf]
      %v5696 = vld [vmem:[%s1295 + $0x10] sm:$0xf]
      %v5697 = vld [vmem:[%s1295 + $0x18] sm:$0xf]
      %v5698 = vld [vmem:[%s1295 + $0x20] sm:$0xf]
      %v5699 = vld [vmem:[%s1295 + $0x28] sm:$0xf]
      %v5700 = vld [vmem:[%s1295 + $0x30] sm:$0xf]
      %v5701 = vld [vmem:[%s1295 + $0x38] sm:$0xf]
      %v5702 = vld [vmem:[%s717] sm:$0x3]
      %v5711 = vunpack.c.l.b16 %v5694
      %v5712 = vunpack.c.l.b16 %v5695
      %v5713 = vunpack.c.l.b16 %v5696
      %v5714 = vunpack.c.l.b16 %v5697
      %v5715 = vunpack.c.l.b16 %v5698
      %v5716 = vunpack.c.l.b16 %v5699
      %v5717 = vunpack.c.l.b16 %v5700
      %v5718 = vunpack.c.l.b16 %v5701
      %v5719 = vpack.c.b16 %v5712, %v5711
      %v5720 = vpack.c.b16 %v5714, %v5713
      %v5721 = vpack.c.b16 %v5716, %v5715
      %v5722 = vpack.c.b16 %v5718, %v5717
      %v5724 = vsel %vm293, %v5719, 0
      %v5727 = vsel %vm293, %v5720, 0
      %v5730 = vsel %vm293, %v5721, 0
      %v5733 = vsel %vm293, %v5722, 0
      %v5736 = vsel %vm306, %v5702, 0
      %5738 = vmatprep.subr.bf16.mxu0 0
      %5739 = vmatpush1.bf16.msra.mxu0 0
      %5740 = vmatprep.subr.bf16.mxu0 0
      %5741 = vmatpush1.bf16.msra.mxu0 0
      %5742 = vmatprep.subr.bf16.mxu0 0
      %5743 = vmatpush1.bf16.msra.mxu0 0
      %5744 = vmatprep.subr.bf16.mxu0 0
      %5745 = vmatpush1.bf16.msra.mxu0 0
      %5746 = vmatprep.subr.bf16.mxu0 0
      %5747 = vmatpush1.bf16.msra.mxu0 0
      %5748 = vmatprep.subr.bf16.mxu0 0
      %5749 = vmatpush1.bf16.msra.mxu0 0
      %5750 = vmatprep.subr.bf16.mxu0 0
      %5751 = vmatpush1.bf16.msra.mxu0 0
      %5752 = vmatprep.subr.bf16.mxu0 0
      %5753 = vmatpush1.bf16.msra.mxu0 %v5736
      %5754 = vmatprep.subr.bf16.mxu0 0
      %5755 = vmatpush2.bf16.msra.mxu0 0
      %5756 = vmatprep.subr.bf16.mxu0 0
      %5757 = vmatpush2.bf16.msra.mxu0 0
      %5758 = vmatprep.subr.bf16.mxu0 0
      %5759 = vmatpush2.bf16.msra.mxu0 0
      %5760 = vmatprep.subr.bf16.mxu0 0
      %5761 = vmatpush2.bf16.msra.mxu0 0
      %5762 = vmatprep.subr.bf16.mxu0 0
      %5763 = vmatpush2.bf16.msra.mxu0 0
      %5764 = vmatprep.subr.bf16.mxu0 0
      %5765 = vmatpush2.bf16.msra.mxu0 0
      %5766 = vmatprep.subr.bf16.mxu0 0
      %5767 = vmatpush2.bf16.msra.mxu0 0
      %5768 = vmatprep.subr.bf16.mxu0 0
      %5769 = vmatpush2.bf16.msra.mxu0 0
      %5770 = vmatprep.mubr.bf16.mxu0 0
      %5771 = vmatmul.mubr.bf16.gmra.mxu0 %v5724
      %v5772 = vpop.f32.mrf.mxu0
      %v5773 = vadd.f32 0.0, %v5772
      %v5774 = vpop.f32.mrf.mxu0
      %v5775 = vpop.f32.mrf.mxu0
      %v5776 = vadd.f32 0.0, %v5775
      %v5777 = vpop.f32.mrf.mxu0
      %5778 = vmatprep.mubr.bf16.mxu0 0
      %5779 = vmatmul.mubr.bf16.gmra.mxu0 %v5727
      %v5780 = vpop.f32.mrf.mxu0
      %v5781 = vadd.f32 0.0, %v5780
      %v5782 = vpop.f32.mrf.mxu0
      %v5783 = vpop.f32.mrf.mxu0
      %v5784 = vadd.f32 0.0, %v5783
      %v5785 = vpop.f32.mrf.mxu0
      %5786 = vmatprep.mubr.bf16.mxu0 0
      %5787 = vmatmul.mubr.bf16.gmra.mxu0 %v5730
      %v5788 = vpop.f32.mrf.mxu0
      %v5789 = vadd.f32 0.0, %v5788
      %v5790 = vpop.f32.mrf.mxu0
      %v5791 = vpop.f32.mrf.mxu0
      %v5792 = vadd.f32 0.0, %v5791
      %v5793 = vpop.f32.mrf.mxu0
      %5794 = vmatprep.mubr.bf16.mxu0 0
      %5795 = vmatmul.mubr.bf16.gmra.mxu0 %v5733
      %v5796 = vpop.f32.mrf.mxu0
      %v5797 = vadd.f32 0.0, %v5796
      %v5798 = vpop.f32.mrf.mxu0
      %v5799 = vpop.f32.mrf.mxu0
      %v5800 = vadd.f32 0.0, %v5799
      %v5801 = vpop.f32.mrf.mxu0
      %5802 = vdwg.mxu0
      %v5803 = vadd.f32 %v5686, %v5773
      %v5804 = vadd.f32 %v5687, %v5776
      %v5805 = vadd.f32 %v5688, %v5781
      %v5806 = vadd.f32 %v5689, %v5784
      %v5807 = vadd.f32 %v5690, %v5789
      %v5808 = vadd.f32 %v5691, %v5792
      %v5809 = vadd.f32 %v5692, %v5797
      %v5810 = vadd.f32 %v5693, %v5800
      %v5811 = vld [vmem:[%s1176] sm:$0xf]
      %v5812 = vld [vmem:[%s1176 + $0x4] sm:$0x1]
      %v5813 = vld [vmem:[%s1176 + $0x8] sm:$0xf]
      %v5814 = vld [vmem:[%s1176 + $0xc] sm:$0x1]
      %v5815 = vld [vmem:[%s1176 + $0x10] sm:$0xf]
      %v5816 = vld [vmem:[%s1176 + $0x14] sm:$0x1]
      %v5817 = vld [vmem:[%s1176 + $0x18] sm:$0xf]
      %v5818 = vld [vmem:[%s1176 + $0x1c] sm:$0x1]
      %v5819 = vld [vmem:[%s1176 + $0x20] sm:$0xf]
      %v5820 = vld [vmem:[%s1176 + $0x24] sm:$0x1]
      %v5821 = vld [vmem:[%s1176 + $0x28] sm:$0xf]
      %v5822 = vld [vmem:[%s1176 + $0x2c] sm:$0x1]
      %v5823 = vld [vmem:[%s1176 + $0x30] sm:$0xf]
      %v5824 = vld [vmem:[%s1176 + $0x34] sm:$0x1]
      %v5825 = vld [vmem:[%s1176 + $0x38] sm:$0xf]
      %v5826 = vld [vmem:[%s1176 + $0x3c] sm:$0x1]
      %v5828 = vshrl.u32 %v5811, 16
      %v5830 = vrot.slane %v5828, 4
      %v5831 = vshll.u32 %v5811, 16
      %v5833 = vrot.slane %v5831, 5
      %v5834 = vor.u32 %v5830, %v5833
      %v5835 = vrot.slane %v5834, 4
      %v5837 = vshll.u32 %v5812, 16
      %v5839 = vrot.slane %v5837, 5
      %v5840 = vsel %vm493, %v5835, %v5839
      %v5842 = vshrl.u32 %v5813, 16
      %v5844 = vrot.slane %v5842, 4
      %v5845 = vshll.u32 %v5813, 16
      %v5847 = vrot.slane %v5845, 5
      %v5848 = vor.u32 %v5844, %v5847
      %v5849 = vrot.slane %v5848, 4
      %v5851 = vshll.u32 %v5814, 16
      %v5853 = vrot.slane %v5851, 5
      %v5854 = vsel %vm493, %v5849, %v5853
      %v5856 = vshrl.u32 %v5815, 16
      %v5858 = vrot.slane %v5856, 4
      %v5859 = vshll.u32 %v5815, 16
      %v5861 = vrot.slane %v5859, 5
      %v5862 = vor.u32 %v5858, %v5861
      %v5863 = vrot.slane %v5862, 4
      %v5865 = vshll.u32 %v5816, 16
      %v5867 = vrot.slane %v5865, 5
      %v5868 = vsel %vm493, %v5863, %v5867
      %v5870 = vshrl.u32 %v5817, 16
      %v5872 = vrot.slane %v5870, 4
      %v5873 = vshll.u32 %v5817, 16
      %v5875 = vrot.slane %v5873, 5
      %v5876 = vor.u32 %v5872, %v5875
      %v5877 = vrot.slane %v5876, 4
      %v5879 = vshll.u32 %v5818, 16
      %v5881 = vrot.slane %v5879, 5
      %v5882 = vsel %vm493, %v5877, %v5881
      %v5884 = vshrl.u32 %v5819, 16
      %v5886 = vrot.slane %v5884, 4
      %v5887 = vshll.u32 %v5819, 16
      %v5889 = vrot.slane %v5887, 5
      %v5890 = vor.u32 %v5886, %v5889
      %v5891 = vrot.slane %v5890, 4
      %v5893 = vshll.u32 %v5820, 16
      %v5895 = vrot.slane %v5893, 5
      %v5896 = vsel %vm493, %v5891, %v5895
      %v5898 = vshrl.u32 %v5821, 16
      %v5900 = vrot.slane %v5898, 4
      %v5901 = vshll.u32 %v5821, 16
      %v5903 = vrot.slane %v5901, 5
      %v5904 = vor.u32 %v5900, %v5903
      %v5905 = vrot.slane %v5904, 4
      %v5907 = vshll.u32 %v5822, 16
      %v5909 = vrot.slane %v5907, 5
      %v5910 = vsel %vm493, %v5905, %v5909
      %v5912 = vshrl.u32 %v5823, 16
      %v5914 = vrot.slane %v5912, 4
      %v5915 = vshll.u32 %v5823, 16
      %v5917 = vrot.slane %v5915, 5
      %v5918 = vor.u32 %v5914, %v5917
      %v5919 = vrot.slane %v5918, 4
      %v5921 = vshll.u32 %v5824, 16
      %v5923 = vrot.slane %v5921, 5
      %v5924 = vsel %vm493, %v5919, %v5923
      %v5926 = vshrl.u32 %v5825, 16
      %v5928 = vrot.slane %v5926, 4
      %v5929 = vshll.u32 %v5825, 16
      %v5931 = vrot.slane %v5929, 5
      %v5932 = vor.u32 %v5928, %v5931
      %v5933 = vrot.slane %v5932, 4
      %v5935 = vshll.u32 %v5826, 16
      %v5937 = vrot.slane %v5935, 5
      %v5938 = vsel %vm493, %v5933, %v5937
      %v5939 = vld [vmem:[%s836] sm:$0x3]
      %v5940 = vunpack.c.l.b16 %v5840
      %v5941 = vunpack.c.l.b16 %v5854
      %v5942 = vunpack.c.l.b16 %v5868
      %v5943 = vunpack.c.l.b16 %v5882
      %v5944 = vunpack.c.l.b16 %v5896
      %v5945 = vunpack.c.l.b16 %v5910
      %v5946 = vunpack.c.l.b16 %v5924
      %v5947 = vunpack.c.l.b16 %v5938
      %v5948 = vpack.c.b16 %v5941, %v5940
      %v5949 = vpack.c.b16 %v5943, %v5942
      %v5950 = vpack.c.b16 %v5945, %v5944
      %v5951 = vpack.c.b16 %v5947, %v5946
      %v5953 = vsel %vm293, %v5948, 0
      %v5956 = vsel %vm293, %v5949, 0
      %v5959 = vsel %vm293, %v5950, 0
      %v5962 = vsel %vm293, %v5951, 0
      %v5965 = vsel %vm306, %v5939, 0
      %5967 = vmatprep.subr.bf16.mxu0 0
      %5968 = vmatpush1.bf16.msra.mxu0 0
      %5969 = vmatprep.subr.bf16.mxu0 0
      %5970 = vmatpush1.bf16.msra.mxu0 0
      %5971 = vmatprep.subr.bf16.mxu0 0
      %5972 = vmatpush1.bf16.msra.mxu0 0
      %5973 = vmatprep.subr.bf16.mxu0 0
      %5974 = vmatpush1.bf16.msra.mxu0 0
      %5975 = vmatprep.subr.bf16.mxu0 0
      %5976 = vmatpush1.bf16.msra.mxu0 0
      %5977 = vmatprep.subr.bf16.mxu0 0
      %5978 = vmatpush1.bf16.msra.mxu0 0
      %5979 = vmatprep.subr.bf16.mxu0 0
      %5980 = vmatpush1.bf16.msra.mxu0 0
      %5981 = vmatprep.subr.bf16.mxu0 0
      %5982 = vmatpush1.bf16.msra.mxu0 %v5965
      %5983 = vmatprep.subr.bf16.mxu0 0
      %5984 = vmatpush2.bf16.msra.mxu0 0
      %5985 = vmatprep.subr.bf16.mxu0 0
      %5986 = vmatpush2.bf16.msra.mxu0 0
      %5987 = vmatprep.subr.bf16.mxu0 0
      %5988 = vmatpush2.bf16.msra.mxu0 0
      %5989 = vmatprep.subr.bf16.mxu0 0
      %5990 = vmatpush2.bf16.msra.mxu0 0
      %5991 = vmatprep.subr.bf16.mxu0 0
      %5992 = vmatpush2.bf16.msra.mxu0 0
      %5993 = vmatprep.subr.bf16.mxu0 0
      %5994 = vmatpush2.bf16.msra.mxu0 0
      %5995 = vmatprep.subr.bf16.mxu0 0
      %5996 = vmatpush2.bf16.msra.mxu0 0
      %5997 = vmatprep.subr.bf16.mxu0 0
      %5998 = vmatpush2.bf16.msra.mxu0 0
      %5999 = vmatprep.mubr.bf16.mxu0 0
      %6000 = vmatmul.mubr.bf16.gmra.mxu0 %v5953
      %v6001 = vpop.f32.mrf.mxu0
      %v6002 = vadd.f32 0.0, %v6001
      %v6003 = vpop.f32.mrf.mxu0
      %v6004 = vpop.f32.mrf.mxu0
      %v6005 = vadd.f32 0.0, %v6004
      %v6006 = vpop.f32.mrf.mxu0
      %6007 = vmatprep.mubr.bf16.mxu0 0
      %6008 = vmatmul.mubr.bf16.gmra.mxu0 %v5956
      %v6009 = vpop.f32.mrf.mxu0
      %v6010 = vadd.f32 0.0, %v6009
      %v6011 = vpop.f32.mrf.mxu0
      %v6012 = vpop.f32.mrf.mxu0
      %v6013 = vadd.f32 0.0, %v6012
      %v6014 = vpop.f32.mrf.mxu0
      %6015 = vmatprep.mubr.bf16.mxu0 0
      %6016 = vmatmul.mubr.bf16.gmra.mxu0 %v5959
      %v6017 = vpop.f32.mrf.mxu0
      %v6018 = vadd.f32 0.0, %v6017
      %v6019 = vpop.f32.mrf.mxu0
      %v6020 = vpop.f32.mrf.mxu0
      %v6021 = vadd.f32 0.0, %v6020
      %v6022 = vpop.f32.mrf.mxu0
      %6023 = vmatprep.mubr.bf16.mxu0 0
      %6024 = vmatmul.mubr.bf16.gmra.mxu0 %v5962
      %v6025 = vpop.f32.mrf.mxu0
      %v6026 = vadd.f32 0.0, %v6025
      %v6027 = vpop.f32.mrf.mxu0
      %v6028 = vpop.f32.mrf.mxu0
      %v6029 = vadd.f32 0.0, %v6028
      %v6030 = vpop.f32.mrf.mxu0
      %6031 = vdwg.mxu0
      %v6032 = vadd.f32 %v5803, %v6002
      %v6033 = vadd.f32 %v5804, %v6005
      %v6034 = vadd.f32 %v5805, %v6010
      %v6035 = vadd.f32 %v5806, %v6013
      %v6036 = vadd.f32 %v5807, %v6018
      %v6037 = vadd.f32 %v5808, %v6021
      %v6038 = vadd.f32 %v5809, %v6026
      %v6039 = vadd.f32 %v5810, %v6029
      %v6040 = vld [vmem:[%s1295] sm:$0xf]
      %v6041 = vld [vmem:[%s1295 + $0x4] sm:$0x1]
      %v6042 = vld [vmem:[%s1295 + $0x8] sm:$0xf]
      %v6043 = vld [vmem:[%s1295 + $0xc] sm:$0x1]
      %v6044 = vld [vmem:[%s1295 + $0x10] sm:$0xf]
      %v6045 = vld [vmem:[%s1295 + $0x14] sm:$0x1]
      %v6046 = vld [vmem:[%s1295 + $0x18] sm:$0xf]
      %v6047 = vld [vmem:[%s1295 + $0x1c] sm:$0x1]
      %v6048 = vld [vmem:[%s1295 + $0x20] sm:$0xf]
      %v6049 = vld [vmem:[%s1295 + $0x24] sm:$0x1]
      %v6050 = vld [vmem:[%s1295 + $0x28] sm:$0xf]
      %v6051 = vld [vmem:[%s1295 + $0x2c] sm:$0x1]
      %v6052 = vld [vmem:[%s1295 + $0x30] sm:$0xf]
      %v6053 = vld [vmem:[%s1295 + $0x34] sm:$0x1]
      %v6054 = vld [vmem:[%s1295 + $0x38] sm:$0xf]
      %v6055 = vld [vmem:[%s1295 + $0x3c] sm:$0x1]
      %v6057 = vshrl.u32 %v6040, 16
      %v6059 = vrot.slane %v6057, 4
      %v6060 = vshll.u32 %v6040, 16
      %v6062 = vrot.slane %v6060, 5
      %v6063 = vor.u32 %v6059, %v6062
      %v6064 = vrot.slane %v6063, 4
      %v6066 = vshll.u32 %v6041, 16
      %v6068 = vrot.slane %v6066, 5
      %v6069 = vsel %vm493, %v6064, %v6068
      %v6071 = vshrl.u32 %v6042, 16
      %v6073 = vrot.slane %v6071, 4
      %v6074 = vshll.u32 %v6042, 16
      %v6076 = vrot.slane %v6074, 5
      %v6077 = vor.u32 %v6073, %v6076
      %v6078 = vrot.slane %v6077, 4
      %v6080 = vshll.u32 %v6043, 16
      %v6082 = vrot.slane %v6080, 5
      %v6083 = vsel %vm493, %v6078, %v6082
      %v6085 = vshrl.u32 %v6044, 16
      %v6087 = vrot.slane %v6085, 4
      %v6088 = vshll.u32 %v6044, 16
      %v6090 = vrot.slane %v6088, 5
      %v6091 = vor.u32 %v6087, %v6090
      %v6092 = vrot.slane %v6091, 4
      %v6094 = vshll.u32 %v6045, 16
      %v6096 = vrot.slane %v6094, 5
      %v6097 = vsel %vm493, %v6092, %v6096
      %v6099 = vshrl.u32 %v6046, 16
      %v6101 = vrot.slane %v6099, 4
      %v6102 = vshll.u32 %v6046, 16
      %v6104 = vrot.slane %v6102, 5
      %v6105 = vor.u32 %v6101, %v6104
      %v6106 = vrot.slane %v6105, 4
      %v6108 = vshll.u32 %v6047, 16
      %v6110 = vrot.slane %v6108, 5
      %v6111 = vsel %vm493, %v6106, %v6110
      %v6113 = vshrl.u32 %v6048, 16
      %v6115 = vrot.slane %v6113, 4
      %v6116 = vshll.u32 %v6048, 16
      %v6118 = vrot.slane %v6116, 5
      %v6119 = vor.u32 %v6115, %v6118
      %v6120 = vrot.slane %v6119, 4
      %v6122 = vshll.u32 %v6049, 16
      %v6124 = vrot.slane %v6122, 5
      %v6125 = vsel %vm493, %v6120, %v6124
      %v6127 = vshrl.u32 %v6050, 16
      %v6129 = vrot.slane %v6127, 4
      %v6130 = vshll.u32 %v6050, 16
      %v6132 = vrot.slane %v6130, 5
      %v6133 = vor.u32 %v6129, %v6132
      %v6134 = vrot.slane %v6133, 4
      %v6136 = vshll.u32 %v6051, 16
      %v6138 = vrot.slane %v6136, 5
      %v6139 = vsel %vm493, %v6134, %v6138
      %v6141 = vshrl.u32 %v6052, 16
      %v6143 = vrot.slane %v6141, 4
      %v6144 = vshll.u32 %v6052, 16
      %v6146 = vrot.slane %v6144, 5
      %v6147 = vor.u32 %v6143, %v6146
      %v6148 = vrot.slane %v6147, 4
      %v6150 = vshll.u32 %v6053, 16
      %v6152 = vrot.slane %v6150, 5
      %v6153 = vsel %vm493, %v6148, %v6152
      %v6155 = vshrl.u32 %v6054, 16
      %v6157 = vrot.slane %v6155, 4
      %v6158 = vshll.u32 %v6054, 16
      %v6160 = vrot.slane %v6158, 5
      %v6161 = vor.u32 %v6157, %v6160
      %v6162 = vrot.slane %v6161, 4
      %v6164 = vshll.u32 %v6055, 16
      %v6166 = vrot.slane %v6164, 5
      %v6167 = vsel %vm493, %v6162, %v6166
      %v6168 = vld [vmem:[%s1074] sm:$0x3]
      %v6169 = vunpack.c.l.b16 %v6069
      %v6170 = vunpack.c.l.b16 %v6083
      %v6171 = vunpack.c.l.b16 %v6097
      %v6172 = vunpack.c.l.b16 %v6111
      %v6173 = vunpack.c.l.b16 %v6125
      %v6174 = vunpack.c.l.b16 %v6139
      %v6175 = vunpack.c.l.b16 %v6153
      %v6176 = vunpack.c.l.b16 %v6167
      %v6177 = vpack.c.b16 %v6170, %v6169
      %v6178 = vpack.c.b16 %v6172, %v6171
      %v6179 = vpack.c.b16 %v6174, %v6173
      %v6180 = vpack.c.b16 %v6176, %v6175
      %v6182 = vsel %vm293, %v6177, 0
      %v6185 = vsel %vm293, %v6178, 0
      %v6188 = vsel %vm293, %v6179, 0
      %v6191 = vsel %vm293, %v6180, 0
      %v6194 = vsel %vm306, %v6168, 0
      %6196 = vmatprep.subr.bf16.mxu0 0
      %6197 = vmatpush1.bf16.msra.mxu0 0
      %6198 = vmatprep.subr.bf16.mxu0 0
      %6199 = vmatpush1.bf16.msra.mxu0 0
      %6200 = vmatprep.subr.bf16.mxu0 0
      %6201 = vmatpush1.bf16.msra.mxu0 0
      %6202 = vmatprep.subr.bf16.mxu0 0
      %6203 = vmatpush1.bf16.msra.mxu0 0
      %6204 = vmatprep.subr.bf16.mxu0 0
      %6205 = vmatpush1.bf16.msra.mxu0 0
      %6206 = vmatprep.subr.bf16.mxu0 0
      %6207 = vmatpush1.bf16.msra.mxu0 0
      %6208 = vmatprep.subr.bf16.mxu0 0
      %6209 = vmatpush1.bf16.msra.mxu0 0
      %6210 = vmatprep.subr.bf16.mxu0 0
      %6211 = vmatpush1.bf16.msra.mxu0 %v6194
      %6212 = vmatprep.subr.bf16.mxu0 0
      %6213 = vmatpush2.bf16.msra.mxu0 0
      %6214 = vmatprep.subr.bf16.mxu0 0
      %6215 = vmatpush2.bf16.msra.mxu0 0
      %6216 = vmatprep.subr.bf16.mxu0 0
      %6217 = vmatpush2.bf16.msra.mxu0 0
      %6218 = vmatprep.subr.bf16.mxu0 0
      %6219 = vmatpush2.bf16.msra.mxu0 0
      %6220 = vmatprep.subr.bf16.mxu0 0
      %6221 = vmatpush2.bf16.msra.mxu0 0
      %6222 = vmatprep.subr.bf16.mxu0 0
      %6223 = vmatpush2.bf16.msra.mxu0 0
      %6224 = vmatprep.subr.bf16.mxu0 0
      %6225 = vmatpush2.bf16.msra.mxu0 0
      %6226 = vmatprep.subr.bf16.mxu0 0
      %6227 = vmatpush2.bf16.msra.mxu0 0
      %6228 = vmatprep.mubr.bf16.mxu0 0
      %6229 = vmatmul.mubr.bf16.gmra.mxu0 %v6182
      %v6230 = vpop.f32.mrf.mxu0
      %v6231 = vadd.f32 0.0, %v6230
      %v6232 = vpop.f32.mrf.mxu0
      %v6233 = vpop.f32.mrf.mxu0
      %v6234 = vadd.f32 0.0, %v6233
      %v6235 = vpop.f32.mrf.mxu0
      %6236 = vmatprep.mubr.bf16.mxu0 0
      %6237 = vmatmul.mubr.bf16.gmra.mxu0 %v6185
      %v6238 = vpop.f32.mrf.mxu0
      %v6239 = vadd.f32 0.0, %v6238
      %v6240 = vpop.f32.mrf.mxu0
      %v6241 = vpop.f32.mrf.mxu0
      %v6242 = vadd.f32 0.0, %v6241
      %v6243 = vpop.f32.mrf.mxu0
      %6244 = vmatprep.mubr.bf16.mxu0 0
      %6245 = vmatmul.mubr.bf16.gmra.mxu0 %v6188
      %v6246 = vpop.f32.mrf.mxu0
      %v6247 = vadd.f32 0.0, %v6246
      %v6248 = vpop.f32.mrf.mxu0
      %v6249 = vpop.f32.mrf.mxu0
      %v6250 = vadd.f32 0.0, %v6249
      %v6251 = vpop.f32.mrf.mxu0
      %6252 = vmatprep.mubr.bf16.mxu0 0
      %6253 = vmatmul.mubr.bf16.gmra.mxu0 %v6191
      %v6254 = vpop.f32.mrf.mxu0
      %v6255 = vadd.f32 0.0, %v6254
      %v6256 = vpop.f32.mrf.mxu0
      %v6257 = vpop.f32.mrf.mxu0
      %v6258 = vadd.f32 0.0, %v6257
      %v6259 = vpop.f32.mrf.mxu0
      %6260 = vdwg.mxu0
      %v6261 = vadd.f32 %v6032, %v6231
      %v6262 = vadd.f32 %v6033, %v6234
      %v6263 = vadd.f32 %v6034, %v6239
      %v6264 = vadd.f32 %v6035, %v6242
      %v6265 = vadd.f32 %v6036, %v6247
      %v6266 = vadd.f32 %v6037, %v6250
      %v6267 = vadd.f32 %v6038, %v6255
      %v6268 = vadd.f32 %v6039, %v6258
      %v6269 = vld [vmem:[%s4692] sm:$0xf]
      %v6270 = vld [vmem:[%s4692 + $0x8] sm:$0xf]
      %v6271 = vld [vmem:[%s4692 + $0x10] sm:$0xf]
      %v6272 = vld [vmem:[%s4692 + $0x18] sm:$0xf]
      %v6273 = vld [vmem:[%s4692 + $0x20] sm:$0xf]
      %v6274 = vld [vmem:[%s4692 + $0x28] sm:$0xf]
      %v6275 = vld [vmem:[%s4692 + $0x30] sm:$0xf]
      %v6276 = vld [vmem:[%s4692 + $0x38] sm:$0xf]
      %v6277 = vld [vmem:[%s1185] sm:$0x3]
      %v6286 = vunpack.c.l.b16 %v6269
      %v6287 = vunpack.c.l.b16 %v6270
      %v6288 = vunpack.c.l.b16 %v6271
      %v6289 = vunpack.c.l.b16 %v6272
      %v6290 = vunpack.c.l.b16 %v6273
      %v6291 = vunpack.c.l.b16 %v6274
      %v6292 = vunpack.c.l.b16 %v6275
      %v6293 = vunpack.c.l.b16 %v6276
      %v6294 = vpack.c.b16 %v6287, %v6286
      %v6295 = vpack.c.b16 %v6289, %v6288
      %v6296 = vpack.c.b16 %v6291, %v6290
      %v6297 = vpack.c.b16 %v6293, %v6292
      %v6299 = vsel %vm293, %v6294, 0
      %v6302 = vsel %vm293, %v6295, 0
      %v6305 = vsel %vm293, %v6296, 0
      %v6308 = vsel %vm293, %v6297, 0
      %v6311 = vsel %vm306, %v6277, 0
      %6313 = vmatprep.subr.bf16.mxu0 0
      %6314 = vmatpush1.bf16.msra.mxu0 0
      %6315 = vmatprep.subr.bf16.mxu0 0
      %6316 = vmatpush1.bf16.msra.mxu0 0
      %6317 = vmatprep.subr.bf16.mxu0 0
      %6318 = vmatpush1.bf16.msra.mxu0 0
      %6319 = vmatprep.subr.bf16.mxu0 0
      %6320 = vmatpush1.bf16.msra.mxu0 0
      %6321 = vmatprep.subr.bf16.mxu0 0
      %6322 = vmatpush1.bf16.msra.mxu0 0
      %6323 = vmatprep.subr.bf16.mxu0 0
      %6324 = vmatpush1.bf16.msra.mxu0 0
      %6325 = vmatprep.subr.bf16.mxu0 0
      %6326 = vmatpush1.bf16.msra.mxu0 0
      %6327 = vmatprep.subr.bf16.mxu0 0
      %6328 = vmatpush1.bf16.msra.mxu0 %v6311
      %6329 = vmatprep.subr.bf16.mxu0 0
      %6330 = vmatpush2.bf16.msra.mxu0 0
      %6331 = vmatprep.subr.bf16.mxu0 0
      %6332 = vmatpush2.bf16.msra.mxu0 0
      %6333 = vmatprep.subr.bf16.mxu0 0
      %6334 = vmatpush2.bf16.msra.mxu0 0
      %6335 = vmatprep.subr.bf16.mxu0 0
      %6336 = vmatpush2.bf16.msra.mxu0 0
      %6337 = vmatprep.subr.bf16.mxu0 0
      %6338 = vmatpush2.bf16.msra.mxu0 0
      %6339 = vmatprep.subr.bf16.mxu0 0
      %6340 = vmatpush2.bf16.msra.mxu0 0
      %6341 = vmatprep.subr.bf16.mxu0 0
      %6342 = vmatpush2.bf16.msra.mxu0 0
      %6343 = vmatprep.subr.bf16.mxu0 0
      %6344 = vmatpush2.bf16.msra.mxu0 0
      %6345 = vmatprep.mubr.bf16.mxu0 0
      %6346 = vmatmul.mubr.bf16.gmra.mxu0 %v6299
      %v6347 = vpop.f32.mrf.mxu0
      %v6348 = vadd.f32 0.0, %v6347
      %v6349 = vpop.f32.mrf.mxu0
      %v6350 = vpop.f32.mrf.mxu0
      %v6351 = vadd.f32 0.0, %v6350
      %v6352 = vpop.f32.mrf.mxu0
      %6353 = vmatprep.mubr.bf16.mxu0 0
      %6354 = vmatmul.mubr.bf16.gmra.mxu0 %v6302
      %v6355 = vpop.f32.mrf.mxu0
      %v6356 = vadd.f32 0.0, %v6355
      %v6357 = vpop.f32.mrf.mxu0
      %v6358 = vpop.f32.mrf.mxu0
      %v6359 = vadd.f32 0.0, %v6358
      %v6360 = vpop.f32.mrf.mxu0
      %6361 = vmatprep.mubr.bf16.mxu0 0
      %6362 = vmatmul.mubr.bf16.gmra.mxu0 %v6305
      %v6363 = vpop.f32.mrf.mxu0
      %v6364 = vadd.f32 0.0, %v6363
      %v6365 = vpop.f32.mrf.mxu0
      %v6366 = vpop.f32.mrf.mxu0
      %v6367 = vadd.f32 0.0, %v6366
      %v6368 = vpop.f32.mrf.mxu0
      %6369 = vmatprep.mubr.bf16.mxu0 0
      %6370 = vmatmul.mubr.bf16.gmra.mxu0 %v6308
      %v6371 = vpop.f32.mrf.mxu0
      %v6372 = vadd.f32 0.0, %v6371
      %v6373 = vpop.f32.mrf.mxu0
      %v6374 = vpop.f32.mrf.mxu0
      %v6375 = vadd.f32 0.0, %v6374
      %v6376 = vpop.f32.mrf.mxu0
      %6377 = vdwg.mxu0
      %v6378 = vadd.f32 %v6261, %v6348
      %v6379 = vadd.f32 %v6262, %v6351
      %v6380 = vadd.f32 %v6263, %v6356
      %v6381 = vadd.f32 %v6264, %v6359
      %v6382 = vadd.f32 %v6265, %v6364
      %v6383 = vadd.f32 %v6266, %v6367
      %v6384 = vadd.f32 %v6267, %v6372
      %v6385 = vadd.f32 %v6268, %v6375
      %v6386 = vld [vmem:[%s4574] sm:$0xf]
      %v6387 = vld [vmem:[%s4574 + $0x4] sm:$0x1]
      %v6388 = vld [vmem:[%s4574 + $0x8] sm:$0xf]
      %v6389 = vld [vmem:[%s4574 + $0xc] sm:$0x1]
      %v6390 = vld [vmem:[%s4574 + $0x10] sm:$0xf]
      %v6391 = vld [vmem:[%s4574 + $0x14] sm:$0x1]
      %v6392 = vld [vmem:[%s4574 + $0x18] sm:$0xf]
      %v6393 = vld [vmem:[%s4574 + $0x1c] sm:$0x1]
      %v6394 = vld [vmem:[%s4574 + $0x20] sm:$0xf]
      %v6395 = vld [vmem:[%s4574 + $0x24] sm:$0x1]
      %v6396 = vld [vmem:[%s4574 + $0x28] sm:$0xf]
      %v6397 = vld [vmem:[%s4574 + $0x2c] sm:$0x1]
      %v6398 = vld [vmem:[%s4574 + $0x30] sm:$0xf]
      %v6399 = vld [vmem:[%s4574 + $0x34] sm:$0x1]
      %v6400 = vld [vmem:[%s4574 + $0x38] sm:$0xf]
      %v6401 = vld [vmem:[%s4574 + $0x3c] sm:$0x1]
      %v6403 = vshrl.u32 %v6386, 16
      %v6405 = vrot.slane %v6403, 4
      %v6406 = vshll.u32 %v6386, 16
      %v6408 = vrot.slane %v6406, 5
      %v6409 = vor.u32 %v6405, %v6408
      %v6410 = vrot.slane %v6409, 4
      %v6412 = vshll.u32 %v6387, 16
      %v6414 = vrot.slane %v6412, 5
      %v6415 = vsel %vm493, %v6410, %v6414
      %v6417 = vshrl.u32 %v6388, 16
      %v6419 = vrot.slane %v6417, 4
      %v6420 = vshll.u32 %v6388, 16
      %v6422 = vrot.slane %v6420, 5
      %v6423 = vor.u32 %v6419, %v6422
      %v6424 = vrot.slane %v6423, 4
      %v6426 = vshll.u32 %v6389, 16
      %v6428 = vrot.slane %v6426, 5
      %v6429 = vsel %vm493, %v6424, %v6428
      %v6431 = vshrl.u32 %v6390, 16
      %v6433 = vrot.slane %v6431, 4
      %v6434 = vshll.u32 %v6390, 16
      %v6436 = vrot.slane %v6434, 5
      %v6437 = vor.u32 %v6433, %v6436
      %v6438 = vrot.slane %v6437, 4
      %v6440 = vshll.u32 %v6391, 16
      %v6442 = vrot.slane %v6440, 5
      %v6443 = vsel %vm493, %v6438, %v6442
      %v6445 = vshrl.u32 %v6392, 16
      %v6447 = vrot.slane %v6445, 4
      %v6448 = vshll.u32 %v6392, 16
      %v6450 = vrot.slane %v6448, 5
      %v6451 = vor.u32 %v6447, %v6450
      %v6452 = vrot.slane %v6451, 4
      %v6454 = vshll.u32 %v6393, 16
      %v6456 = vrot.slane %v6454, 5
      %v6457 = vsel %vm493, %v6452, %v6456
      %v6459 = vshrl.u32 %v6394, 16
      %v6461 = vrot.slane %v6459, 4
      %v6462 = vshll.u32 %v6394, 16
      %v6464 = vrot.slane %v6462, 5
      %v6465 = vor.u32 %v6461, %v6464
      %v6466 = vrot.slane %v6465, 4
      %v6468 = vshll.u32 %v6395, 16
      %v6470 = vrot.slane %v6468, 5
      %v6471 = vsel %vm493, %v6466, %v6470
      %v6473 = vshrl.u32 %v6396, 16
      %v6475 = vrot.slane %v6473, 4
      %v6476 = vshll.u32 %v6396, 16
      %v6478 = vrot.slane %v6476, 5
      %v6479 = vor.u32 %v6475, %v6478
      %v6480 = vrot.slane %v6479, 4
      %v6482 = vshll.u32 %v6397, 16
      %v6484 = vrot.slane %v6482, 5
      %v6485 = vsel %vm493, %v6480, %v6484
      %v6487 = vshrl.u32 %v6398, 16
      %v6489 = vrot.slane %v6487, 4
      %v6490 = vshll.u32 %v6398, 16
      %v6492 = vrot.slane %v6490, 5
      %v6493 = vor.u32 %v6489, %v6492
      %v6494 = vrot.slane %v6493, 4
      %v6496 = vshll.u32 %v6399, 16
      %v6498 = vrot.slane %v6496, 5
      %v6499 = vsel %vm493, %v6494, %v6498
      %v6501 = vshrl.u32 %v6400, 16
      %v6503 = vrot.slane %v6501, 4
      %v6504 = vshll.u32 %v6400, 16
      %v6506 = vrot.slane %v6504, 5
      %v6507 = vor.u32 %v6503, %v6506
      %v6508 = vrot.slane %v6507, 4
      %v6510 = vshll.u32 %v6401, 16
      %v6512 = vrot.slane %v6510, 5
      %v6513 = vsel %vm493, %v6508, %v6512
      %v6514 = vld [vmem:[%s1304] sm:$0x3]
      %v6515 = vunpack.c.l.b16 %v6415
      %v6516 = vunpack.c.l.b16 %v6429
      %v6517 = vunpack.c.l.b16 %v6443
      %v6518 = vunpack.c.l.b16 %v6457
      %v6519 = vunpack.c.l.b16 %v6471
      %v6520 = vunpack.c.l.b16 %v6485
      %v6521 = vunpack.c.l.b16 %v6499
      %v6522 = vunpack.c.l.b16 %v6513
      %v6523 = vpack.c.b16 %v6516, %v6515
      %v6524 = vpack.c.b16 %v6518, %v6517
      %v6525 = vpack.c.b16 %v6520, %v6519
      %v6526 = vpack.c.b16 %v6522, %v6521
      %v6528 = vsel %vm293, %v6523, 0
      %v6531 = vsel %vm293, %v6524, 0
      %v6534 = vsel %vm293, %v6525, 0
      %v6537 = vsel %vm293, %v6526, 0
      %v6540 = vsel %vm306, %v6514, 0
      %6542 = vmatprep.subr.bf16.mxu0 0
      %6543 = vmatpush1.bf16.msra.mxu0 0
      %6544 = vmatprep.subr.bf16.mxu0 0
      %6545 = vmatpush1.bf16.msra.mxu0 0
      %6546 = vmatprep.subr.bf16.mxu0 0
      %6547 = vmatpush1.bf16.msra.mxu0 0
      %6548 = vmatprep.subr.bf16.mxu0 0
      %6549 = vmatpush1.bf16.msra.mxu0 0
      %6550 = vmatprep.subr.bf16.mxu0 0
      %6551 = vmatpush1.bf16.msra.mxu0 0
      %6552 = vmatprep.subr.bf16.mxu0 0
      %6553 = vmatpush1.bf16.msra.mxu0 0
      %6554 = vmatprep.subr.bf16.mxu0 0
      %6555 = vmatpush1.bf16.msra.mxu0 0
      %6556 = vmatprep.subr.bf16.mxu0 0
      %6557 = vmatpush1.bf16.msra.mxu0 %v6540
      %6558 = vmatprep.subr.bf16.mxu0 0
      %6559 = vmatpush2.bf16.msra.mxu0 0
      %6560 = vmatprep.subr.bf16.mxu0 0
      %6561 = vmatpush2.bf16.msra.mxu0 0
      %6562 = vmatprep.subr.bf16.mxu0 0
      %6563 = vmatpush2.bf16.msra.mxu0 0
      %6564 = vmatprep.subr.bf16.mxu0 0
      %6565 = vmatpush2.bf16.msra.mxu0 0
      %6566 = vmatprep.subr.bf16.mxu0 0
      %6567 = vmatpush2.bf16.msra.mxu0 0
      %6568 = vmatprep.subr.bf16.mxu0 0
      %6569 = vmatpush2.bf16.msra.mxu0 0
      %6570 = vmatprep.subr.bf16.mxu0 0
      %6571 = vmatpush2.bf16.msra.mxu0 0
      %6572 = vmatprep.subr.bf16.mxu0 0
      %6573 = vmatpush2.bf16.msra.mxu0 0
      %6574 = vmatprep.mubr.bf16.mxu0 0
      %6575 = vmatmul.mubr.bf16.gmra.mxu0 %v6528
      %v6576 = vpop.f32.mrf.mxu0
      %v6577 = vadd.f32 0.0, %v6576
      %v6578 = vpop.f32.mrf.mxu0
      %v6579 = vpop.f32.mrf.mxu0
      %v6580 = vadd.f32 0.0, %v6579
      %v6581 = vpop.f32.mrf.mxu0
      %6582 = vmatprep.mubr.bf16.mxu0 0
      %6583 = vmatmul.mubr.bf16.gmra.mxu0 %v6531
      %v6584 = vpop.f32.mrf.mxu0
      %v6585 = vadd.f32 0.0, %v6584
      %v6586 = vpop.f32.mrf.mxu0
      %v6587 = vpop.f32.mrf.mxu0
      %v6588 = vadd.f32 0.0, %v6587
      %v6589 = vpop.f32.mrf.mxu0
      %6590 = vmatprep.mubr.bf16.mxu0 0
      %6591 = vmatmul.mubr.bf16.gmra.mxu0 %v6534
      %v6592 = vpop.f32.mrf.mxu0
      %v6593 = vadd.f32 0.0, %v6592
      %v6594 = vpop.f32.mrf.mxu0
      %v6595 = vpop.f32.mrf.mxu0
      %v6596 = vadd.f32 0.0, %v6595
      %v6597 = vpop.f32.mrf.mxu0
      %6598 = vmatprep.mubr.bf16.mxu0 0
      %6599 = vmatmul.mubr.bf16.gmra.mxu0 %v6537
      %v6600 = vpop.f32.mrf.mxu0
      %v6601 = vadd.f32 0.0, %v6600
      %v6602 = vpop.f32.mrf.mxu0
      %v6603 = vpop.f32.mrf.mxu0
      %v6604 = vadd.f32 0.0, %v6603
      %v6605 = vpop.f32.mrf.mxu0
      %6606 = vdwg.mxu0
      %v6607 = vadd.f32 %v6378, %v6577
      %v6608 = vadd.f32 %v6379, %v6580
      %v6609 = vadd.f32 %v6380, %v6585
      %v6610 = vadd.f32 %v6381, %v6588
      %v6611 = vadd.f32 %v6382, %v6593
      %v6612 = vadd.f32 %v6383, %v6596
      %v6613 = vadd.f32 %v6384, %v6601
      %v6614 = vadd.f32 %v6385, %v6604
      %v6615 = vld [vmem:[%s4692] sm:$0xf]
      %v6616 = vld [vmem:[%s4692 + $0x4] sm:$0x1]
      %v6617 = vld [vmem:[%s4692 + $0x8] sm:$0xf]
      %v6618 = vld [vmem:[%s4692 + $0xc] sm:$0x1]
      %v6619 = vld [vmem:[%s4692 + $0x10] sm:$0xf]
      %v6620 = vld [vmem:[%s4692 + $0x14] sm:$0x1]
      %v6621 = vld [vmem:[%s4692 + $0x18] sm:$0xf]
      %v6622 = vld [vmem:[%s4692 + $0x1c] sm:$0x1]
      %v6623 = vld [vmem:[%s4692 + $0x20] sm:$0xf]
      %v6624 = vld [vmem:[%s4692 + $0x24] sm:$0x1]
      %v6625 = vld [vmem:[%s4692 + $0x28] sm:$0xf]
      %v6626 = vld [vmem:[%s4692 + $0x2c] sm:$0x1]
      %v6627 = vld [vmem:[%s4692 + $0x30] sm:$0xf]
      %v6628 = vld [vmem:[%s4692 + $0x34] sm:$0x1]
      %v6629 = vld [vmem:[%s4692 + $0x38] sm:$0xf]
      %v6630 = vld [vmem:[%s4692 + $0x3c] sm:$0x1]
      %v6632 = vshrl.u32 %v6615, 16
      %v6634 = vrot.slane %v6632, 4
      %v6635 = vshll.u32 %v6615, 16
      %v6637 = vrot.slane %v6635, 5
      %v6638 = vor.u32 %v6634, %v6637
      %v6639 = vrot.slane %v6638, 4
      %v6641 = vshll.u32 %v6616, 16
      %v6643 = vrot.slane %v6641, 5
      %v6644 = vsel %vm493, %v6639, %v6643
      %v6646 = vshrl.u32 %v6617, 16
      %v6648 = vrot.slane %v6646, 4
      %v6649 = vshll.u32 %v6617, 16
      %v6651 = vrot.slane %v6649, 5
      %v6652 = vor.u32 %v6648, %v6651
      %v6653 = vrot.slane %v6652, 4
      %v6655 = vshll.u32 %v6618, 16
      %v6657 = vrot.slane %v6655, 5
      %v6658 = vsel %vm493, %v6653, %v6657
      %v6660 = vshrl.u32 %v6619, 16
      %v6662 = vrot.slane %v6660, 4
      %v6663 = vshll.u32 %v6619, 16
      %v6665 = vrot.slane %v6663, 5
      %v6666 = vor.u32 %v6662, %v6665
      %v6667 = vrot.slane %v6666, 4
      %v6669 = vshll.u32 %v6620, 16
      %v6671 = vrot.slane %v6669, 5
      %v6672 = vsel %vm493, %v6667, %v6671
      %v6674 = vshrl.u32 %v6621, 16
      %v6676 = vrot.slane %v6674, 4
      %v6677 = vshll.u32 %v6621, 16
      %v6679 = vrot.slane %v6677, 5
      %v6680 = vor.u32 %v6676, %v6679
      %v6681 = vrot.slane %v6680, 4
      %v6683 = vshll.u32 %v6622, 16
      %v6685 = vrot.slane %v6683, 5
      %v6686 = vsel %vm493, %v6681, %v6685
      %v6688 = vshrl.u32 %v6623, 16
      %v6690 = vrot.slane %v6688, 4
      %v6691 = vshll.u32 %v6623, 16
      %v6693 = vrot.slane %v6691, 5
      %v6694 = vor.u32 %v6690, %v6693
      %v6695 = vrot.slane %v6694, 4
      %v6697 = vshll.u32 %v6624, 16
      %v6699 = vrot.slane %v6697, 5
      %v6700 = vsel %vm493, %v6695, %v6699
      %v6702 = vshrl.u32 %v6625, 16
      %v6704 = vrot.slane %v6702, 4
      %v6705 = vshll.u32 %v6625, 16
      %v6707 = vrot.slane %v6705, 5
      %v6708 = vor.u32 %v6704, %v6707
      %v6709 = vrot.slane %v6708, 4
      %v6711 = vshll.u32 %v6626, 16
      %v6713 = vrot.slane %v6711, 5
      %v6714 = vsel %vm493, %v6709, %v6713
      %v6716 = vshrl.u32 %v6627, 16
      %v6718 = vrot.slane %v6716, 4
      %v6719 = vshll.u32 %v6627, 16
      %v6721 = vrot.slane %v6719, 5
      %v6722 = vor.u32 %v6718, %v6721
      %v6723 = vrot.slane %v6722, 4
      %v6725 = vshll.u32 %v6628, 16
      %v6727 = vrot.slane %v6725, 5
      %v6728 = vsel %vm493, %v6723, %v6727
      %v6730 = vshrl.u32 %v6629, 16
      %v6732 = vrot.slane %v6730, 4
      %v6733 = vshll.u32 %v6629, 16
      %v6735 = vrot.slane %v6733, 5
      %v6736 = vor.u32 %v6732, %v6735
      %v6737 = vrot.slane %v6736, 4
      %v6739 = vshll.u32 %v6630, 16
      %v6741 = vrot.slane %v6739, 5
      %v6742 = vsel %vm493, %v6737, %v6741
      %v6743 = vld [vmem:[%s1542] sm:$0x3]
      %v6744 = vunpack.c.l.b16 %v6644
      %v6745 = vunpack.c.l.b16 %v6658
      %v6746 = vunpack.c.l.b16 %v6672
      %v6747 = vunpack.c.l.b16 %v6686
      %v6748 = vunpack.c.l.b16 %v6700
      %v6749 = vunpack.c.l.b16 %v6714
      %v6750 = vunpack.c.l.b16 %v6728
      %v6751 = vunpack.c.l.b16 %v6742
      %v6752 = vpack.c.b16 %v6745, %v6744
      %v6753 = vpack.c.b16 %v6747, %v6746
      %v6754 = vpack.c.b16 %v6749, %v6748
      %v6755 = vpack.c.b16 %v6751, %v6750
      %v6757 = vsel %vm293, %v6752, 0
      %v6760 = vsel %vm293, %v6753, 0
      %v6763 = vsel %vm293, %v6754, 0
      %v6766 = vsel %vm293, %v6755, 0
      %v6769 = vsel %vm306, %v6743, 0
      %6771 = vmatprep.subr.bf16.mxu0 0
      %6772 = vmatpush1.bf16.msra.mxu0 0
      %6773 = vmatprep.subr.bf16.mxu0 0
      %6774 = vmatpush1.bf16.msra.mxu0 0
      %6775 = vmatprep.subr.bf16.mxu0 0
      %6776 = vmatpush1.bf16.msra.mxu0 0
      %6777 = vmatprep.subr.bf16.mxu0 0
      %6778 = vmatpush1.bf16.msra.mxu0 0
      %6779 = vmatprep.subr.bf16.mxu0 0
      %6780 = vmatpush1.bf16.msra.mxu0 0
      %6781 = vmatprep.subr.bf16.mxu0 0
      %6782 = vmatpush1.bf16.msra.mxu0 0
      %6783 = vmatprep.subr.bf16.mxu0 0
      %6784 = vmatpush1.bf16.msra.mxu0 0
      %6785 = vmatprep.subr.bf16.mxu0 0
      %6786 = vmatpush1.bf16.msra.mxu0 %v6769
      %6787 = vmatprep.subr.bf16.mxu0 0
      %6788 = vmatpush2.bf16.msra.mxu0 0
      %6789 = vmatprep.subr.bf16.mxu0 0
      %6790 = vmatpush2.bf16.msra.mxu0 0
      %6791 = vmatprep.subr.bf16.mxu0 0
      %6792 = vmatpush2.bf16.msra.mxu0 0
      %6793 = vmatprep.subr.bf16.mxu0 0
      %6794 = vmatpush2.bf16.msra.mxu0 0
      %6795 = vmatprep.subr.bf16.mxu0 0
      %6796 = vmatpush2.bf16.msra.mxu0 0
      %6797 = vmatprep.subr.bf16.mxu0 0
      %6798 = vmatpush2.bf16.msra.mxu0 0
      %6799 = vmatprep.subr.bf16.mxu0 0
      %6800 = vmatpush2.bf16.msra.mxu0 0
      %6801 = vmatprep.subr.bf16.mxu0 0
      %6802 = vmatpush2.bf16.msra.mxu0 0
      %6803 = vmatprep.mubr.bf16.mxu0 0
      %6804 = vmatmul.mubr.bf16.gmra.mxu0 %v6757
      %v6805 = vpop.f32.mrf.mxu0
      %v6806 = vadd.f32 0.0, %v6805
      %v6807 = vpop.f32.mrf.mxu0
      %v6808 = vpop.f32.mrf.mxu0
      %v6809 = vadd.f32 0.0, %v6808
      %v6810 = vpop.f32.mrf.mxu0
      %6811 = vmatprep.mubr.bf16.mxu0 0
      %6812 = vmatmul.mubr.bf16.gmra.mxu0 %v6760
      %v6813 = vpop.f32.mrf.mxu0
      %v6814 = vadd.f32 0.0, %v6813
      %v6815 = vpop.f32.mrf.mxu0
      %v6816 = vpop.f32.mrf.mxu0
      %v6817 = vadd.f32 0.0, %v6816
      %v6818 = vpop.f32.mrf.mxu0
      %6819 = vmatprep.mubr.bf16.mxu0 0
      %6820 = vmatmul.mubr.bf16.gmra.mxu0 %v6763
      %v6821 = vpop.f32.mrf.mxu0
      %v6822 = vadd.f32 0.0, %v6821
      %v6823 = vpop.f32.mrf.mxu0
      %v6824 = vpop.f32.mrf.mxu0
      %v6825 = vadd.f32 0.0, %v6824
      %v6826 = vpop.f32.mrf.mxu0
      %6827 = vmatprep.mubr.bf16.mxu0 0
      %6828 = vmatmul.mubr.bf16.gmra.mxu0 %v6766
      %v6829 = vpop.f32.mrf.mxu0
      %v6830 = vadd.f32 0.0, %v6829
      %v6831 = vpop.f32.mrf.mxu0
      %v6832 = vpop.f32.mrf.mxu0
      %v6833 = vadd.f32 0.0, %v6832
      %v6834 = vpop.f32.mrf.mxu0
      %6835 = vdwg.mxu0
      %v6836 = vadd.f32 %v6607, %v6806
      %v6837 = vadd.f32 %v6608, %v6809
      %v6838 = vadd.f32 %v6609, %v6814
      %v6839 = vadd.f32 %v6610, %v6817
      %v6840 = vadd.f32 %v6611, %v6822
      %v6841 = vadd.f32 %v6612, %v6825
      %v6842 = vadd.f32 %v6613, %v6830
      %v6843 = vadd.f32 %v6614, %v6833
      %v6844 = vld [vmem:[%s2] sm:$0x1]
      %v6846 = vlaneseq
      %v6847 = vshrl.u32 %v6846, 7
      %v6848 = vsub.s32 0, %v6847
      %v6849 = vrot.slane %v6844, %v6848
      %v6851 = vadd.f32 %v6836, %v6849
      %v6852 = vadd.f32 %v6837, %v6849
      %v6853 = vadd.f32 %v6838, %v6849
      %v6854 = vadd.f32 %v6839, %v6849
      %v6855 = vadd.f32 %v6840, %v6849
      %v6856 = vadd.f32 %v6841, %v6849
      %v6857 = vadd.f32 %v6842, %v6849
      %v6858 = vadd.f32 %v6843, %v6849
      %v6859 = vmax.f32 %v6851, 0.0
      %v6860 = vmax.f32 %v6852, 0.0
      %v6861 = vmax.f32 %v6853, 0.0
      %v6862 = vmax.f32 %v6854, 0.0
      %v6863 = vmax.f32 %v6855, 0.0
      %v6864 = vmax.f32 %v6856, 0.0
      %v6865 = vmax.f32 %v6857, 0.0
      %v6866 = vmax.f32 %v6858, 0.0
      %v6867 = vpack.c.bf16 %v6860, %v6859
      %v6868 = vpack.c.bf16 %v6862, %v6861
      %v6869 = vpack.c.bf16 %v6864, %v6863
      %v6870 = vpack.c.bf16 %v6866, %v6865
      %6871 = vst.msk [vmem:[#allocation2] sm:$0xf] %vm1672, 0
      %v6872 = vld [vmem:[#allocation2 + $0x4] sm:$0x1]
      %v6873 = vsel %vm1676, 0, %v6872
      %6874 = vst [vmem:[#allocation2 + $0x4] sm:$0x1] %v6873
      %v6875 = vld [vmem:[#allocation2] sm:$0x1]
      %v6876 = vsel %vm1676, 0, %v6875
      %6877 = vst [vmem:[#allocation2] sm:$0x1] %v6876
      %v6878 = vld [vmem:[#allocation2 + $0x8] sm:$0x1]
      %v6879 = vsel %vm1676, 0, %v6878
      %6880 = vst [vmem:[#allocation2 + $0x8] sm:$0x1] %v6879
      %v6881 = vld [vmem:[#allocation2 + $0x10] sm:$0x1]
      %v6882 = vsel %vm1676, 0, %v6881
      %6883 = vst [vmem:[#allocation2 + $0x10] sm:$0x1] %v6882
      %v6884 = vld [vmem:[#allocation2 + $0x18] sm:$0x1]
      %v6885 = vsel %vm1676, 0, %v6884
      %6886 = vst [vmem:[#allocation2 + $0x18] sm:$0x1] %v6885
      %v6887 = vld [vmem:[#allocation2 + $0x20] sm:$0x1]
      %v6888 = vsel %vm1676, 0, %v6887
      %6889 = vst [vmem:[#allocation2 + $0x20] sm:$0x1] %v6888
      %v6890 = vld [vmem:[#allocation2 + $0x28] sm:$0x1]
      %v6891 = vsel %vm1676, 0, %v6890
      %6892 = vst [vmem:[#allocation2 + $0x28] sm:$0x1] %v6891
      %v6893 = vld [vmem:[#allocation2 + $0x30] sm:$0x1]
      %v6894 = vsel %vm1676, 0, %v6893
      %6895 = vst [vmem:[#allocation2 + $0x30] sm:$0x1] %v6894
      %v6896 = vld [vmem:[#allocation2 + $0x38] sm:$0x1]
      %v6897 = vsel %vm1676, 0, %v6896
      %6898 = vst [vmem:[#allocation2 + $0x38] sm:$0x1] %v6897
      %v6899 = vld [vmem:[#allocation2 + $0x40] sm:$0x1]
      %v6900 = vsel %vm1676, 0, %v6899
      %6901 = vst [vmem:[#allocation2 + $0x40] sm:$0x1] %v6900
      %v6906 = vunpack.c.l.b16 %v6867
      %v6907 = vunpack.c.h.b16 %v6867
      %v6908 = vunpack.c.l.b16 %v6868
      %v6909 = vunpack.c.h.b16 %v6868
      %v6910 = vunpack.c.l.b16 %v6869
      %v6911 = vunpack.c.h.b16 %v6869
      %v6912 = vunpack.c.l.b16 %v6870
      %v6913 = vunpack.c.h.b16 %v6870
      %v6914 = vpack.c.b16 %v6906, %v6906
      %v6915 = vpack.c.b16 %v6907, %v6907
      %v6916 = vpack.c.b16 %v6908, %v6908
      %v6917 = vpack.c.b16 %v6909, %v6909
      %v6918 = vpack.c.b16 %v6910, %v6910
      %v6919 = vpack.c.b16 %v6911, %v6911
      %v6920 = vpack.c.b16 %v6912, %v6912
      %v6921 = vpack.c.b16 %v6913, %v6913
      %v6923 = vshrl.u32 %v6914, 16
      %v6925 = vrot.slane %v6923, 7
      %v6926 = vshll.u32 %v6914, 16
      %v6928 = vor.u32 %v6925, %v6926
      %v6929 = vrot.slane %v6925, 4
      %v6931 = vshrl.u32 %v6915, 16
      %v6933 = vrot.slane %v6931, 7
      %v6934 = vshll.u32 %v6915, 16
      %v6936 = vor.u32 %v6933, %v6934
      %v6937 = vrot.slane %v6933, 4
      %v6939 = vshrl.u32 %v6916, 16
      %v6941 = vrot.slane %v6939, 7
      %v6942 = vshll.u32 %v6916, 16
      %v6944 = vor.u32 %v6941, %v6942
      %v6945 = vrot.slane %v6941, 4
      %v6947 = vshrl.u32 %v6917, 16
      %v6949 = vrot.slane %v6947, 7
      %v6950 = vshll.u32 %v6917, 16
      %v6952 = vor.u32 %v6949, %v6950
      %v6953 = vrot.slane %v6949, 4
      %v6955 = vshrl.u32 %v6918, 16
      %v6957 = vrot.slane %v6955, 7
      %v6958 = vshll.u32 %v6918, 16
      %v6960 = vor.u32 %v6957, %v6958
      %v6961 = vrot.slane %v6957, 4
      %v6963 = vshrl.u32 %v6919, 16
      %v6965 = vrot.slane %v6963, 7
      %v6966 = vshll.u32 %v6919, 16
      %v6968 = vor.u32 %v6965, %v6966
      %v6969 = vrot.slane %v6965, 4
      %v6971 = vshrl.u32 %v6920, 16
      %v6973 = vrot.slane %v6971, 7
      %v6974 = vshll.u32 %v6920, 16
      %v6976 = vor.u32 %v6973, %v6974
      %v6977 = vrot.slane %v6973, 4
      %v6979 = vshrl.u32 %v6921, 16
      %v6981 = vrot.slane %v6979, 7
      %v6982 = vshll.u32 %v6921, 16
      %v6984 = vor.u32 %v6981, %v6982
      %v6985 = vrot.slane %v6981, 4
      %s7002 = scalar_lea.vmem [#allocation2], 8
      %v7003 = vld [vmem:[%s7002] sm:$0xf]
      %v7004 = vsel %vm3615, %v6928, %v7003
      %7005 = vst [vmem:[%s7002] sm:$0xf] %v7004
      %v7006 = vld [vmem:[%s7002 + $0x4] sm:$0x1]
      %v7007 = vsel %vm1676, %v6929, %v7006
      %7008 = vst [vmem:[%s7002 + $0x4] sm:$0x1] %v7007
      %v7009 = vld [vmem:[%s7002 + $0x8] sm:$0xf]
      %v7010 = vsel %vm3615, %v6936, %v7009
      %7011 = vst [vmem:[%s7002 + $0x8] sm:$0xf] %v7010
      %v7012 = vld [vmem:[%s7002 + $0xc] sm:$0x1]
      %v7013 = vsel %vm1676, %v6937, %v7012
      %7014 = vst [vmem:[%s7002 + $0xc] sm:$0x1] %v7013
      %v7015 = vld [vmem:[%s7002 + $0x10] sm:$0xf]
      %v7016 = vsel %vm3615, %v6944, %v7015
      %7017 = vst [vmem:[%s7002 + $0x10] sm:$0xf] %v7016
      %v7018 = vld [vmem:[%s7002 + $0x14] sm:$0x1]
      %v7019 = vsel %vm1676, %v6945, %v7018
      %7020 = vst [vmem:[%s7002 + $0x14] sm:$0x1] %v7019
      %v7021 = vld [vmem:[%s7002 + $0x18] sm:$0xf]
      %v7022 = vsel %vm3615, %v6952, %v7021
      %7023 = vst [vmem:[%s7002 + $0x18] sm:$0xf] %v7022
      %v7024 = vld [vmem:[%s7002 + $0x1c] sm:$0x1]
      %v7025 = vsel %vm1676, %v6953, %v7024
      %7026 = vst [vmem:[%s7002 + $0x1c] sm:$0x1] %v7025
      %v7027 = vld [vmem:[%s7002 + $0x20] sm:$0xf]
      %v7028 = vsel %vm3615, %v6960, %v7027
      %7029 = vst [vmem:[%s7002 + $0x20] sm:$0xf] %v7028
      %v7030 = vld [vmem:[%s7002 + $0x24] sm:$0x1]
      %v7031 = vsel %vm1676, %v6961, %v7030
      %7032 = vst [vmem:[%s7002 + $0x24] sm:$0x1] %v7031
      %v7033 = vld [vmem:[%s7002 + $0x28] sm:$0xf]
      %v7034 = vsel %vm3615, %v6968, %v7033
      %7035 = vst [vmem:[%s7002 + $0x28] sm:$0xf] %v7034
      %v7036 = vld [vmem:[%s7002 + $0x2c] sm:$0x1]
      %v7037 = vsel %vm1676, %v6969, %v7036
      %7038 = vst [vmem:[%s7002 + $0x2c] sm:$0x1] %v7037
      %v7039 = vld [vmem:[%s7002 + $0x30] sm:$0xf]
      %v7040 = vsel %vm3615, %v6976, %v7039
      %7041 = vst [vmem:[%s7002 + $0x30] sm:$0xf] %v7040
      %v7042 = vld [vmem:[%s7002 + $0x34] sm:$0x1]
      %v7043 = vsel %vm1676, %v6977, %v7042
      %7044 = vst [vmem:[%s7002 + $0x34] sm:$0x1] %v7043
      %v7045 = vld [vmem:[%s7002 + $0x38] sm:$0xf]
      %v7046 = vsel %vm3615, %v6984, %v7045
      %7047 = vst [vmem:[%s7002 + $0x38] sm:$0xf] %v7046
      %v7048 = vld [vmem:[%s7002 + $0x3c] sm:$0x1]
      %v7049 = vsel %vm1676, %v6985, %v7048
      %7050 = vst [vmem:[%s7002 + $0x3c] sm:$0x1] %v7049
      %v7051 = vld [vmem:[#allocation2] sm:$0xf]
      %v7052 = vld [vmem:[#allocation2 + $0x8] sm:$0xf]
      %v7053 = vld [vmem:[#allocation2 + $0x10] sm:$0xf]
      %v7054 = vld [vmem:[#allocation2 + $0x18] sm:$0xf]
      %v7055 = vld [vmem:[#allocation2 + $0x20] sm:$0xf]
      %v7056 = vld [vmem:[#allocation2 + $0x28] sm:$0xf]
      %v7057 = vld [vmem:[#allocation2 + $0x30] sm:$0xf]
      %v7058 = vld [vmem:[#allocation2 + $0x38] sm:$0xf]
      %v7059 = vld [vmem:[%s3] sm:$0xf]
      %v7060 = vld [vmem:[%s5066] sm:$0xf]
      %v7061 = vld [vmem:[%s5066 + $0x8] sm:$0xf]
      %v7062 = vld [vmem:[%s5066 + $0x10] sm:$0xf]
      %v7063 = vld [vmem:[%s5066 + $0x18] sm:$0xf]
      %v7064 = vld [vmem:[%s5066 + $0x20] sm:$0xf]
      %v7065 = vld [vmem:[%s5066 + $0x28] sm:$0xf]
      %v7066 = vld [vmem:[%s5066 + $0x30] sm:$0xf]
      %v7067 = vld [vmem:[%s5066 + $0x38] sm:$0xf]
      %s7068 = scalar_lea.vmem %s3, 4
      %v7069 = vld [vmem:[%s7068] sm:$0xf]
      %v7078 = vunpack.c.l.b16 %v7060
      %v7079 = vunpack.c.l.b16 %v7061
      %v7080 = vunpack.c.l.b16 %v7062
      %v7081 = vunpack.c.l.b16 %v7063
      %v7082 = vunpack.c.l.b16 %v7064
      %v7083 = vunpack.c.l.b16 %v7065
      %v7084 = vunpack.c.l.b16 %v7066
      %v7085 = vunpack.c.l.b16 %v7067
      %v7086 = vpack.c.b16 %v7079, %v7078
      %v7087 = vpack.c.b16 %v7081, %v7080
      %v7088 = vpack.c.b16 %v7083, %v7082
      %v7089 = vpack.c.b16 %v7085, %v7084
      %vm7090 = vcmask 64512
      %v7092 = vsel %vm7090, %v7086, 0
      %v7095 = vsel %vm7090, %v7087, 0
      %v7098 = vsel %vm7090, %v7088, 0
      %v7101 = vsel %vm7090, %v7089, 0
      %vm7103 = vcmask 1043456
      %v7105 = vsel %vm7103, %v7069, 0
      %7107 = vmatprep.subr.bf16.mxu0 0
      %7108 = vmatpush1.bf16.msra.mxu0 0
      %7109 = vmatprep.subr.bf16.mxu0 0
      %7110 = vmatpush1.bf16.msra.mxu0 0
      %7111 = vmatprep.subr.bf16.mxu0 0
      %7112 = vmatpush1.bf16.msra.mxu0 0
      %7113 = vmatprep.subr.bf16.mxu0 0
      %7114 = vmatpush1.bf16.msra.mxu0 0
      %7115 = vmatprep.subr.bf16.mxu0 0
      %7116 = vmatpush1.bf16.msra.mxu0 0
      %7117 = vmatprep.subr.bf16.mxu0 0
      %7118 = vmatpush1.bf16.msra.mxu0 0
      %7119 = vmatprep.subr.bf16.mxu0 0
      %7120 = vmatpush1.bf16.msra.mxu0 0
      %7121 = vmatprep.subr.bf16.mxu0 0
      %7122 = vmatpush1.bf16.msra.mxu0 %v7105
      %7123 = vmatprep.subr.bf16.mxu0 0
      %7124 = vmatpush2.bf16.msra.mxu0 0
      %7125 = vmatprep.subr.bf16.mxu0 0
      %7126 = vmatpush2.bf16.msra.mxu0 0
      %7127 = vmatprep.subr.bf16.mxu0 0
      %7128 = vmatpush2.bf16.msra.mxu0 0
      %7129 = vmatprep.subr.bf16.mxu0 0
      %7130 = vmatpush2.bf16.msra.mxu0 0
      %7131 = vmatprep.subr.bf16.mxu0 0
      %7132 = vmatpush2.bf16.msra.mxu0 0
      %7133 = vmatprep.subr.bf16.mxu0 0
      %7134 = vmatpush2.bf16.msra.mxu0 0
      %7135 = vmatprep.subr.bf16.mxu0 0
      %7136 = vmatpush2.bf16.msra.mxu0 0
      %7137 = vmatprep.subr.bf16.mxu0 0
      %7138 = vmatpush2.bf16.msra.mxu0 0
      %7139 = vmatprep.mubr.bf16.mxu0 0
      %7140 = vmatmul.mubr.bf16.gmra.mxu0 %v7092
      %v7141 = vpop.f32.mrf.mxu0
      %v7142 = vadd.f32 0.0, %v7141
      %v7143 = vpop.f32.mrf.mxu0
      %v7144 = vpop.f32.mrf.mxu0
      %v7145 = vadd.f32 0.0, %v7144
      %v7146 = vpop.f32.mrf.mxu0
      %7147 = vmatprep.mubr.bf16.mxu0 0
      %7148 = vmatmul.mubr.bf16.gmra.mxu0 %v7095
      %v7149 = vpop.f32.mrf.mxu0
      %v7150 = vadd.f32 0.0, %v7149
      %v7151 = vpop.f32.mrf.mxu0
      %v7152 = vpop.f32.mrf.mxu0
      %v7153 = vadd.f32 0.0, %v7152
      %v7154 = vpop.f32.mrf.mxu0
      %7155 = vmatprep.mubr.bf16.mxu0 0
      %7156 = vmatmul.mubr.bf16.gmra.mxu0 %v7098
      %v7157 = vpop.f32.mrf.mxu0
      %v7158 = vadd.f32 0.0, %v7157
      %v7159 = vpop.f32.mrf.mxu0
      %v7160 = vpop.f32.mrf.mxu0
      %v7161 = vadd.f32 0.0, %v7160
      %v7162 = vpop.f32.mrf.mxu0
      %7163 = vmatprep.mubr.bf16.mxu0 0
      %7164 = vmatmul.mubr.bf16.gmra.mxu0 %v7101
      %v7165 = vpop.f32.mrf.mxu0
      %v7166 = vadd.f32 0.0, %v7165
      %v7167 = vpop.f32.mrf.mxu0
      %v7168 = vpop.f32.mrf.mxu0
      %v7169 = vadd.f32 0.0, %v7168
      %v7170 = vpop.f32.mrf.mxu0
      %7171 = vdwg.mxu0
      %v7180 = vunpack.c.l.b16 %v7051
      %v7181 = vunpack.c.l.b16 %v7052
      %v7182 = vunpack.c.l.b16 %v7053
      %v7183 = vunpack.c.l.b16 %v7054
      %v7184 = vunpack.c.l.b16 %v7055
      %v7185 = vunpack.c.l.b16 %v7056
      %v7186 = vunpack.c.l.b16 %v7057
      %v7187 = vunpack.c.l.b16 %v7058
      %v7188 = vpack.c.b16 %v7181, %v7180
      %v7189 = vpack.c.b16 %v7183, %v7182
      %v7190 = vpack.c.b16 %v7185, %v7184
      %v7191 = vpack.c.b16 %v7187, %v7186
      %v7193 = vsel %vm7090, %v7188, 0
      %v7196 = vsel %vm7090, %v7189, 0
      %v7199 = vsel %vm7090, %v7190, 0
      %v7202 = vsel %vm7090, %v7191, 0
      %v7205 = vsel %vm7103, %v7059, 0
      %7207 = vmatprep.subr.bf16.mxu0 0
      %7208 = vmatpush1.bf16.msra.mxu0 0
      %7209 = vmatprep.subr.bf16.mxu0 0
      %7210 = vmatpush1.bf16.msra.mxu0 0
      %7211 = vmatprep.subr.bf16.mxu0 0
      %7212 = vmatpush1.bf16.msra.mxu0 0
      %7213 = vmatprep.subr.bf16.mxu0 0
      %7214 = vmatpush1.bf16.msra.mxu0 0
      %7215 = vmatprep.subr.bf16.mxu0 0
      %7216 = vmatpush1.bf16.msra.mxu0 0
      %7217 = vmatprep.subr.bf16.mxu0 0
      %7218 = vmatpush1.bf16.msra.mxu0 0
      %7219 = vmatprep.subr.bf16.mxu0 0
      %7220 = vmatpush1.bf16.msra.mxu0 0
      %7221 = vmatprep.subr.bf16.mxu0 0
      %7222 = vmatpush1.bf16.msra.mxu0 %v7205
      %7223 = vmatprep.subr.bf16.mxu0 0
      %7224 = vmatpush2.bf16.msra.mxu0 0
      %7225 = vmatprep.subr.bf16.mxu0 0
      %7226 = vmatpush2.bf16.msra.mxu0 0
      %7227 = vmatprep.subr.bf16.mxu0 0
      %7228 = vmatpush2.bf16.msra.mxu0 0
      %7229 = vmatprep.subr.bf16.mxu0 0
      %7230 = vmatpush2.bf16.msra.mxu0 0
      %7231 = vmatprep.subr.bf16.mxu0 0
      %7232 = vmatpush2.bf16.msra.mxu0 0
      %7233 = vmatprep.subr.bf16.mxu0 0
      %7234 = vmatpush2.bf16.msra.mxu0 0
      %7235 = vmatprep.subr.bf16.mxu0 0
      %7236 = vmatpush2.bf16.msra.mxu0 0
      %7237 = vmatprep.subr.bf16.mxu0 0
      %7238 = vmatpush2.bf16.msra.mxu0 0
      %7239 = vmatprep.mubr.bf16.mxu0 0
      %7240 = vmatmul.mubr.bf16.gmra.mxu0 %v7193
      %v7241 = vpop.f32.mrf.mxu0
      %v7242 = vadd.f32 %v7142, %v7241
      %v7243 = vpop.f32.mrf.mxu0
      %v7244 = vpop.f32.mrf.mxu0
      %v7245 = vadd.f32 %v7145, %v7244
      %v7246 = vpop.f32.mrf.mxu0
      %7247 = vmatprep.mubr.bf16.mxu0 0
      %7248 = vmatmul.mubr.bf16.gmra.mxu0 %v7196
      %v7249 = vpop.f32.mrf.mxu0
      %v7250 = vadd.f32 %v7150, %v7249
      %v7251 = vpop.f32.mrf.mxu0
      %v7252 = vpop.f32.mrf.mxu0
      %v7253 = vadd.f32 %v7153, %v7252
      %v7254 = vpop.f32.mrf.mxu0
      %7255 = vmatprep.mubr.bf16.mxu0 0
      %7256 = vmatmul.mubr.bf16.gmra.mxu0 %v7199
      %v7257 = vpop.f32.mrf.mxu0
      %v7258 = vadd.f32 %v7158, %v7257
      %v7259 = vpop.f32.mrf.mxu0
      %v7260 = vpop.f32.mrf.mxu0
      %v7261 = vadd.f32 %v7161, %v7260
      %v7262 = vpop.f32.mrf.mxu0
      %7263 = vmatprep.mubr.bf16.mxu0 0
      %7264 = vmatmul.mubr.bf16.gmra.mxu0 %v7202
      %v7265 = vpop.f32.mrf.mxu0
      %v7266 = vadd.f32 %v7166, %v7265
      %v7267 = vpop.f32.mrf.mxu0
      %v7268 = vpop.f32.mrf.mxu0
      %v7269 = vadd.f32 %v7169, %v7268
      %v7270 = vpop.f32.mrf.mxu0
      %7271 = vdwg.mxu0
      %v7272 = vld [vmem:[#allocation2] sm:$0xf]
      %v7273 = vld [vmem:[#allocation2 + $0x4] sm:$0x1]
      %v7274 = vld [vmem:[#allocation2 + $0x8] sm:$0xf]
      %v7275 = vld [vmem:[#allocation2 + $0xc] sm:$0x1]
      %v7276 = vld [vmem:[#allocation2 + $0x10] sm:$0xf]
      %v7277 = vld [vmem:[#allocation2 + $0x14] sm:$0x1]
      %v7278 = vld [vmem:[#allocation2 + $0x18] sm:$0xf]
      %v7279 = vld [vmem:[#allocation2 + $0x1c] sm:$0x1]
      %v7280 = vld [vmem:[#allocation2 + $0x20] sm:$0xf]
      %v7281 = vld [vmem:[#allocation2 + $0x24] sm:$0x1]
      %v7282 = vld [vmem:[#allocation2 + $0x28] sm:$0xf]
      %v7283 = vld [vmem:[#allocation2 + $0x2c] sm:$0x1]
      %v7284 = vld [vmem:[#allocation2 + $0x30] sm:$0xf]
      %v7285 = vld [vmem:[#allocation2 + $0x34] sm:$0x1]
      %v7286 = vld [vmem:[#allocation2 + $0x38] sm:$0xf]
      %v7287 = vld [vmem:[#allocation2 + $0x3c] sm:$0x1]
      %v7289 = vshrl.u32 %v7272, 16
      %v7291 = vrot.slane %v7289, 4
      %v7292 = vshll.u32 %v7272, 16
      %v7294 = vrot.slane %v7292, 5
      %v7295 = vor.u32 %v7291, %v7294
      %v7296 = vrot.slane %v7295, 4
      %v7298 = vshll.u32 %v7273, 16
      %v7300 = vrot.slane %v7298, 5
      %v7301 = vsel %vm493, %v7296, %v7300
      %v7303 = vshrl.u32 %v7274, 16
      %v7305 = vrot.slane %v7303, 4
      %v7306 = vshll.u32 %v7274, 16
      %v7308 = vrot.slane %v7306, 5
      %v7309 = vor.u32 %v7305, %v7308
      %v7310 = vrot.slane %v7309, 4
      %v7312 = vshll.u32 %v7275, 16
      %v7314 = vrot.slane %v7312, 5
      %v7315 = vsel %vm493, %v7310, %v7314
      %v7317 = vshrl.u32 %v7276, 16
      %v7319 = vrot.slane %v7317, 4
      %v7320 = vshll.u32 %v7276, 16
      %v7322 = vrot.slane %v7320, 5
      %v7323 = vor.u32 %v7319, %v7322
      %v7324 = vrot.slane %v7323, 4
      %v7326 = vshll.u32 %v7277, 16
      %v7328 = vrot.slane %v7326, 5
      %v7329 = vsel %vm493, %v7324, %v7328
      %v7331 = vshrl.u32 %v7278, 16
      %v7333 = vrot.slane %v7331, 4
      %v7334 = vshll.u32 %v7278, 16
      %v7336 = vrot.slane %v7334, 5
      %v7337 = vor.u32 %v7333, %v7336
      %v7338 = vrot.slane %v7337, 4
      %v7340 = vshll.u32 %v7279, 16
      %v7342 = vrot.slane %v7340, 5
      %v7343 = vsel %vm493, %v7338, %v7342
      %v7345 = vshrl.u32 %v7280, 16
      %v7347 = vrot.slane %v7345, 4
      %v7348 = vshll.u32 %v7280, 16
      %v7350 = vrot.slane %v7348, 5
      %v7351 = vor.u32 %v7347, %v7350
      %v7352 = vrot.slane %v7351, 4
      %v7354 = vshll.u32 %v7281, 16
      %v7356 = vrot.slane %v7354, 5
      %v7357 = vsel %vm493, %v7352, %v7356
      %v7359 = vshrl.u32 %v7282, 16
      %v7361 = vrot.slane %v7359, 4
      %v7362 = vshll.u32 %v7282, 16
      %v7364 = vrot.slane %v7362, 5
      %v7365 = vor.u32 %v7361, %v7364
      %v7366 = vrot.slane %v7365, 4
      %v7368 = vshll.u32 %v7283, 16
      %v7370 = vrot.slane %v7368, 5
      %v7371 = vsel %vm493, %v7366, %v7370
      %v7373 = vshrl.u32 %v7284, 16
      %v7375 = vrot.slane %v7373, 4
      %v7376 = vshll.u32 %v7284, 16
      %v7378 = vrot.slane %v7376, 5
      %v7379 = vor.u32 %v7375, %v7378
      %v7380 = vrot.slane %v7379, 4
      %v7382 = vshll.u32 %v7285, 16
      %v7384 = vrot.slane %v7382, 5
      %v7385 = vsel %vm493, %v7380, %v7384
      %v7387 = vshrl.u32 %v7286, 16
      %v7389 = vrot.slane %v7387, 4
      %v7390 = vshll.u32 %v7286, 16
      %v7392 = vrot.slane %v7390, 5
      %v7393 = vor.u32 %v7389, %v7392
      %v7394 = vrot.slane %v7393, 4
      %v7396 = vshll.u32 %v7287, 16
      %v7398 = vrot.slane %v7396, 5
      %v7399 = vsel %vm493, %v7394, %v7398
      %s7400 = scalar_lea.vmem %s3, 8
      %v7401 = vld [vmem:[%s7400] sm:$0xf]
      %v7402 = vunpack.c.l.b16 %v7301
      %v7403 = vunpack.c.l.b16 %v7315
      %v7404 = vunpack.c.l.b16 %v7329
      %v7405 = vunpack.c.l.b16 %v7343
      %v7406 = vunpack.c.l.b16 %v7357
      %v7407 = vunpack.c.l.b16 %v7371
      %v7408 = vunpack.c.l.b16 %v7385
      %v7409 = vunpack.c.l.b16 %v7399
      %v7410 = vpack.c.b16 %v7403, %v7402
      %v7411 = vpack.c.b16 %v7405, %v7404
      %v7412 = vpack.c.b16 %v7407, %v7406
      %v7413 = vpack.c.b16 %v7409, %v7408
      %v7415 = vsel %vm7090, %v7410, 0
      %v7418 = vsel %vm7090, %v7411, 0
      %v7421 = vsel %vm7090, %v7412, 0
      %v7424 = vsel %vm7090, %v7413, 0
      %v7427 = vsel %vm7103, %v7401, 0
      %7429 = vmatprep.subr.bf16.mxu0 0
      %7430 = vmatpush1.bf16.msra.mxu0 0
      %7431 = vmatprep.subr.bf16.mxu0 0
      %7432 = vmatpush1.bf16.msra.mxu0 0
      %7433 = vmatprep.subr.bf16.mxu0 0
      %7434 = vmatpush1.bf16.msra.mxu0 0
      %7435 = vmatprep.subr.bf16.mxu0 0
      %7436 = vmatpush1.bf16.msra.mxu0 0
      %7437 = vmatprep.subr.bf16.mxu0 0
      %7438 = vmatpush1.bf16.msra.mxu0 0
      %7439 = vmatprep.subr.bf16.mxu0 0
      %7440 = vmatpush1.bf16.msra.mxu0 0
      %7441 = vmatprep.subr.bf16.mxu0 0
      %7442 = vmatpush1.bf16.msra.mxu0 0
      %7443 = vmatprep.subr.bf16.mxu0 0
      %7444 = vmatpush1.bf16.msra.mxu0 %v7427
      %7445 = vmatprep.subr.bf16.mxu0 0
      %7446 = vmatpush2.bf16.msra.mxu0 0
      %7447 = vmatprep.subr.bf16.mxu0 0
      %7448 = vmatpush2.bf16.msra.mxu0 0
      %7449 = vmatprep.subr.bf16.mxu0 0
      %7450 = vmatpush2.bf16.msra.mxu0 0
      %7451 = vmatprep.subr.bf16.mxu0 0
      %7452 = vmatpush2.bf16.msra.mxu0 0
      %7453 = vmatprep.subr.bf16.mxu0 0
      %7454 = vmatpush2.bf16.msra.mxu0 0
      %7455 = vmatprep.subr.bf16.mxu0 0
      %7456 = vmatpush2.bf16.msra.mxu0 0
      %7457 = vmatprep.subr.bf16.mxu0 0
      %7458 = vmatpush2.bf16.msra.mxu0 0
      %7459 = vmatprep.subr.bf16.mxu0 0
      %7460 = vmatpush2.bf16.msra.mxu0 0
      %7461 = vmatprep.mubr.bf16.mxu0 0
      %7462 = vmatmul.mubr.bf16.gmra.mxu0 %v7415
      %v7463 = vpop.f32.mrf.mxu0
      %v7464 = vadd.f32 0.0, %v7463
      %v7465 = vpop.f32.mrf.mxu0
      %v7466 = vpop.f32.mrf.mxu0
      %v7467 = vadd.f32 0.0, %v7466
      %v7468 = vpop.f32.mrf.mxu0
      %7469 = vmatprep.mubr.bf16.mxu0 0
      %7470 = vmatmul.mubr.bf16.gmra.mxu0 %v7418
      %v7471 = vpop.f32.mrf.mxu0
      %v7472 = vadd.f32 0.0, %v7471
      %v7473 = vpop.f32.mrf.mxu0
      %v7474 = vpop.f32.mrf.mxu0
      %v7475 = vadd.f32 0.0, %v7474
      %v7476 = vpop.f32.mrf.mxu0
      %7477 = vmatprep.mubr.bf16.mxu0 0
      %7478 = vmatmul.mubr.bf16.gmra.mxu0 %v7421
      %v7479 = vpop.f32.mrf.mxu0
      %v7480 = vadd.f32 0.0, %v7479
      %v7481 = vpop.f32.mrf.mxu0
      %v7482 = vpop.f32.mrf.mxu0
      %v7483 = vadd.f32 0.0, %v7482
      %v7484 = vpop.f32.mrf.mxu0
      %7485 = vmatprep.mubr.bf16.mxu0 0
      %7486 = vmatmul.mubr.bf16.gmra.mxu0 %v7424
      %v7487 = vpop.f32.mrf.mxu0
      %v7488 = vadd.f32 0.0, %v7487
      %v7489 = vpop.f32.mrf.mxu0
      %v7490 = vpop.f32.mrf.mxu0
      %v7491 = vadd.f32 0.0, %v7490
      %v7492 = vpop.f32.mrf.mxu0
      %7493 = vdwg.mxu0
      %v7494 = vadd.f32 %v7242, %v7464
      %v7495 = vadd.f32 %v7245, %v7467
      %v7496 = vadd.f32 %v7250, %v7472
      %v7497 = vadd.f32 %v7253, %v7475
      %v7498 = vadd.f32 %v7258, %v7480
      %v7499 = vadd.f32 %v7261, %v7483
      %v7500 = vadd.f32 %v7266, %v7488
      %v7501 = vadd.f32 %v7269, %v7491
      %v7502 = vld [vmem:[%s5066] sm:$0xf]
      %v7503 = vld [vmem:[%s5066 + $0x4] sm:$0x1]
      %v7504 = vld [vmem:[%s5066 + $0x8] sm:$0xf]
      %v7505 = vld [vmem:[%s5066 + $0xc] sm:$0x1]
      %v7506 = vld [vmem:[%s5066 + $0x10] sm:$0xf]
      %v7507 = vld [vmem:[%s5066 + $0x14] sm:$0x1]
      %v7508 = vld [vmem:[%s5066 + $0x18] sm:$0xf]
      %v7509 = vld [vmem:[%s5066 + $0x1c] sm:$0x1]
      %v7510 = vld [vmem:[%s5066 + $0x20] sm:$0xf]
      %v7511 = vld [vmem:[%s5066 + $0x24] sm:$0x1]
      %v7512 = vld [vmem:[%s5066 + $0x28] sm:$0xf]
      %v7513 = vld [vmem:[%s5066 + $0x2c] sm:$0x1]
      %v7514 = vld [vmem:[%s5066 + $0x30] sm:$0xf]
      %v7515 = vld [vmem:[%s5066 + $0x34] sm:$0x1]
      %v7516 = vld [vmem:[%s5066 + $0x38] sm:$0xf]
      %v7517 = vld [vmem:[%s5066 + $0x3c] sm:$0x1]
      %v7519 = vshrl.u32 %v7502, 16
      %v7521 = vrot.slane %v7519, 4
      %v7522 = vshll.u32 %v7502, 16
      %v7524 = vrot.slane %v7522, 5
      %v7525 = vor.u32 %v7521, %v7524
      %v7526 = vrot.slane %v7525, 4
      %v7528 = vshll.u32 %v7503, 16
      %v7530 = vrot.slane %v7528, 5
      %v7531 = vsel %vm493, %v7526, %v7530
      %v7533 = vshrl.u32 %v7504, 16
      %v7535 = vrot.slane %v7533, 4
      %v7536 = vshll.u32 %v7504, 16
      %v7538 = vrot.slane %v7536, 5
      %v7539 = vor.u32 %v7535, %v7538
      %v7540 = vrot.slane %v7539, 4
      %v7542 = vshll.u32 %v7505, 16
      %v7544 = vrot.slane %v7542, 5
      %v7545 = vsel %vm493, %v7540, %v7544
      %v7547 = vshrl.u32 %v7506, 16
      %v7549 = vrot.slane %v7547, 4
      %v7550 = vshll.u32 %v7506, 16
      %v7552 = vrot.slane %v7550, 5
      %v7553 = vor.u32 %v7549, %v7552
      %v7554 = vrot.slane %v7553, 4
      %v7556 = vshll.u32 %v7507, 16
      %v7558 = vrot.slane %v7556, 5
      %v7559 = vsel %vm493, %v7554, %v7558
      %v7561 = vshrl.u32 %v7508, 16
      %v7563 = vrot.slane %v7561, 4
      %v7564 = vshll.u32 %v7508, 16
      %v7566 = vrot.slane %v7564, 5
      %v7567 = vor.u32 %v7563, %v7566
      %v7568 = vrot.slane %v7567, 4
      %v7570 = vshll.u32 %v7509, 16
      %v7572 = vrot.slane %v7570, 5
      %v7573 = vsel %vm493, %v7568, %v7572
      %v7575 = vshrl.u32 %v7510, 16
      %v7577 = vrot.slane %v7575, 4
      %v7578 = vshll.u32 %v7510, 16
      %v7580 = vrot.slane %v7578, 5
      %v7581 = vor.u32 %v7577, %v7580
      %v7582 = vrot.slane %v7581, 4
      %v7584 = vshll.u32 %v7511, 16
      %v7586 = vrot.slane %v7584, 5
      %v7587 = vsel %vm493, %v7582, %v7586
      %v7589 = vshrl.u32 %v7512, 16
      %v7591 = vrot.slane %v7589, 4
      %v7592 = vshll.u32 %v7512, 16
      %v7594 = vrot.slane %v7592, 5
      %v7595 = vor.u32 %v7591, %v7594
      %v7596 = vrot.slane %v7595, 4
      %v7598 = vshll.u32 %v7513, 16
      %v7600 = vrot.slane %v7598, 5
      %v7601 = vsel %vm493, %v7596, %v7600
      %v7603 = vshrl.u32 %v7514, 16
      %v7605 = vrot.slane %v7603, 4
      %v7606 = vshll.u32 %v7514, 16
      %v7608 = vrot.slane %v7606, 5
      %v7609 = vor.u32 %v7605, %v7608
      %v7610 = vrot.slane %v7609, 4
      %v7612 = vshll.u32 %v7515, 16
      %v7614 = vrot.slane %v7612, 5
      %v7615 = vsel %vm493, %v7610, %v7614
      %v7617 = vshrl.u32 %v7516, 16
      %v7619 = vrot.slane %v7617, 4
      %v7620 = vshll.u32 %v7516, 16
      %v7622 = vrot.slane %v7620, 5
      %v7623 = vor.u32 %v7619, %v7622
      %v7624 = vrot.slane %v7623, 4
      %v7626 = vshll.u32 %v7517, 16
      %v7628 = vrot.slane %v7626, 5
      %v7629 = vsel %vm493, %v7624, %v7628
      %s7630 = scalar_lea.vmem %s3, 12
      %v7631 = vld [vmem:[%s7630] sm:$0xf]
      %v7632 = vunpack.c.l.b16 %v7531
      %v7633 = vunpack.c.l.b16 %v7545
      %v7634 = vunpack.c.l.b16 %v7559
      %v7635 = vunpack.c.l.b16 %v7573
      %v7636 = vunpack.c.l.b16 %v7587
      %v7637 = vunpack.c.l.b16 %v7601
      %v7638 = vunpack.c.l.b16 %v7615
      %v7639 = vunpack.c.l.b16 %v7629
      %v7640 = vpack.c.b16 %v7633, %v7632
      %v7641 = vpack.c.b16 %v7635, %v7634
      %v7642 = vpack.c.b16 %v7637, %v7636
      %v7643 = vpack.c.b16 %v7639, %v7638
      %v7645 = vsel %vm7090, %v7640, 0
      %v7648 = vsel %vm7090, %v7641, 0
      %v7651 = vsel %vm7090, %v7642, 0
      %v7654 = vsel %vm7090, %v7643, 0
      %v7657 = vsel %vm7103, %v7631, 0
      %7659 = vmatprep.subr.bf16.mxu0 0
      %7660 = vmatpush1.bf16.msra.mxu0 0
      %7661 = vmatprep.subr.bf16.mxu0 0
      %7662 = vmatpush1.bf16.msra.mxu0 0
      %7663 = vmatprep.subr.bf16.mxu0 0
      %7664 = vmatpush1.bf16.msra.mxu0 0
      %7665 = vmatprep.subr.bf16.mxu0 0
      %7666 = vmatpush1.bf16.msra.mxu0 0
      %7667 = vmatprep.subr.bf16.mxu0 0
      %7668 = vmatpush1.bf16.msra.mxu0 0
      %7669 = vmatprep.subr.bf16.mxu0 0
      %7670 = vmatpush1.bf16.msra.mxu0 0
      %7671 = vmatprep.subr.bf16.mxu0 0
      %7672 = vmatpush1.bf16.msra.mxu0 0
      %7673 = vmatprep.subr.bf16.mxu0 0
      %7674 = vmatpush1.bf16.msra.mxu0 %v7657
      %7675 = vmatprep.subr.bf16.mxu0 0
      %7676 = vmatpush2.bf16.msra.mxu0 0
      %7677 = vmatprep.subr.bf16.mxu0 0
      %7678 = vmatpush2.bf16.msra.mxu0 0
      %7679 = vmatprep.subr.bf16.mxu0 0
      %7680 = vmatpush2.bf16.msra.mxu0 0
      %7681 = vmatprep.subr.bf16.mxu0 0
      %7682 = vmatpush2.bf16.msra.mxu0 0
      %7683 = vmatprep.subr.bf16.mxu0 0
      %7684 = vmatpush2.bf16.msra.mxu0 0
      %7685 = vmatprep.subr.bf16.mxu0 0
      %7686 = vmatpush2.bf16.msra.mxu0 0
      %7687 = vmatprep.subr.bf16.mxu0 0
      %7688 = vmatpush2.bf16.msra.mxu0 0
      %7689 = vmatprep.subr.bf16.mxu0 0
      %7690 = vmatpush2.bf16.msra.mxu0 0
      %7691 = vmatprep.mubr.bf16.mxu0 0
      %7692 = vmatmul.mubr.bf16.gmra.mxu0 %v7645
      %v7693 = vpop.f32.mrf.mxu0
      %v7694 = vadd.f32 0.0, %v7693
      %v7695 = vpop.f32.mrf.mxu0
      %v7696 = vpop.f32.mrf.mxu0
      %v7697 = vadd.f32 0.0, %v7696
      %v7698 = vpop.f32.mrf.mxu0
      %7699 = vmatprep.mubr.bf16.mxu0 0
      %7700 = vmatmul.mubr.bf16.gmra.mxu0 %v7648
      %v7701 = vpop.f32.mrf.mxu0
      %v7702 = vadd.f32 0.0, %v7701
      %v7703 = vpop.f32.mrf.mxu0
      %v7704 = vpop.f32.mrf.mxu0
      %v7705 = vadd.f32 0.0, %v7704
      %v7706 = vpop.f32.mrf.mxu0
      %7707 = vmatprep.mubr.bf16.mxu0 0
      %7708 = vmatmul.mubr.bf16.gmra.mxu0 %v7651
      %v7709 = vpop.f32.mrf.mxu0
      %v7710 = vadd.f32 0.0, %v7709
      %v7711 = vpop.f32.mrf.mxu0
      %v7712 = vpop.f32.mrf.mxu0
      %v7713 = vadd.f32 0.0, %v7712
      %v7714 = vpop.f32.mrf.mxu0
      %7715 = vmatprep.mubr.bf16.mxu0 0
      %7716 = vmatmul.mubr.bf16.gmra.mxu0 %v7654
      %v7717 = vpop.f32.mrf.mxu0
      %v7718 = vadd.f32 0.0, %v7717
      %v7719 = vpop.f32.mrf.mxu0
      %v7720 = vpop.f32.mrf.mxu0
      %v7721 = vadd.f32 0.0, %v7720
      %v7722 = vpop.f32.mrf.mxu0
      %7723 = vdwg.mxu0
      %v7724 = vadd.f32 %v7494, %v7694
      %v7725 = vadd.f32 %v7495, %v7697
      %v7726 = vadd.f32 %v7496, %v7702
      %v7727 = vadd.f32 %v7497, %v7705
      %v7728 = vadd.f32 %v7498, %v7710
      %v7729 = vadd.f32 %v7499, %v7713
      %v7730 = vadd.f32 %v7500, %v7718
      %v7731 = vadd.f32 %v7501, %v7721
      %v7732 = vld [vmem:[%s3485] sm:$0xf]
      %v7733 = vld [vmem:[%s3485 + $0x8] sm:$0xf]
      %v7734 = vld [vmem:[%s3485 + $0x10] sm:$0xf]
      %v7735 = vld [vmem:[%s3485 + $0x18] sm:$0xf]
      %v7736 = vld [vmem:[%s3485 + $0x20] sm:$0xf]
      %v7737 = vld [vmem:[%s3485 + $0x28] sm:$0xf]
      %v7738 = vld [vmem:[%s3485 + $0x30] sm:$0xf]
      %v7739 = vld [vmem:[%s3485 + $0x38] sm:$0xf]
      %s7740 = scalar_lea.vmem %s3, 16
      %v7741 = vld [vmem:[%s7740] sm:$0xf]
      %v7750 = vunpack.c.l.b16 %v7732
      %v7751 = vunpack.c.l.b16 %v7733
      %v7752 = vunpack.c.l.b16 %v7734
      %v7753 = vunpack.c.l.b16 %v7735
      %v7754 = vunpack.c.l.b16 %v7736
      %v7755 = vunpack.c.l.b16 %v7737
      %v7756 = vunpack.c.l.b16 %v7738
      %v7757 = vunpack.c.l.b16 %v7739
      %v7758 = vpack.c.b16 %v7751, %v7750
      %v7759 = vpack.c.b16 %v7753, %v7752
      %v7760 = vpack.c.b16 %v7755, %v7754
      %v7761 = vpack.c.b16 %v7757, %v7756
      %v7763 = vsel %vm7090, %v7758, 0
      %v7766 = vsel %vm7090, %v7759, 0
      %v7769 = vsel %vm7090, %v7760, 0
      %v7772 = vsel %vm7090, %v7761, 0
      %v7775 = vsel %vm7103, %v7741, 0
      %7777 = vmatprep.subr.bf16.mxu0 0
      %7778 = vmatpush1.bf16.msra.mxu0 0
      %7779 = vmatprep.subr.bf16.mxu0 0
      %7780 = vmatpush1.bf16.msra.mxu0 0
      %7781 = vmatprep.subr.bf16.mxu0 0
      %7782 = vmatpush1.bf16.msra.mxu0 0
      %7783 = vmatprep.subr.bf16.mxu0 0
      %7784 = vmatpush1.bf16.msra.mxu0 0
      %7785 = vmatprep.subr.bf16.mxu0 0
      %7786 = vmatpush1.bf16.msra.mxu0 0
      %7787 = vmatprep.subr.bf16.mxu0 0
      %7788 = vmatpush1.bf16.msra.mxu0 0
      %7789 = vmatprep.subr.bf16.mxu0 0
      %7790 = vmatpush1.bf16.msra.mxu0 0
      %7791 = vmatprep.subr.bf16.mxu0 0
      %7792 = vmatpush1.bf16.msra.mxu0 %v7775
      %7793 = vmatprep.subr.bf16.mxu0 0
      %7794 = vmatpush2.bf16.msra.mxu0 0
      %7795 = vmatprep.subr.bf16.mxu0 0
      %7796 = vmatpush2.bf16.msra.mxu0 0
      %7797 = vmatprep.subr.bf16.mxu0 0
      %7798 = vmatpush2.bf16.msra.mxu0 0
      %7799 = vmatprep.subr.bf16.mxu0 0
      %7800 = vmatpush2.bf16.msra.mxu0 0
      %7801 = vmatprep.subr.bf16.mxu0 0
      %7802 = vmatpush2.bf16.msra.mxu0 0
      %7803 = vmatprep.subr.bf16.mxu0 0
      %7804 = vmatpush2.bf16.msra.mxu0 0
      %7805 = vmatprep.subr.bf16.mxu0 0
      %7806 = vmatpush2.bf16.msra.mxu0 0
      %7807 = vmatprep.subr.bf16.mxu0 0
      %7808 = vmatpush2.bf16.msra.mxu0 0
      %7809 = vmatprep.mubr.bf16.mxu0 0
      %7810 = vmatmul.mubr.bf16.gmra.mxu0 %v7763
      %v7811 = vpop.f32.mrf.mxu0
      %v7812 = vadd.f32 0.0, %v7811
      %v7813 = vpop.f32.mrf.mxu0
      %v7814 = vpop.f32.mrf.mxu0
      %v7815 = vadd.f32 0.0, %v7814
      %v7816 = vpop.f32.mrf.mxu0
      %7817 = vmatprep.mubr.bf16.mxu0 0
      %7818 = vmatmul.mubr.bf16.gmra.mxu0 %v7766
      %v7819 = vpop.f32.mrf.mxu0
      %v7820 = vadd.f32 0.0, %v7819
      %v7821 = vpop.f32.mrf.mxu0
      %v7822 = vpop.f32.mrf.mxu0
      %v7823 = vadd.f32 0.0, %v7822
      %v7824 = vpop.f32.mrf.mxu0
      %7825 = vmatprep.mubr.bf16.mxu0 0
      %7826 = vmatmul.mubr.bf16.gmra.mxu0 %v7769
      %v7827 = vpop.f32.mrf.mxu0
      %v7828 = vadd.f32 0.0, %v7827
      %v7829 = vpop.f32.mrf.mxu0
      %v7830 = vpop.f32.mrf.mxu0
      %v7831 = vadd.f32 0.0, %v7830
      %v7832 = vpop.f32.mrf.mxu0
      %7833 = vmatprep.mubr.bf16.mxu0 0
      %7834 = vmatmul.mubr.bf16.gmra.mxu0 %v7772
      %v7835 = vpop.f32.mrf.mxu0
      %v7836 = vadd.f32 0.0, %v7835
      %v7837 = vpop.f32.mrf.mxu0
      %v7838 = vpop.f32.mrf.mxu0
      %v7839 = vadd.f32 0.0, %v7838
      %v7840 = vpop.f32.mrf.mxu0
      %7841 = vdwg.mxu0
      %v7842 = vadd.f32 %v7724, %v7812
      %v7843 = vadd.f32 %v7725, %v7815
      %v7844 = vadd.f32 %v7726, %v7820
      %v7845 = vadd.f32 %v7727, %v7823
      %v7846 = vadd.f32 %v7728, %v7828
      %v7847 = vadd.f32 %v7729, %v7831
      %v7848 = vadd.f32 %v7730, %v7836
      %v7849 = vadd.f32 %v7731, %v7839
      %v7850 = vld [vmem:[%s1680] sm:$0xf]
      %v7851 = vld [vmem:[%s1680 + $0x8] sm:$0xf]
      %v7852 = vld [vmem:[%s1680 + $0x10] sm:$0xf]
      %v7853 = vld [vmem:[%s1680 + $0x18] sm:$0xf]
      %v7854 = vld [vmem:[%s1680 + $0x20] sm:$0xf]
      %v7855 = vld [vmem:[%s1680 + $0x28] sm:$0xf]
      %v7856 = vld [vmem:[%s1680 + $0x30] sm:$0xf]
      %v7857 = vld [vmem:[%s1680 + $0x38] sm:$0xf]
      %s7858 = scalar_lea.vmem %s3, 20
      %v7859 = vld [vmem:[%s7858] sm:$0xf]
      %v7868 = vunpack.c.l.b16 %v7850
      %v7869 = vunpack.c.l.b16 %v7851
      %v7870 = vunpack.c.l.b16 %v7852
      %v7871 = vunpack.c.l.b16 %v7853
      %v7872 = vunpack.c.l.b16 %v7854
      %v7873 = vunpack.c.l.b16 %v7855
      %v7874 = vunpack.c.l.b16 %v7856
      %v7875 = vunpack.c.l.b16 %v7857
      %v7876 = vpack.c.b16 %v7869, %v7868
      %v7877 = vpack.c.b16 %v7871, %v7870
      %v7878 = vpack.c.b16 %v7873, %v7872
      %v7879 = vpack.c.b16 %v7875, %v7874
      %v7881 = vsel %vm7090, %v7876, 0
      %v7884 = vsel %vm7090, %v7877, 0
      %v7887 = vsel %vm7090, %v7878, 0
      %v7890 = vsel %vm7090, %v7879, 0
      %v7893 = vsel %vm7103, %v7859, 0
      %7895 = vmatprep.subr.bf16.mxu0 0
      %7896 = vmatpush1.bf16.msra.mxu0 0
      %7897 = vmatprep.subr.bf16.mxu0 0
      %7898 = vmatpush1.bf16.msra.mxu0 0
      %7899 = vmatprep.subr.bf16.mxu0 0
      %7900 = vmatpush1.bf16.msra.mxu0 0
      %7901 = vmatprep.subr.bf16.mxu0 0
      %7902 = vmatpush1.bf16.msra.mxu0 0
      %7903 = vmatprep.subr.bf16.mxu0 0
      %7904 = vmatpush1.bf16.msra.mxu0 0
      %7905 = vmatprep.subr.bf16.mxu0 0
      %7906 = vmatpush1.bf16.msra.mxu0 0
      %7907 = vmatprep.subr.bf16.mxu0 0
      %7908 = vmatpush1.bf16.msra.mxu0 0
      %7909 = vmatprep.subr.bf16.mxu0 0
      %7910 = vmatpush1.bf16.msra.mxu0 %v7893
      %7911 = vmatprep.subr.bf16.mxu0 0
      %7912 = vmatpush2.bf16.msra.mxu0 0
      %7913 = vmatprep.subr.bf16.mxu0 0
      %7914 = vmatpush2.bf16.msra.mxu0 0
      %7915 = vmatprep.subr.bf16.mxu0 0
      %7916 = vmatpush2.bf16.msra.mxu0 0
      %7917 = vmatprep.subr.bf16.mxu0 0
      %7918 = vmatpush2.bf16.msra.mxu0 0
      %7919 = vmatprep.subr.bf16.mxu0 0
      %7920 = vmatpush2.bf16.msra.mxu0 0
      %7921 = vmatprep.subr.bf16.mxu0 0
      %7922 = vmatpush2.bf16.msra.mxu0 0
      %7923 = vmatprep.subr.bf16.mxu0 0
      %7924 = vmatpush2.bf16.msra.mxu0 0
      %7925 = vmatprep.subr.bf16.mxu0 0
      %7926 = vmatpush2.bf16.msra.mxu0 0
      %7927 = vmatprep.mubr.bf16.mxu0 0
      %7928 = vmatmul.mubr.bf16.gmra.mxu0 %v7881
      %v7929 = vpop.f32.mrf.mxu0
      %v7930 = vadd.f32 0.0, %v7929
      %v7931 = vpop.f32.mrf.mxu0
      %v7932 = vpop.f32.mrf.mxu0
      %v7933 = vadd.f32 0.0, %v7932
      %v7934 = vpop.f32.mrf.mxu0
      %7935 = vmatprep.mubr.bf16.mxu0 0
      %7936 = vmatmul.mubr.bf16.gmra.mxu0 %v7884
      %v7937 = vpop.f32.mrf.mxu0
      %v7938 = vadd.f32 0.0, %v7937
      %v7939 = vpop.f32.mrf.mxu0
      %v7940 = vpop.f32.mrf.mxu0
      %v7941 = vadd.f32 0.0, %v7940
      %v7942 = vpop.f32.mrf.mxu0
      %7943 = vmatprep.mubr.bf16.mxu0 0
      %7944 = vmatmul.mubr.bf16.gmra.mxu0 %v7887
      %v7945 = vpop.f32.mrf.mxu0
      %v7946 = vadd.f32 0.0, %v7945
      %v7947 = vpop.f32.mrf.mxu0
      %v7948 = vpop.f32.mrf.mxu0
      %v7949 = vadd.f32 0.0, %v7948
      %v7950 = vpop.f32.mrf.mxu0
      %7951 = vmatprep.mubr.bf16.mxu0 0
      %7952 = vmatmul.mubr.bf16.gmra.mxu0 %v7890
      %v7953 = vpop.f32.mrf.mxu0
      %v7954 = vadd.f32 0.0, %v7953
      %v7955 = vpop.f32.mrf.mxu0
      %v7956 = vpop.f32.mrf.mxu0
      %v7957 = vadd.f32 0.0, %v7956
      %v7958 = vpop.f32.mrf.mxu0
      %7959 = vdwg.mxu0
      %v7960 = vadd.f32 %v7842, %v7930
      %v7961 = vadd.f32 %v7843, %v7933
      %v7962 = vadd.f32 %v7844, %v7938
      %v7963 = vadd.f32 %v7845, %v7941
      %v7964 = vadd.f32 %v7846, %v7946
      %v7965 = vadd.f32 %v7847, %v7949
      %v7966 = vadd.f32 %v7848, %v7954
      %v7967 = vadd.f32 %v7849, %v7957
      %v7968 = vld [vmem:[%s3485] sm:$0xf]
      %v7969 = vld [vmem:[%s3485 + $0x4] sm:$0x1]
      %v7970 = vld [vmem:[%s3485 + $0x8] sm:$0xf]
      %v7971 = vld [vmem:[%s3485 + $0xc] sm:$0x1]
      %v7972 = vld [vmem:[%s3485 + $0x10] sm:$0xf]
      %v7973 = vld [vmem:[%s3485 + $0x14] sm:$0x1]
      %v7974 = vld [vmem:[%s3485 + $0x18] sm:$0xf]
      %v7975 = vld [vmem:[%s3485 + $0x1c] sm:$0x1]
      %v7976 = vld [vmem:[%s3485 + $0x20] sm:$0xf]
      %v7977 = vld [vmem:[%s3485 + $0x24] sm:$0x1]
      %v7978 = vld [vmem:[%s3485 + $0x28] sm:$0xf]
      %v7979 = vld [vmem:[%s3485 + $0x2c] sm:$0x1]
      %v7980 = vld [vmem:[%s3485 + $0x30] sm:$0xf]
      %v7981 = vld [vmem:[%s3485 + $0x34] sm:$0x1]
      %v7982 = vld [vmem:[%s3485 + $0x38] sm:$0xf]
      %v7983 = vld [vmem:[%s3485 + $0x3c] sm:$0x1]
      %v7985 = vshrl.u32 %v7968, 16
      %v7987 = vrot.slane %v7985, 4
      %v7988 = vshll.u32 %v7968, 16
      %v7990 = vrot.slane %v7988, 5
      %v7991 = vor.u32 %v7987, %v7990
      %v7992 = vrot.slane %v7991, 4
      %v7994 = vshll.u32 %v7969, 16
      %v7996 = vrot.slane %v7994, 5
      %v7997 = vsel %vm493, %v7992, %v7996
      %v7999 = vshrl.u32 %v7970, 16
      %v8001 = vrot.slane %v7999, 4
      %v8002 = vshll.u32 %v7970, 16
      %v8004 = vrot.slane %v8002, 5
      %v8005 = vor.u32 %v8001, %v8004
      %v8006 = vrot.slane %v8005, 4
      %v8008 = vshll.u32 %v7971, 16
      %v8010 = vrot.slane %v8008, 5
      %v8011 = vsel %vm493, %v8006, %v8010
      %v8013 = vshrl.u32 %v7972, 16
      %v8015 = vrot.slane %v8013, 4
      %v8016 = vshll.u32 %v7972, 16
      %v8018 = vrot.slane %v8016, 5
      %v8019 = vor.u32 %v8015, %v8018
      %v8020 = vrot.slane %v8019, 4
      %v8022 = vshll.u32 %v7973, 16
      %v8024 = vrot.slane %v8022, 5
      %v8025 = vsel %vm493, %v8020, %v8024
      %v8027 = vshrl.u32 %v7974, 16
      %v8029 = vrot.slane %v8027, 4
      %v8030 = vshll.u32 %v7974, 16
      %v8032 = vrot.slane %v8030, 5
      %v8033 = vor.u32 %v8029, %v8032
      %v8034 = vrot.slane %v8033, 4
      %v8036 = vshll.u32 %v7975, 16
      %v8038 = vrot.slane %v8036, 5
      %v8039 = vsel %vm493, %v8034, %v8038
      %v8041 = vshrl.u32 %v7976, 16
      %v8043 = vrot.slane %v8041, 4
      %v8044 = vshll.u32 %v7976, 16
      %v8046 = vrot.slane %v8044, 5
      %v8047 = vor.u32 %v8043, %v8046
      %v8048 = vrot.slane %v8047, 4
      %v8050 = vshll.u32 %v7977, 16
      %v8052 = vrot.slane %v8050, 5
      %v8053 = vsel %vm493, %v8048, %v8052
      %v8055 = vshrl.u32 %v7978, 16
      %v8057 = vrot.slane %v8055, 4
      %v8058 = vshll.u32 %v7978, 16
      %v8060 = vrot.slane %v8058, 5
      %v8061 = vor.u32 %v8057, %v8060
      %v8062 = vrot.slane %v8061, 4
      %v8064 = vshll.u32 %v7979, 16
      %v8066 = vrot.slane %v8064, 5
      %v8067 = vsel %vm493, %v8062, %v8066
      %v8069 = vshrl.u32 %v7980, 16
      %v8071 = vrot.slane %v8069, 4
      %v8072 = vshll.u32 %v7980, 16
      %v8074 = vrot.slane %v8072, 5
      %v8075 = vor.u32 %v8071, %v8074
      %v8076 = vrot.slane %v8075, 4
      %v8078 = vshll.u32 %v7981, 16
      %v8080 = vrot.slane %v8078, 5
      %v8081 = vsel %vm493, %v8076, %v8080
      %v8083 = vshrl.u32 %v7982, 16
      %v8085 = vrot.slane %v8083, 4
      %v8086 = vshll.u32 %v7982, 16
      %v8088 = vrot.slane %v8086, 5
      %v8089 = vor.u32 %v8085, %v8088
      %v8090 = vrot.slane %v8089, 4
      %v8092 = vshll.u32 %v7983, 16
      %v8094 = vrot.slane %v8092, 5
      %v8095 = vsel %vm493, %v8090, %v8094
      %s8096 = scalar_lea.vmem %s3, 24
      %v8097 = vld [vmem:[%s8096] sm:$0xf]
      %v8098 = vunpack.c.l.b16 %v7997
      %v8099 = vunpack.c.l.b16 %v8011
      %v8100 = vunpack.c.l.b16 %v8025
      %v8101 = vunpack.c.l.b16 %v8039
      %v8102 = vunpack.c.l.b16 %v8053
      %v8103 = vunpack.c.l.b16 %v8067
      %v8104 = vunpack.c.l.b16 %v8081
      %v8105 = vunpack.c.l.b16 %v8095
      %v8106 = vpack.c.b16 %v8099, %v8098
      %v8107 = vpack.c.b16 %v8101, %v8100
      %v8108 = vpack.c.b16 %v8103, %v8102
      %v8109 = vpack.c.b16 %v8105, %v8104
      %v8111 = vsel %vm7090, %v8106, 0
      %v8114 = vsel %vm7090, %v8107, 0
      %v8117 = vsel %vm7090, %v8108, 0
      %v8120 = vsel %vm7090, %v8109, 0
      %v8123 = vsel %vm7103, %v8097, 0
      %8125 = vmatprep.subr.bf16.mxu0 0
      %8126 = vmatpush1.bf16.msra.mxu0 0
      %8127 = vmatprep.subr.bf16.mxu0 0
      %8128 = vmatpush1.bf16.msra.mxu0 0
      %8129 = vmatprep.subr.bf16.mxu0 0
      %8130 = vmatpush1.bf16.msra.mxu0 0
      %8131 = vmatprep.subr.bf16.mxu0 0
      %8132 = vmatpush1.bf16.msra.mxu0 0
      %8133 = vmatprep.subr.bf16.mxu0 0
      %8134 = vmatpush1.bf16.msra.mxu0 0
      %8135 = vmatprep.subr.bf16.mxu0 0
      %8136 = vmatpush1.bf16.msra.mxu0 0
      %8137 = vmatprep.subr.bf16.mxu0 0
      %8138 = vmatpush1.bf16.msra.mxu0 0
      %8139 = vmatprep.subr.bf16.mxu0 0
      %8140 = vmatpush1.bf16.msra.mxu0 %v8123
      %8141 = vmatprep.subr.bf16.mxu0 0
      %8142 = vmatpush2.bf16.msra.mxu0 0
      %8143 = vmatprep.subr.bf16.mxu0 0
      %8144 = vmatpush2.bf16.msra.mxu0 0
      %8145 = vmatprep.subr.bf16.mxu0 0
      %8146 = vmatpush2.bf16.msra.mxu0 0
      %8147 = vmatprep.subr.bf16.mxu0 0
      %8148 = vmatpush2.bf16.msra.mxu0 0
      %8149 = vmatprep.subr.bf16.mxu0 0
      %8150 = vmatpush2.bf16.msra.mxu0 0
      %8151 = vmatprep.subr.bf16.mxu0 0
      %8152 = vmatpush2.bf16.msra.mxu0 0
      %8153 = vmatprep.subr.bf16.mxu0 0
      %8154 = vmatpush2.bf16.msra.mxu0 0
      %8155 = vmatprep.subr.bf16.mxu0 0
      %8156 = vmatpush2.bf16.msra.mxu0 0
      %8157 = vmatprep.mubr.bf16.mxu0 0
      %8158 = vmatmul.mubr.bf16.gmra.mxu0 %v8111
      %v8159 = vpop.f32.mrf.mxu0
      %v8160 = vadd.f32 0.0, %v8159
      %v8161 = vpop.f32.mrf.mxu0
      %v8162 = vpop.f32.mrf.mxu0
      %v8163 = vadd.f32 0.0, %v8162
      %v8164 = vpop.f32.mrf.mxu0
      %8165 = vmatprep.mubr.bf16.mxu0 0
      %8166 = vmatmul.mubr.bf16.gmra.mxu0 %v8114
      %v8167 = vpop.f32.mrf.mxu0
      %v8168 = vadd.f32 0.0, %v8167
      %v8169 = vpop.f32.mrf.mxu0
      %v8170 = vpop.f32.mrf.mxu0
      %v8171 = vadd.f32 0.0, %v8170
      %v8172 = vpop.f32.mrf.mxu0
      %8173 = vmatprep.mubr.bf16.mxu0 0
      %8174 = vmatmul.mubr.bf16.gmra.mxu0 %v8117
      %v8175 = vpop.f32.mrf.mxu0
      %v8176 = vadd.f32 0.0, %v8175
      %v8177 = vpop.f32.mrf.mxu0
      %v8178 = vpop.f32.mrf.mxu0
      %v8179 = vadd.f32 0.0, %v8178
      %v8180 = vpop.f32.mrf.mxu0
      %8181 = vmatprep.mubr.bf16.mxu0 0
      %8182 = vmatmul.mubr.bf16.gmra.mxu0 %v8120
      %v8183 = vpop.f32.mrf.mxu0
      %v8184 = vadd.f32 0.0, %v8183
      %v8185 = vpop.f32.mrf.mxu0
      %v8186 = vpop.f32.mrf.mxu0
      %v8187 = vadd.f32 0.0, %v8186
      %v8188 = vpop.f32.mrf.mxu0
      %8189 = vdwg.mxu0
      %v8190 = vadd.f32 %v7960, %v8160
      %v8191 = vadd.f32 %v7961, %v8163
      %v8192 = vadd.f32 %v7962, %v8168
      %v8193 = vadd.f32 %v7963, %v8171
      %v8194 = vadd.f32 %v7964, %v8176
      %v8195 = vadd.f32 %v7965, %v8179
      %v8196 = vadd.f32 %v7966, %v8184
      %v8197 = vadd.f32 %v7967, %v8187
      %v8198 = vld [vmem:[%s1680] sm:$0xf]
      %v8199 = vld [vmem:[%s1680 + $0x4] sm:$0x1]
      %v8200 = vld [vmem:[%s1680 + $0x8] sm:$0xf]
      %v8201 = vld [vmem:[%s1680 + $0xc] sm:$0x1]
      %v8202 = vld [vmem:[%s1680 + $0x10] sm:$0xf]
      %v8203 = vld [vmem:[%s1680 + $0x14] sm:$0x1]
      %v8204 = vld [vmem:[%s1680 + $0x18] sm:$0xf]
      %v8205 = vld [vmem:[%s1680 + $0x1c] sm:$0x1]
      %v8206 = vld [vmem:[%s1680 + $0x20] sm:$0xf]
      %v8207 = vld [vmem:[%s1680 + $0x24] sm:$0x1]
      %v8208 = vld [vmem:[%s1680 + $0x28] sm:$0xf]
      %v8209 = vld [vmem:[%s1680 + $0x2c] sm:$0x1]
      %v8210 = vld [vmem:[%s1680 + $0x30] sm:$0xf]
      %v8211 = vld [vmem:[%s1680 + $0x34] sm:$0x1]
      %v8212 = vld [vmem:[%s1680 + $0x38] sm:$0xf]
      %v8213 = vld [vmem:[%s1680 + $0x3c] sm:$0x1]
      %v8215 = vshrl.u32 %v8198, 16
      %v8217 = vrot.slane %v8215, 4
      %v8218 = vshll.u32 %v8198, 16
      %v8220 = vrot.slane %v8218, 5
      %v8221 = vor.u32 %v8217, %v8220
      %v8222 = vrot.slane %v8221, 4
      %v8224 = vshll.u32 %v8199, 16
      %v8226 = vrot.slane %v8224, 5
      %v8227 = vsel %vm493, %v8222, %v8226
      %v8229 = vshrl.u32 %v8200, 16
      %v8231 = vrot.slane %v8229, 4
      %v8232 = vshll.u32 %v8200, 16
      %v8234 = vrot.slane %v8232, 5
      %v8235 = vor.u32 %v8231, %v8234
      %v8236 = vrot.slane %v8235, 4
      %v8238 = vshll.u32 %v8201, 16
      %v8240 = vrot.slane %v8238, 5
      %v8241 = vsel %vm493, %v8236, %v8240
      %v8243 = vshrl.u32 %v8202, 16
      %v8245 = vrot.slane %v8243, 4
      %v8246 = vshll.u32 %v8202, 16
      %v8248 = vrot.slane %v8246, 5
      %v8249 = vor.u32 %v8245, %v8248
      %v8250 = vrot.slane %v8249, 4
      %v8252 = vshll.u32 %v8203, 16
      %v8254 = vrot.slane %v8252, 5
      %v8255 = vsel %vm493, %v8250, %v8254
      %v8257 = vshrl.u32 %v8204, 16
      %v8259 = vrot.slane %v8257, 4
      %v8260 = vshll.u32 %v8204, 16
      %v8262 = vrot.slane %v8260, 5
      %v8263 = vor.u32 %v8259, %v8262
      %v8264 = vrot.slane %v8263, 4
      %v8266 = vshll.u32 %v8205, 16
      %v8268 = vrot.slane %v8266, 5
      %v8269 = vsel %vm493, %v8264, %v8268
      %v8271 = vshrl.u32 %v8206, 16
      %v8273 = vrot.slane %v8271, 4
      %v8274 = vshll.u32 %v8206, 16
      %v8276 = vrot.slane %v8274, 5
      %v8277 = vor.u32 %v8273, %v8276
      %v8278 = vrot.slane %v8277, 4
      %v8280 = vshll.u32 %v8207, 16
      %v8282 = vrot.slane %v8280, 5
      %v8283 = vsel %vm493, %v8278, %v8282
      %v8285 = vshrl.u32 %v8208, 16
      %v8287 = vrot.slane %v8285, 4
      %v8288 = vshll.u32 %v8208, 16
      %v8290 = vrot.slane %v8288, 5
      %v8291 = vor.u32 %v8287, %v8290
      %v8292 = vrot.slane %v8291, 4
      %v8294 = vshll.u32 %v8209, 16
      %v8296 = vrot.slane %v8294, 5
      %v8297 = vsel %vm493, %v8292, %v8296
      %v8299 = vshrl.u32 %v8210, 16
      %v8301 = vrot.slane %v8299, 4
      %v8302 = vshll.u32 %v8210, 16
      %v8304 = vrot.slane %v8302, 5
      %v8305 = vor.u32 %v8301, %v8304
      %v8306 = vrot.slane %v8305, 4
      %v8308 = vshll.u32 %v8211, 16
      %v8310 = vrot.slane %v8308, 5
      %v8311 = vsel %vm493, %v8306, %v8310
      %v8313 = vshrl.u32 %v8212, 16
      %v8315 = vrot.slane %v8313, 4
      %v8316 = vshll.u32 %v8212, 16
      %v8318 = vrot.slane %v8316, 5
      %v8319 = vor.u32 %v8315, %v8318
      %v8320 = vrot.slane %v8319, 4
      %v8322 = vshll.u32 %v8213, 16
      %v8324 = vrot.slane %v8322, 5
      %v8325 = vsel %vm493, %v8320, %v8324
      %s8326 = scalar_lea.vmem %s3, 28
      %v8327 = vld [vmem:[%s8326] sm:$0xf]
      %v8328 = vunpack.c.l.b16 %v8227
      %v8329 = vunpack.c.l.b16 %v8241
      %v8330 = vunpack.c.l.b16 %v8255
      %v8331 = vunpack.c.l.b16 %v8269
      %v8332 = vunpack.c.l.b16 %v8283
      %v8333 = vunpack.c.l.b16 %v8297
      %v8334 = vunpack.c.l.b16 %v8311
      %v8335 = vunpack.c.l.b16 %v8325
      %v8336 = vpack.c.b16 %v8329, %v8328
      %v8337 = vpack.c.b16 %v8331, %v8330
      %v8338 = vpack.c.b16 %v8333, %v8332
      %v8339 = vpack.c.b16 %v8335, %v8334
      %v8341 = vsel %vm7090, %v8336, 0
      %v8344 = vsel %vm7090, %v8337, 0
      %v8347 = vsel %vm7090, %v8338, 0
      %v8350 = vsel %vm7090, %v8339, 0
      %v8353 = vsel %vm7103, %v8327, 0
      %8355 = vmatprep.subr.bf16.mxu0 0
      %8356 = vmatpush1.bf16.msra.mxu0 0
      %8357 = vmatprep.subr.bf16.mxu0 0
      %8358 = vmatpush1.bf16.msra.mxu0 0
      %8359 = vmatprep.subr.bf16.mxu0 0
      %8360 = vmatpush1.bf16.msra.mxu0 0
      %8361 = vmatprep.subr.bf16.mxu0 0
      %8362 = vmatpush1.bf16.msra.mxu0 0
      %8363 = vmatprep.subr.bf16.mxu0 0
      %8364 = vmatpush1.bf16.msra.mxu0 0
      %8365 = vmatprep.subr.bf16.mxu0 0
      %8366 = vmatpush1.bf16.msra.mxu0 0
      %8367 = vmatprep.subr.bf16.mxu0 0
      %8368 = vmatpush1.bf16.msra.mxu0 0
      %8369 = vmatprep.subr.bf16.mxu0 0
      %8370 = vmatpush1.bf16.msra.mxu0 %v8353
      %8371 = vmatprep.subr.bf16.mxu0 0
      %8372 = vmatpush2.bf16.msra.mxu0 0
      %8373 = vmatprep.subr.bf16.mxu0 0
      %8374 = vmatpush2.bf16.msra.mxu0 0
      %8375 = vmatprep.subr.bf16.mxu0 0
      %8376 = vmatpush2.bf16.msra.mxu0 0
      %8377 = vmatprep.subr.bf16.mxu0 0
      %8378 = vmatpush2.bf16.msra.mxu0 0
      %8379 = vmatprep.subr.bf16.mxu0 0
      %8380 = vmatpush2.bf16.msra.mxu0 0
      %8381 = vmatprep.subr.bf16.mxu0 0
      %8382 = vmatpush2.bf16.msra.mxu0 0
      %8383 = vmatprep.subr.bf16.mxu0 0
      %8384 = vmatpush2.bf16.msra.mxu0 0
      %8385 = vmatprep.subr.bf16.mxu0 0
      %8386 = vmatpush2.bf16.msra.mxu0 0
      %8387 = vmatprep.mubr.bf16.mxu0 0
      %8388 = vmatmul.mubr.bf16.gmra.mxu0 %v8341
      %v8389 = vpop.f32.mrf.mxu0
      %v8390 = vadd.f32 0.0, %v8389
      %v8391 = vpop.f32.mrf.mxu0
      %v8392 = vpop.f32.mrf.mxu0
      %v8393 = vadd.f32 0.0, %v8392
      %v8394 = vpop.f32.mrf.mxu0
      %8395 = vmatprep.mubr.bf16.mxu0 0
      %8396 = vmatmul.mubr.bf16.gmra.mxu0 %v8344
      %v8397 = vpop.f32.mrf.mxu0
      %v8398 = vadd.f32 0.0, %v8397
      %v8399 = vpop.f32.mrf.mxu0
      %v8400 = vpop.f32.mrf.mxu0
      %v8401 = vadd.f32 0.0, %v8400
      %v8402 = vpop.f32.mrf.mxu0
      %8403 = vmatprep.mubr.bf16.mxu0 0
      %8404 = vmatmul.mubr.bf16.gmra.mxu0 %v8347
      %v8405 = vpop.f32.mrf.mxu0
      %v8406 = vadd.f32 0.0, %v8405
      %v8407 = vpop.f32.mrf.mxu0
      %v8408 = vpop.f32.mrf.mxu0
      %v8409 = vadd.f32 0.0, %v8408
      %v8410 = vpop.f32.mrf.mxu0
      %8411 = vmatprep.mubr.bf16.mxu0 0
      %8412 = vmatmul.mubr.bf16.gmra.mxu0 %v8350
      %v8413 = vpop.f32.mrf.mxu0
      %v8414 = vadd.f32 0.0, %v8413
      %v8415 = vpop.f32.mrf.mxu0
      %v8416 = vpop.f32.mrf.mxu0
      %v8417 = vadd.f32 0.0, %v8416
      %v8418 = vpop.f32.mrf.mxu0
      %8419 = vdwg.mxu0
      %v8420 = vadd.f32 %v8190, %v8390
      %v8421 = vadd.f32 %v8191, %v8393
      %v8422 = vadd.f32 %v8192, %v8398
      %v8423 = vadd.f32 %v8193, %v8401
      %v8424 = vadd.f32 %v8194, %v8406
      %v8425 = vadd.f32 %v8195, %v8409
      %v8426 = vadd.f32 %v8196, %v8414
      %v8427 = vadd.f32 %v8197, %v8417
      %v8428 = vld [vmem:[%s7002] sm:$0xf]
      %v8429 = vld [vmem:[%s7002 + $0x8] sm:$0xf]
      %v8430 = vld [vmem:[%s7002 + $0x10] sm:$0xf]
      %v8431 = vld [vmem:[%s7002 + $0x18] sm:$0xf]
      %v8432 = vld [vmem:[%s7002 + $0x20] sm:$0xf]
      %v8433 = vld [vmem:[%s7002 + $0x28] sm:$0xf]
      %v8434 = vld [vmem:[%s7002 + $0x30] sm:$0xf]
      %v8435 = vld [vmem:[%s7002 + $0x38] sm:$0xf]
      %s8436 = scalar_lea.vmem %s3, 32
      %v8437 = vld [vmem:[%s8436] sm:$0xf]
      %v8446 = vunpack.c.l.b16 %v8428
      %v8447 = vunpack.c.l.b16 %v8429
      %v8448 = vunpack.c.l.b16 %v8430
      %v8449 = vunpack.c.l.b16 %v8431
      %v8450 = vunpack.c.l.b16 %v8432
      %v8451 = vunpack.c.l.b16 %v8433
      %v8452 = vunpack.c.l.b16 %v8434
      %v8453 = vunpack.c.l.b16 %v8435
      %v8454 = vpack.c.b16 %v8447, %v8446
      %v8455 = vpack.c.b16 %v8449, %v8448
      %v8456 = vpack.c.b16 %v8451, %v8450
      %v8457 = vpack.c.b16 %v8453, %v8452
      %v8459 = vsel %vm7090, %v8454, 0
      %v8462 = vsel %vm7090, %v8455, 0
      %v8465 = vsel %vm7090, %v8456, 0
      %v8468 = vsel %vm7090, %v8457, 0
      %v8471 = vsel %vm7103, %v8437, 0
      %8473 = vmatprep.subr.bf16.mxu0 0
      %8474 = vmatpush1.bf16.msra.mxu0 0
      %8475 = vmatprep.subr.bf16.mxu0 0
      %8476 = vmatpush1.bf16.msra.mxu0 0
      %8477 = vmatprep.subr.bf16.mxu0 0
      %8478 = vmatpush1.bf16.msra.mxu0 0
      %8479 = vmatprep.subr.bf16.mxu0 0
      %8480 = vmatpush1.bf16.msra.mxu0 0
      %8481 = vmatprep.subr.bf16.mxu0 0
      %8482 = vmatpush1.bf16.msra.mxu0 0
      %8483 = vmatprep.subr.bf16.mxu0 0
      %8484 = vmatpush1.bf16.msra.mxu0 0
      %8485 = vmatprep.subr.bf16.mxu0 0
      %8486 = vmatpush1.bf16.msra.mxu0 0
      %8487 = vmatprep.subr.bf16.mxu0 0
      %8488 = vmatpush1.bf16.msra.mxu0 %v8471
      %8489 = vmatprep.subr.bf16.mxu0 0
      %8490 = vmatpush2.bf16.msra.mxu0 0
      %8491 = vmatprep.subr.bf16.mxu0 0
      %8492 = vmatpush2.bf16.msra.mxu0 0
      %8493 = vmatprep.subr.bf16.mxu0 0
      %8494 = vmatpush2.bf16.msra.mxu0 0
      %8495 = vmatprep.subr.bf16.mxu0 0
      %8496 = vmatpush2.bf16.msra.mxu0 0
      %8497 = vmatprep.subr.bf16.mxu0 0
      %8498 = vmatpush2.bf16.msra.mxu0 0
      %8499 = vmatprep.subr.bf16.mxu0 0
      %8500 = vmatpush2.bf16.msra.mxu0 0
      %8501 = vmatprep.subr.bf16.mxu0 0
      %8502 = vmatpush2.bf16.msra.mxu0 0
      %8503 = vmatprep.subr.bf16.mxu0 0
      %8504 = vmatpush2.bf16.msra.mxu0 0
      %8505 = vmatprep.mubr.bf16.mxu0 0
      %8506 = vmatmul.mubr.bf16.gmra.mxu0 %v8459
      %v8507 = vpop.f32.mrf.mxu0
      %v8508 = vadd.f32 0.0, %v8507
      %v8509 = vpop.f32.mrf.mxu0
      %v8510 = vpop.f32.mrf.mxu0
      %v8511 = vadd.f32 0.0, %v8510
      %v8512 = vpop.f32.mrf.mxu0
      %8513 = vmatprep.mubr.bf16.mxu0 0
      %8514 = vmatmul.mubr.bf16.gmra.mxu0 %v8462
      %v8515 = vpop.f32.mrf.mxu0
      %v8516 = vadd.f32 0.0, %v8515
      %v8517 = vpop.f32.mrf.mxu0
      %v8518 = vpop.f32.mrf.mxu0
      %v8519 = vadd.f32 0.0, %v8518
      %v8520 = vpop.f32.mrf.mxu0
      %8521 = vmatprep.mubr.bf16.mxu0 0
      %8522 = vmatmul.mubr.bf16.gmra.mxu0 %v8465
      %v8523 = vpop.f32.mrf.mxu0
      %v8524 = vadd.f32 0.0, %v8523
      %v8525 = vpop.f32.mrf.mxu0
      %v8526 = vpop.f32.mrf.mxu0
      %v8527 = vadd.f32 0.0, %v8526
      %v8528 = vpop.f32.mrf.mxu0
      %8529 = vmatprep.mubr.bf16.mxu0 0
      %8530 = vmatmul.mubr.bf16.gmra.mxu0 %v8468
      %v8531 = vpop.f32.mrf.mxu0
      %v8532 = vadd.f32 0.0, %v8531
      %v8533 = vpop.f32.mrf.mxu0
      %v8534 = vpop.f32.mrf.mxu0
      %v8535 = vadd.f32 0.0, %v8534
      %v8536 = vpop.f32.mrf.mxu0
      %8537 = vdwg.mxu0
      %v8538 = vadd.f32 %v8420, %v8508
      %v8539 = vadd.f32 %v8421, %v8511
      %v8540 = vadd.f32 %v8422, %v8516
      %v8541 = vadd.f32 %v8423, %v8519
      %v8542 = vadd.f32 %v8424, %v8524
      %v8543 = vadd.f32 %v8425, %v8527
      %v8544 = vadd.f32 %v8426, %v8532
      %v8545 = vadd.f32 %v8427, %v8535
      %v8546 = vld [vmem:[%s5126] sm:$0xf]
      %v8547 = vld [vmem:[%s5126 + $0x8] sm:$0xf]
      %v8548 = vld [vmem:[%s5126 + $0x10] sm:$0xf]
      %v8549 = vld [vmem:[%s5126 + $0x18] sm:$0xf]
      %v8550 = vld [vmem:[%s5126 + $0x20] sm:$0xf]
      %v8551 = vld [vmem:[%s5126 + $0x28] sm:$0xf]
      %v8552 = vld [vmem:[%s5126 + $0x30] sm:$0xf]
      %v8553 = vld [vmem:[%s5126 + $0x38] sm:$0xf]
      %s8554 = scalar_lea.vmem %s3, 36
      %v8555 = vld [vmem:[%s8554] sm:$0xf]
      %v8564 = vunpack.c.l.b16 %v8546
      %v8565 = vunpack.c.l.b16 %v8547
      %v8566 = vunpack.c.l.b16 %v8548
      %v8567 = vunpack.c.l.b16 %v8549
      %v8568 = vunpack.c.l.b16 %v8550
      %v8569 = vunpack.c.l.b16 %v8551
      %v8570 = vunpack.c.l.b16 %v8552
      %v8571 = vunpack.c.l.b16 %v8553
      %v8572 = vpack.c.b16 %v8565, %v8564
      %v8573 = vpack.c.b16 %v8567, %v8566
      %v8574 = vpack.c.b16 %v8569, %v8568
      %v8575 = vpack.c.b16 %v8571, %v8570
      %v8577 = vsel %vm7090, %v8572, 0
      %v8580 = vsel %vm7090, %v8573, 0
      %v8583 = vsel %vm7090, %v8574, 0
      %v8586 = vsel %vm7090, %v8575, 0
      %v8589 = vsel %vm7103, %v8555, 0
      %8591 = vmatprep.subr.bf16.mxu0 0
      %8592 = vmatpush1.bf16.msra.mxu0 0
      %8593 = vmatprep.subr.bf16.mxu0 0
      %8594 = vmatpush1.bf16.msra.mxu0 0
      %8595 = vmatprep.subr.bf16.mxu0 0
      %8596 = vmatpush1.bf16.msra.mxu0 0
      %8597 = vmatprep.subr.bf16.mxu0 0
      %8598 = vmatpush1.bf16.msra.mxu0 0
      %8599 = vmatprep.subr.bf16.mxu0 0
      %8600 = vmatpush1.bf16.msra.mxu0 0
      %8601 = vmatprep.subr.bf16.mxu0 0
      %8602 = vmatpush1.bf16.msra.mxu0 0
      %8603 = vmatprep.subr.bf16.mxu0 0
      %8604 = vmatpush1.bf16.msra.mxu0 0
      %8605 = vmatprep.subr.bf16.mxu0 0
      %8606 = vmatpush1.bf16.msra.mxu0 %v8589
      %8607 = vmatprep.subr.bf16.mxu0 0
      %8608 = vmatpush2.bf16.msra.mxu0 0
      %8609 = vmatprep.subr.bf16.mxu0 0
      %8610 = vmatpush2.bf16.msra.mxu0 0
      %8611 = vmatprep.subr.bf16.mxu0 0
      %8612 = vmatpush2.bf16.msra.mxu0 0
      %8613 = vmatprep.subr.bf16.mxu0 0
      %8614 = vmatpush2.bf16.msra.mxu0 0
      %8615 = vmatprep.subr.bf16.mxu0 0
      %8616 = vmatpush2.bf16.msra.mxu0 0
      %8617 = vmatprep.subr.bf16.mxu0 0
      %8618 = vmatpush2.bf16.msra.mxu0 0
      %8619 = vmatprep.subr.bf16.mxu0 0
      %8620 = vmatpush2.bf16.msra.mxu0 0
      %8621 = vmatprep.subr.bf16.mxu0 0
      %8622 = vmatpush2.bf16.msra.mxu0 0
      %8623 = vmatprep.mubr.bf16.mxu0 0
      %8624 = vmatmul.mubr.bf16.gmra.mxu0 %v8577
      %v8625 = vpop.f32.mrf.mxu0
      %v8626 = vadd.f32 0.0, %v8625
      %v8627 = vpop.f32.mrf.mxu0
      %v8628 = vpop.f32.mrf.mxu0
      %v8629 = vadd.f32 0.0, %v8628
      %v8630 = vpop.f32.mrf.mxu0
      %8631 = vmatprep.mubr.bf16.mxu0 0
      %8632 = vmatmul.mubr.bf16.gmra.mxu0 %v8580
      %v8633 = vpop.f32.mrf.mxu0
      %v8634 = vadd.f32 0.0, %v8633
      %v8635 = vpop.f32.mrf.mxu0
      %v8636 = vpop.f32.mrf.mxu0
      %v8637 = vadd.f32 0.0, %v8636
      %v8638 = vpop.f32.mrf.mxu0
      %8639 = vmatprep.mubr.bf16.mxu0 0
      %8640 = vmatmul.mubr.bf16.gmra.mxu0 %v8583
      %v8641 = vpop.f32.mrf.mxu0
      %v8642 = vadd.f32 0.0, %v8641
      %v8643 = vpop.f32.mrf.mxu0
      %v8644 = vpop.f32.mrf.mxu0
      %v8645 = vadd.f32 0.0, %v8644
      %v8646 = vpop.f32.mrf.mxu0
      %8647 = vmatprep.mubr.bf16.mxu0 0
      %8648 = vmatmul.mubr.bf16.gmra.mxu0 %v8586
      %v8649 = vpop.f32.mrf.mxu0
      %v8650 = vadd.f32 0.0, %v8649
      %v8651 = vpop.f32.mrf.mxu0
      %v8652 = vpop.f32.mrf.mxu0
      %v8653 = vadd.f32 0.0, %v8652
      %v8654 = vpop.f32.mrf.mxu0
      %8655 = vdwg.mxu0
      %v8656 = vadd.f32 %v8538, %v8626
      %v8657 = vadd.f32 %v8539, %v8629
      %v8658 = vadd.f32 %v8540, %v8634
      %v8659 = vadd.f32 %v8541, %v8637
      %v8660 = vadd.f32 %v8542, %v8642
      %v8661 = vadd.f32 %v8543, %v8645
      %v8662 = vadd.f32 %v8544, %v8650
      %v8663 = vadd.f32 %v8545, %v8653
      %v8664 = vld [vmem:[%s7002] sm:$0xf]
      %v8665 = vld [vmem:[%s7002 + $0x4] sm:$0x1]
      %v8666 = vld [vmem:[%s7002 + $0x8] sm:$0xf]
      %v8667 = vld [vmem:[%s7002 + $0xc] sm:$0x1]
      %v8668 = vld [vmem:[%s7002 + $0x10] sm:$0xf]
      %v8669 = vld [vmem:[%s7002 + $0x14] sm:$0x1]
      %v8670 = vld [vmem:[%s7002 + $0x18] sm:$0xf]
      %v8671 = vld [vmem:[%s7002 + $0x1c] sm:$0x1]
      %v8672 = vld [vmem:[%s7002 + $0x20] sm:$0xf]
      %v8673 = vld [vmem:[%s7002 + $0x24] sm:$0x1]
      %v8674 = vld [vmem:[%s7002 + $0x28] sm:$0xf]
      %v8675 = vld [vmem:[%s7002 + $0x2c] sm:$0x1]
      %v8676 = vld [vmem:[%s7002 + $0x30] sm:$0xf]
      %v8677 = vld [vmem:[%s7002 + $0x34] sm:$0x1]
      %v8678 = vld [vmem:[%s7002 + $0x38] sm:$0xf]
      %v8679 = vld [vmem:[%s7002 + $0x3c] sm:$0x1]
      %v8681 = vshrl.u32 %v8664, 16
      %v8683 = vrot.slane %v8681, 4
      %v8684 = vshll.u32 %v8664, 16
      %v8686 = vrot.slane %v8684, 5
      %v8687 = vor.u32 %v8683, %v8686
      %v8688 = vrot.slane %v8687, 4
      %v8690 = vshll.u32 %v8665, 16
      %v8692 = vrot.slane %v8690, 5
      %v8693 = vsel %vm493, %v8688, %v8692
      %v8695 = vshrl.u32 %v8666, 16
      %v8697 = vrot.slane %v8695, 4
      %v8698 = vshll.u32 %v8666, 16
      %v8700 = vrot.slane %v8698, 5
      %v8701 = vor.u32 %v8697, %v8700
      %v8702 = vrot.slane %v8701, 4
      %v8704 = vshll.u32 %v8667, 16
      %v8706 = vrot.slane %v8704, 5
      %v8707 = vsel %vm493, %v8702, %v8706
      %v8709 = vshrl.u32 %v8668, 16
      %v8711 = vrot.slane %v8709, 4
      %v8712 = vshll.u32 %v8668, 16
      %v8714 = vrot.slane %v8712, 5
      %v8715 = vor.u32 %v8711, %v8714
      %v8716 = vrot.slane %v8715, 4
      %v8718 = vshll.u32 %v8669, 16
      %v8720 = vrot.slane %v8718, 5
      %v8721 = vsel %vm493, %v8716, %v8720
      %v8723 = vshrl.u32 %v8670, 16
      %v8725 = vrot.slane %v8723, 4
      %v8726 = vshll.u32 %v8670, 16
      %v8728 = vrot.slane %v8726, 5
      %v8729 = vor.u32 %v8725, %v8728
      %v8730 = vrot.slane %v8729, 4
      %v8732 = vshll.u32 %v8671, 16
      %v8734 = vrot.slane %v8732, 5
      %v8735 = vsel %vm493, %v8730, %v8734
      %v8737 = vshrl.u32 %v8672, 16
      %v8739 = vrot.slane %v8737, 4
      %v8740 = vshll.u32 %v8672, 16
      %v8742 = vrot.slane %v8740, 5
      %v8743 = vor.u32 %v8739, %v8742
      %v8744 = vrot.slane %v8743, 4
      %v8746 = vshll.u32 %v8673, 16
      %v8748 = vrot.slane %v8746, 5
      %v8749 = vsel %vm493, %v8744, %v8748
      %v8751 = vshrl.u32 %v8674, 16
      %v8753 = vrot.slane %v8751, 4
      %v8754 = vshll.u32 %v8674, 16
      %v8756 = vrot.slane %v8754, 5
      %v8757 = vor.u32 %v8753, %v8756
      %v8758 = vrot.slane %v8757, 4
      %v8760 = vshll.u32 %v8675, 16
      %v8762 = vrot.slane %v8760, 5
      %v8763 = vsel %vm493, %v8758, %v8762
      %v8765 = vshrl.u32 %v8676, 16
      %v8767 = vrot.slane %v8765, 4
      %v8768 = vshll.u32 %v8676, 16
      %v8770 = vrot.slane %v8768, 5
      %v8771 = vor.u32 %v8767, %v8770
      %v8772 = vrot.slane %v8771, 4
      %v8774 = vshll.u32 %v8677, 16
      %v8776 = vrot.slane %v8774, 5
      %v8777 = vsel %vm493, %v8772, %v8776
      %v8779 = vshrl.u32 %v8678, 16
      %v8781 = vrot.slane %v8779, 4
      %v8782 = vshll.u32 %v8678, 16
      %v8784 = vrot.slane %v8782, 5
      %v8785 = vor.u32 %v8781, %v8784
      %v8786 = vrot.slane %v8785, 4
      %v8788 = vshll.u32 %v8679, 16
      %v8790 = vrot.slane %v8788, 5
      %v8791 = vsel %vm493, %v8786, %v8790
      %s8792 = scalar_lea.vmem %s3, 40
      %v8793 = vld [vmem:[%s8792] sm:$0xf]
      %v8794 = vunpack.c.l.b16 %v8693
      %v8795 = vunpack.c.l.b16 %v8707
      %v8796 = vunpack.c.l.b16 %v8721
      %v8797 = vunpack.c.l.b16 %v8735
      %v8798 = vunpack.c.l.b16 %v8749
      %v8799 = vunpack.c.l.b16 %v8763
      %v8800 = vunpack.c.l.b16 %v8777
      %v8801 = vunpack.c.l.b16 %v8791
      %v8802 = vpack.c.b16 %v8795, %v8794
      %v8803 = vpack.c.b16 %v8797, %v8796
      %v8804 = vpack.c.b16 %v8799, %v8798
      %v8805 = vpack.c.b16 %v8801, %v8800
      %v8807 = vsel %vm7090, %v8802, 0
      %v8810 = vsel %vm7090, %v8803, 0
      %v8813 = vsel %vm7090, %v8804, 0
      %v8816 = vsel %vm7090, %v8805, 0
      %v8819 = vsel %vm7103, %v8793, 0
      %8821 = vmatprep.subr.bf16.mxu0 0
      %8822 = vmatpush1.bf16.msra.mxu0 0
      %8823 = vmatprep.subr.bf16.mxu0 0
      %8824 = vmatpush1.bf16.msra.mxu0 0
      %8825 = vmatprep.subr.bf16.mxu0 0
      %8826 = vmatpush1.bf16.msra.mxu0 0
      %8827 = vmatprep.subr.bf16.mxu0 0
      %8828 = vmatpush1.bf16.msra.mxu0 0
      %8829 = vmatprep.subr.bf16.mxu0 0
      %8830 = vmatpush1.bf16.msra.mxu0 0
      %8831 = vmatprep.subr.bf16.mxu0 0
      %8832 = vmatpush1.bf16.msra.mxu0 0
      %8833 = vmatprep.subr.bf16.mxu0 0
      %8834 = vmatpush1.bf16.msra.mxu0 0
      %8835 = vmatprep.subr.bf16.mxu0 0
      %8836 = vmatpush1.bf16.msra.mxu0 %v8819
      %8837 = vmatprep.subr.bf16.mxu0 0
      %8838 = vmatpush2.bf16.msra.mxu0 0
      %8839 = vmatprep.subr.bf16.mxu0 0
      %8840 = vmatpush2.bf16.msra.mxu0 0
      %8841 = vmatprep.subr.bf16.mxu0 0
      %8842 = vmatpush2.bf16.msra.mxu0 0
      %8843 = vmatprep.subr.bf16.mxu0 0
      %8844 = vmatpush2.bf16.msra.mxu0 0
      %8845 = vmatprep.subr.bf16.mxu0 0
      %8846 = vmatpush2.bf16.msra.mxu0 0
      %8847 = vmatprep.subr.bf16.mxu0 0
      %8848 = vmatpush2.bf16.msra.mxu0 0
      %8849 = vmatprep.subr.bf16.mxu0 0
      %8850 = vmatpush2.bf16.msra.mxu0 0
      %8851 = vmatprep.subr.bf16.mxu0 0
      %8852 = vmatpush2.bf16.msra.mxu0 0
      %8853 = vmatprep.mubr.bf16.mxu0 0
      %8854 = vmatmul.mubr.bf16.gmra.mxu0 %v8807
      %v8855 = vpop.f32.mrf.mxu0
      %v8856 = vadd.f32 0.0, %v8855
      %v8857 = vpop.f32.mrf.mxu0
      %v8858 = vpop.f32.mrf.mxu0
      %v8859 = vadd.f32 0.0, %v8858
      %v8860 = vpop.f32.mrf.mxu0
      %8861 = vmatprep.mubr.bf16.mxu0 0
      %8862 = vmatmul.mubr.bf16.gmra.mxu0 %v8810
      %v8863 = vpop.f32.mrf.mxu0
      %v8864 = vadd.f32 0.0, %v8863
      %v8865 = vpop.f32.mrf.mxu0
      %v8866 = vpop.f32.mrf.mxu0
      %v8867 = vadd.f32 0.0, %v8866
      %v8868 = vpop.f32.mrf.mxu0
      %8869 = vmatprep.mubr.bf16.mxu0 0
      %8870 = vmatmul.mubr.bf16.gmra.mxu0 %v8813
      %v8871 = vpop.f32.mrf.mxu0
      %v8872 = vadd.f32 0.0, %v8871
      %v8873 = vpop.f32.mrf.mxu0
      %v8874 = vpop.f32.mrf.mxu0
      %v8875 = vadd.f32 0.0, %v8874
      %v8876 = vpop.f32.mrf.mxu0
      %8877 = vmatprep.mubr.bf16.mxu0 0
      %8878 = vmatmul.mubr.bf16.gmra.mxu0 %v8816
      %v8879 = vpop.f32.mrf.mxu0
      %v8880 = vadd.f32 0.0, %v8879
      %v8881 = vpop.f32.mrf.mxu0
      %v8882 = vpop.f32.mrf.mxu0
      %v8883 = vadd.f32 0.0, %v8882
      %v8884 = vpop.f32.mrf.mxu0
      %8885 = vdwg.mxu0
      %v8886 = vadd.f32 %v8656, %v8856
      %v8887 = vadd.f32 %v8657, %v8859
      %v8888 = vadd.f32 %v8658, %v8864
      %v8889 = vadd.f32 %v8659, %v8867
      %v8890 = vadd.f32 %v8660, %v8872
      %v8891 = vadd.f32 %v8661, %v8875
      %v8892 = vadd.f32 %v8662, %v8880
      %v8893 = vadd.f32 %v8663, %v8883
      %v8894 = vld [vmem:[%s5126] sm:$0xf]
      %v8895 = vld [vmem:[%s5126 + $0x4] sm:$0x1]
      %v8896 = vld [vmem:[%s5126 + $0x8] sm:$0xf]
      %v8897 = vld [vmem:[%s5126 + $0xc] sm:$0x1]
      %v8898 = vld [vmem:[%s5126 + $0x10] sm:$0xf]
      %v8899 = vld [vmem:[%s5126 + $0x14] sm:$0x1]
      %v8900 = vld [vmem:[%s5126 + $0x18] sm:$0xf]
      %v8901 = vld [vmem:[%s5126 + $0x1c] sm:$0x1]
      %v8902 = vld [vmem:[%s5126 + $0x20] sm:$0xf]
      %v8903 = vld [vmem:[%s5126 + $0x24] sm:$0x1]
      %v8904 = vld [vmem:[%s5126 + $0x28] sm:$0xf]
      %v8905 = vld [vmem:[%s5126 + $0x2c] sm:$0x1]
      %v8906 = vld [vmem:[%s5126 + $0x30] sm:$0xf]
      %v8907 = vld [vmem:[%s5126 + $0x34] sm:$0x1]
      %v8908 = vld [vmem:[%s5126 + $0x38] sm:$0xf]
      %v8909 = vld [vmem:[%s5126 + $0x3c] sm:$0x1]
      %v8911 = vshrl.u32 %v8894, 16
      %v8913 = vrot.slane %v8911, 4
      %v8914 = vshll.u32 %v8894, 16
      %v8916 = vrot.slane %v8914, 5
      %v8917 = vor.u32 %v8913, %v8916
      %v8918 = vrot.slane %v8917, 4
      %v8920 = vshll.u32 %v8895, 16
      %v8922 = vrot.slane %v8920, 5
      %v8923 = vsel %vm493, %v8918, %v8922
      %v8925 = vshrl.u32 %v8896, 16
      %v8927 = vrot.slane %v8925, 4
      %v8928 = vshll.u32 %v8896, 16
      %v8930 = vrot.slane %v8928, 5
      %v8931 = vor.u32 %v8927, %v8930
      %v8932 = vrot.slane %v8931, 4
      %v8934 = vshll.u32 %v8897, 16
      %v8936 = vrot.slane %v8934, 5
      %v8937 = vsel %vm493, %v8932, %v8936
      %v8939 = vshrl.u32 %v8898, 16
      %v8941 = vrot.slane %v8939, 4
      %v8942 = vshll.u32 %v8898, 16
      %v8944 = vrot.slane %v8942, 5
      %v8945 = vor.u32 %v8941, %v8944
      %v8946 = vrot.slane %v8945, 4
      %v8948 = vshll.u32 %v8899, 16
      %v8950 = vrot.slane %v8948, 5
      %v8951 = vsel %vm493, %v8946, %v8950
      %v8953 = vshrl.u32 %v8900, 16
      %v8955 = vrot.slane %v8953, 4
      %v8956 = vshll.u32 %v8900, 16
      %v8958 = vrot.slane %v8956, 5
      %v8959 = vor.u32 %v8955, %v8958
      %v8960 = vrot.slane %v8959, 4
      %v8962 = vshll.u32 %v8901, 16
      %v8964 = vrot.slane %v8962, 5
      %v8965 = vsel %vm493, %v8960, %v8964
      %v8967 = vshrl.u32 %v8902, 16
      %v8969 = vrot.slane %v8967, 4
      %v8970 = vshll.u32 %v8902, 16
      %v8972 = vrot.slane %v8970, 5
      %v8973 = vor.u32 %v8969, %v8972
      %v8974 = vrot.slane %v8973, 4
      %v8976 = vshll.u32 %v8903, 16
      %v8978 = vrot.slane %v8976, 5
      %v8979 = vsel %vm493, %v8974, %v8978
      %v8981 = vshrl.u32 %v8904, 16
      %v8983 = vrot.slane %v8981, 4
      %v8984 = vshll.u32 %v8904, 16
      %v8986 = vrot.slane %v8984, 5
      %v8987 = vor.u32 %v8983, %v8986
      %v8988 = vrot.slane %v8987, 4
      %v8990 = vshll.u32 %v8905, 16
      %v8992 = vrot.slane %v8990, 5
      %v8993 = vsel %vm493, %v8988, %v8992
      %v8995 = vshrl.u32 %v8906, 16
      %v8997 = vrot.slane %v8995, 4
      %v8998 = vshll.u32 %v8906, 16
      %v9000 = vrot.slane %v8998, 5
      %v9001 = vor.u32 %v8997, %v9000
      %v9002 = vrot.slane %v9001, 4
      %v9004 = vshll.u32 %v8907, 16
      %v9006 = vrot.slane %v9004, 5
      %v9007 = vsel %vm493, %v9002, %v9006
      %v9009 = vshrl.u32 %v8908, 16
      %v9011 = vrot.slane %v9009, 4
      %v9012 = vshll.u32 %v8908, 16
      %v9014 = vrot.slane %v9012, 5
      %v9015 = vor.u32 %v9011, %v9014
      %v9016 = vrot.slane %v9015, 4
      %v9018 = vshll.u32 %v8909, 16
      %v9020 = vrot.slane %v9018, 5
      %v9021 = vsel %vm493, %v9016, %v9020
      %s9022 = scalar_lea.vmem %s3, 44
      %v9023 = vld [vmem:[%s9022] sm:$0xf]
      %v9024 = vunpack.c.l.b16 %v8923
      %v9025 = vunpack.c.l.b16 %v8937
      %v9026 = vunpack.c.l.b16 %v8951
      %v9027 = vunpack.c.l.b16 %v8965
      %v9028 = vunpack.c.l.b16 %v8979
      %v9029 = vunpack.c.l.b16 %v8993
      %v9030 = vunpack.c.l.b16 %v9007
      %v9031 = vunpack.c.l.b16 %v9021
      %v9032 = vpack.c.b16 %v9025, %v9024
      %v9033 = vpack.c.b16 %v9027, %v9026
      %v9034 = vpack.c.b16 %v9029, %v9028
      %v9035 = vpack.c.b16 %v9031, %v9030
      %v9037 = vsel %vm7090, %v9032, 0
      %v9040 = vsel %vm7090, %v9033, 0
      %v9043 = vsel %vm7090, %v9034, 0
      %v9046 = vsel %vm7090, %v9035, 0
      %v9049 = vsel %vm7103, %v9023, 0
      %9051 = vmatprep.subr.bf16.mxu0 0
      %9052 = vmatpush1.bf16.msra.mxu0 0
      %9053 = vmatprep.subr.bf16.mxu0 0
      %9054 = vmatpush1.bf16.msra.mxu0 0
      %9055 = vmatprep.subr.bf16.mxu0 0
      %9056 = vmatpush1.bf16.msra.mxu0 0
      %9057 = vmatprep.subr.bf16.mxu0 0
      %9058 = vmatpush1.bf16.msra.mxu0 0
      %9059 = vmatprep.subr.bf16.mxu0 0
      %9060 = vmatpush1.bf16.msra.mxu0 0
      %9061 = vmatprep.subr.bf16.mxu0 0
      %9062 = vmatpush1.bf16.msra.mxu0 0
      %9063 = vmatprep.subr.bf16.mxu0 0
      %9064 = vmatpush1.bf16.msra.mxu0 0
      %9065 = vmatprep.subr.bf16.mxu0 0
      %9066 = vmatpush1.bf16.msra.mxu0 %v9049
      %9067 = vmatprep.subr.bf16.mxu0 0
      %9068 = vmatpush2.bf16.msra.mxu0 0
      %9069 = vmatprep.subr.bf16.mxu0 0
      %9070 = vmatpush2.bf16.msra.mxu0 0
      %9071 = vmatprep.subr.bf16.mxu0 0
      %9072 = vmatpush2.bf16.msra.mxu0 0
      %9073 = vmatprep.subr.bf16.mxu0 0
      %9074 = vmatpush2.bf16.msra.mxu0 0
      %9075 = vmatprep.subr.bf16.mxu0 0
      %9076 = vmatpush2.bf16.msra.mxu0 0
      %9077 = vmatprep.subr.bf16.mxu0 0
      %9078 = vmatpush2.bf16.msra.mxu0 0
      %9079 = vmatprep.subr.bf16.mxu0 0
      %9080 = vmatpush2.bf16.msra.mxu0 0
      %9081 = vmatprep.subr.bf16.mxu0 0
      %9082 = vmatpush2.bf16.msra.mxu0 0
      %9083 = vmatprep.mubr.bf16.mxu0 0
      %9084 = vmatmul.mubr.bf16.gmra.mxu0 %v9037
      %v9085 = vpop.f32.mrf.mxu0
      %v9086 = vadd.f32 0.0, %v9085
      %v9087 = vpop.f32.mrf.mxu0
      %v9088 = vpop.f32.mrf.mxu0
      %v9089 = vadd.f32 0.0, %v9088
      %v9090 = vpop.f32.mrf.mxu0
      %9091 = vmatprep.mubr.bf16.mxu0 0
      %9092 = vmatmul.mubr.bf16.gmra.mxu0 %v9040
      %v9093 = vpop.f32.mrf.mxu0
      %v9094 = vadd.f32 0.0, %v9093
      %v9095 = vpop.f32.mrf.mxu0
      %v9096 = vpop.f32.mrf.mxu0
      %v9097 = vadd.f32 0.0, %v9096
      %v9098 = vpop.f32.mrf.mxu0
      %9099 = vmatprep.mubr.bf16.mxu0 0
      %9100 = vmatmul.mubr.bf16.gmra.mxu0 %v9043
      %v9101 = vpop.f32.mrf.mxu0
      %v9102 = vadd.f32 0.0, %v9101
      %v9103 = vpop.f32.mrf.mxu0
      %v9104 = vpop.f32.mrf.mxu0
      %v9105 = vadd.f32 0.0, %v9104
      %v9106 = vpop.f32.mrf.mxu0
      %9107 = vmatprep.mubr.bf16.mxu0 0
      %9108 = vmatmul.mubr.bf16.gmra.mxu0 %v9046
      %v9109 = vpop.f32.mrf.mxu0
      %v9110 = vadd.f32 0.0, %v9109
      %v9111 = vpop.f32.mrf.mxu0
      %v9112 = vpop.f32.mrf.mxu0
      %v9113 = vadd.f32 0.0, %v9112
      %v9114 = vpop.f32.mrf.mxu0
      %9115 = vdwg.mxu0
      %v9116 = vadd.f32 %v8886, %v9086
      %v9117 = vadd.f32 %v8887, %v9089
      %v9118 = vadd.f32 %v8888, %v9094
      %v9119 = vadd.f32 %v8889, %v9097
      %v9120 = vadd.f32 %v8890, %v9102
      %v9121 = vadd.f32 %v8891, %v9105
      %v9122 = vadd.f32 %v8892, %v9110
      %v9123 = vadd.f32 %v8893, %v9113
      %s9124 = scalar_lea.vmem [#allocation2], 152
      %v9125 = vld [vmem:[%s9124] sm:$0xf]
      %v9126 = vld [vmem:[%s9124 + $0x8] sm:$0xf]
      %v9127 = vld [vmem:[%s9124 + $0x10] sm:$0xf]
      %v9128 = vld [vmem:[%s9124 + $0x18] sm:$0xf]
      %v9129 = vld [vmem:[%s9124 + $0x20] sm:$0xf]
      %v9130 = vld [vmem:[%s9124 + $0x28] sm:$0xf]
      %v9131 = vld [vmem:[%s9124 + $0x30] sm:$0xf]
      %v9132 = vld [vmem:[%s9124 + $0x38] sm:$0xf]
      %s9133 = scalar_lea.vmem %s3, 48
      %v9134 = vld [vmem:[%s9133] sm:$0xf]
      %v9143 = vunpack.c.l.b16 %v9125
      %v9144 = vunpack.c.l.b16 %v9126
      %v9145 = vunpack.c.l.b16 %v9127
      %v9146 = vunpack.c.l.b16 %v9128
      %v9147 = vunpack.c.l.b16 %v9129
      %v9148 = vunpack.c.l.b16 %v9130
      %v9149 = vunpack.c.l.b16 %v9131
      %v9150 = vunpack.c.l.b16 %v9132
      %v9151 = vpack.c.b16 %v9144, %v9143
      %v9152 = vpack.c.b16 %v9146, %v9145
      %v9153 = vpack.c.b16 %v9148, %v9147
      %v9154 = vpack.c.b16 %v9150, %v9149
      %v9156 = vsel %vm7090, %v9151, 0
      %v9159 = vsel %vm7090, %v9152, 0
      %v9162 = vsel %vm7090, %v9153, 0
      %v9165 = vsel %vm7090, %v9154, 0
      %v9168 = vsel %vm7103, %v9134, 0
      %9170 = vmatprep.subr.bf16.mxu0 0
      %9171 = vmatpush1.bf16.msra.mxu0 0
      %9172 = vmatprep.subr.bf16.mxu0 0
      %9173 = vmatpush1.bf16.msra.mxu0 0
      %9174 = vmatprep.subr.bf16.mxu0 0
      %9175 = vmatpush1.bf16.msra.mxu0 0
      %9176 = vmatprep.subr.bf16.mxu0 0
      %9177 = vmatpush1.bf16.msra.mxu0 0
      %9178 = vmatprep.subr.bf16.mxu0 0
      %9179 = vmatpush1.bf16.msra.mxu0 0
      %9180 = vmatprep.subr.bf16.mxu0 0
      %9181 = vmatpush1.bf16.msra.mxu0 0
      %9182 = vmatprep.subr.bf16.mxu0 0
      %9183 = vmatpush1.bf16.msra.mxu0 0
      %9184 = vmatprep.subr.bf16.mxu0 0
      %9185 = vmatpush1.bf16.msra.mxu0 %v9168
      %9186 = vmatprep.subr.bf16.mxu0 0
      %9187 = vmatpush2.bf16.msra.mxu0 0
      %9188 = vmatprep.subr.bf16.mxu0 0
      %9189 = vmatpush2.bf16.msra.mxu0 0
      %9190 = vmatprep.subr.bf16.mxu0 0
      %9191 = vmatpush2.bf16.msra.mxu0 0
      %9192 = vmatprep.subr.bf16.mxu0 0
      %9193 = vmatpush2.bf16.msra.mxu0 0
      %9194 = vmatprep.subr.bf16.mxu0 0
      %9195 = vmatpush2.bf16.msra.mxu0 0
      %9196 = vmatprep.subr.bf16.mxu0 0
      %9197 = vmatpush2.bf16.msra.mxu0 0
      %9198 = vmatprep.subr.bf16.mxu0 0
      %9199 = vmatpush2.bf16.msra.mxu0 0
      %9200 = vmatprep.subr.bf16.mxu0 0
      %9201 = vmatpush2.bf16.msra.mxu0 0
      %9202 = vmatprep.mubr.bf16.mxu0 0
      %9203 = vmatmul.mubr.bf16.gmra.mxu0 %v9156
      %v9204 = vpop.f32.mrf.mxu0
      %v9205 = vadd.f32 0.0, %v9204
      %v9206 = vpop.f32.mrf.mxu0
      %v9207 = vpop.f32.mrf.mxu0
      %v9208 = vadd.f32 0.0, %v9207
      %v9209 = vpop.f32.mrf.mxu0
      %9210 = vmatprep.mubr.bf16.mxu0 0
      %9211 = vmatmul.mubr.bf16.gmra.mxu0 %v9159
      %v9212 = vpop.f32.mrf.mxu0
      %v9213 = vadd.f32 0.0, %v9212
      %v9214 = vpop.f32.mrf.mxu0
      %v9215 = vpop.f32.mrf.mxu0
      %v9216 = vadd.f32 0.0, %v9215
      %v9217 = vpop.f32.mrf.mxu0
      %9218 = vmatprep.mubr.bf16.mxu0 0
      %9219 = vmatmul.mubr.bf16.gmra.mxu0 %v9162
      %v9220 = vpop.f32.mrf.mxu0
      %v9221 = vadd.f32 0.0, %v9220
      %v9222 = vpop.f32.mrf.mxu0
      %v9223 = vpop.f32.mrf.mxu0
      %v9224 = vadd.f32 0.0, %v9223
      %v9225 = vpop.f32.mrf.mxu0
      %9226 = vmatprep.mubr.bf16.mxu0 0
      %9227 = vmatmul.mubr.bf16.gmra.mxu0 %v9165
      %v9228 = vpop.f32.mrf.mxu0
      %v9229 = vadd.f32 0.0, %v9228
      %v9230 = vpop.f32.mrf.mxu0
      %v9231 = vpop.f32.mrf.mxu0
      %v9232 = vadd.f32 0.0, %v9231
      %v9233 = vpop.f32.mrf.mxu0
      %9234 = vdwg.mxu0
      %v9235 = vadd.f32 %v9116, %v9205
      %v9236 = vadd.f32 %v9117, %v9208
      %v9237 = vadd.f32 %v9118, %v9213
      %v9238 = vadd.f32 %v9119, %v9216
      %v9239 = vadd.f32 %v9120, %v9221
      %v9240 = vadd.f32 %v9121, %v9224
      %v9241 = vadd.f32 %v9122, %v9229
      %v9242 = vadd.f32 %v9123, %v9232
      %s9243 = scalar_lea.vmem [#allocation2], 224
      %v9244 = vld [vmem:[%s9243] sm:$0xf]
      %v9245 = vld [vmem:[%s9243 + $0x8] sm:$0xf]
      %v9246 = vld [vmem:[%s9243 + $0x10] sm:$0xf]
      %v9247 = vld [vmem:[%s9243 + $0x18] sm:$0xf]
      %v9248 = vld [vmem:[%s9243 + $0x20] sm:$0xf]
      %v9249 = vld [vmem:[%s9243 + $0x28] sm:$0xf]
      %v9250 = vld [vmem:[%s9243 + $0x30] sm:$0xf]
      %v9251 = vld [vmem:[%s9243 + $0x38] sm:$0xf]
      %s9252 = scalar_lea.vmem %s3, 52
      %v9253 = vld [vmem:[%s9252] sm:$0xf]
      %v9262 = vunpack.c.l.b16 %v9244
      %v9263 = vunpack.c.l.b16 %v9245
      %v9264 = vunpack.c.l.b16 %v9246
      %v9265 = vunpack.c.l.b16 %v9247
      %v9266 = vunpack.c.l.b16 %v9248
      %v9267 = vunpack.c.l.b16 %v9249
      %v9268 = vunpack.c.l.b16 %v9250
      %v9269 = vunpack.c.l.b16 %v9251
      %v9270 = vpack.c.b16 %v9263, %v9262
      %v9271 = vpack.c.b16 %v9265, %v9264
      %v9272 = vpack.c.b16 %v9267, %v9266
      %v9273 = vpack.c.b16 %v9269, %v9268
      %v9275 = vsel %vm7090, %v9270, 0
      %v9278 = vsel %vm7090, %v9271, 0
      %v9281 = vsel %vm7090, %v9272, 0
      %v9284 = vsel %vm7090, %v9273, 0
      %v9287 = vsel %vm7103, %v9253, 0
      %9289 = vmatprep.subr.bf16.mxu0 0
      %9290 = vmatpush1.bf16.msra.mxu0 0
      %9291 = vmatprep.subr.bf16.mxu0 0
      %9292 = vmatpush1.bf16.msra.mxu0 0
      %9293 = vmatprep.subr.bf16.mxu0 0
      %9294 = vmatpush1.bf16.msra.mxu0 0
      %9295 = vmatprep.subr.bf16.mxu0 0
      %9296 = vmatpush1.bf16.msra.mxu0 0
      %9297 = vmatprep.subr.bf16.mxu0 0
      %9298 = vmatpush1.bf16.msra.mxu0 0
      %9299 = vmatprep.subr.bf16.mxu0 0
      %9300 = vmatpush1.bf16.msra.mxu0 0
      %9301 = vmatprep.subr.bf16.mxu0 0
      %9302 = vmatpush1.bf16.msra.mxu0 0
      %9303 = vmatprep.subr.bf16.mxu0 0
      %9304 = vmatpush1.bf16.msra.mxu0 %v9287
      %9305 = vmatprep.subr.bf16.mxu0 0
      %9306 = vmatpush2.bf16.msra.mxu0 0
      %9307 = vmatprep.subr.bf16.mxu0 0
      %9308 = vmatpush2.bf16.msra.mxu0 0
      %9309 = vmatprep.subr.bf16.mxu0 0
      %9310 = vmatpush2.bf16.msra.mxu0 0
      %9311 = vmatprep.subr.bf16.mxu0 0
      %9312 = vmatpush2.bf16.msra.mxu0 0
      %9313 = vmatprep.subr.bf16.mxu0 0
      %9314 = vmatpush2.bf16.msra.mxu0 0
      %9315 = vmatprep.subr.bf16.mxu0 0
      %9316 = vmatpush2.bf16.msra.mxu0 0
      %9317 = vmatprep.subr.bf16.mxu0 0
      %9318 = vmatpush2.bf16.msra.mxu0 0
      %9319 = vmatprep.subr.bf16.mxu0 0
      %9320 = vmatpush2.bf16.msra.mxu0 0
      %9321 = vmatprep.mubr.bf16.mxu0 0
      %9322 = vmatmul.mubr.bf16.gmra.mxu0 %v9275
      %v9323 = vpop.f32.mrf.mxu0
      %v9324 = vadd.f32 0.0, %v9323
      %v9325 = vpop.f32.mrf.mxu0
      %v9326 = vpop.f32.mrf.mxu0
      %v9327 = vadd.f32 0.0, %v9326
      %v9328 = vpop.f32.mrf.mxu0
      %9329 = vmatprep.mubr.bf16.mxu0 0
      %9330 = vmatmul.mubr.bf16.gmra.mxu0 %v9278
      %v9331 = vpop.f32.mrf.mxu0
      %v9332 = vadd.f32 0.0, %v9331
      %v9333 = vpop.f32.mrf.mxu0
      %v9334 = vpop.f32.mrf.mxu0
      %v9335 = vadd.f32 0.0, %v9334
      %v9336 = vpop.f32.mrf.mxu0
      %9337 = vmatprep.mubr.bf16.mxu0 0
      %9338 = vmatmul.mubr.bf16.gmra.mxu0 %v9281
      %v9339 = vpop.f32.mrf.mxu0
      %v9340 = vadd.f32 0.0, %v9339
      %v9341 = vpop.f32.mrf.mxu0
      %v9342 = vpop.f32.mrf.mxu0
      %v9343 = vadd.f32 0.0, %v9342
      %v9344 = vpop.f32.mrf.mxu0
      %9345 = vmatprep.mubr.bf16.mxu0 0
      %9346 = vmatmul.mubr.bf16.gmra.mxu0 %v9284
      %v9347 = vpop.f32.mrf.mxu0
      %v9348 = vadd.f32 0.0, %v9347
      %v9349 = vpop.f32.mrf.mxu0
      %v9350 = vpop.f32.mrf.mxu0
      %v9351 = vadd.f32 0.0, %v9350
      %v9352 = vpop.f32.mrf.mxu0
      %9353 = vdwg.mxu0
      %v9354 = vadd.f32 %v9235, %v9324
      %v9355 = vadd.f32 %v9236, %v9327
      %v9356 = vadd.f32 %v9237, %v9332
      %v9357 = vadd.f32 %v9238, %v9335
      %v9358 = vadd.f32 %v9239, %v9340
      %v9359 = vadd.f32 %v9240, %v9343
      %v9360 = vadd.f32 %v9241, %v9348
      %v9361 = vadd.f32 %v9242, %v9351
      %v9362 = vld [vmem:[%s9124] sm:$0xf]
      %v9363 = vld [vmem:[%s9124 + $0x4] sm:$0x1]
      %v9364 = vld [vmem:[%s9124 + $0x8] sm:$0xf]
      %v9365 = vld [vmem:[%s9124 + $0xc] sm:$0x1]
      %v9366 = vld [vmem:[%s9124 + $0x10] sm:$0xf]
      %v9367 = vld [vmem:[%s9124 + $0x14] sm:$0x1]
      %v9368 = vld [vmem:[%s9124 + $0x18] sm:$0xf]
      %v9369 = vld [vmem:[%s9124 + $0x1c] sm:$0x1]
      %v9370 = vld [vmem:[%s9124 + $0x20] sm:$0xf]
      %v9371 = vld [vmem:[%s9124 + $0x24] sm:$0x1]
      %v9372 = vld [vmem:[%s9124 + $0x28] sm:$0xf]
      %v9373 = vld [vmem:[%s9124 + $0x2c] sm:$0x1]
      %v9374 = vld [vmem:[%s9124 + $0x30] sm:$0xf]
      %v9375 = vld [vmem:[%s9124 + $0x34] sm:$0x1]
      %v9376 = vld [vmem:[%s9124 + $0x38] sm:$0xf]
      %v9377 = vld [vmem:[%s9124 + $0x3c] sm:$0x1]
      %v9379 = vshrl.u32 %v9362, 16
      %v9381 = vrot.slane %v9379, 4
      %v9382 = vshll.u32 %v9362, 16
      %v9384 = vrot.slane %v9382, 5
      %v9385 = vor.u32 %v9381, %v9384
      %v9386 = vrot.slane %v9385, 4
      %v9388 = vshll.u32 %v9363, 16
      %v9390 = vrot.slane %v9388, 5
      %v9391 = vsel %vm493, %v9386, %v9390
      %v9393 = vshrl.u32 %v9364, 16
      %v9395 = vrot.slane %v9393, 4
      %v9396 = vshll.u32 %v9364, 16
      %v9398 = vrot.slane %v9396, 5
      %v9399 = vor.u32 %v9395, %v9398
      %v9400 = vrot.slane %v9399, 4
      %v9402 = vshll.u32 %v9365, 16
      %v9404 = vrot.slane %v9402, 5
      %v9405 = vsel %vm493, %v9400, %v9404
      %v9407 = vshrl.u32 %v9366, 16
      %v9409 = vrot.slane %v9407, 4
      %v9410 = vshll.u32 %v9366, 16
      %v9412 = vrot.slane %v9410, 5
      %v9413 = vor.u32 %v9409, %v9412
      %v9414 = vrot.slane %v9413, 4
      %v9416 = vshll.u32 %v9367, 16
      %v9418 = vrot.slane %v9416, 5
      %v9419 = vsel %vm493, %v9414, %v9418
      %v9421 = vshrl.u32 %v9368, 16
      %v9423 = vrot.slane %v9421, 4
      %v9424 = vshll.u32 %v9368, 16
      %v9426 = vrot.slane %v9424, 5
      %v9427 = vor.u32 %v9423, %v9426
      %v9428 = vrot.slane %v9427, 4
      %v9430 = vshll.u32 %v9369, 16
      %v9432 = vrot.slane %v9430, 5
      %v9433 = vsel %vm493, %v9428, %v9432
      %v9435 = vshrl.u32 %v9370, 16
      %v9437 = vrot.slane %v9435, 4
      %v9438 = vshll.u32 %v9370, 16
      %v9440 = vrot.slane %v9438, 5
      %v9441 = vor.u32 %v9437, %v9440
      %v9442 = vrot.slane %v9441, 4
      %v9444 = vshll.u32 %v9371, 16
      %v9446 = vrot.slane %v9444, 5
      %v9447 = vsel %vm493, %v9442, %v9446
      %v9449 = vshrl.u32 %v9372, 16
      %v9451 = vrot.slane %v9449, 4
      %v9452 = vshll.u32 %v9372, 16
      %v9454 = vrot.slane %v9452, 5
      %v9455 = vor.u32 %v9451, %v9454
      %v9456 = vrot.slane %v9455, 4
      %v9458 = vshll.u32 %v9373, 16
      %v9460 = vrot.slane %v9458, 5
      %v9461 = vsel %vm493, %v9456, %v9460
      %v9463 = vshrl.u32 %v9374, 16
      %v9465 = vrot.slane %v9463, 4
      %v9466 = vshll.u32 %v9374, 16
      %v9468 = vrot.slane %v9466, 5
      %v9469 = vor.u32 %v9465, %v9468
      %v9470 = vrot.slane %v9469, 4
      %v9472 = vshll.u32 %v9375, 16
      %v9474 = vrot.slane %v9472, 5
      %v9475 = vsel %vm493, %v9470, %v9474
      %v9477 = vshrl.u32 %v9376, 16
      %v9479 = vrot.slane %v9477, 4
      %v9480 = vshll.u32 %v9376, 16
      %v9482 = vrot.slane %v9480, 5
      %v9483 = vor.u32 %v9479, %v9482
      %v9484 = vrot.slane %v9483, 4
      %v9486 = vshll.u32 %v9377, 16
      %v9488 = vrot.slane %v9486, 5
      %v9489 = vsel %vm493, %v9484, %v9488
      %s9490 = scalar_lea.vmem %s3, 56
      %v9491 = vld [vmem:[%s9490] sm:$0xf]
      %v9492 = vunpack.c.l.b16 %v9391
      %v9493 = vunpack.c.l.b16 %v9405
      %v9494 = vunpack.c.l.b16 %v9419
      %v9495 = vunpack.c.l.b16 %v9433
      %v9496 = vunpack.c.l.b16 %v9447
      %v9497 = vunpack.c.l.b16 %v9461
      %v9498 = vunpack.c.l.b16 %v9475
      %v9499 = vunpack.c.l.b16 %v9489
      %v9500 = vpack.c.b16 %v9493, %v9492
      %v9501 = vpack.c.b16 %v9495, %v9494
      %v9502 = vpack.c.b16 %v9497, %v9496
      %v9503 = vpack.c.b16 %v9499, %v9498
      %v9505 = vsel %vm7090, %v9500, 0
      %v9508 = vsel %vm7090, %v9501, 0
      %v9511 = vsel %vm7090, %v9502, 0
      %v9514 = vsel %vm7090, %v9503, 0
      %v9517 = vsel %vm7103, %v9491, 0
      %9519 = vmatprep.subr.bf16.mxu0 0
      %9520 = vmatpush1.bf16.msra.mxu0 0
      %9521 = vmatprep.subr.bf16.mxu0 0
      %9522 = vmatpush1.bf16.msra.mxu0 0
      %9523 = vmatprep.subr.bf16.mxu0 0
      %9524 = vmatpush1.bf16.msra.mxu0 0
      %9525 = vmatprep.subr.bf16.mxu0 0
      %9526 = vmatpush1.bf16.msra.mxu0 0
      %9527 = vmatprep.subr.bf16.mxu0 0
      %9528 = vmatpush1.bf16.msra.mxu0 0
      %9529 = vmatprep.subr.bf16.mxu0 0
      %9530 = vmatpush1.bf16.msra.mxu0 0
      %9531 = vmatprep.subr.bf16.mxu0 0
      %9532 = vmatpush1.bf16.msra.mxu0 0
      %9533 = vmatprep.subr.bf16.mxu0 0
      %9534 = vmatpush1.bf16.msra.mxu0 %v9517
      %9535 = vmatprep.subr.bf16.mxu0 0
      %9536 = vmatpush2.bf16.msra.mxu0 0
      %9537 = vmatprep.subr.bf16.mxu0 0
      %9538 = vmatpush2.bf16.msra.mxu0 0
      %9539 = vmatprep.subr.bf16.mxu0 0
      %9540 = vmatpush2.bf16.msra.mxu0 0
      %9541 = vmatprep.subr.bf16.mxu0 0
      %9542 = vmatpush2.bf16.msra.mxu0 0
      %9543 = vmatprep.subr.bf16.mxu0 0
      %9544 = vmatpush2.bf16.msra.mxu0 0
      %9545 = vmatprep.subr.bf16.mxu0 0
      %9546 = vmatpush2.bf16.msra.mxu0 0
      %9547 = vmatprep.subr.bf16.mxu0 0
      %9548 = vmatpush2.bf16.msra.mxu0 0
      %9549 = vmatprep.subr.bf16.mxu0 0
      %9550 = vmatpush2.bf16.msra.mxu0 0
      %9551 = vmatprep.mubr.bf16.mxu0 0
      %9552 = vmatmul.mubr.bf16.gmra.mxu0 %v9505
      %v9553 = vpop.f32.mrf.mxu0
      %v9554 = vadd.f32 0.0, %v9553
      %v9555 = vpop.f32.mrf.mxu0
      %v9556 = vpop.f32.mrf.mxu0
      %v9557 = vadd.f32 0.0, %v9556
      %v9558 = vpop.f32.mrf.mxu0
      %9559 = vmatprep.mubr.bf16.mxu0 0
      %9560 = vmatmul.mubr.bf16.gmra.mxu0 %v9508
      %v9561 = vpop.f32.mrf.mxu0
      %v9562 = vadd.f32 0.0, %v9561
      %v9563 = vpop.f32.mrf.mxu0
      %v9564 = vpop.f32.mrf.mxu0
      %v9565 = vadd.f32 0.0, %v9564
      %v9566 = vpop.f32.mrf.mxu0
      %9567 = vmatprep.mubr.bf16.mxu0 0
      %9568 = vmatmul.mubr.bf16.gmra.mxu0 %v9511
      %v9569 = vpop.f32.mrf.mxu0
      %v9570 = vadd.f32 0.0, %v9569
      %v9571 = vpop.f32.mrf.mxu0
      %v9572 = vpop.f32.mrf.mxu0
      %v9573 = vadd.f32 0.0, %v9572
      %v9574 = vpop.f32.mrf.mxu0
      %9575 = vmatprep.mubr.bf16.mxu0 0
      %9576 = vmatmul.mubr.bf16.gmra.mxu0 %v9514
      %v9577 = vpop.f32.mrf.mxu0
      %v9578 = vadd.f32 0.0, %v9577
      %v9579 = vpop.f32.mrf.mxu0
      %v9580 = vpop.f32.mrf.mxu0
      %v9581 = vadd.f32 0.0, %v9580
      %v9582 = vpop.f32.mrf.mxu0
      %9583 = vdwg.mxu0
      %v9584 = vadd.f32 %v9354, %v9554
      %v9585 = vadd.f32 %v9355, %v9557
      %v9586 = vadd.f32 %v9356, %v9562
      %v9587 = vadd.f32 %v9357, %v9565
      %v9588 = vadd.f32 %v9358, %v9570
      %v9589 = vadd.f32 %v9359, %v9573
      %v9590 = vadd.f32 %v9360, %v9578
      %v9591 = vadd.f32 %v9361, %v9581
      %v9592 = vld [vmem:[%s9243] sm:$0xf]
      %v9593 = vld [vmem:[%s9243 + $0x4] sm:$0x1]
      %v9594 = vld [vmem:[%s9243 + $0x8] sm:$0xf]
      %v9595 = vld [vmem:[%s9243 + $0xc] sm:$0x1]
      %v9596 = vld [vmem:[%s9243 + $0x10] sm:$0xf]
      %v9597 = vld [vmem:[%s9243 + $0x14] sm:$0x1]
      %v9598 = vld [vmem:[%s9243 + $0x18] sm:$0xf]
      %v9599 = vld [vmem:[%s9243 + $0x1c] sm:$0x1]
      %v9600 = vld [vmem:[%s9243 + $0x20] sm:$0xf]
      %v9601 = vld [vmem:[%s9243 + $0x24] sm:$0x1]
      %v9602 = vld [vmem:[%s9243 + $0x28] sm:$0xf]
      %v9603 = vld [vmem:[%s9243 + $0x2c] sm:$0x1]
      %v9604 = vld [vmem:[%s9243 + $0x30] sm:$0xf]
      %v9605 = vld [vmem:[%s9243 + $0x34] sm:$0x1]
      %v9606 = vld [vmem:[%s9243 + $0x38] sm:$0xf]
      %v9607 = vld [vmem:[%s9243 + $0x3c] sm:$0x1]
      %v9609 = vshrl.u32 %v9592, 16
      %v9611 = vrot.slane %v9609, 4
      %v9612 = vshll.u32 %v9592, 16
      %v9614 = vrot.slane %v9612, 5
      %v9615 = vor.u32 %v9611, %v9614
      %v9616 = vrot.slane %v9615, 4
      %v9618 = vshll.u32 %v9593, 16
      %v9620 = vrot.slane %v9618, 5
      %v9621 = vsel %vm493, %v9616, %v9620
      %v9623 = vshrl.u32 %v9594, 16
      %v9625 = vrot.slane %v9623, 4
      %v9626 = vshll.u32 %v9594, 16
      %v9628 = vrot.slane %v9626, 5
      %v9629 = vor.u32 %v9625, %v9628
      %v9630 = vrot.slane %v9629, 4
      %v9632 = vshll.u32 %v9595, 16
      %v9634 = vrot.slane %v9632, 5
      %v9635 = vsel %vm493, %v9630, %v9634
      %v9637 = vshrl.u32 %v9596, 16
      %v9639 = vrot.slane %v9637, 4
      %v9640 = vshll.u32 %v9596, 16
      %v9642 = vrot.slane %v9640, 5
      %v9643 = vor.u32 %v9639, %v9642
      %v9644 = vrot.slane %v9643, 4
      %v9646 = vshll.u32 %v9597, 16
      %v9648 = vrot.slane %v9646, 5
      %v9649 = vsel %vm493, %v9644, %v9648
      %v9651 = vshrl.u32 %v9598, 16
      %v9653 = vrot.slane %v9651, 4
      %v9654 = vshll.u32 %v9598, 16
      %v9656 = vrot.slane %v9654, 5
      %v9657 = vor.u32 %v9653, %v9656
      %v9658 = vrot.slane %v9657, 4
      %v9660 = vshll.u32 %v9599, 16
      %v9662 = vrot.slane %v9660, 5
      %v9663 = vsel %vm493, %v9658, %v9662
      %v9665 = vshrl.u32 %v9600, 16
      %v9667 = vrot.slane %v9665, 4
      %v9668 = vshll.u32 %v9600, 16
      %v9670 = vrot.slane %v9668, 5
      %v9671 = vor.u32 %v9667, %v9670
      %v9672 = vrot.slane %v9671, 4
      %v9674 = vshll.u32 %v9601, 16
      %v9676 = vrot.slane %v9674, 5
      %v9677 = vsel %vm493, %v9672, %v9676
      %v9679 = vshrl.u32 %v9602, 16
      %v9681 = vrot.slane %v9679, 4
      %v9682 = vshll.u32 %v9602, 16
      %v9684 = vrot.slane %v9682, 5
      %v9685 = vor.u32 %v9681, %v9684
      %v9686 = vrot.slane %v9685, 4
      %v9688 = vshll.u32 %v9603, 16
      %v9690 = vrot.slane %v9688, 5
      %v9691 = vsel %vm493, %v9686, %v9690
      %v9693 = vshrl.u32 %v9604, 16
      %v9695 = vrot.slane %v9693, 4
      %v9696 = vshll.u32 %v9604, 16
      %v9698 = vrot.slane %v9696, 5
      %v9699 = vor.u32 %v9695, %v9698
      %v9700 = vrot.slane %v9699, 4
      %v9702 = vshll.u32 %v9605, 16
      %v9704 = vrot.slane %v9702, 5
      %v9705 = vsel %vm493, %v9700, %v9704
      %v9707 = vshrl.u32 %v9606, 16
      %v9709 = vrot.slane %v9707, 4
      %v9710 = vshll.u32 %v9606, 16
      %v9712 = vrot.slane %v9710, 5
      %v9713 = vor.u32 %v9709, %v9712
      %v9714 = vrot.slane %v9713, 4
      %v9716 = vshll.u32 %v9607, 16
      %v9718 = vrot.slane %v9716, 5
      %v9719 = vsel %vm493, %v9714, %v9718
      %s9720 = scalar_lea.vmem %s3, 60
      %v9721 = vld [vmem:[%s9720] sm:$0xf]
      %v9722 = vunpack.c.l.b16 %v9621
      %v9723 = vunpack.c.l.b16 %v9635
      %v9724 = vunpack.c.l.b16 %v9649
      %v9725 = vunpack.c.l.b16 %v9663
      %v9726 = vunpack.c.l.b16 %v9677
      %v9727 = vunpack.c.l.b16 %v9691
      %v9728 = vunpack.c.l.b16 %v9705
      %v9729 = vunpack.c.l.b16 %v9719
      %v9730 = vpack.c.b16 %v9723, %v9722
      %v9731 = vpack.c.b16 %v9725, %v9724
      %v9732 = vpack.c.b16 %v9727, %v9726
      %v9733 = vpack.c.b16 %v9729, %v9728
      %v9735 = vsel %vm7090, %v9730, 0
      %v9738 = vsel %vm7090, %v9731, 0
      %v9741 = vsel %vm7090, %v9732, 0
      %v9744 = vsel %vm7090, %v9733, 0
      %v9747 = vsel %vm7103, %v9721, 0
      %9749 = vmatprep.subr.bf16.mxu0 0
      %9750 = vmatpush1.bf16.msra.mxu0 0
      %9751 = vmatprep.subr.bf16.mxu0 0
      %9752 = vmatpush1.bf16.msra.mxu0 0
      %9753 = vmatprep.subr.bf16.mxu0 0
      %9754 = vmatpush1.bf16.msra.mxu0 0
      %9755 = vmatprep.subr.bf16.mxu0 0
      %9756 = vmatpush1.bf16.msra.mxu0 0
      %9757 = vmatprep.subr.bf16.mxu0 0
      %9758 = vmatpush1.bf16.msra.mxu0 0
      %9759 = vmatprep.subr.bf16.mxu0 0
      %9760 = vmatpush1.bf16.msra.mxu0 0
      %9761 = vmatprep.subr.bf16.mxu0 0
      %9762 = vmatpush1.bf16.msra.mxu0 0
      %9763 = vmatprep.subr.bf16.mxu0 0
      %9764 = vmatpush1.bf16.msra.mxu0 %v9747
      %9765 = vmatprep.subr.bf16.mxu0 0
      %9766 = vmatpush2.bf16.msra.mxu0 0
      %9767 = vmatprep.subr.bf16.mxu0 0
      %9768 = vmatpush2.bf16.msra.mxu0 0
      %9769 = vmatprep.subr.bf16.mxu0 0
      %9770 = vmatpush2.bf16.msra.mxu0 0
      %9771 = vmatprep.subr.bf16.mxu0 0
      %9772 = vmatpush2.bf16.msra.mxu0 0
      %9773 = vmatprep.subr.bf16.mxu0 0
      %9774 = vmatpush2.bf16.msra.mxu0 0
      %9775 = vmatprep.subr.bf16.mxu0 0
      %9776 = vmatpush2.bf16.msra.mxu0 0
      %9777 = vmatprep.subr.bf16.mxu0 0
      %9778 = vmatpush2.bf16.msra.mxu0 0
      %9779 = vmatprep.subr.bf16.mxu0 0
      %9780 = vmatpush2.bf16.msra.mxu0 0
      %9781 = vmatprep.mubr.bf16.mxu0 0
      %9782 = vmatmul.mubr.bf16.gmra.mxu0 %v9735
      %v9783 = vpop.f32.mrf.mxu0
      %v9784 = vadd.f32 0.0, %v9783
      %v9785 = vpop.f32.mrf.mxu0
      %v9786 = vpop.f32.mrf.mxu0
      %v9787 = vadd.f32 0.0, %v9786
      %v9788 = vpop.f32.mrf.mxu0
      %9789 = vmatprep.mubr.bf16.mxu0 0
      %9790 = vmatmul.mubr.bf16.gmra.mxu0 %v9738
      %v9791 = vpop.f32.mrf.mxu0
      %v9792 = vadd.f32 0.0, %v9791
      %v9793 = vpop.f32.mrf.mxu0
      %v9794 = vpop.f32.mrf.mxu0
      %v9795 = vadd.f32 0.0, %v9794
      %v9796 = vpop.f32.mrf.mxu0
      %9797 = vmatprep.mubr.bf16.mxu0 0
      %9798 = vmatmul.mubr.bf16.gmra.mxu0 %v9741
      %v9799 = vpop.f32.mrf.mxu0
      %v9800 = vadd.f32 0.0, %v9799
      %v9801 = vpop.f32.mrf.mxu0
      %v9802 = vpop.f32.mrf.mxu0
      %v9803 = vadd.f32 0.0, %v9802
      %v9804 = vpop.f32.mrf.mxu0
      %9805 = vmatprep.mubr.bf16.mxu0 0
      %9806 = vmatmul.mubr.bf16.gmra.mxu0 %v9744
      %v9807 = vpop.f32.mrf.mxu0
      %v9808 = vadd.f32 0.0, %v9807
      %v9809 = vpop.f32.mrf.mxu0
      %v9810 = vpop.f32.mrf.mxu0
      %v9811 = vadd.f32 0.0, %v9810
      %v9812 = vpop.f32.mrf.mxu0
      %9813 = vdwg.mxu0
      %v9814 = vadd.f32 %v9584, %v9784
      %v9815 = vadd.f32 %v9585, %v9787
      %v9816 = vadd.f32 %v9586, %v9792
      %v9817 = vadd.f32 %v9587, %v9795
      %v9818 = vadd.f32 %v9588, %v9800
      %v9819 = vadd.f32 %v9589, %v9803
      %v9820 = vadd.f32 %v9590, %v9808
      %v9821 = vadd.f32 %v9591, %v9811
      %v9822 = vld [vmem:[%s827] sm:$0xf]
      %v9823 = vld [vmem:[%s827 + $0x8] sm:$0xf]
      %v9824 = vld [vmem:[%s827 + $0x10] sm:$0xf]
      %v9825 = vld [vmem:[%s827 + $0x18] sm:$0xf]
      %v9826 = vld [vmem:[%s827 + $0x20] sm:$0xf]
      %v9827 = vld [vmem:[%s827 + $0x28] sm:$0xf]
      %v9828 = vld [vmem:[%s827 + $0x30] sm:$0xf]
      %v9829 = vld [vmem:[%s827 + $0x38] sm:$0xf]
      %v9830 = vld [vmem:[%s4] sm:$0x3]
      %v9839 = vunpack.c.l.b16 %v9822
      %v9840 = vunpack.c.l.b16 %v9823
      %v9841 = vunpack.c.l.b16 %v9824
      %v9842 = vunpack.c.l.b16 %v9825
      %v9843 = vunpack.c.l.b16 %v9826
      %v9844 = vunpack.c.l.b16 %v9827
      %v9845 = vunpack.c.l.b16 %v9828
      %v9846 = vunpack.c.l.b16 %v9829
      %v9847 = vpack.c.b16 %v9840, %v9839
      %v9848 = vpack.c.b16 %v9842, %v9841
      %v9849 = vpack.c.b16 %v9844, %v9843
      %v9850 = vpack.c.b16 %v9846, %v9845
      %v9852 = vsel %vm293, %v9847, 0
      %v9855 = vsel %vm293, %v9848, 0
      %v9858 = vsel %vm293, %v9849, 0
      %v9861 = vsel %vm293, %v9850, 0
      %v9864 = vsel %vm306, %v9830, 0
      %9866 = vmatprep.subr.bf16.mxu0 0
      %9867 = vmatpush1.bf16.msra.mxu0 0
      %9868 = vmatprep.subr.bf16.mxu0 0
      %9869 = vmatpush1.bf16.msra.mxu0 0
      %9870 = vmatprep.subr.bf16.mxu0 0
      %9871 = vmatpush1.bf16.msra.mxu0 0
      %9872 = vmatprep.subr.bf16.mxu0 0
      %9873 = vmatpush1.bf16.msra.mxu0 0
      %9874 = vmatprep.subr.bf16.mxu0 0
      %9875 = vmatpush1.bf16.msra.mxu0 0
      %9876 = vmatprep.subr.bf16.mxu0 0
      %9877 = vmatpush1.bf16.msra.mxu0 0
      %9878 = vmatprep.subr.bf16.mxu0 0
      %9879 = vmatpush1.bf16.msra.mxu0 0
      %9880 = vmatprep.subr.bf16.mxu0 0
      %9881 = vmatpush1.bf16.msra.mxu0 %v9864
      %9882 = vmatprep.subr.bf16.mxu0 0
      %9883 = vmatpush2.bf16.msra.mxu0 0
      %9884 = vmatprep.subr.bf16.mxu0 0
      %9885 = vmatpush2.bf16.msra.mxu0 0
      %9886 = vmatprep.subr.bf16.mxu0 0
      %9887 = vmatpush2.bf16.msra.mxu0 0
      %9888 = vmatprep.subr.bf16.mxu0 0
      %9889 = vmatpush2.bf16.msra.mxu0 0
      %9890 = vmatprep.subr.bf16.mxu0 0
      %9891 = vmatpush2.bf16.msra.mxu0 0
      %9892 = vmatprep.subr.bf16.mxu0 0
      %9893 = vmatpush2.bf16.msra.mxu0 0
      %9894 = vmatprep.subr.bf16.mxu0 0
      %9895 = vmatpush2.bf16.msra.mxu0 0
      %9896 = vmatprep.subr.bf16.mxu0 0
      %9897 = vmatpush2.bf16.msra.mxu0 0
      %9898 = vmatprep.mubr.bf16.mxu0 0
      %9899 = vmatmul.mubr.bf16.gmra.mxu0 %v9852
      %v9900 = vpop.f32.mrf.mxu0
      %v9901 = vadd.f32 0.0, %v9900
      %v9902 = vpop.f32.mrf.mxu0
      %v9903 = vpop.f32.mrf.mxu0
      %v9904 = vadd.f32 0.0, %v9903
      %v9905 = vpop.f32.mrf.mxu0
      %9906 = vmatprep.mubr.bf16.mxu0 0
      %9907 = vmatmul.mubr.bf16.gmra.mxu0 %v9855
      %v9908 = vpop.f32.mrf.mxu0
      %v9909 = vadd.f32 0.0, %v9908
      %v9910 = vpop.f32.mrf.mxu0
      %v9911 = vpop.f32.mrf.mxu0
      %v9912 = vadd.f32 0.0, %v9911
      %v9913 = vpop.f32.mrf.mxu0
      %9914 = vmatprep.mubr.bf16.mxu0 0
      %9915 = vmatmul.mubr.bf16.gmra.mxu0 %v9858
      %v9916 = vpop.f32.mrf.mxu0
      %v9917 = vadd.f32 0.0, %v9916
      %v9918 = vpop.f32.mrf.mxu0
      %v9919 = vpop.f32.mrf.mxu0
      %v9920 = vadd.f32 0.0, %v9919
      %v9921 = vpop.f32.mrf.mxu0
      %9922 = vmatprep.mubr.bf16.mxu0 0
      %9923 = vmatmul.mubr.bf16.gmra.mxu0 %v9861
      %v9924 = vpop.f32.mrf.mxu0
      %v9925 = vadd.f32 0.0, %v9924
      %v9926 = vpop.f32.mrf.mxu0
      %v9927 = vpop.f32.mrf.mxu0
      %v9928 = vadd.f32 0.0, %v9927
      %v9929 = vpop.f32.mrf.mxu0
      %9930 = vdwg.mxu0
      %v9931 = vadd.f32 %v9814, %v9901
      %v9932 = vadd.f32 %v9815, %v9904
      %v9933 = vadd.f32 %v9816, %v9909
      %v9934 = vadd.f32 %v9817, %v9912
      %v9935 = vadd.f32 %v9818, %v9917
      %v9936 = vadd.f32 %v9819, %v9920
      %v9937 = vadd.f32 %v9820, %v9925
      %v9938 = vadd.f32 %v9821, %v9928
      %v9939 = vld [vmem:[%s708] sm:$0xf]
      %v9940 = vld [vmem:[%s708 + $0x4] sm:$0x1]
      %v9941 = vld [vmem:[%s708 + $0x8] sm:$0xf]
      %v9942 = vld [vmem:[%s708 + $0xc] sm:$0x1]
      %v9943 = vld [vmem:[%s708 + $0x10] sm:$0xf]
      %v9944 = vld [vmem:[%s708 + $0x14] sm:$0x1]
      %v9945 = vld [vmem:[%s708 + $0x18] sm:$0xf]
      %v9946 = vld [vmem:[%s708 + $0x1c] sm:$0x1]
      %v9947 = vld [vmem:[%s708 + $0x20] sm:$0xf]
      %v9948 = vld [vmem:[%s708 + $0x24] sm:$0x1]
      %v9949 = vld [vmem:[%s708 + $0x28] sm:$0xf]
      %v9950 = vld [vmem:[%s708 + $0x2c] sm:$0x1]
      %v9951 = vld [vmem:[%s708 + $0x30] sm:$0xf]
      %v9952 = vld [vmem:[%s708 + $0x34] sm:$0x1]
      %v9953 = vld [vmem:[%s708 + $0x38] sm:$0xf]
      %v9954 = vld [vmem:[%s708 + $0x3c] sm:$0x1]
      %v9956 = vshrl.u32 %v9939, 16
      %v9958 = vrot.slane %v9956, 4
      %v9959 = vshll.u32 %v9939, 16
      %v9961 = vrot.slane %v9959, 5
      %v9962 = vor.u32 %v9958, %v9961
      %v9963 = vrot.slane %v9962, 4
      %v9965 = vshll.u32 %v9940, 16
      %v9967 = vrot.slane %v9965, 5
      %v9968 = vsel %vm493, %v9963, %v9967
      %v9970 = vshrl.u32 %v9941, 16
      %v9972 = vrot.slane %v9970, 4
      %v9973 = vshll.u32 %v9941, 16
      %v9975 = vrot.slane %v9973, 5
      %v9976 = vor.u32 %v9972, %v9975
      %v9977 = vrot.slane %v9976, 4
      %v9979 = vshll.u32 %v9942, 16
      %v9981 = vrot.slane %v9979, 5
      %v9982 = vsel %vm493, %v9977, %v9981
      %v9984 = vshrl.u32 %v9943, 16
      %v9986 = vrot.slane %v9984, 4
      %v9987 = vshll.u32 %v9943, 16
      %v9989 = vrot.slane %v9987, 5
      %v9990 = vor.u32 %v9986, %v9989
      %v9991 = vrot.slane %v9990, 4
      %v9993 = vshll.u32 %v9944, 16
      %v9995 = vrot.slane %v9993, 5
      %v9996 = vsel %vm493, %v9991, %v9995
      %v9998 = vshrl.u32 %v9945, 16
      %v10000 = vrot.slane %v9998, 4
      %v10001 = vshll.u32 %v9945, 16
      %v10003 = vrot.slane %v10001, 5
      %v10004 = vor.u32 %v10000, %v10003
      %v10005 = vrot.slane %v10004, 4
      %v10007 = vshll.u32 %v9946, 16
      %v10009 = vrot.slane %v10007, 5
      %v10010 = vsel %vm493, %v10005, %v10009
      %v10012 = vshrl.u32 %v9947, 16
      %v10014 = vrot.slane %v10012, 4
      %v10015 = vshll.u32 %v9947, 16
      %v10017 = vrot.slane %v10015, 5
      %v10018 = vor.u32 %v10014, %v10017
      %v10019 = vrot.slane %v10018, 4
      %v10021 = vshll.u32 %v9948, 16
      %v10023 = vrot.slane %v10021, 5
      %v10024 = vsel %vm493, %v10019, %v10023
      %v10026 = vshrl.u32 %v9949, 16
      %v10028 = vrot.slane %v10026, 4
      %v10029 = vshll.u32 %v9949, 16
      %v10031 = vrot.slane %v10029, 5
      %v10032 = vor.u32 %v10028, %v10031
      %v10033 = vrot.slane %v10032, 4
      %v10035 = vshll.u32 %v9950, 16
      %v10037 = vrot.slane %v10035, 5
      %v10038 = vsel %vm493, %v10033, %v10037
      %v10040 = vshrl.u32 %v9951, 16
      %v10042 = vrot.slane %v10040, 4
      %v10043 = vshll.u32 %v9951, 16
      %v10045 = vrot.slane %v10043, 5
      %v10046 = vor.u32 %v10042, %v10045
      %v10047 = vrot.slane %v10046, 4
      %v10049 = vshll.u32 %v9952, 16
      %v10051 = vrot.slane %v10049, 5
      %v10052 = vsel %vm493, %v10047, %v10051
      %v10054 = vshrl.u32 %v9953, 16
      %v10056 = vrot.slane %v10054, 4
      %v10057 = vshll.u32 %v9953, 16
      %v10059 = vrot.slane %v10057, 5
      %v10060 = vor.u32 %v10056, %v10059
      %v10061 = vrot.slane %v10060, 4
      %v10063 = vshll.u32 %v9954, 16
      %v10065 = vrot.slane %v10063, 5
      %v10066 = vsel %vm493, %v10061, %v10065
      %v10067 = vunpack.c.l.b16 %v9968
      %v10068 = vunpack.c.l.b16 %v9982
      %v10069 = vunpack.c.l.b16 %v9996
      %v10070 = vunpack.c.l.b16 %v10010
      %v10071 = vunpack.c.l.b16 %v10024
      %v10072 = vunpack.c.l.b16 %v10038
      %v10073 = vunpack.c.l.b16 %v10052
      %v10074 = vunpack.c.l.b16 %v10066
      %v10075 = vpack.c.b16 %v10068, %v10067
      %v10076 = vpack.c.b16 %v10070, %v10069
      %v10077 = vpack.c.b16 %v10072, %v10071
      %v10078 = vpack.c.b16 %v10074, %v10073
      %v10080 = vsel %vm293, %v10075, 0
      %v10083 = vsel %vm293, %v10076, 0
      %v10086 = vsel %vm293, %v10077, 0
      %v10089 = vsel %vm293, %v10078, 0
      %10091 = vmatprep.subr.bf16.mxu0 0
      %10092 = vmatpush1.bf16.msra.mxu0 0
      %10093 = vmatprep.subr.bf16.mxu0 0
      %10094 = vmatpush1.bf16.msra.mxu0 0
      %10095 = vmatprep.subr.bf16.mxu0 0
      %10096 = vmatpush1.bf16.msra.mxu0 0
      %10097 = vmatprep.subr.bf16.mxu0 0
      %10098 = vmatpush1.bf16.msra.mxu0 0
      %10099 = vmatprep.subr.bf16.mxu0 0
      %10100 = vmatpush1.bf16.msra.mxu0 0
      %10101 = vmatprep.subr.bf16.mxu0 0
      %10102 = vmatpush1.bf16.msra.mxu0 0
      %10103 = vmatprep.subr.bf16.mxu0 0
      %10104 = vmatpush1.bf16.msra.mxu0 0
      %10105 = vmatprep.subr.bf16.mxu0 0
      %10106 = vmatpush1.bf16.msra.mxu0 %v9864
      %10107 = vmatprep.subr.bf16.mxu0 0
      %10108 = vmatpush2.bf16.msra.mxu0 0
      %10109 = vmatprep.subr.bf16.mxu0 0
      %10110 = vmatpush2.bf16.msra.mxu0 0
      %10111 = vmatprep.subr.bf16.mxu0 0
      %10112 = vmatpush2.bf16.msra.mxu0 0
      %10113 = vmatprep.subr.bf16.mxu0 0
      %10114 = vmatpush2.bf16.msra.mxu0 0
      %10115 = vmatprep.subr.bf16.mxu0 0
      %10116 = vmatpush2.bf16.msra.mxu0 0
      %10117 = vmatprep.subr.bf16.mxu0 0
      %10118 = vmatpush2.bf16.msra.mxu0 0
      %10119 = vmatprep.subr.bf16.mxu0 0
      %10120 = vmatpush2.bf16.msra.mxu0 0
      %10121 = vmatprep.subr.bf16.mxu0 0
      %10122 = vmatpush2.bf16.msra.mxu0 0
      %10123 = vmatprep.mubr.bf16.mxu0 0
      %10124 = vmatmul.mubr.bf16.gmra.mxu0 %v10080
      %v10125 = vpop.f32.mrf.mxu0
      %v10126 = vadd.f32 0.0, %v10125
      %v10127 = vpop.f32.mrf.mxu0
      %v10128 = vpop.f32.mrf.mxu0
      %v10129 = vadd.f32 0.0, %v10128
      %v10130 = vpop.f32.mrf.mxu0
      %10131 = vmatprep.mubr.bf16.mxu0 0
      %10132 = vmatmul.mubr.bf16.gmra.mxu0 %v10083
      %v10133 = vpop.f32.mrf.mxu0
      %v10134 = vadd.f32 0.0, %v10133
      %v10135 = vpop.f32.mrf.mxu0
      %v10136 = vpop.f32.mrf.mxu0
      %v10137 = vadd.f32 0.0, %v10136
      %v10138 = vpop.f32.mrf.mxu0
      %10139 = vmatprep.mubr.bf16.mxu0 0
      %10140 = vmatmul.mubr.bf16.gmra.mxu0 %v10086
      %v10141 = vpop.f32.mrf.mxu0
      %v10142 = vadd.f32 0.0, %v10141
      %v10143 = vpop.f32.mrf.mxu0
      %v10144 = vpop.f32.mrf.mxu0
      %v10145 = vadd.f32 0.0, %v10144
      %v10146 = vpop.f32.mrf.mxu0
      %10147 = vmatprep.mubr.bf16.mxu0 0
      %10148 = vmatmul.mubr.bf16.gmra.mxu0 %v10089
      %v10149 = vpop.f32.mrf.mxu0
      %v10150 = vadd.f32 0.0, %v10149
      %v10151 = vpop.f32.mrf.mxu0
      %v10152 = vpop.f32.mrf.mxu0
      %v10153 = vadd.f32 0.0, %v10152
      %v10154 = vpop.f32.mrf.mxu0
      %10155 = vdwg.mxu0
      %v10156 = vadd.f32 %v9931, %v10126
      %v10157 = vadd.f32 %v9932, %v10129
      %v10158 = vadd.f32 %v9933, %v10134
      %v10159 = vadd.f32 %v9934, %v10137
      %v10160 = vadd.f32 %v9935, %v10142
      %v10161 = vadd.f32 %v9936, %v10145
      %v10162 = vadd.f32 %v9937, %v10150
      %v10163 = vadd.f32 %v9938, %v10153
      %v10164 = vld [vmem:[%s1295] sm:$0xf]
      %v10165 = vld [vmem:[%s1295 + $0x8] sm:$0xf]
      %v10166 = vld [vmem:[%s1295 + $0x10] sm:$0xf]
      %v10167 = vld [vmem:[%s1295 + $0x18] sm:$0xf]
      %v10168 = vld [vmem:[%s1295 + $0x20] sm:$0xf]
      %v10169 = vld [vmem:[%s1295 + $0x28] sm:$0xf]
      %v10170 = vld [vmem:[%s1295 + $0x30] sm:$0xf]
      %v10171 = vld [vmem:[%s1295 + $0x38] sm:$0xf]
      %v10180 = vunpack.c.l.b16 %v10164
      %v10181 = vunpack.c.l.b16 %v10165
      %v10182 = vunpack.c.l.b16 %v10166
      %v10183 = vunpack.c.l.b16 %v10167
      %v10184 = vunpack.c.l.b16 %v10168
      %v10185 = vunpack.c.l.b16 %v10169
      %v10186 = vunpack.c.l.b16 %v10170
      %v10187 = vunpack.c.l.b16 %v10171
      %v10188 = vpack.c.b16 %v10181, %v10180
      %v10189 = vpack.c.b16 %v10183, %v10182
      %v10190 = vpack.c.b16 %v10185, %v10184
      %v10191 = vpack.c.b16 %v10187, %v10186
      %v10193 = vsel %vm293, %v10188, 0
      %v10196 = vsel %vm293, %v10189, 0
      %v10199 = vsel %vm293, %v10190, 0
      %v10202 = vsel %vm293, %v10191, 0
      %10204 = vmatprep.subr.bf16.mxu0 0
      %10205 = vmatpush1.bf16.msra.mxu0 0
      %10206 = vmatprep.subr.bf16.mxu0 0
      %10207 = vmatpush1.bf16.msra.mxu0 0
      %10208 = vmatprep.subr.bf16.mxu0 0
      %10209 = vmatpush1.bf16.msra.mxu0 0
      %10210 = vmatprep.subr.bf16.mxu0 0
      %10211 = vmatpush1.bf16.msra.mxu0 0
      %10212 = vmatprep.subr.bf16.mxu0 0
      %10213 = vmatpush1.bf16.msra.mxu0 0
      %10214 = vmatprep.subr.bf16.mxu0 0
      %10215 = vmatpush1.bf16.msra.mxu0 0
      %10216 = vmatprep.subr.bf16.mxu0 0
      %10217 = vmatpush1.bf16.msra.mxu0 0
      %10218 = vmatprep.subr.bf16.mxu0 0
      %10219 = vmatpush1.bf16.msra.mxu0 %v9864
      %10220 = vmatprep.subr.bf16.mxu0 0
      %10221 = vmatpush2.bf16.msra.mxu0 0
      %10222 = vmatprep.subr.bf16.mxu0 0
      %10223 = vmatpush2.bf16.msra.mxu0 0
      %10224 = vmatprep.subr.bf16.mxu0 0
      %10225 = vmatpush2.bf16.msra.mxu0 0
      %10226 = vmatprep.subr.bf16.mxu0 0
      %10227 = vmatpush2.bf16.msra.mxu0 0
      %10228 = vmatprep.subr.bf16.mxu0 0
      %10229 = vmatpush2.bf16.msra.mxu0 0
      %10230 = vmatprep.subr.bf16.mxu0 0
      %10231 = vmatpush2.bf16.msra.mxu0 0
      %10232 = vmatprep.subr.bf16.mxu0 0
      %10233 = vmatpush2.bf16.msra.mxu0 0
      %10234 = vmatprep.subr.bf16.mxu0 0
      %10235 = vmatpush2.bf16.msra.mxu0 0
      %10236 = vmatprep.mubr.bf16.mxu0 0
      %10237 = vmatmul.mubr.bf16.gmra.mxu0 %v10193
      %v10238 = vpop.f32.mrf.mxu0
      %v10239 = vadd.f32 0.0, %v10238
      %v10240 = vpop.f32.mrf.mxu0
      %v10241 = vpop.f32.mrf.mxu0
      %v10242 = vadd.f32 0.0, %v10241
      %v10243 = vpop.f32.mrf.mxu0
      %10244 = vmatprep.mubr.bf16.mxu0 0
      %10245 = vmatmul.mubr.bf16.gmra.mxu0 %v10196
      %v10246 = vpop.f32.mrf.mxu0
      %v10247 = vadd.f32 0.0, %v10246
      %v10248 = vpop.f32.mrf.mxu0
      %v10249 = vpop.f32.mrf.mxu0
      %v10250 = vadd.f32 0.0, %v10249
      %v10251 = vpop.f32.mrf.mxu0
      %10252 = vmatprep.mubr.bf16.mxu0 0
      %10253 = vmatmul.mubr.bf16.gmra.mxu0 %v10199
      %v10254 = vpop.f32.mrf.mxu0
      %v10255 = vadd.f32 0.0, %v10254
      %v10256 = vpop.f32.mrf.mxu0
      %v10257 = vpop.f32.mrf.mxu0
      %v10258 = vadd.f32 0.0, %v10257
      %v10259 = vpop.f32.mrf.mxu0
      %10260 = vmatprep.mubr.bf16.mxu0 0
      %10261 = vmatmul.mubr.bf16.gmra.mxu0 %v10202
      %v10262 = vpop.f32.mrf.mxu0
      %v10263 = vadd.f32 0.0, %v10262
      %v10264 = vpop.f32.mrf.mxu0
      %v10265 = vpop.f32.mrf.mxu0
      %v10266 = vadd.f32 0.0, %v10265
      %v10267 = vpop.f32.mrf.mxu0
      %10268 = vdwg.mxu0
      %v10269 = vadd.f32 %v10156, %v10239
      %v10270 = vadd.f32 %v10157, %v10242
      %v10271 = vadd.f32 %v10158, %v10247
      %v10272 = vadd.f32 %v10159, %v10250
      %v10273 = vadd.f32 %v10160, %v10255
      %v10274 = vadd.f32 %v10161, %v10258
      %v10275 = vadd.f32 %v10162, %v10263
      %v10276 = vadd.f32 %v10163, %v10266
      %v10277 = vld [vmem:[%s1176] sm:$0xf]
      %v10278 = vld [vmem:[%s1176 + $0x4] sm:$0x1]
      %v10279 = vld [vmem:[%s1176 + $0x8] sm:$0xf]
      %v10280 = vld [vmem:[%s1176 + $0xc] sm:$0x1]
      %v10281 = vld [vmem:[%s1176 + $0x10] sm:$0xf]
      %v10282 = vld [vmem:[%s1176 + $0x14] sm:$0x1]
      %v10283 = vld [vmem:[%s1176 + $0x18] sm:$0xf]
      %v10284 = vld [vmem:[%s1176 + $0x1c] sm:$0x1]
      %v10285 = vld [vmem:[%s1176 + $0x20] sm:$0xf]
      %v10286 = vld [vmem:[%s1176 + $0x24] sm:$0x1]
      %v10287 = vld [vmem:[%s1176 + $0x28] sm:$0xf]
      %v10288 = vld [vmem:[%s1176 + $0x2c] sm:$0x1]
      %v10289 = vld [vmem:[%s1176 + $0x30] sm:$0xf]
      %v10290 = vld [vmem:[%s1176 + $0x34] sm:$0x1]
      %v10291 = vld [vmem:[%s1176 + $0x38] sm:$0xf]
      %v10292 = vld [vmem:[%s1176 + $0x3c] sm:$0x1]
      %v10294 = vshrl.u32 %v10277, 16
      %v10296 = vrot.slane %v10294, 4
      %v10297 = vshll.u32 %v10277, 16
      %v10299 = vrot.slane %v10297, 5
      %v10300 = vor.u32 %v10296, %v10299
      %v10301 = vrot.slane %v10300, 4
      %v10303 = vshll.u32 %v10278, 16
      %v10305 = vrot.slane %v10303, 5
      %v10306 = vsel %vm493, %v10301, %v10305
      %v10308 = vshrl.u32 %v10279, 16
      %v10310 = vrot.slane %v10308, 4
      %v10311 = vshll.u32 %v10279, 16
      %v10313 = vrot.slane %v10311, 5
      %v10314 = vor.u32 %v10310, %v10313
      %v10315 = vrot.slane %v10314, 4
      %v10317 = vshll.u32 %v10280, 16
      %v10319 = vrot.slane %v10317, 5
      %v10320 = vsel %vm493, %v10315, %v10319
      %v10322 = vshrl.u32 %v10281, 16
      %v10324 = vrot.slane %v10322, 4
      %v10325 = vshll.u32 %v10281, 16
      %v10327 = vrot.slane %v10325, 5
      %v10328 = vor.u32 %v10324, %v10327
      %v10329 = vrot.slane %v10328, 4
      %v10331 = vshll.u32 %v10282, 16
      %v10333 = vrot.slane %v10331, 5
      %v10334 = vsel %vm493, %v10329, %v10333
      %v10336 = vshrl.u32 %v10283, 16
      %v10338 = vrot.slane %v10336, 4
      %v10339 = vshll.u32 %v10283, 16
      %v10341 = vrot.slane %v10339, 5
      %v10342 = vor.u32 %v10338, %v10341
      %v10343 = vrot.slane %v10342, 4
      %v10345 = vshll.u32 %v10284, 16
      %v10347 = vrot.slane %v10345, 5
      %v10348 = vsel %vm493, %v10343, %v10347
      %v10350 = vshrl.u32 %v10285, 16
      %v10352 = vrot.slane %v10350, 4
      %v10353 = vshll.u32 %v10285, 16
      %v10355 = vrot.slane %v10353, 5
      %v10356 = vor.u32 %v10352, %v10355
      %v10357 = vrot.slane %v10356, 4
      %v10359 = vshll.u32 %v10286, 16
      %v10361 = vrot.slane %v10359, 5
      %v10362 = vsel %vm493, %v10357, %v10361
      %v10364 = vshrl.u32 %v10287, 16
      %v10366 = vrot.slane %v10364, 4
      %v10367 = vshll.u32 %v10287, 16
      %v10369 = vrot.slane %v10367, 5
      %v10370 = vor.u32 %v10366, %v10369
      %v10371 = vrot.slane %v10370, 4
      %v10373 = vshll.u32 %v10288, 16
      %v10375 = vrot.slane %v10373, 5
      %v10376 = vsel %vm493, %v10371, %v10375
      %v10378 = vshrl.u32 %v10289, 16
      %v10380 = vrot.slane %v10378, 4
      %v10381 = vshll.u32 %v10289, 16
      %v10383 = vrot.slane %v10381, 5
      %v10384 = vor.u32 %v10380, %v10383
      %v10385 = vrot.slane %v10384, 4
      %v10387 = vshll.u32 %v10290, 16
      %v10389 = vrot.slane %v10387, 5
      %v10390 = vsel %vm493, %v10385, %v10389
      %v10392 = vshrl.u32 %v10291, 16
      %v10394 = vrot.slane %v10392, 4
      %v10395 = vshll.u32 %v10291, 16
      %v10397 = vrot.slane %v10395, 5
      %v10398 = vor.u32 %v10394, %v10397
      %v10399 = vrot.slane %v10398, 4
      %v10401 = vshll.u32 %v10292, 16
      %v10403 = vrot.slane %v10401, 5
      %v10404 = vsel %vm493, %v10399, %v10403
      %v10405 = vunpack.c.l.b16 %v10306
      %v10406 = vunpack.c.l.b16 %v10320
      %v10407 = vunpack.c.l.b16 %v10334
      %v10408 = vunpack.c.l.b16 %v10348
      %v10409 = vunpack.c.l.b16 %v10362
      %v10410 = vunpack.c.l.b16 %v10376
      %v10411 = vunpack.c.l.b16 %v10390
      %v10412 = vunpack.c.l.b16 %v10404
      %v10413 = vpack.c.b16 %v10406, %v10405
      %v10414 = vpack.c.b16 %v10408, %v10407
      %v10415 = vpack.c.b16 %v10410, %v10409
      %v10416 = vpack.c.b16 %v10412, %v10411
      %v10418 = vsel %vm293, %v10413, 0
      %v10421 = vsel %vm293, %v10414, 0
      %v10424 = vsel %vm293, %v10415, 0
      %v10427 = vsel %vm293, %v10416, 0
      %10429 = vmatprep.subr.bf16.mxu0 0
      %10430 = vmatpush1.bf16.msra.mxu0 0
      %10431 = vmatprep.subr.bf16.mxu0 0
      %10432 = vmatpush1.bf16.msra.mxu0 0
      %10433 = vmatprep.subr.bf16.mxu0 0
      %10434 = vmatpush1.bf16.msra.mxu0 0
      %10435 = vmatprep.subr.bf16.mxu0 0
      %10436 = vmatpush1.bf16.msra.mxu0 0
      %10437 = vmatprep.subr.bf16.mxu0 0
      %10438 = vmatpush1.bf16.msra.mxu0 0
      %10439 = vmatprep.subr.bf16.mxu0 0
      %10440 = vmatpush1.bf16.msra.mxu0 0
      %10441 = vmatprep.subr.bf16.mxu0 0
      %10442 = vmatpush1.bf16.msra.mxu0 0
      %10443 = vmatprep.subr.bf16.mxu0 0
      %10444 = vmatpush1.bf16.msra.mxu0 %v9864
      %10445 = vmatprep.subr.bf16.mxu0 0
      %10446 = vmatpush2.bf16.msra.mxu0 0
      %10447 = vmatprep.subr.bf16.mxu0 0
      %10448 = vmatpush2.bf16.msra.mxu0 0
      %10449 = vmatprep.subr.bf16.mxu0 0
      %10450 = vmatpush2.bf16.msra.mxu0 0
      %10451 = vmatprep.subr.bf16.mxu0 0
      %10452 = vmatpush2.bf16.msra.mxu0 0
      %10453 = vmatprep.subr.bf16.mxu0 0
      %10454 = vmatpush2.bf16.msra.mxu0 0
      %10455 = vmatprep.subr.bf16.mxu0 0
      %10456 = vmatpush2.bf16.msra.mxu0 0
      %10457 = vmatprep.subr.bf16.mxu0 0
      %10458 = vmatpush2.bf16.msra.mxu0 0
      %10459 = vmatprep.subr.bf16.mxu0 0
      %10460 = vmatpush2.bf16.msra.mxu0 0
      %10461 = vmatprep.mubr.bf16.mxu0 0
      %10462 = vmatmul.mubr.bf16.gmra.mxu0 %v10418
      %v10463 = vpop.f32.mrf.mxu0
      %v10464 = vadd.f32 0.0, %v10463
      %v10465 = vpop.f32.mrf.mxu0
      %v10466 = vpop.f32.mrf.mxu0
      %v10467 = vadd.f32 0.0, %v10466
      %v10468 = vpop.f32.mrf.mxu0
      %10469 = vmatprep.mubr.bf16.mxu0 0
      %10470 = vmatmul.mubr.bf16.gmra.mxu0 %v10421
      %v10471 = vpop.f32.mrf.mxu0
      %v10472 = vadd.f32 0.0, %v10471
      %v10473 = vpop.f32.mrf.mxu0
      %v10474 = vpop.f32.mrf.mxu0
      %v10475 = vadd.f32 0.0, %v10474
      %v10476 = vpop.f32.mrf.mxu0
      %10477 = vmatprep.mubr.bf16.mxu0 0
      %10478 = vmatmul.mubr.bf16.gmra.mxu0 %v10424
      %v10479 = vpop.f32.mrf.mxu0
      %v10480 = vadd.f32 0.0, %v10479
      %v10481 = vpop.f32.mrf.mxu0
      %v10482 = vpop.f32.mrf.mxu0
      %v10483 = vadd.f32 0.0, %v10482
      %v10484 = vpop.f32.mrf.mxu0
      %10485 = vmatprep.mubr.bf16.mxu0 0
      %10486 = vmatmul.mubr.bf16.gmra.mxu0 %v10427
      %v10487 = vpop.f32.mrf.mxu0
      %v10488 = vadd.f32 0.0, %v10487
      %v10489 = vpop.f32.mrf.mxu0
      %v10490 = vpop.f32.mrf.mxu0
      %v10491 = vadd.f32 0.0, %v10490
      %v10492 = vpop.f32.mrf.mxu0
      %10493 = vdwg.mxu0
      %v10494 = vadd.f32 %v10269, %v10464
      %v10495 = vadd.f32 %v10270, %v10467
      %v10496 = vadd.f32 %v10271, %v10472
      %v10497 = vadd.f32 %v10272, %v10475
      %v10498 = vadd.f32 %v10273, %v10480
      %v10499 = vadd.f32 %v10274, %v10483
      %v10500 = vadd.f32 %v10275, %v10488
      %v10501 = vadd.f32 %v10276, %v10491
      %v10502 = vld [vmem:[%s5] sm:$0x1]
      %v10504 = vlaneseq
      %v10505 = vshrl.u32 %v10504, 7
      %v10506 = vsub.s32 0, %v10505
      %v10507 = vrot.slane %v10502, %v10506
      %v10509 = vadd.f32 %v10494, %v10507
      %v10510 = vadd.f32 %v10495, %v10507
      %v10511 = vadd.f32 %v10496, %v10507
      %v10512 = vadd.f32 %v10497, %v10507
      %v10513 = vadd.f32 %v10498, %v10507
      %v10514 = vadd.f32 %v10499, %v10507
      %v10515 = vadd.f32 %v10500, %v10507
      %v10516 = vadd.f32 %v10501, %v10507
      %10517 = vst.msk [vmem:[%s251] sm:$0xff] %vm7090, %v10509
      %10518 = vst.msk [vmem:[%s251 + $0x8] sm:$0xff] %vm7090, %v10510
      %10519 = vst.msk [vmem:[%s251 + $0x10] sm:$0xff] %vm7090, %v10511
      %10520 = vst.msk [vmem:[%s251 + $0x18] sm:$0xff] %vm7090, %v10512
      %10521 = vst.msk [vmem:[%s251 + $0x20] sm:$0xff] %vm7090, %v10513
      %10522 = vst.msk [vmem:[%s251 + $0x28] sm:$0xff] %vm7090, %v10514
      %10523 = vst.msk [vmem:[%s251 + $0x30] sm:$0xff] %vm7090, %v10515
      %10524 = vst.msk [vmem:[%s251 + $0x38] sm:$0xff] %vm7090, %v10516
      %p10525 = scmp.lt.s32.totalorder %s17, 1
      %s10526 = scalar_select %p10525, %s17, 1
      %s10527 = smul.addr %s10526, 8
      %s10528 = smul.addr %s10527, 8
      %s10529 = scalar_lea.vmem %s6, %s10528
      // Predicated region
      $region45: #{tpu_custom_call.1} parent=43 // pred_check
        %p10530 = pneg %p166
      $region46: #{tpu_custom_call.1} parent=43 // pred_check_branch
        %10532 = sbr.rel (%p10530) target = $region48
      $region47: #{tpu_custom_call.1} parent=43 // pred_region
        _
      $region48: #{tpu_custom_call.1} parent=43 // pred_fallthru
        _
    $region44: #{tpu_custom_call.1} parent=5 // pred_fallthru
      _
    %p10533 = scmp.le.s32.totalorder 2, %s12
    // Predicated region
    $region49: #{tpu_custom_call.1} parent=5 // pred_check
      %p10534 = pneg %p10533
    $region50: #{tpu_custom_call.1} parent=5 // pred_check_branch
      %10536 = sbr.rel (%p10534) target = $region52
    $region51: #{tpu_custom_call.1} parent=5 // pred_region
      %s10537 = ssub.s32 %s12, 2
      // Predicated region
      $region53: #{tpu_custom_call.1} parent=51 // pred_check
        %p10538 = pneg %p172
      $region54: #{tpu_custom_call.1} parent=51 // pred_check_branch
        %10540 = sbr.rel (%p10538) target = $region56
      $region55: #{tpu_custom_call.1} parent=51 // pred_region
        %p10541 = scmp.lt.s32.totalorder %s18, 1
        %s10542 = scalar_select %p10541, %s18, 1
        %s10543 = smul.addr %s10542, 8
        %s10544 = smul.addr %s10543, 8
        %s10545 = scalar_lea.vmem %s6, %s10544
      $region56: #{tpu_custom_call.1} parent=51 // pred_fallthru
        _
    $region52: #{tpu_custom_call.1} parent=5 // pred_fallthru
      _
  $region6: #{tpu_custom_call.1} parent=0 // loop_footer
    %s16 = sadd.s32 1, %s12
  $region7: #{tpu_custom_call.1} parent=0 // loop_footer_branch
    %11 = sbr.rel target = $region3
  $region8: #{tpu_custom_call.1} parent=0 // loop_exit
    _

</llo_original>
